<compile_context>
chip_gen: v7x
topology: tpu7x:2x2x1
jax: 0.10.0
libtpu: 0.0.40
codegen_flags: <defaults>
</compile_context>

<pallas_src>
import functools

import jax
import jax.numpy as jnp
from jax import lax
from jax.experimental import pallas as pl
from jax.experimental.pallas import tpu as pltpu


def _gelu_exact(x):
    """GELU(x) = 0.5*x*(1+erf(x/sqrt(2))) with erf via Abramowitz&Stegun 7.1.26.

    Max |erf error| ~1.5e-7 -> matches PyTorch nn.GELU() (exact/erf form) to
    float32 precision, using only exp/mul/add (always lowerable in Mosaic).
    """
    a1, a2, a3, a4, a5 = 0.254829592, -0.284496736, 1.421413741, -1.453152027, 1.061405429
    p = 0.3275911
    z = x * 0.7071067811865476  # x / sqrt(2)
    az = jnp.abs(z)
    t = 1.0 / (1.0 + p * az)
    poly = ((((a5 * t + a4) * t + a3) * t + a2) * t + a1) * t
    erf_abs = 1.0 - poly * jnp.exp(-az * az)
    erf_z = jnp.where(z >= 0, erf_abs, -erf_abs)
    return 0.5 * x * (1.0 + erf_z)


def _transformer_block_kernel(
    x_ref,                       # (1, N, C)   input tokens (read only at depth step 0)
    ln1w_ref, ln1b_ref,          # (1, 1, C)
    wq_ref, bq_ref,              # (1, C, C), (1, 1, C)
    wkv_ref, bkv_ref,            # (1, C, 2C), (1, 1, 2C)
    wo_ref, bo_ref,              # (1, C, C), (1, 1, C)
    ln2w_ref, ln2b_ref,          # (1, 1, C)
    w1_ref, b1_ref,              # (1, C, Hd), (1, 1, Hd)
    w2_ref, b2_ref,              # (1, Hd, C), (1, 1, C)
    o_ref,                       # (1, N, C)   tokens, resident across the depth axis
    *, num_heads, scale, eps):
    # At the first transformer block, seed the resident output tile with x.
    @pl.when(pl.program_id(1) == 0)
    def _():
        o_ref[...] = x_ref[...]

    x = o_ref[0].astype(jnp.float32)            # (N, C)
    N, C = x.shape
    hd = C // num_heads

    def layer_norm(v, w_ref_, b_ref_):
        w = w_ref_[0].astype(jnp.float32)       # (1, C)
        b = b_ref_[0].astype(jnp.float32)
        mu = jnp.mean(v, axis=-1, keepdims=True)
        var = jnp.mean((v - mu) * (v - mu), axis=-1, keepdims=True)
        return (v - mu) * lax.rsqrt(var + eps) * w + b

    # ---------------- Attention branch ----------------
    y = layer_norm(x, ln1w_ref, ln1b_ref)
    q = jnp.dot(y, wq_ref[0], preferred_element_type=jnp.float32) + bq_ref[0]
    kv = jnp.dot(y, wkv_ref[0], preferred_element_type=jnp.float32) + bkv_ref[0]
    k = kv[:, :C]
    v = kv[:, C:]
    q = q * scale

    attn_proj = jnp.zeros((N, C), jnp.float32)
    for h in range(num_heads):                  # small, static unroll over heads
        sl = slice(h * hd, (h + 1) * hd)
        qh = q[:, sl]                           # (N, hd)
        kh = k[:, sl]
        vh = v[:, sl]
        # scores = qh @ kh^T  (contract on head_dim)
        s = lax.dot_general(qh, kh, (((1,), (1,)), ((), ())),
                            preferred_element_type=jnp.float32)   # (N, N)
        s = s - jnp.max(s, axis=-1, keepdims=True)
        p = jnp.exp(s)
        p = p / jnp.sum(p, axis=-1, keepdims=True)
        oh = jnp.dot(p, vh, preferred_element_type=jnp.float32)   # (N, hd)
        # Fold this head's output straight into the output projection
        # (avoids concatenating heads / lane relayout).
        attn_proj = attn_proj + jnp.dot(oh, wo_ref[0, sl, :],
                                        preferred_element_type=jnp.float32)
    x = x + attn_proj + bo_ref[0]

    # ---------------- MLP branch ----------------
    y2 = layer_norm(x, ln2w_ref, ln2b_ref)
    h1 = jnp.dot(y2, w1_ref[0], preferred_element_type=jnp.float32) + b1_ref[0]
    h1 = _gelu_exact(h1)
    h2 = jnp.dot(h1, w2_ref[0], preferred_element_type=jnp.float32) + b2_ref[0]
    x = x + h2

    o_ref[0] = x.astype(o_ref.dtype)


def basic_smnet_layer(x, params, *, num_heads, eps=1e-5):
    """Forward pass of BaisicSMNetLayer (depth TransformerBlocks), eval mode.

    x      : (B, N, C) tokens
    params : dict of depth-stacked weights (see __main__ for shapes)
    returns: (B, N, C)
    """
    B, N, C = x.shape
    depth = params["wq"].shape[0]
    Hd = params["w1"].shape[-1]
    hd = C // num_heads
    scale = hd ** -0.5

    def v2(a):  # (depth, D) -> (depth, 1, D) so block = (1, 1, D) is TPU-layout clean
        return a.reshape(depth, 1, a.shape[-1])

    kernel = functools.partial(_transformer_block_kernel,
                               num_heads=num_heads, scale=scale, eps=eps)

    xmap = lambda b, d: (b, 0, 0)   # token tile: follows batch, resident across depth
    wmap = lambda b, d: (d, 0, 0)   # per-block weights: follow depth

    in_specs = [
        pl.BlockSpec((1, N, C), xmap),           # x
        pl.BlockSpec((1, 1, C), wmap),           # ln1 weight
        pl.BlockSpec((1, 1, C), wmap),           # ln1 bias
        pl.BlockSpec((1, C, C), wmap),           # Wq
        pl.BlockSpec((1, 1, C), wmap),           # bq
        pl.BlockSpec((1, C, 2 * C), wmap),       # Wkv
        pl.BlockSpec((1, 1, 2 * C), wmap),       # bkv
        pl.BlockSpec((1, C, C), wmap),           # Wo (attn output proj)
        pl.BlockSpec((1, 1, C), wmap),           # bo
        pl.BlockSpec((1, 1, C), wmap),           # ln2 weight
        pl.BlockSpec((1, 1, C), wmap),           # ln2 bias
        pl.BlockSpec((1, C, Hd), wmap),          # W1 (mlp fc1)
        pl.BlockSpec((1, 1, Hd), wmap),          # b1
        pl.BlockSpec((1, Hd, C), wmap),          # W2 (mlp fc2)
        pl.BlockSpec((1, 1, C), wmap),           # b2
    ]

    out = pl.pallas_call(
        kernel,
        out_shape=jax.ShapeDtypeStruct((B, N, C), x.dtype),
        grid=(B, depth),
        in_specs=in_specs,
        out_specs=pl.BlockSpec((1, N, C), xmap),
        compiler_params=pltpu.CompilerParams(
            dimension_semantics=("parallel", "arbitrary")),
    )(
        x,
        v2(params["ln1_w"]), v2(params["ln1_b"]),
        params["wq"], v2(params["bq"]),
        params["wkv"], v2(params["bkv"]),
        params["wo"], v2(params["bo"]),
        v2(params["ln2_w"]), v2(params["ln2_b"]),
        params["w1"], v2(params["b1"]),
        params["w2"], v2(params["b2"]),
    )
    return out


def _reference(x, params, *, num_heads, eps=1e-5):
    """Plain-JAX reference mirroring the PyTorch forward (exact f32 matmuls)."""
    B, N, C = x.shape
    depth = params["wq"].shape[0]
    hd = C // num_heads
    scale = hd ** -0.5

    def mm(a, b):
        return jnp.matmul(a, b, precision=jax.lax.Precision.HIGHEST)

    def ln(v, w, b):
        mu = jnp.mean(v, axis=-1, keepdims=True)
        var = jnp.mean((v - mu) ** 2, axis=-1, keepdims=True)
        return (v - mu) / jnp.sqrt(var + eps) * w + b

    for d in range(depth):
        # attention
        y = ln(x, params["ln1_w"][d], params["ln1_b"][d])
        q = mm(y, params["wq"][d]) + params["bq"][d]
        kv = mm(y, params["wkv"][d]) + params["bkv"][d]
        k, v = kv[..., :C], kv[..., C:]

        def heads(t):
            return t.reshape(B, N, num_heads, hd).transpose(0, 2, 1, 3)

        qh, kh, vh = heads(q) * scale, heads(k), heads(v)
        attn = jax.nn.softmax(mm(qh, kh.transpose(0, 1, 3, 2)), axis=-1)
        o = mm(attn, vh).transpose(0, 2, 1, 3).reshape(B, N, C)
        x = x + (mm(o, params["wo"][d]) + params["bo"][d])
        # mlp
        y2 = ln(x, params["ln2_w"][d], params["ln2_b"][d])
        h = jax.nn.gelu(mm(y2, params["w1"][d]) + params["b1"][d], approximate=False)
        x = x + (mm(h, params["w2"][d]) + params["b2"][d])
    return x


if __name__ == "__main__":
    # Small, lane-dense shapes: B=2, N=128 tokens, dim=128, 4 heads, depth=2, mlp_ratio=4.
    B, N, C = 2, 128, 128
    num_heads, depth, mlp_ratio = 4, 2, 4
    Hd = C * mlp_ratio

    key = jax.random.PRNGKey(0)
    keys = list(jax.random.split(key, 20))
    kit = iter(keys)

    x = jax.random.normal(next(kit), (B, N, C), dtype=jnp.float32)

    def lin(k, fan_in, shape):
        bound = 1.0 / (fan_in ** 0.5)
        return jax.random.uniform(k, shape, jnp.float32, -bound, bound)

    params = {
        "ln1_w": 1.0 + 0.1 * jax.random.normal(next(kit), (depth, C), jnp.float32),
        "ln1_b": 0.1 * jax.random.normal(next(kit), (depth, C), jnp.float32),
        "wq":  lin(next(kit), C, (depth, C, C)),
        "bq":  lin(next(kit), C, (depth, C)),
        "wkv": lin(next(kit), C, (depth, C, 2 * C)),
        "bkv": lin(next(kit), C, (depth, 2 * C)),
        "wo":  lin(next(kit), C, (depth, C, C)),
        "bo":  lin(next(kit), C, (depth, C)),
        "ln2_w": 1.0 + 0.1 * jax.random.normal(next(kit), (depth, C), jnp.float32),
        "ln2_b": 0.1 * jax.random.normal(next(kit), (depth, C), jnp.float32),
        "w1":  lin(next(kit), C, (depth, C, Hd)),
        "b1":  lin(next(kit), C, (depth, Hd)),
        "w2":  lin(next(kit), Hd, (depth, Hd, C)),
        "b2":  lin(next(kit), Hd, (depth, C)),
    }

    out = basic_smnet_layer(x, params, num_heads=num_heads)
    out = jax.block_until_ready(out)

    ref = _reference(x, params, num_heads=num_heads)
    assert out.shape == (B, N, C), out.shape
    max_err = float(jnp.max(jnp.abs(out - ref)))
    assert jnp.allclose(out, ref, atol=2e-3, rtol=2e-3), max_err

    print("KERNEL_OK")
</pallas_src>

<mosaic_0001>
module attributes {stable_mosaic.version = 11 : i64} {
  func.func @_transformer_block_kernel(%arg0: i32, %arg1: i32, %arg2: memref<1x128x128xf32, #tpu.memory_space<vmem>>, %arg3: memref<1x1x128xf32, #tpu.memory_space<vmem>>, %arg4: memref<1x1x128xf32, #tpu.memory_space<vmem>>, %arg5: memref<1x128x128xf32, #tpu.memory_space<vmem>>, %arg6: memref<1x1x128xf32, #tpu.memory_space<vmem>>, %arg7: memref<1x128x256xf32, #tpu.memory_space<vmem>>, %arg8: memref<1x1x256xf32, #tpu.memory_space<vmem>>, %arg9: memref<1x128x128xf32, #tpu.memory_space<vmem>>, %arg10: memref<1x1x128xf32, #tpu.memory_space<vmem>>, %arg11: memref<1x1x128xf32, #tpu.memory_space<vmem>>, %arg12: memref<1x1x128xf32, #tpu.memory_space<vmem>>, %arg13: memref<1x128x512xf32, #tpu.memory_space<vmem>>, %arg14: memref<1x1x512xf32, #tpu.memory_space<vmem>>, %arg15: memref<1x512x128xf32, #tpu.memory_space<vmem>>, %arg16: memref<1x1x128xf32, #tpu.memory_space<vmem>>, %arg17: memref<1x128x128xf32, #tpu.memory_space<vmem>>) attributes {dimension_semantics = [#tpu.dimension_semantics<parallel>, #tpu.dimension_semantics<arbitrary>], iteration_bounds = array<i64: 2, 2>, scalar_prefetch = 0 : i64, scratch_operands = 0 : i64, tpu.core_type = #tpu.core_type<tc>, window_params = [{transform_indices = @transform_0, window_bounds = array<i64: 1, 128, 128>}, {transform_indices = @transform_1, window_bounds = array<i64: 1, 1, 128>}, {transform_indices = @transform_2, window_bounds = array<i64: 1, 1, 128>}, {transform_indices = @transform_3, window_bounds = array<i64: 1, 128, 128>}, {transform_indices = @transform_4, window_bounds = array<i64: 1, 1, 128>}, {transform_indices = @transform_5, window_bounds = array<i64: 1, 128, 256>}, {transform_indices = @transform_6, window_bounds = array<i64: 1, 1, 256>}, {transform_indices = @transform_7, window_bounds = array<i64: 1, 128, 128>}, {transform_indices = @transform_8, window_bounds = array<i64: 1, 1, 128>}, {transform_indices = @transform_9, window_bounds = array<i64: 1, 1, 128>}, {transform_indices = @transform_10, window_bounds = array<i64: 1, 1, 128>}, {transform_indices = @transform_11, window_bounds = array<i64: 1, 128, 512>}, {transform_indices = @transform_12, window_bounds = array<i64: 1, 1, 512>}, {transform_indices = @transform_13, window_bounds = array<i64: 1, 512, 128>}, {transform_indices = @transform_14, window_bounds = array<i64: 1, 1, 128>}, {transform_indices = @transform_15, window_bounds = array<i64: 1, 128, 128>}]} {
    %c0_i32 = arith.constant 0 : i32
    %0 = arith.cmpi eq, %arg1, %c0_i32 : i32
    %1 = arith.extui %0 : i1 to i32
    %c0_i32_0 = arith.constant 0 : i32
    %2 = arith.cmpi ne, %1, %c0_i32_0 : i32
    scf.if %2 {
      %c0_104 = arith.constant 0 : index
      %c0_105 = arith.constant 0 : index
      %c0_106 = arith.constant 0 : index
      %215 = vector.load %arg2[%c0_104, %c0_105, %c0_106] : memref<1x128x128xf32, #tpu.memory_space<vmem>>, vector<1x128x128xf32>
      %c0_107 = arith.constant 0 : index
      %c0_108 = arith.constant 0 : index
      %c0_109 = arith.constant 0 : index
      %216 = vector.load %arg17[%c0_107, %c0_108, %c0_109] : memref<1x128x128xf32, #tpu.memory_space<vmem>>, vector<1x128x128xf32>
      tpu.vector_store %arg17[%c0_107, %c0_108, %c0_109], %215 {strides = array<i32>} : memref<1x128x128xf32, #tpu.memory_space<vmem>>, vector<1x128x128xf32>,
    } else {
    }
    %c0 = arith.constant 0 : index
    %c0_1 = arith.constant 0 : index
    %c0_2 = arith.constant 0 : index
    %3 = vector.load %arg17[%c0, %c0_1, %c0_2] : memref<1x128x128xf32, #tpu.memory_space<vmem>>, vector<1x128x128xf32>
    %4 = vector.shape_cast %3 : vector<1x128x128xf32> to vector<128x128xf32>
    %c0_3 = arith.constant 0 : index
    %c0_4 = arith.constant 0 : index
    %c0_5 = arith.constant 0 : index
    %5 = vector.load %arg3[%c0_3, %c0_4, %c0_5] : memref<1x1x128xf32, #tpu.memory_space<vmem>>, vector<1x1x128xf32>
    %6 = vector.shape_cast %5 : vector<1x1x128xf32> to vector<1x128xf32>
    %c0_6 = arith.constant 0 : index
    %c0_7 = arith.constant 0 : index
    %c0_8 = arith.constant 0 : index
    %7 = vector.load %arg4[%c0_6, %c0_7, %c0_8] : memref<1x1x128xf32, #tpu.memory_space<vmem>>, vector<1x1x128xf32>
    %8 = vector.shape_cast %7 : vector<1x1x128xf32> to vector<1x128xf32>
    %cst = arith.constant dense<0.000000e+00> : vector<128xf32>
    %9 = vector.multi_reduction <add>, %4, %cst [1] : vector<128x128xf32> to vector<128xf32>
    %10 = vector.shape_cast %9 : vector<128xf32> to vector<128x1xf32>
    %cst_9 = arith.constant 1.280000e+02 : f32
    %11 = vector.broadcast %cst_9 : f32 to vector<128x1xf32>
    %12 = arith.divf %10, %11 : vector<128x1xf32>
    %13 = vector.broadcast %12 : vector<128x1xf32> to vector<128x128xf32>
    %14 = arith.subf %4, %13 : vector<128x128xf32>
    %15 = vector.broadcast %12 : vector<128x1xf32> to vector<128x128xf32>
    %16 = arith.subf %4, %15 : vector<128x128xf32>
    %17 = arith.mulf %14, %16 : vector<128x128xf32>
    %cst_10 = arith.constant dense<0.000000e+00> : vector<128xf32>
    %18 = vector.multi_reduction <add>, %17, %cst_10 [1] : vector<128x128xf32> to vector<128xf32>
    %19 = vector.shape_cast %18 : vector<128xf32> to vector<128x1xf32>
    %cst_11 = arith.constant 1.280000e+02 : f32
    %20 = vector.broadcast %cst_11 : f32 to vector<128x1xf32>
    %21 = arith.divf %19, %20 : vector<128x1xf32>
    %22 = vector.broadcast %12 : vector<128x1xf32> to vector<128x128xf32>
    %23 = arith.subf %4, %22 : vector<128x128xf32>
    %cst_12 = arith.constant 9.99999974E-6 : f32
    %24 = vector.broadcast %cst_12 : f32 to vector<128x1xf32>
    %25 = arith.addf %21, %24 : vector<128x1xf32>
    %26 = math.rsqrt %25 : vector<128x1xf32>
    %27 = vector.broadcast %26 : vector<128x1xf32> to vector<128x128xf32>
    %28 = arith.mulf %23, %27 : vector<128x128xf32>
    %29 = vector.broadcast %6 : vector<1x128xf32> to vector<128x128xf32>
    %30 = arith.mulf %28, %29 : vector<128x128xf32>
    %31 = vector.broadcast %8 : vector<1x128xf32> to vector<128x128xf32>
    %32 = arith.addf %30, %31 : vector<128x128xf32>
    %c0_13 = arith.constant 0 : index
    %c0_14 = arith.constant 0 : index
    %c0_15 = arith.constant 0 : index
    %33 = vector.load %arg5[%c0_13, %c0_14, %c0_15] : memref<1x128x128xf32, #tpu.memory_space<vmem>>, vector<1x128x128xf32>
    %34 = vector.shape_cast %33 : vector<1x128x128xf32> to vector<128x128xf32>
    %cst_16 = arith.constant dense<0.000000e+00> : vector<128x128xf32>
    %35 = tpu.matmul %32, %34, %cst_16 {dimension_numbers = #tpu.dot_dimension_numbers<[1], [0], [0], [1], [0, 0, 1, 1], [], []>} : vector<128x128xf32>, vector<128x128xf32>, vector<128x128xf32> -> vector<128x128xf32>
    %c0_17 = arith.constant 0 : index
    %c0_18 = arith.constant 0 : index
    %c0_19 = arith.constant 0 : index
    %36 = vector.load %arg6[%c0_17, %c0_18, %c0_19] : memref<1x1x128xf32, #tpu.memory_space<vmem>>, vector<1x1x128xf32>
    %37 = vector.shape_cast %36 : vector<1x1x128xf32> to vector<1x128xf32>
    %38 = vector.broadcast %37 : vector<1x128xf32> to vector<128x128xf32>
    %39 = arith.addf %35, %38 : vector<128x128xf32>
    %c0_20 = arith.constant 0 : index
    %c0_21 = arith.constant 0 : index
    %c0_22 = arith.constant 0 : index
    %40 = vector.load %arg7[%c0_20, %c0_21, %c0_22] : memref<1x128x256xf32, #tpu.memory_space<vmem>>, vector<1x128x256xf32>
    %41 = vector.shape_cast %40 : vector<1x128x256xf32> to vector<128x256xf32>
    %cst_23 = arith.constant dense<0.000000e+00> : vector<128x256xf32>
    %42 = tpu.matmul %32, %41, %cst_23 {dimension_numbers = #tpu.dot_dimension_numbers<[1], [0], [0], [1], [0, 0, 1, 1], [], []>} : vector<128x128xf32>, vector<128x256xf32>, vector<128x256xf32> -> vector<128x256xf32>
    %c0_24 = arith.constant 0 : index
    %c0_25 = arith.constant 0 : index
    %c0_26 = arith.constant 0 : index
    %43 = vector.load %arg8[%c0_24, %c0_25, %c0_26] : memref<1x1x256xf32, #tpu.memory_space<vmem>>, vector<1x1x256xf32>
    %44 = vector.shape_cast %43 : vector<1x1x256xf32> to vector<1x256xf32>
    %45 = vector.broadcast %44 : vector<1x256xf32> to vector<128x256xf32>
    %46 = arith.addf %42, %45 : vector<128x256xf32>
    %47 = vector.extract_strided_slice %46 {offsets = [0, 0], sizes = [128, 128], strides = [1, 1]} : vector<128x256xf32> to vector<128x128xf32>
    %48 = vector.extract_strided_slice %46 {offsets = [0, 128], sizes = [128, 128], strides = [1, 1]} : vector<128x256xf32> to vector<128x128xf32>
    %cst_27 = arith.constant 0.176776692 : f32
    %49 = vector.broadcast %cst_27 : f32 to vector<128x128xf32>
    %50 = arith.mulf %39, %49 : vector<128x128xf32>
    %cst_28 = arith.constant 0.000000e+00 : f32
    %51 = vector.broadcast %cst_28 : f32 to vector<128x128xf32>
    %52 = vector.extract_strided_slice %50 {offsets = [0, 0], sizes = [128, 32], strides = [1, 1]} : vector<128x128xf32> to vector<128x32xf32>
    %53 = vector.extract_strided_slice %47 {offsets = [0, 0], sizes = [128, 32], strides = [1, 1]} : vector<128x128xf32> to vector<128x32xf32>
    %54 = vector.extract_strided_slice %48 {offsets = [0, 0], sizes = [128, 32], strides = [1, 1]} : vector<128x128xf32> to vector<128x32xf32>
    %cst_29 = arith.constant dense<0.000000e+00> : vector<128x128xf32>
    %55 = tpu.matmul %52, %53, %cst_29 {dimension_numbers = #tpu.dot_dimension_numbers<[1], [1], [0], [0], [0, 0, 1, 0], [], []>} : vector<128x32xf32>, vector<128x32xf32>, vector<128x128xf32> -> vector<128x128xf32>
    %cst_30 = arith.constant dense<0xFF800000> : vector<128xf32>
    %56 = vector.multi_reduction <maximumf>, %55, %cst_30 [1] : vector<128x128xf32> to vector<128xf32>
    %57 = vector.shape_cast %56 : vector<128xf32> to vector<128x1xf32>
    %58 = vector.broadcast %57 : vector<128x1xf32> to vector<128x128xf32>
    %59 = arith.subf %55, %58 : vector<128x128xf32>
    %60 = math.exp %59 : vector<128x128xf32>
    %cst_31 = arith.constant dense<0.000000e+00> : vector<128xf32>
    %61 = vector.multi_reduction <add>, %60, %cst_31 [1] : vector<128x128xf32> to vector<128xf32>
    %62 = vector.shape_cast %61 : vector<128xf32> to vector<128x1xf32>
    %63 = vector.broadcast %62 : vector<128x1xf32> to vector<128x128xf32>
    %64 = arith.divf %60, %63 : vector<128x128xf32>
    %cst_32 = arith.constant dense<0.000000e+00> : vector<128x32xf32>
    %65 = tpu.matmul %64, %54, %cst_32 {dimension_numbers = #tpu.dot_dimension_numbers<[1], [0], [0], [1], [0, 0, 1, 1], [], []>} : vector<128x128xf32>, vector<128x32xf32>, vector<128x32xf32> -> vector<128x32xf32>
    %c0_33 = arith.constant 0 : index
    %c0_34 = arith.constant 0 : index
    %c0_35 = arith.constant 0 : index
    %66 = vector.load %arg9[%c0_33, %c0_34, %c0_35] : memref<1x128x128xf32, #tpu.memory_space<vmem>>, vector<1x32x128xf32>
    %67 = vector.shape_cast %66 : vector<1x32x128xf32> to vector<32x128xf32>
    %cst_36 = arith.constant dense<0.000000e+00> : vector<128x128xf32>
    %68 = tpu.matmul %65, %67, %cst_36 {dimension_numbers = #tpu.dot_dimension_numbers<[1], [0], [0], [1], [0, 0, 1, 1], [], []>} : vector<128x32xf32>, vector<32x128xf32>, vector<128x128xf32> -> vector<128x128xf32>
    %69 = arith.addf %51, %68 : vector<128x128xf32>
    %70 = vector.extract_strided_slice %50 {offsets = [0, 32], sizes = [128, 32], strides = [1, 1]} : vector<128x128xf32> to vector<128x32xf32>
    %71 = vector.extract_strided_slice %47 {offsets = [0, 32], sizes = [128, 32], strides = [1, 1]} : vector<128x128xf32> to vector<128x32xf32>
    %72 = vector.extract_strided_slice %48 {offsets = [0, 32], sizes = [128, 32], strides = [1, 1]} : vector<128x128xf32> to vector<128x32xf32>
    %cst_37 = arith.constant dense<0.000000e+00> : vector<128x128xf32>
    %73 = tpu.matmul %70, %71, %cst_37 {dimension_numbers = #tpu.dot_dimension_numbers<[1], [1], [0], [0], [0, 0, 1, 0], [], []>} : vector<128x32xf32>, vector<128x32xf32>, vector<128x128xf32> -> vector<128x128xf32>
    %cst_38 = arith.constant dense<0xFF800000> : vector<128xf32>
    %74 = vector.multi_reduction <maximumf>, %73, %cst_38 [1] : vector<128x128xf32> to vector<128xf32>
    %75 = vector.shape_cast %74 : vector<128xf32> to vector<128x1xf32>
    %76 = vector.broadcast %75 : vector<128x1xf32> to vector<128x128xf32>
    %77 = arith.subf %73, %76 : vector<128x128xf32>
    %78 = math.exp %77 : vector<128x128xf32>
    %cst_39 = arith.constant dense<0.000000e+00> : vector<128xf32>
    %79 = vector.multi_reduction <add>, %78, %cst_39 [1] : vector<128x128xf32> to vector<128xf32>
    %80 = vector.shape_cast %79 : vector<128xf32> to vector<128x1xf32>
    %81 = vector.broadcast %80 : vector<128x1xf32> to vector<128x128xf32>
    %82 = arith.divf %78, %81 : vector<128x128xf32>
    %cst_40 = arith.constant dense<0.000000e+00> : vector<128x32xf32>
    %83 = tpu.matmul %82, %72, %cst_40 {dimension_numbers = #tpu.dot_dimension_numbers<[1], [0], [0], [1], [0, 0, 1, 1], [], []>} : vector<128x128xf32>, vector<128x32xf32>, vector<128x32xf32> -> vector<128x32xf32>
    %c0_41 = arith.constant 0 : index
    %c32 = arith.constant 32 : index
    %c0_42 = arith.constant 0 : index
    %84 = vector.load %arg9[%c0_41, %c32, %c0_42] : memref<1x128x128xf32, #tpu.memory_space<vmem>>, vector<1x32x128xf32>
    %85 = vector.shape_cast %84 : vector<1x32x128xf32> to vector<32x128xf32>
    %cst_43 = arith.constant dense<0.000000e+00> : vector<128x128xf32>
    %86 = tpu.matmul %83, %85, %cst_43 {dimension_numbers = #tpu.dot_dimension_numbers<[1], [0], [0], [1], [0, 0, 1, 1], [], []>} : vector<128x32xf32>, vector<32x128xf32>, vector<128x128xf32> -> vector<128x128xf32>
    %87 = arith.addf %69, %86 : vector<128x128xf32>
    %88 = vector.extract_strided_slice %50 {offsets = [0, 64], sizes = [128, 32], strides = [1, 1]} : vector<128x128xf32> to vector<128x32xf32>
    %89 = vector.extract_strided_slice %47 {offsets = [0, 64], sizes = [128, 32], strides = [1, 1]} : vector<128x128xf32> to vector<128x32xf32>
    %90 = vector.extract_strided_slice %48 {offsets = [0, 64], sizes = [128, 32], strides = [1, 1]} : vector<128x128xf32> to vector<128x32xf32>
    %cst_44 = arith.constant dense<0.000000e+00> : vector<128x128xf32>
    %91 = tpu.matmul %88, %89, %cst_44 {dimension_numbers = #tpu.dot_dimension_numbers<[1], [1], [0], [0], [0, 0, 1, 0], [], []>} : vector<128x32xf32>, vector<128x32xf32>, vector<128x128xf32> -> vector<128x128xf32>
    %cst_45 = arith.constant dense<0xFF800000> : vector<128xf32>
    %92 = vector.multi_reduction <maximumf>, %91, %cst_45 [1] : vector<128x128xf32> to vector<128xf32>
    %93 = vector.shape_cast %92 : vector<128xf32> to vector<128x1xf32>
    %94 = vector.broadcast %93 : vector<128x1xf32> to vector<128x128xf32>
    %95 = arith.subf %91, %94 : vector<128x128xf32>
    %96 = math.exp %95 : vector<128x128xf32>
    %cst_46 = arith.constant dense<0.000000e+00> : vector<128xf32>
    %97 = vector.multi_reduction <add>, %96, %cst_46 [1] : vector<128x128xf32> to vector<128xf32>
    %98 = vector.shape_cast %97 : vector<128xf32> to vector<128x1xf32>
    %99 = vector.broadcast %98 : vector<128x1xf32> to vector<128x128xf32>
    %100 = arith.divf %96, %99 : vector<128x128xf32>
    %cst_47 = arith.constant dense<0.000000e+00> : vector<128x32xf32>
    %101 = tpu.matmul %100, %90, %cst_47 {dimension_numbers = #tpu.dot_dimension_numbers<[1], [0], [0], [1], [0, 0, 1, 1], [], []>} : vector<128x128xf32>, vector<128x32xf32>, vector<128x32xf32> -> vector<128x32xf32>
    %c0_48 = arith.constant 0 : index
    %c64 = arith.constant 64 : index
    %c0_49 = arith.constant 0 : index
    %102 = vector.load %arg9[%c0_48, %c64, %c0_49] : memref<1x128x128xf32, #tpu.memory_space<vmem>>, vector<1x32x128xf32>
    %103 = vector.shape_cast %102 : vector<1x32x128xf32> to vector<32x128xf32>
    %cst_50 = arith.constant dense<0.000000e+00> : vector<128x128xf32>
    %104 = tpu.matmul %101, %103, %cst_50 {dimension_numbers = #tpu.dot_dimension_numbers<[1], [0], [0], [1], [0, 0, 1, 1], [], []>} : vector<128x32xf32>, vector<32x128xf32>, vector<128x128xf32> -> vector<128x128xf32>
    %105 = arith.addf %87, %104 : vector<128x128xf32>
    %106 = vector.extract_strided_slice %50 {offsets = [0, 96], sizes = [128, 32], strides = [1, 1]} : vector<128x128xf32> to vector<128x32xf32>
    %107 = vector.extract_strided_slice %47 {offsets = [0, 96], sizes = [128, 32], strides = [1, 1]} : vector<128x128xf32> to vector<128x32xf32>
    %108 = vector.extract_strided_slice %48 {offsets = [0, 96], sizes = [128, 32], strides = [1, 1]} : vector<128x128xf32> to vector<128x32xf32>
    %cst_51 = arith.constant dense<0.000000e+00> : vector<128x128xf32>
    %109 = tpu.matmul %106, %107, %cst_51 {dimension_numbers = #tpu.dot_dimension_numbers<[1], [1], [0], [0], [0, 0, 1, 0], [], []>} : vector<128x32xf32>, vector<128x32xf32>, vector<128x128xf32> -> vector<128x128xf32>
    %cst_52 = arith.constant dense<0xFF800000> : vector<128xf32>
    %110 = vector.multi_reduction <maximumf>, %109, %cst_52 [1] : vector<128x128xf32> to vector<128xf32>
    %111 = vector.shape_cast %110 : vector<128xf32> to vector<128x1xf32>
    %112 = vector.broadcast %111 : vector<128x1xf32> to vector<128x128xf32>
    %113 = arith.subf %109, %112 : vector<128x128xf32>
    %114 = math.exp %113 : vector<128x128xf32>
    %cst_53 = arith.constant dense<0.000000e+00> : vector<128xf32>
    %115 = vector.multi_reduction <add>, %114, %cst_53 [1] : vector<128x128xf32> to vector<128xf32>
    %116 = vector.shape_cast %115 : vector<128xf32> to vector<128x1xf32>
    %117 = vector.broadcast %116 : vector<128x1xf32> to vector<128x128xf32>
    %118 = arith.divf %114, %117 : vector<128x128xf32>
    %cst_54 = arith.constant dense<0.000000e+00> : vector<128x32xf32>
    %119 = tpu.matmul %118, %108, %cst_54 {dimension_numbers = #tpu.dot_dimension_numbers<[1], [0], [0], [1], [0, 0, 1, 1], [], []>} : vector<128x128xf32>, vector<128x32xf32>, vector<128x32xf32> -> vector<128x32xf32>
    %c0_55 = arith.constant 0 : index
    %c96 = arith.constant 96 : index
    %c0_56 = arith.constant 0 : index
    %120 = vector.load %arg9[%c0_55, %c96, %c0_56] : memref<1x128x128xf32, #tpu.memory_space<vmem>>, vector<1x32x128xf32>
    %121 = vector.shape_cast %120 : vector<1x32x128xf32> to vector<32x128xf32>
    %cst_57 = arith.constant dense<0.000000e+00> : vector<128x128xf32>
    %122 = tpu.matmul %119, %121, %cst_57 {dimension_numbers = #tpu.dot_dimension_numbers<[1], [0], [0], [1], [0, 0, 1, 1], [], []>} : vector<128x32xf32>, vector<32x128xf32>, vector<128x128xf32> -> vector<128x128xf32>
    %123 = arith.addf %105, %122 : vector<128x128xf32>
    %124 = arith.addf %4, %123 : vector<128x128xf32>
    %c0_58 = arith.constant 0 : index
    %c0_59 = arith.constant 0 : index
    %c0_60 = arith.constant 0 : index
    %125 = vector.load %arg10[%c0_58, %c0_59, %c0_60] : memref<1x1x128xf32, #tpu.memory_space<vmem>>, vector<1x1x128xf32>
    %126 = vector.shape_cast %125 : vector<1x1x128xf32> to vector<1x128xf32>
    %127 = vector.broadcast %126 : vector<1x128xf32> to vector<128x128xf32>
    %128 = arith.addf %124, %127 : vector<128x128xf32>
    %c0_61 = arith.constant 0 : index
    %c0_62 = arith.constant 0 : index
    %c0_63 = arith.constant 0 : index
    %129 = vector.load %arg11[%c0_61, %c0_62, %c0_63] : memref<1x1x128xf32, #tpu.memory_space<vmem>>, vector<1x1x128xf32>
    %130 = vector.shape_cast %129 : vector<1x1x128xf32> to vector<1x128xf32>
    %c0_64 = arith.constant 0 : index
    %c0_65 = arith.constant 0 : index
    %c0_66 = arith.constant 0 : index
    %131 = vector.load %arg12[%c0_64, %c0_65, %c0_66] : memref<1x1x128xf32, #tpu.memory_space<vmem>>, vector<1x1x128xf32>
    %132 = vector.shape_cast %131 : vector<1x1x128xf32> to vector<1x128xf32>
    %cst_67 = arith.constant dense<0.000000e+00> : vector<128xf32>
    %133 = vector.multi_reduction <add>, %128, %cst_67 [1] : vector<128x128xf32> to vector<128xf32>
    %134 = vector.shape_cast %133 : vector<128xf32> to vector<128x1xf32>
    %cst_68 = arith.constant 1.280000e+02 : f32
    %135 = vector.broadcast %cst_68 : f32 to vector<128x1xf32>
    %136 = arith.divf %134, %135 : vector<128x1xf32>
    %137 = vector.broadcast %136 : vector<128x1xf32> to vector<128x128xf32>
    %138 = arith.subf %128, %137 : vector<128x128xf32>
    %139 = vector.broadcast %136 : vector<128x1xf32> to vector<128x128xf32>
    %140 = arith.subf %128, %139 : vector<128x128xf32>
    %141 = arith.mulf %138, %140 : vector<128x128xf32>
    %cst_69 = arith.constant dense<0.000000e+00> : vector<128xf32>
    %142 = vector.multi_reduction <add>, %141, %cst_69 [1] : vector<128x128xf32> to vector<128xf32>
    %143 = vector.shape_cast %142 : vector<128xf32> to vector<128x1xf32>
    %cst_70 = arith.constant 1.280000e+02 : f32
    %144 = vector.broadcast %cst_70 : f32 to vector<128x1xf32>
    %145 = arith.divf %143, %144 : vector<128x1xf32>
    %146 = vector.broadcast %136 : vector<128x1xf32> to vector<128x128xf32>
    %147 = arith.subf %128, %146 : vector<128x128xf32>
    %cst_71 = arith.constant 9.99999974E-6 : f32
    %148 = vector.broadcast %cst_71 : f32 to vector<128x1xf32>
    %149 = arith.addf %145, %148 : vector<128x1xf32>
    %150 = math.rsqrt %149 : vector<128x1xf32>
    %151 = vector.broadcast %150 : vector<128x1xf32> to vector<128x128xf32>
    %152 = arith.mulf %147, %151 : vector<128x128xf32>
    %153 = vector.broadcast %130 : vector<1x128xf32> to vector<128x128xf32>
    %154 = arith.mulf %152, %153 : vector<128x128xf32>
    %155 = vector.broadcast %132 : vector<1x128xf32> to vector<128x128xf32>
    %156 = arith.addf %154, %155 : vector<128x128xf32>
    %c0_72 = arith.constant 0 : index
    %c0_73 = arith.constant 0 : index
    %c0_74 = arith.constant 0 : index
    %157 = vector.load %arg13[%c0_72, %c0_73, %c0_74] : memref<1x128x512xf32, #tpu.memory_space<vmem>>, vector<1x128x512xf32>
    %158 = vector.shape_cast %157 : vector<1x128x512xf32> to vector<128x512xf32>
    %cst_75 = arith.constant dense<0.000000e+00> : vector<128x512xf32>
    %159 = tpu.matmul %156, %158, %cst_75 {dimension_numbers = #tpu.dot_dimension_numbers<[1], [0], [0], [1], [0, 0, 1, 1], [], []>} : vector<128x128xf32>, vector<128x512xf32>, vector<128x512xf32> -> vector<128x512xf32>
    %c0_76 = arith.constant 0 : index
    %c0_77 = arith.constant 0 : index
    %c0_78 = arith.constant 0 : index
    %160 = vector.load %arg14[%c0_76, %c0_77, %c0_78] : memref<1x1x512xf32, #tpu.memory_space<vmem>>, vector<1x1x512xf32>
    %161 = vector.shape_cast %160 : vector<1x1x512xf32> to vector<1x512xf32>
    %162 = vector.broadcast %161 : vector<1x512xf32> to vector<128x512xf32>
    %163 = arith.addf %159, %162 : vector<128x512xf32>
    %cst_79 = arith.constant 0.707106769 : f32
    %164 = vector.broadcast %cst_79 : f32 to vector<128x512xf32>
    %165 = arith.mulf %163, %164 : vector<128x512xf32>
    %166 = math.absf %165 : vector<128x512xf32>
    %cst_80 = arith.constant 0.327591091 : f32
    %167 = vector.broadcast %cst_80 : f32 to vector<128x512xf32>
    %168 = arith.mulf %167, %166 : vector<128x512xf32>
    %cst_81 = arith.constant 1.000000e+00 : f32
    %169 = vector.broadcast %cst_81 : f32 to vector<128x512xf32>
    %170 = arith.addf %169, %168 : vector<128x512xf32>
    %cst_82 = arith.constant 1.000000e+00 : f32
    %171 = vector.broadcast %cst_82 : f32 to vector<128x512xf32>
    %172 = arith.divf %171, %170 : vector<128x512xf32>
    %cst_83 = arith.constant 1.06140542 : f32
    %173 = vector.broadcast %cst_83 : f32 to vector<128x512xf32>
    %174 = arith.mulf %173, %172 : vector<128x512xf32>
    %cst_84 = arith.constant -1.45315206 : f32
    %175 = vector.broadcast %cst_84 : f32 to vector<128x512xf32>
    %176 = arith.addf %174, %175 : vector<128x512xf32>
    %177 = arith.mulf %176, %172 : vector<128x512xf32>
    %cst_85 = arith.constant 1.42141378 : f32
    %178 = vector.broadcast %cst_85 : f32 to vector<128x512xf32>
    %179 = arith.addf %177, %178 : vector<128x512xf32>
    %180 = arith.mulf %179, %172 : vector<128x512xf32>
    %cst_86 = arith.constant -0.284496725 : f32
    %181 = vector.broadcast %cst_86 : f32 to vector<128x512xf32>
    %182 = arith.addf %180, %181 : vector<128x512xf32>
    %183 = arith.mulf %182, %172 : vector<128x512xf32>
    %cst_87 = arith.constant 0.254829586 : f32
    %184 = vector.broadcast %cst_87 : f32 to vector<128x512xf32>
    %185 = arith.addf %183, %184 : vector<128x512xf32>
    %186 = arith.mulf %185, %172 : vector<128x512xf32>
    %cst_88 = arith.constant 0.000000e+00 : f32
    %187 = vector.broadcast %cst_88 : f32 to vector<128x512xf32>
    %188 = arith.subf %187, %166 : vector<128x512xf32>
    %189 = arith.mulf %188, %166 : vector<128x512xf32>
    %190 = math.exp %189 : vector<128x512xf32>
    %191 = arith.mulf %186, %190 : vector<128x512xf32>
    %cst_89 = arith.constant 1.000000e+00 : f32
    %192 = vector.broadcast %cst_89 : f32 to vector<128x512xf32>
    %193 = arith.subf %192, %191 : vector<128x512xf32>
    %cst_90 = arith.constant 0.000000e+00 : f32
    %194 = vector.broadcast %cst_90 : f32 to vector<128x512xf32>
    %195 = arith.cmpf oge, %165, %194 : vector<128x512xf32>
    %cst_91 = arith.constant 0.000000e+00 : f32
    %196 = vector.broadcast %cst_91 : f32 to vector<128x512xf32>
    %197 = arith.subf %196, %193 : vector<128x512xf32>
    %198 = arith.select %195, %193, %197 : vector<128x512xi1>, vector<128x512xf32>
    %cst_92 = arith.constant 5.000000e-01 : f32
    %199 = vector.broadcast %cst_92 : f32 to vector<128x512xf32>
    %200 = arith.mulf %199, %163 : vector<128x512xf32>
    %cst_93 = arith.constant 1.000000e+00 : f32
    %201 = vector.broadcast %cst_93 : f32 to vector<128x512xf32>
    %202 = arith.addf %201, %198 : vector<128x512xf32>
    %203 = arith.mulf %200, %202 : vector<128x512xf32>
    %c0_94 = arith.constant 0 : index
    %c0_95 = arith.constant 0 : index
    %c0_96 = arith.constant 0 : index
    %204 = vector.load %arg15[%c0_94, %c0_95, %c0_96] : memref<1x512x128xf32, #tpu.memory_space<vmem>>, vector<1x512x128xf32>
    %205 = vector.shape_cast %204 : vector<1x512x128xf32> to vector<512x128xf32>
    %cst_97 = arith.constant dense<0.000000e+00> : vector<128x128xf32>
    %206 = tpu.matmul %203, %205, %cst_97 {dimension_numbers = #tpu.dot_dimension_numbers<[1], [0], [0], [1], [0, 0, 1, 1], [], []>} : vector<128x512xf32>, vector<512x128xf32>, vector<128x128xf32> -> vector<128x128xf32>
    %c0_98 = arith.constant 0 : index
    %c0_99 = arith.constant 0 : index
    %c0_100 = arith.constant 0 : index
    %207 = vector.load %arg16[%c0_98, %c0_99, %c0_100] : memref<1x1x128xf32, #tpu.memory_space<vmem>>, vector<1x1x128xf32>
    %208 = vector.shape_cast %207 : vector<1x1x128xf32> to vector<1x128xf32>
    %209 = vector.broadcast %208 : vector<1x128xf32> to vector<128x128xf32>
    %210 = arith.addf %206, %209 : vector<128x128xf32>
    %211 = arith.addf %128, %210 : vector<128x128xf32>
    %c0_101 = arith.constant 0 : index
    %c0_102 = arith.constant 0 : index
    %c0_103 = arith.constant 0 : index
    %212 = vector.load %arg17[%c0_101, %c0_102, %c0_103] : memref<1x128x128xf32, #tpu.memory_space<vmem>>, vector<1x128x128xf32>
    %213 = vector.shape_cast %212 : vector<1x128x128xf32> to vector<128x128xf32>
    %214 = vector.shape_cast %211 : vector<128x128xf32> to vector<1x128x128xf32>
    tpu.vector_store %arg17[%c0_101, %c0_102, %c0_103], %214 {strides = array<i32>} : memref<1x128x128xf32, #tpu.memory_space<vmem>>, vector<1x128x128xf32>,
    return
  }
  func.func @transform_0(%arg0: i32, %arg1: i32) -> (i32, i32, i32) {
    %c0_i32 = arith.constant 0 : i32
    %c0_i32_0 = arith.constant 0 : i32
    %c0_i32_1 = arith.constant 0 : i32
    return %arg0, %c0_i32, %c0_i32_0 : i32, i32, i32
  }
  func.func @transform_1(%arg0: i32, %arg1: i32) -> (i32, i32, i32) {
    %c0_i32 = arith.constant 0 : i32
    %c0_i32_0 = arith.constant 0 : i32
    %c0_i32_1 = arith.constant 0 : i32
    return %arg1, %c0_i32, %c0_i32_0 : i32, i32, i32
  }
  func.func @transform_2(%arg0: i32, %arg1: i32) -> (i32, i32, i32) {
    %c0_i32 = arith.constant 0 : i32
    %c0_i32_0 = arith.constant 0 : i32
    %c0_i32_1 = arith.constant 0 : i32
    return %arg1, %c0_i32, %c0_i32_0 : i32, i32, i32
  }
  func.func @transform_3(%arg0: i32, %arg1: i32) -> (i32, i32, i32) {
    %c0_i32 = arith.constant 0 : i32
    %c0_i32_0 = arith.constant 0 : i32
    %c0_i32_1 = arith.constant 0 : i32
    return %arg1, %c0_i32, %c0_i32_0 : i32, i32, i32
  }
  func.func @transform_4(%arg0: i32, %arg1: i32) -> (i32, i32, i32) {
    %c0_i32 = arith.constant 0 : i32
    %c0_i32_0 = arith.constant 0 : i32
    %c0_i32_1 = arith.constant 0 : i32
    return %arg1, %c0_i32, %c0_i32_0 : i32, i32, i32
  }
  func.func @transform_5(%arg0: i32, %arg1: i32) -> (i32, i32, i32) {
    %c0_i32 = arith.constant 0 : i32
    %c0_i32_0 = arith.constant 0 : i32
    %c0_i32_1 = arith.constant 0 : i32
    return %arg1, %c0_i32, %c0_i32_0 : i32, i32, i32
  }
  func.func @transform_6(%arg0: i32, %arg1: i32) -> (i32, i32, i32) {
    %c0_i32 = arith.constant 0 : i32
    %c0_i32_0 = arith.constant 0 : i32
    %c0_i32_1 = arith.constant 0 : i32
    return %arg1, %c0_i32, %c0_i32_0 : i32, i32, i32
  }
  func.func @transform_7(%arg0: i32, %arg1: i32) -> (i32, i32, i32) {
    %c0_i32 = arith.constant 0 : i32
    %c0_i32_0 = arith.constant 0 : i32
    %c0_i32_1 = arith.constant 0 : i32
    return %arg1, %c0_i32, %c0_i32_0 : i32, i32, i32
  }
  func.func @transform_8(%arg0: i32, %arg1: i32) -> (i32, i32, i32) {
    %c0_i32 = arith.constant 0 : i32
    %c0_i32_0 = arith.constant 0 : i32
    %c0_i32_1 = arith.constant 0 : i32
    return %arg1, %c0_i32, %c0_i32_0 : i32, i32, i32
  }
  func.func @transform_9(%arg0: i32, %arg1: i32) -> (i32, i32, i32) {
    %c0_i32 = arith.constant 0 : i32
    %c0_i32_0 = arith.constant 0 : i32
    %c0_i32_1 = arith.constant 0 : i32
    return %arg1, %c0_i32, %c0_i32_0 : i32, i32, i32
  }
  func.func @transform_10(%arg0: i32, %arg1: i32) -> (i32, i32, i32) {
    %c0_i32 = arith.constant 0 : i32
    %c0_i32_0 = arith.constant 0 : i32
    %c0_i32_1 = arith.constant 0 : i32
    return %arg1, %c0_i32, %c0_i32_0 : i32, i32, i32
  }
  func.func @transform_11(%arg0: i32, %arg1: i32) -> (i32, i32, i32) {
    %c0_i32 = arith.constant 0 : i32
    %c0_i32_0 = arith.constant 0 : i32
    %c0_i32_1 = arith.constant 0 : i32
    return %arg1, %c0_i32, %c0_i32_0 : i32, i32, i32
  }
  func.func @transform_12(%arg0: i32, %arg1: i32) -> (i32, i32, i32) {
    %c0_i32 = arith.constant 0 : i32
    %c0_i32_0 = arith.constant 0 : i32
    %c0_i32_1 = arith.constant 0 : i32
    return %arg1, %c0_i32, %c0_i32_0 : i32, i32, i32
  }
  func.func @transform_13(%arg0: i32, %arg1: i32) -> (i32, i32, i32) {
    %c0_i32 = arith.constant 0 : i32
    %c0_i32_0 = arith.constant 0 : i32
    %c0_i32_1 = arith.constant 0 : i32
    return %arg1, %c0_i32, %c0_i32_0 : i32, i32, i32
  }
  func.func @transform_14(%arg0: i32, %arg1: i32) -> (i32, i32, i32) {
    %c0_i32 = arith.constant 0 : i32
    %c0_i32_0 = arith.constant 0 : i32
    %c0_i32_1 = arith.constant 0 : i32
    return %arg1, %c0_i32, %c0_i32_0 : i32, i32, i32
  }
  func.func @transform_15(%arg0: i32, %arg1: i32) -> (i32, i32, i32) {
    %c0_i32 = arith.constant 0 : i32
    %c0_i32_0 = arith.constant 0 : i32
    %c0_i32_1 = arith.constant 0 : i32
    return %arg0, %c0_i32, %c0_i32_0 : i32, i32, i32
  }
}

</mosaic_0001>

<llo_original>
// kernel: tpu_custom_call.1
$region0: #{tpu_custom_call.1}
  #allocation0 [shape = 'u32[]', space=smem, size = 0x4, offset = 0x4, fixed_abs, tag = 'smem constant byte address 0x4 - core index']
  #allocation1 [shape = 'u32[144,128]{1,0:T(1,128)}', space=vmem, size = 0x12000, scoped, tag = 'internal scratch']
  %s0 = inlined_call_operand.hbm [shape: f32[2,128,128], index: 0, kind: input, shape index: {}]
  %s1 = inlined_call_operand.vmem [shape: f32[2,1,128], index: 1, kind: input, shape index: {}]
  %s2 = inlined_call_operand.hbm [shape: f32[2,1,128], index: 2, kind: input, shape index: {}]
  %s3 = inlined_call_operand.hbm [shape: f32[2,128,128], index: 3, kind: input, shape index: {}]
  %s4 = inlined_call_operand.hbm [shape: f32[2,1,128], index: 4, kind: input, shape index: {}]
  %s5 = inlined_call_operand.hbm [shape: f32[2,128,256], index: 5, kind: input, shape index: {}]
  %s6 = inlined_call_operand.vmem [shape: f32[2,1,256], index: 6, kind: input, shape index: {}]
  %s7 = inlined_call_operand.hbm [shape: f32[2,128,128], index: 7, kind: input, shape index: {}]
  %s8 = inlined_call_operand.vmem [shape: f32[2,1,128], index: 8, kind: input, shape index: {}]
  %s9 = inlined_call_operand.vmem [shape: f32[2,1,128], index: 9, kind: input, shape index: {}]
  %s10 = inlined_call_operand.vmem [shape: f32[2,1,128], index: 10, kind: input, shape index: {}]
  %s11 = inlined_call_operand.hbm [shape: f32[2,128,512], index: 11, kind: input, shape index: {}]
  %s12 = inlined_call_operand.vmem [shape: f32[2,1,512], index: 12, kind: input, shape index: {}]
  %s13 = inlined_call_operand.hbm [shape: f32[2,512,128], index: 13, kind: input, shape index: {}]
  %s14 = inlined_call_operand.vmem [shape: f32[2,1,128], index: 14, kind: input, shape index: {}]
  %s15 = inlined_call_operand.hbm [shape: f32[2,128,128], index: 15, kind: output, shape index: {}]
  %s16 = sld [smem:[#allocation0]]
  $region129: #{tpu_custom_call.1} parent=0
    _
  %s18 = ssub.s32 1, %s16
  %s19 = scalar_select 0, %s18, %s16
  $region1: #{tpu_custom_call.1} parent=0
    #allocation2 [shape = 'u8[131072]{0}', space=vmem, size = 0x20000, scoped, tag = 'input window, operand 0']
    #allocation3 [shape = 's32[2]{0}', space=sflag, size = 0x8, scoped, tag = 'scoped memory for tpu_custom_call.1']
    #allocation4 [shape = 's32[2]{0}', space=sflag, size = 0x8, scoped, tag = 'scoped memory for tpu_custom_call.1']
    #allocation5 [shape = 'u8[1024]{0}', space=vmem, size = 0x400, scoped, tag = 'input window, operand 2']
    #allocation6 [shape = 's32[2]{0}', space=sflag, size = 0x8, scoped, tag = 'scoped memory for tpu_custom_call.1']
    #allocation7 [shape = 'u8[131072]{0}', space=vmem, size = 0x20000, scoped, tag = 'input window, operand 3']
    #allocation8 [shape = 'u8[1024]{0}', space=vmem, size = 0x400, scoped, tag = 'input window, operand 4']
    #allocation9 [shape = 's32[2]{0}', space=sflag, size = 0x8, scoped, tag = 'scoped memory for tpu_custom_call.1']
    #allocation10 [shape = 'u8[262144]{0}', space=vmem, size = 0x40000, scoped, tag = 'input window, operand 5']
    #allocation11 [shape = 'u8[131072]{0}', space=vmem, size = 0x20000, scoped, tag = 'input window, operand 7']
    #allocation12 [shape = 's32[2]{0}', space=sflag, size = 0x8, scoped, tag = 'scoped memory for tpu_custom_call.1']
    #allocation13 [shape = 'u8[524288]{0}', space=vmem, size = 0x80000, scoped, tag = 'input window, operand 11']
    #allocation14 [shape = 'u8[524288]{0}', space=vmem, size = 0x80000, scoped, tag = 'input window, operand 13']
    #allocation15 [shape = 's32[2]{0}', space=sflag, size = 0x8, scoped, tag = 'scoped memory for tpu_custom_call.1']
    #allocation16 [shape = 'u8[131072]{0}', space=vmem, size = 0x20000, scoped, tag = 'output window, operand 0']
    %20 = vsyncpa [#allocation3], 0
    %s21 = scalar_lea.sflag [#allocation3], 1
    %22 = vsyncpa %s21, 0
    %23 = vsyncpa [#allocation6], 0
    %s24 = scalar_lea.sflag [#allocation6], 1
    %25 = vsyncpa %s24, 0
    %26 = vsyncpa [#allocation9], 0
    %s27 = scalar_lea.sflag [#allocation9], 1
    %28 = vsyncpa %s27, 0
    %29 = vsyncpa [#allocation12], 0
    %s30 = scalar_lea.sflag [#allocation12], 1
    %31 = vsyncpa %s30, 0
    %32 = vsyncpa [#allocation15], 0
    %s33 = scalar_lea.sflag [#allocation15], 1
    %34 = vsyncpa %s33, 0
    %35 = vsyncpa [#allocation4], 0
    %s36 = scalar_lea.sflag [#allocation4], 1
    %37 = vsyncpa %s36, 0
    loop: start=0, step=1, limit=6
    $region2: #{tpu_custom_call.1} parent=1 // loop_pre_header
      _
    $region3: #{tpu_custom_call.1} parent=1 // loop_header
      %s39 = sphi 0, %s43
      %p40 = scmp.ge.s32.totalorder %s39, 6
      %s46 = sphi 0, %s58
      %s47 = sphi 0, %s54
      %s48 = sphi 0, %s46
      %s49 = sphi 0, %s47
      %s50 = sphi 0, %s48
      %s51 = sphi 0, %s49
      %s61 = sphi 0, %s63
      %s64 = sphi 0, %s61
      %s65 = sphi 0, %s64
      %s81 = sphi 0, %s65
      %s87 = sphi 0, %s89
      %s90 = sphi 0, %s87
      %s91 = sphi 0, %s90
      %s107 = sphi 0, %s91
      %s113 = sphi 0, %s115
      %s116 = sphi 0, %s113
      %s117 = sphi 0, %s116
      %s133 = sphi 0, %s117
      %s139 = sphi 0, %s141
      %s142 = sphi 0, %s139
      %s143 = sphi 0, %s142
      %s159 = sphi 0, %s143
      %s165 = sphi 0, %s167
      %s168 = sphi 0, %s165
      %s169 = sphi 0, %s168
      %s185 = sphi 0, %s169
      %s191 = sphi 0, %s193
      %s194 = sphi 0, %s191
      %s195 = sphi 0, %s194
      %s211 = sphi 0, %s195
      %s217 = sphi 0, %s219
      %s220 = sphi 0, %s217
      %s221 = sphi 0, %s220
      %s237 = sphi 0, %s221
      %s243 = sphi 0, %s245
      %s246 = sphi 0, %s243
      %s247 = sphi 0, %s246
      %s263 = sphi 0, %s247
      %s269 = sphi 0, %s271
      %s272 = sphi 0, %s269
      %s273 = sphi 0, %s272
      %s289 = sphi 0, %s273
      %s295 = sphi 0, %s297
      %s298 = sphi 0, %s295
      %s299 = sphi 0, %s298
      %s315 = sphi 0, %s299
      %s321 = sphi 0, %s323
      %s324 = sphi 0, %s321
      %s325 = sphi 0, %s324
      %s341 = sphi 0, %s325
      %s347 = sphi 0, %s349
      %s350 = sphi 0, %s347
      %s351 = sphi 0, %s350
      %s367 = sphi 0, %s351
      %s373 = sphi 0, %s375
      %s376 = sphi 0, %s373
      %s377 = sphi 0, %s376
      %s393 = sphi 0, %s377
      %s399 = sphi 0, %s401
      %s402 = sphi 0, %s399
      %s403 = sphi 0, %s402
      %s419 = sphi 0, %s403
      %s425 = sphi 0, %s427
      %s428 = sphi 0, %s425
      %s429 = sphi 0, %s428
      %s445 = sphi 0, %s429
      %s451 = sphi 0, %s453
      %s454 = sphi 0, %s451
      %s455 = sphi 0, %s454
      %s471 = sphi 0, %s455
    $region4: #{tpu_custom_call.1} parent=1 // loop_header_branch
      %42 = sbr.rel (%p40) target = $region8
    $region5: #{tpu_custom_call.1} parent=1 // loop_body
      %s44 = ssub.s32 %s39, 1
      %s45 = ssub.s32 %s39, 2
      %s52 = sadd.s32 1, %s47
      %p53 = scmp.ge.s32.totalorder %s52, 2
      %s54 = scalar_select %p53, 0, %s52
      %s55 = sadd.s32 1, %s46
      %s56 = scalar_select %p53, %s55, %s46
      %p57 = scmp.ge.s32.totalorder %s56, 2
      %s58 = scalar_select %p57, 0, %s56
      %s59 = ssub.s32 %s46, %s58
      %p60 = scmp.eq.s32.totalorder %s59, 0
      %s62 = sadd.s32 %s61, 1
      %s63 = scalar_select %p60, %s61, %s62
      %p66 = pneg %p60
      %p67 = scmp.eq.s32.totalorder %s39, 3
      %p68 = por %p66, %p67
      %p69 = scmp.ne.s32.totalorder %s61, %s64
      %p70 = scmp.eq.s32.totalorder %s39, 0
      %p71 = por %p69, %p70
      %p72 = scmp.ne.s32.totalorder %s61, %s64
      %p73 = scmp.eq.s32.totalorder %s44, 3
      %p74 = por %p72, %p73
      %p75 = scmp.ne.s32.totalorder %s64, %s65
      %p76 = scmp.eq.s32.totalorder %s44, 0
      %p77 = por %p75, %p76
      %p78 = scmp.ne.s32.totalorder %s64, %s65
      %p79 = scmp.eq.s32.totalorder %s45, 3
      %p80 = por %p78, %p79
      %p82 = scmp.ne.s32.totalorder %s65, %s81
      %p83 = scmp.eq.s32.totalorder %s45, 0
      %p84 = por %p82, %p83
      %s85 = ssub.s32 %s47, %s54
      %p86 = scmp.eq.s32.totalorder %s85, 0
      %s88 = sadd.s32 %s87, 1
      %s89 = scalar_select %p86, %s87, %s88
      %p92 = pneg %p86
      %p93 = scmp.eq.s32.totalorder %s39, 3
      %p94 = por %p92, %p93
      %p95 = scmp.ne.s32.totalorder %s87, %s90
      %p96 = scmp.eq.s32.totalorder %s39, 0
      %p97 = por %p95, %p96
      %p98 = scmp.ne.s32.totalorder %s87, %s90
      %p99 = scmp.eq.s32.totalorder %s44, 3
      %p100 = por %p98, %p99
      %p101 = scmp.ne.s32.totalorder %s90, %s91
      %p102 = scmp.eq.s32.totalorder %s44, 0
      %p103 = por %p101, %p102
      %p104 = scmp.ne.s32.totalorder %s90, %s91
      %p105 = scmp.eq.s32.totalorder %s45, 3
      %p106 = por %p104, %p105
      %p108 = scmp.ne.s32.totalorder %s91, %s107
      %p109 = scmp.eq.s32.totalorder %s45, 0
      %p110 = por %p108, %p109
      %s111 = ssub.s32 %s47, %s54
      %p112 = scmp.eq.s32.totalorder %s111, 0
      %s114 = sadd.s32 %s113, 1
      %s115 = scalar_select %p112, %s113, %s114
      %p118 = pneg %p112
      %p119 = scmp.eq.s32.totalorder %s39, 3
      %p120 = por %p118, %p119
      %p121 = scmp.ne.s32.totalorder %s113, %s116
      %p122 = scmp.eq.s32.totalorder %s39, 0
      %p123 = por %p121, %p122
      %p124 = scmp.ne.s32.totalorder %s113, %s116
      %p125 = scmp.eq.s32.totalorder %s44, 3
      %p126 = por %p124, %p125
      %p127 = scmp.ne.s32.totalorder %s116, %s117
      %p128 = scmp.eq.s32.totalorder %s44, 0
      %p129 = por %p127, %p128
      %p130 = scmp.ne.s32.totalorder %s116, %s117
      %p131 = scmp.eq.s32.totalorder %s45, 3
      %p132 = por %p130, %p131
      %p134 = scmp.ne.s32.totalorder %s117, %s133
      %p135 = scmp.eq.s32.totalorder %s45, 0
      %p136 = por %p134, %p135
      %s137 = ssub.s32 %s47, %s54
      %p138 = scmp.eq.s32.totalorder %s137, 0
      %s140 = sadd.s32 %s139, 1
      %s141 = scalar_select %p138, %s139, %s140
      %p144 = pneg %p138
      %p145 = scmp.eq.s32.totalorder %s39, 3
      %p146 = por %p144, %p145
      %p147 = scmp.ne.s32.totalorder %s139, %s142
      %p148 = scmp.eq.s32.totalorder %s39, 0
      %p149 = por %p147, %p148
      %p150 = scmp.ne.s32.totalorder %s139, %s142
      %p151 = scmp.eq.s32.totalorder %s44, 3
      %p152 = por %p150, %p151
      %p153 = scmp.ne.s32.totalorder %s142, %s143
      %p154 = scmp.eq.s32.totalorder %s44, 0
      %p155 = por %p153, %p154
      %p156 = scmp.ne.s32.totalorder %s142, %s143
      %p157 = scmp.eq.s32.totalorder %s45, 3
      %p158 = por %p156, %p157
      %p160 = scmp.ne.s32.totalorder %s143, %s159
      %p161 = scmp.eq.s32.totalorder %s45, 0
      %p162 = por %p160, %p161
      %s163 = ssub.s32 %s47, %s54
      %p164 = scmp.eq.s32.totalorder %s163, 0
      %s166 = sadd.s32 %s165, 1
      %s167 = scalar_select %p164, %s165, %s166
      %p170 = pneg %p164
      %p171 = scmp.eq.s32.totalorder %s39, 3
      %p172 = por %p170, %p171
      %p173 = scmp.ne.s32.totalorder %s165, %s168
      %p174 = scmp.eq.s32.totalorder %s39, 0
      %p175 = por %p173, %p174
      %p176 = scmp.ne.s32.totalorder %s165, %s168
      %p177 = scmp.eq.s32.totalorder %s44, 3
      %p178 = por %p176, %p177
      %p179 = scmp.ne.s32.totalorder %s168, %s169
      %p180 = scmp.eq.s32.totalorder %s44, 0
      %p181 = por %p179, %p180
      %p182 = scmp.ne.s32.totalorder %s168, %s169
      %p183 = scmp.eq.s32.totalorder %s45, 3
      %p184 = por %p182, %p183
      %p186 = scmp.ne.s32.totalorder %s169, %s185
      %p187 = scmp.eq.s32.totalorder %s45, 0
      %p188 = por %p186, %p187
      %s189 = ssub.s32 %s47, %s54
      %p190 = scmp.eq.s32.totalorder %s189, 0
      %s192 = sadd.s32 %s191, 1
      %s193 = scalar_select %p190, %s191, %s192
      %p196 = pneg %p190
      %p197 = scmp.eq.s32.totalorder %s39, 3
      %p198 = por %p196, %p197
      %p199 = scmp.ne.s32.totalorder %s191, %s194
      %p200 = scmp.eq.s32.totalorder %s39, 0
      %p201 = por %p199, %p200
      %p202 = scmp.ne.s32.totalorder %s191, %s194
      %p203 = scmp.eq.s32.totalorder %s44, 3
      %p204 = por %p202, %p203
      %p205 = scmp.ne.s32.totalorder %s194, %s195
      %p206 = scmp.eq.s32.totalorder %s44, 0
      %p207 = por %p205, %p206
      %p208 = scmp.ne.s32.totalorder %s194, %s195
      %p209 = scmp.eq.s32.totalorder %s45, 3
      %p210 = por %p208, %p209
      %p212 = scmp.ne.s32.totalorder %s195, %s211
      %p213 = scmp.eq.s32.totalorder %s45, 0
      %p214 = por %p212, %p213
      %s215 = ssub.s32 %s47, %s54
      %p216 = scmp.eq.s32.totalorder %s215, 0
      %s218 = sadd.s32 %s217, 1
      %s219 = scalar_select %p216, %s217, %s218
      %p222 = pneg %p216
      %p223 = scmp.eq.s32.totalorder %s39, 3
      %p224 = por %p222, %p223
      %p225 = scmp.ne.s32.totalorder %s217, %s220
      %p226 = scmp.eq.s32.totalorder %s39, 0
      %p227 = por %p225, %p226
      %p228 = scmp.ne.s32.totalorder %s217, %s220
      %p229 = scmp.eq.s32.totalorder %s44, 3
      %p230 = por %p228, %p229
      %p231 = scmp.ne.s32.totalorder %s220, %s221
      %p232 = scmp.eq.s32.totalorder %s44, 0
      %p233 = por %p231, %p232
      %p234 = scmp.ne.s32.totalorder %s220, %s221
      %p235 = scmp.eq.s32.totalorder %s45, 3
      %p236 = por %p234, %p235
      %p238 = scmp.ne.s32.totalorder %s221, %s237
      %p239 = scmp.eq.s32.totalorder %s45, 0
      %p240 = por %p238, %p239
      %s241 = ssub.s32 %s47, %s54
      %p242 = scmp.eq.s32.totalorder %s241, 0
      %s244 = sadd.s32 %s243, 1
      %s245 = scalar_select %p242, %s243, %s244
      %p248 = pneg %p242
      %p249 = scmp.eq.s32.totalorder %s39, 3
      %p250 = por %p248, %p249
      %p251 = scmp.ne.s32.totalorder %s243, %s246
      %p252 = scmp.eq.s32.totalorder %s39, 0
      %p253 = por %p251, %p252
      %p254 = scmp.ne.s32.totalorder %s243, %s246
      %p255 = scmp.eq.s32.totalorder %s44, 3
      %p256 = por %p254, %p255
      %p257 = scmp.ne.s32.totalorder %s246, %s247
      %p258 = scmp.eq.s32.totalorder %s44, 0
      %p259 = por %p257, %p258
      %p260 = scmp.ne.s32.totalorder %s246, %s247
      %p261 = scmp.eq.s32.totalorder %s45, 3
      %p262 = por %p260, %p261
      %p264 = scmp.ne.s32.totalorder %s247, %s263
      %p265 = scmp.eq.s32.totalorder %s45, 0
      %p266 = por %p264, %p265
      %s267 = ssub.s32 %s47, %s54
      %p268 = scmp.eq.s32.totalorder %s267, 0
      %s270 = sadd.s32 %s269, 1
      %s271 = scalar_select %p268, %s269, %s270
      %p274 = pneg %p268
      %p275 = scmp.eq.s32.totalorder %s39, 3
      %p276 = por %p274, %p275
      %p277 = scmp.ne.s32.totalorder %s269, %s272
      %p278 = scmp.eq.s32.totalorder %s39, 0
      %p279 = por %p277, %p278
      %p280 = scmp.ne.s32.totalorder %s269, %s272
      %p281 = scmp.eq.s32.totalorder %s44, 3
      %p282 = por %p280, %p281
      %p283 = scmp.ne.s32.totalorder %s272, %s273
      %p284 = scmp.eq.s32.totalorder %s44, 0
      %p285 = por %p283, %p284
      %p286 = scmp.ne.s32.totalorder %s272, %s273
      %p287 = scmp.eq.s32.totalorder %s45, 3
      %p288 = por %p286, %p287
      %p290 = scmp.ne.s32.totalorder %s273, %s289
      %p291 = scmp.eq.s32.totalorder %s45, 0
      %p292 = por %p290, %p291
      %s293 = ssub.s32 %s47, %s54
      %p294 = scmp.eq.s32.totalorder %s293, 0
      %s296 = sadd.s32 %s295, 1
      %s297 = scalar_select %p294, %s295, %s296
      %p300 = pneg %p294
      %p301 = scmp.eq.s32.totalorder %s39, 3
      %p302 = por %p300, %p301
      %p303 = scmp.ne.s32.totalorder %s295, %s298
      %p304 = scmp.eq.s32.totalorder %s39, 0
      %p305 = por %p303, %p304
      %p306 = scmp.ne.s32.totalorder %s295, %s298
      %p307 = scmp.eq.s32.totalorder %s44, 3
      %p308 = por %p306, %p307
      %p309 = scmp.ne.s32.totalorder %s298, %s299
      %p310 = scmp.eq.s32.totalorder %s44, 0
      %p311 = por %p309, %p310
      %p312 = scmp.ne.s32.totalorder %s298, %s299
      %p313 = scmp.eq.s32.totalorder %s45, 3
      %p314 = por %p312, %p313
      %p316 = scmp.ne.s32.totalorder %s299, %s315
      %p317 = scmp.eq.s32.totalorder %s45, 0
      %p318 = por %p316, %p317
      %s319 = ssub.s32 %s47, %s54
      %p320 = scmp.eq.s32.totalorder %s319, 0
      %s322 = sadd.s32 %s321, 1
      %s323 = scalar_select %p320, %s321, %s322
      %p326 = pneg %p320
      %p327 = scmp.eq.s32.totalorder %s39, 3
      %p328 = por %p326, %p327
      %p329 = scmp.ne.s32.totalorder %s321, %s324
      %p330 = scmp.eq.s32.totalorder %s39, 0
      %p331 = por %p329, %p330
      %p332 = scmp.ne.s32.totalorder %s321, %s324
      %p333 = scmp.eq.s32.totalorder %s44, 3
      %p334 = por %p332, %p333
      %p335 = scmp.ne.s32.totalorder %s324, %s325
      %p336 = scmp.eq.s32.totalorder %s44, 0
      %p337 = por %p335, %p336
      %p338 = scmp.ne.s32.totalorder %s324, %s325
      %p339 = scmp.eq.s32.totalorder %s45, 3
      %p340 = por %p338, %p339
      %p342 = scmp.ne.s32.totalorder %s325, %s341
      %p343 = scmp.eq.s32.totalorder %s45, 0
      %p344 = por %p342, %p343
      %s345 = ssub.s32 %s47, %s54
      %p346 = scmp.eq.s32.totalorder %s345, 0
      %s348 = sadd.s32 %s347, 1
      %s349 = scalar_select %p346, %s347, %s348
      %p352 = pneg %p346
      %p353 = scmp.eq.s32.totalorder %s39, 3
      %p354 = por %p352, %p353
      %p355 = scmp.ne.s32.totalorder %s347, %s350
      %p356 = scmp.eq.s32.totalorder %s39, 0
      %p357 = por %p355, %p356
      %p358 = scmp.ne.s32.totalorder %s347, %s350
      %p359 = scmp.eq.s32.totalorder %s44, 3
      %p360 = por %p358, %p359
      %p361 = scmp.ne.s32.totalorder %s350, %s351
      %p362 = scmp.eq.s32.totalorder %s44, 0
      %p363 = por %p361, %p362
      %p364 = scmp.ne.s32.totalorder %s350, %s351
      %p365 = scmp.eq.s32.totalorder %s45, 3
      %p366 = por %p364, %p365
      %p368 = scmp.ne.s32.totalorder %s351, %s367
      %p369 = scmp.eq.s32.totalorder %s45, 0
      %p370 = por %p368, %p369
      %s371 = ssub.s32 %s47, %s54
      %p372 = scmp.eq.s32.totalorder %s371, 0
      %s374 = sadd.s32 %s373, 1
      %s375 = scalar_select %p372, %s373, %s374
      %p378 = pneg %p372
      %p379 = scmp.eq.s32.totalorder %s39, 3
      %p380 = por %p378, %p379
      %p381 = scmp.ne.s32.totalorder %s373, %s376
      %p382 = scmp.eq.s32.totalorder %s39, 0
      %p383 = por %p381, %p382
      %p384 = scmp.ne.s32.totalorder %s373, %s376
      %p385 = scmp.eq.s32.totalorder %s44, 3
      %p386 = por %p384, %p385
      %p387 = scmp.ne.s32.totalorder %s376, %s377
      %p388 = scmp.eq.s32.totalorder %s44, 0
      %p389 = por %p387, %p388
      %p390 = scmp.ne.s32.totalorder %s376, %s377
      %p391 = scmp.eq.s32.totalorder %s45, 3
      %p392 = por %p390, %p391
      %p394 = scmp.ne.s32.totalorder %s377, %s393
      %p395 = scmp.eq.s32.totalorder %s45, 0
      %p396 = por %p394, %p395
      %s397 = ssub.s32 %s47, %s54
      %p398 = scmp.eq.s32.totalorder %s397, 0
      %s400 = sadd.s32 %s399, 1
      %s401 = scalar_select %p398, %s399, %s400
      %p404 = pneg %p398
      %p405 = scmp.eq.s32.totalorder %s39, 3
      %p406 = por %p404, %p405
      %p407 = scmp.ne.s32.totalorder %s399, %s402
      %p408 = scmp.eq.s32.totalorder %s39, 0
      %p409 = por %p407, %p408
      %p410 = scmp.ne.s32.totalorder %s399, %s402
      %p411 = scmp.eq.s32.totalorder %s44, 3
      %p412 = por %p410, %p411
      %p413 = scmp.ne.s32.totalorder %s402, %s403
      %p414 = scmp.eq.s32.totalorder %s44, 0
      %p415 = por %p413, %p414
      %p416 = scmp.ne.s32.totalorder %s402, %s403
      %p417 = scmp.eq.s32.totalorder %s45, 3
      %p418 = por %p416, %p417
      %p420 = scmp.ne.s32.totalorder %s403, %s419
      %p421 = scmp.eq.s32.totalorder %s45, 0
      %p422 = por %p420, %p421
      %s423 = ssub.s32 %s47, %s54
      %p424 = scmp.eq.s32.totalorder %s423, 0
      %s426 = sadd.s32 %s425, 1
      %s427 = scalar_select %p424, %s425, %s426
      %p430 = pneg %p424
      %p431 = scmp.eq.s32.totalorder %s39, 3
      %p432 = por %p430, %p431
      %p433 = scmp.ne.s32.totalorder %s425, %s428
      %p434 = scmp.eq.s32.totalorder %s39, 0
      %p435 = por %p433, %p434
      %p436 = scmp.ne.s32.totalorder %s425, %s428
      %p437 = scmp.eq.s32.totalorder %s44, 3
      %p438 = por %p436, %p437
      %p439 = scmp.ne.s32.totalorder %s428, %s429
      %p440 = scmp.eq.s32.totalorder %s44, 0
      %p441 = por %p439, %p440
      %p442 = scmp.ne.s32.totalorder %s428, %s429
      %p443 = scmp.eq.s32.totalorder %s45, 3
      %p444 = por %p442, %p443
      %p446 = scmp.ne.s32.totalorder %s429, %s445
      %p447 = scmp.eq.s32.totalorder %s45, 0
      %p448 = por %p446, %p447
      %s449 = ssub.s32 %s46, %s58
      %p450 = scmp.eq.s32.totalorder %s449, 0
      %s452 = sadd.s32 %s451, 1
      %s453 = scalar_select %p450, %s451, %s452
      %p456 = pneg %p450
      %p457 = scmp.eq.s32.totalorder %s39, 3
      %p458 = por %p456, %p457
      %p459 = scmp.ne.s32.totalorder %s451, %s454
      %p460 = scmp.eq.s32.totalorder %s39, 0
      %p461 = por %p459, %p460
      %p462 = scmp.ne.s32.totalorder %s451, %s454
      %p463 = scmp.eq.s32.totalorder %s44, 3
      %p464 = por %p462, %p463
      %p465 = scmp.ne.s32.totalorder %s454, %s455
      %p466 = scmp.eq.s32.totalorder %s44, 0
      %p467 = por %p465, %p466
      %p468 = scmp.ne.s32.totalorder %s454, %s455
      %p469 = scmp.eq.s32.totalorder %s45, 3
      %p470 = por %p468, %p469
      %p472 = scmp.ne.s32.totalorder %s455, %s471
      %p473 = scmp.eq.s32.totalorder %s45, 0
      %p474 = por %p472, %p473
      %p475 = scmp.le.s32.totalorder 1, %s39
      %p476 = scmp.lt.s32.totalorder %s39, 5
      %p477 = pnand %p475, %p476
      %p478 = pneg %p477
      // Predicated region
      $region9: #{tpu_custom_call.1} parent=5 // pred_check
        _
      $region10: #{tpu_custom_call.1} parent=5 // pred_check_branch
        %480 = sbr.rel (%p477) target = $region12
      $region11: #{tpu_custom_call.1} parent=5 // pred_region
        %s481 = ssub.s32 %s39, 1
      $region12: #{tpu_custom_call.1} parent=5 // pred_fallthru
        _
      %p482 = scmp.lt.s32.totalorder %s39, 4
      // Predicated region
      $region13: #{tpu_custom_call.1} parent=5 // pred_check
        %p483 = pneg %p482
      $region14: #{tpu_custom_call.1} parent=5 // pred_check_branch
        %485 = sbr.rel (%p483) target = $region16
      $region15: #{tpu_custom_call.1} parent=5 // pred_region
        // Predicated region
        $region17: #{tpu_custom_call.1} parent=15 // pred_check
          %p486 = pneg %p71
        $region18: #{tpu_custom_call.1} parent=15 // pred_check_branch
          %488 = sbr.rel (%p486) target = $region20
        $region19: #{tpu_custom_call.1} parent=15 // pred_region
          %s489 = sand.u32 %s61, 1
          %s490 = scalar_lea.sflag [#allocation3], %s489
          %s491 = sand.u32 %s61, 1
          %s492 = smul.addr %s491, 128
          %s493 = scalar_lea.vmem [#allocation2], %s492
          %s495 = ssub.s32 2048, 2048
          %496 = vsyncadd %s490, %s495
          %s497 = smul.addr %s46, 16
          %s498 = smul.addr %s497, 128
          %s499 = scalar_lea.hbm %s0, %s498
          %s500 = sshll.u32 %s493, 4
          %s501 = int_to_ptr.vmem [resolvable:$true] %s500
          %506 = dma.hbm_to_vmem [thread:$0]  %s499, 2048, %s501, %s490, 128, 128, 8
        $region20: #{tpu_custom_call.1} parent=15 // pred_fallthru
          _
        // Predicated region
        $region21: #{tpu_custom_call.1} parent=15 // pred_check
          %p507 = pneg %p97
        $region22: #{tpu_custom_call.1} parent=15 // pred_check_branch
          %509 = sbr.rel (%p507) target = $region24
        $region23: #{tpu_custom_call.1} parent=15 // pred_region
          %p510 = scmp.lt.s32.totalorder %s47, 1
          %s511 = scalar_select %p510, %s47, 1
          %s512 = scalar_lea.vmem %s1, %s511
        $region24: #{tpu_custom_call.1} parent=15 // pred_fallthru
          _
        // Predicated region
        $region25: #{tpu_custom_call.1} parent=15 // pred_check
          %p513 = pneg %p123
        $region26: #{tpu_custom_call.1} parent=15 // pred_check_branch
          %515 = sbr.rel (%p513) target = $region28
        $region27: #{tpu_custom_call.1} parent=15 // pred_region
          %s516 = sand.u32 %s39, 1
          %s517 = scalar_lea.sflag [#allocation6], %s516
          %s518 = sand.u32 %s113, 1
          %s519 = scalar_lea.vmem [#allocation5], %s518
          %s521 = ssub.s32 16, 16
          %522 = vsyncadd %s517, %s521
          %s523 = smul.addr %s47, 16
          %s524 = scalar_lea.hbm %s2, %s523
          %s526 = sshll.u32 %s519, 4
          %s527 = int_to_ptr.vmem [resolvable:$true] %s526
          %529 = dma.hbm_to_vmem [thread:$0]  %s524, 16, %s527, %s517
        $region28: #{tpu_custom_call.1} parent=15 // pred_fallthru
          _
        // Predicated region
        $region29: #{tpu_custom_call.1} parent=15 // pred_check
          %p530 = pneg %p149
        $region30: #{tpu_custom_call.1} parent=15 // pred_check_branch
          %532 = sbr.rel (%p530) target = $region32
        $region31: #{tpu_custom_call.1} parent=15 // pred_region
          %s533 = sand.u32 %s39, 1
          %s534 = scalar_lea.sflag [#allocation6], %s533
          %s535 = sand.u32 %s139, 1
          %s536 = smul.addr %s535, 128
          %s537 = scalar_lea.vmem [#allocation7], %s536
          %s539 = ssub.s32 2048, 2048
          %540 = vsyncadd %s534, %s539
          %s541 = smul.addr %s47, 16
          %s542 = smul.addr %s541, 128
          %s543 = scalar_lea.hbm %s3, %s542
          %s544 = sshll.u32 %s537, 4
          %s545 = int_to_ptr.vmem [resolvable:$true] %s544
          %550 = dma.hbm_to_vmem [thread:$0]  %s543, 2048, %s545, %s534, 128, 128, 8
        $region32: #{tpu_custom_call.1} parent=15 // pred_fallthru
          _
        // Predicated region
        $region33: #{tpu_custom_call.1} parent=15 // pred_check
          %p551 = pneg %p175
        $region34: #{tpu_custom_call.1} parent=15 // pred_check_branch
          %553 = sbr.rel (%p551) target = $region36
        $region35: #{tpu_custom_call.1} parent=15 // pred_region
          %s554 = sand.u32 %s39, 1
          %s555 = scalar_lea.sflag [#allocation9], %s554
          %s556 = sand.u32 %s165, 1
          %s557 = scalar_lea.vmem [#allocation8], %s556
          %s559 = ssub.s32 16, 16
          %560 = vsyncadd %s555, %s559
          %s561 = smul.addr %s47, 16
          %s562 = scalar_lea.hbm %s4, %s561
          %s564 = sshll.u32 %s557, 4
          %s565 = int_to_ptr.vmem [resolvable:$true] %s564
          %567 = dma.hbm_to_vmem [thread:$0]  %s562, 16, %s565, %s555
        $region36: #{tpu_custom_call.1} parent=15 // pred_fallthru
          _
        // Predicated region
        $region37: #{tpu_custom_call.1} parent=15 // pred_check
          %p568 = pneg %p201
        $region38: #{tpu_custom_call.1} parent=15 // pred_check_branch
          %570 = sbr.rel (%p568) target = $region40
        $region39: #{tpu_custom_call.1} parent=15 // pred_region
          %s571 = sand.u32 %s39, 1
          %s572 = scalar_lea.sflag [#allocation9], %s571
          %s573 = sand.u32 %s191, 1
          %s574 = smul.addr %s573, 256
          %s575 = scalar_lea.vmem [#allocation10], %s574
          %s577 = ssub.s32 4096, 4096
          %578 = vsyncadd %s572, %s577
          %s579 = smul.addr %s47, 32
          %s580 = smul.addr %s579, 128
          %s581 = scalar_lea.hbm %s5, %s580
          %s582 = sshll.u32 %s575, 4
          %s583 = int_to_ptr.vmem [resolvable:$true] %s582
          %588 = dma.hbm_to_vmem [thread:$0]  %s581, 4096, %s583, %s572, 256, 256, 16
        $region40: #{tpu_custom_call.1} parent=15 // pred_fallthru
          _
        // Predicated region
        $region41: #{tpu_custom_call.1} parent=15 // pred_check
          %p589 = pneg %p227
        $region42: #{tpu_custom_call.1} parent=15 // pred_check_branch
          %591 = sbr.rel (%p589) target = $region44
        $region43: #{tpu_custom_call.1} parent=15 // pred_region
          %p592 = scmp.lt.s32.totalorder %s47, 1
          %s593 = scalar_select %p592, %s47, 1
          %s594 = smul.addr %s593, 2
          %s595 = scalar_lea.vmem %s6, %s594
        $region44: #{tpu_custom_call.1} parent=15 // pred_fallthru
          _
        // Predicated region
        $region45: #{tpu_custom_call.1} parent=15 // pred_check
          %p596 = pneg %p253
        $region46: #{tpu_custom_call.1} parent=15 // pred_check_branch
          %598 = sbr.rel (%p596) target = $region48
        $region47: #{tpu_custom_call.1} parent=15 // pred_region
          %s599 = sand.u32 %s39, 1
          %s600 = scalar_lea.sflag [#allocation12], %s599
          %s601 = sand.u32 %s243, 1
          %s602 = smul.addr %s601, 128
          %s603 = scalar_lea.vmem [#allocation11], %s602
          %s605 = ssub.s32 2048, 2048
          %606 = vsyncadd %s600, %s605
          %s607 = smul.addr %s47, 16
          %s608 = smul.addr %s607, 128
          %s609 = scalar_lea.hbm %s7, %s608
          %s610 = sshll.u32 %s603, 4
          %s611 = int_to_ptr.vmem [resolvable:$true] %s610
          %616 = dma.hbm_to_vmem [thread:$0]  %s609, 2048, %s611, %s600, 128, 128, 8
        $region48: #{tpu_custom_call.1} parent=15 // pred_fallthru
          _
        // Predicated region
        $region49: #{tpu_custom_call.1} parent=15 // pred_check
          %p617 = pneg %p279
        $region50: #{tpu_custom_call.1} parent=15 // pred_check_branch
          %619 = sbr.rel (%p617) target = $region52
        $region51: #{tpu_custom_call.1} parent=15 // pred_region
          %p620 = scmp.lt.s32.totalorder %s47, 1
          %s621 = scalar_select %p620, %s47, 1
          %s622 = scalar_lea.vmem %s8, %s621
        $region52: #{tpu_custom_call.1} parent=15 // pred_fallthru
          _
        // Predicated region
        $region53: #{tpu_custom_call.1} parent=15 // pred_check
          %p623 = pneg %p305
        $region54: #{tpu_custom_call.1} parent=15 // pred_check_branch
          %625 = sbr.rel (%p623) target = $region56
        $region55: #{tpu_custom_call.1} parent=15 // pred_region
          %p626 = scmp.lt.s32.totalorder %s47, 1
          %s627 = scalar_select %p626, %s47, 1
          %s628 = scalar_lea.vmem %s9, %s627
        $region56: #{tpu_custom_call.1} parent=15 // pred_fallthru
          _
        // Predicated region
        $region57: #{tpu_custom_call.1} parent=15 // pred_check
          %p629 = pneg %p331
        $region58: #{tpu_custom_call.1} parent=15 // pred_check_branch
          %631 = sbr.rel (%p629) target = $region60
        $region59: #{tpu_custom_call.1} parent=15 // pred_region
          %p632 = scmp.lt.s32.totalorder %s47, 1
          %s633 = scalar_select %p632, %s47, 1
          %s634 = scalar_lea.vmem %s10, %s633
        $region60: #{tpu_custom_call.1} parent=15 // pred_fallthru
          _
        // Predicated region
        $region61: #{tpu_custom_call.1} parent=15 // pred_check
          %p635 = pneg %p357
        $region62: #{tpu_custom_call.1} parent=15 // pred_check_branch
          %637 = sbr.rel (%p635) target = $region64
        $region63: #{tpu_custom_call.1} parent=15 // pred_region
          %s638 = sand.u32 %s39, 1
          %s639 = scalar_lea.sflag [#allocation12], %s638
          %s640 = sand.u32 %s347, 1
          %s641 = smul.addr %s640, 512
          %s642 = scalar_lea.vmem [#allocation13], %s641
          %s644 = ssub.s32 8192, 8192
          %645 = vsyncadd %s639, %s644
          %s646 = smul.addr %s47, 64
          %s647 = smul.addr %s646, 128
          %s648 = scalar_lea.hbm %s11, %s647
          %s649 = sshll.u32 %s642, 4
          %s650 = int_to_ptr.vmem [resolvable:$true] %s649
          %655 = dma.hbm_to_vmem [thread:$0]  %s648, 8192, %s650, %s639, 512, 512, 32
        $region64: #{tpu_custom_call.1} parent=15 // pred_fallthru
          _
        // Predicated region
        $region65: #{tpu_custom_call.1} parent=15 // pred_check
          %p656 = pneg %p383
        $region66: #{tpu_custom_call.1} parent=15 // pred_check_branch
          %658 = sbr.rel (%p656) target = $region68
        $region67: #{tpu_custom_call.1} parent=15 // pred_region
          %p659 = scmp.lt.s32.totalorder %s47, 1
          %s660 = scalar_select %p659, %s47, 1
          %s661 = smul.addr %s660, 4
          %s662 = scalar_lea.vmem %s12, %s661
        $region68: #{tpu_custom_call.1} parent=15 // pred_fallthru
          _
        // Predicated region
        $region69: #{tpu_custom_call.1} parent=15 // pred_check
          %p663 = pneg %p409
        $region70: #{tpu_custom_call.1} parent=15 // pred_check_branch
          %665 = sbr.rel (%p663) target = $region72
        $region71: #{tpu_custom_call.1} parent=15 // pred_region
          %s666 = sand.u32 %s399, 1
          %s667 = scalar_lea.sflag [#allocation15], %s666
          %s668 = sand.u32 %s399, 1
          %s669 = smul.addr %s668, 512
          %s670 = scalar_lea.vmem [#allocation14], %s669
          %s672 = ssub.s32 8192, 8192
          %673 = vsyncadd %s667, %s672
          %s674 = smul.addr %s47, 64
          %s675 = smul.addr %s674, 128
          %s676 = scalar_lea.hbm %s13, %s675
          %s677 = sshll.u32 %s670, 4
          %s678 = int_to_ptr.vmem [resolvable:$true] %s677
          %683 = dma.hbm_to_vmem [thread:$0]  %s676, 8192, %s678, %s667, 128, 128, 8
        $region72: #{tpu_custom_call.1} parent=15 // pred_fallthru
          _
        // Predicated region
        $region73: #{tpu_custom_call.1} parent=15 // pred_check
          %p684 = pneg %p435
        $region74: #{tpu_custom_call.1} parent=15 // pred_check_branch
          %686 = sbr.rel (%p684) target = $region76
        $region75: #{tpu_custom_call.1} parent=15 // pred_region
          %p687 = scmp.lt.s32.totalorder %s47, 1
          %s688 = scalar_select %p687, %s47, 1
          %s689 = scalar_lea.vmem %s14, %s688
        $region76: #{tpu_custom_call.1} parent=15 // pred_fallthru
          _
      $region16: #{tpu_custom_call.1} parent=5 // pred_fallthru
        _
      %p690 = scmp.le.s32.totalorder 1, %s39
      %p691 = scmp.lt.s32.totalorder %s39, 5
      %p692 = pnand %p690, %p691
      %p693 = pneg %p692
      // Predicated region
      $region77: #{tpu_custom_call.1} parent=5 // pred_check
        _
      $region78: #{tpu_custom_call.1} parent=5 // pred_check_branch
        %695 = sbr.rel (%p692) target = $region80
      $region79: #{tpu_custom_call.1} parent=5 // pred_region
        %s696 = ssub.s32 %s39, 1
        %s697 = sand.u32 %s64, 1
        %s698 = scalar_lea.sflag [#allocation3], %s697
        %s699 = sand.u32 %s64, 1
        %s700 = smul.addr %s699, 128
        %s701 = scalar_lea.vmem [#allocation2], %s700
        // Predicated region
        $region81: #{tpu_custom_call.1} parent=79 // pred_check
          %p702 = pneg %p77
        $region82: #{tpu_custom_call.1} parent=79 // pred_check_branch
          %704 = sbr.rel (%p702) target = $region84
        $region83: #{tpu_custom_call.1} parent=79 // pred_region
          %705 = dma.done %s698, 2048
        $region84: #{tpu_custom_call.1} parent=79 // pred_fallthru
          _
        %s706 = sand.u32 %s44, 1
        %s707 = scalar_lea.sflag [#allocation6], %s706
        %s708 = sand.u32 %s116, 1
        %s709 = scalar_lea.vmem [#allocation5], %s708
        // Predicated region
        $region85: #{tpu_custom_call.1} parent=79 // pred_check
          %p710 = pneg %p129
        $region86: #{tpu_custom_call.1} parent=79 // pred_check_branch
          %712 = sbr.rel (%p710) target = $region88
        $region87: #{tpu_custom_call.1} parent=79 // pred_region
          %713 = dma.done %s707, 16
        $region88: #{tpu_custom_call.1} parent=79 // pred_fallthru
          _
        %s714 = sand.u32 %s44, 1
        %s715 = scalar_lea.sflag [#allocation6], %s714
        %s716 = sand.u32 %s142, 1
        %s717 = smul.addr %s716, 128
        %s718 = scalar_lea.vmem [#allocation7], %s717
        // Predicated region
        $region89: #{tpu_custom_call.1} parent=79 // pred_check
          %p719 = pneg %p155
        $region90: #{tpu_custom_call.1} parent=79 // pred_check_branch
          %721 = sbr.rel (%p719) target = $region92
        $region91: #{tpu_custom_call.1} parent=79 // pred_region
          %722 = dma.done %s715, 2048
        $region92: #{tpu_custom_call.1} parent=79 // pred_fallthru
          _
        %s723 = sand.u32 %s44, 1
        %s724 = scalar_lea.sflag [#allocation9], %s723
        %s725 = sand.u32 %s168, 1
        %s726 = scalar_lea.vmem [#allocation8], %s725
        // Predicated region
        $region93: #{tpu_custom_call.1} parent=79 // pred_check
          %p727 = pneg %p181
        $region94: #{tpu_custom_call.1} parent=79 // pred_check_branch
          %729 = sbr.rel (%p727) target = $region96
        $region95: #{tpu_custom_call.1} parent=79 // pred_region
          %730 = dma.done %s724, 16
        $region96: #{tpu_custom_call.1} parent=79 // pred_fallthru
          _
        %s731 = sand.u32 %s44, 1
        %s732 = scalar_lea.sflag [#allocation9], %s731
        %s733 = sand.u32 %s194, 1
        %s734 = smul.addr %s733, 256
        %s735 = scalar_lea.vmem [#allocation10], %s734
        // Predicated region
        $region97: #{tpu_custom_call.1} parent=79 // pred_check
          %p736 = pneg %p207
        $region98: #{tpu_custom_call.1} parent=79 // pred_check_branch
          %738 = sbr.rel (%p736) target = $region100
        $region99: #{tpu_custom_call.1} parent=79 // pred_region
          %739 = dma.done %s732, 4096
        $region100: #{tpu_custom_call.1} parent=79 // pred_fallthru
          _
        %s740 = sand.u32 %s44, 1
        %s741 = scalar_lea.sflag [#allocation12], %s740
        %s742 = sand.u32 %s246, 1
        %s743 = smul.addr %s742, 128
        %s744 = scalar_lea.vmem [#allocation11], %s743
        // Predicated region
        $region101: #{tpu_custom_call.1} parent=79 // pred_check
          %p745 = pneg %p259
        $region102: #{tpu_custom_call.1} parent=79 // pred_check_branch
          %747 = sbr.rel (%p745) target = $region104
        $region103: #{tpu_custom_call.1} parent=79 // pred_region
          %748 = dma.done %s741, 2048
        $region104: #{tpu_custom_call.1} parent=79 // pred_fallthru
          _
        %s749 = sand.u32 %s44, 1
        %s750 = scalar_lea.sflag [#allocation12], %s749
        %s751 = sand.u32 %s350, 1
        %s752 = smul.addr %s751, 512
        %s753 = scalar_lea.vmem [#allocation13], %s752
        // Predicated region
        $region105: #{tpu_custom_call.1} parent=79 // pred_check
          %p754 = pneg %p363
        $region106: #{tpu_custom_call.1} parent=79 // pred_check_branch
          %756 = sbr.rel (%p754) target = $region108
        $region107: #{tpu_custom_call.1} parent=79 // pred_region
          %757 = dma.done %s750, 8192
        $region108: #{tpu_custom_call.1} parent=79 // pred_fallthru
          _
        %s758 = sand.u32 %s402, 1
        %s759 = scalar_lea.sflag [#allocation15], %s758
        %s760 = sand.u32 %s402, 1
        %s761 = smul.addr %s760, 512
        %s762 = scalar_lea.vmem [#allocation14], %s761
        // Predicated region
        $region109: #{tpu_custom_call.1} parent=79 // pred_check
          %p763 = pneg %p415
        $region110: #{tpu_custom_call.1} parent=79 // pred_check_branch
          %765 = sbr.rel (%p763) target = $region112
        $region111: #{tpu_custom_call.1} parent=79 // pred_region
          %766 = dma.done %s759, 8192
        $region112: #{tpu_custom_call.1} parent=79 // pred_fallthru
          _
        %s767 = sand.u32 %s64, 1
        %s768 = scalar_lea.sflag [#allocation3], %s767
        %s769 = sand.u32 %s64, 1
        %s770 = smul.addr %s769, 128
        %s771 = scalar_lea.vmem [#allocation2], %s770
        %p772 = pneg %p77
        %p773 = pneg %p74
        %p774 = scmp.lt.s32.totalorder %s49, 1
        %s775 = scalar_select %p774, %s49, 1
        %s776 = scalar_lea.vmem %s1, %s775
        %p777 = pneg %p103
        %p778 = pneg %p100
        %s779 = sand.u32 %s44, 1
        %s780 = scalar_lea.sflag [#allocation6], %s779
        %s781 = sand.u32 %s116, 1
        %s782 = scalar_lea.vmem [#allocation5], %s781
        %p783 = pneg %p129
        %p784 = pneg %p126
        %s785 = sand.u32 %s44, 1
        %s786 = scalar_lea.sflag [#allocation6], %s785
        %s787 = sand.u32 %s142, 1
        %s788 = smul.addr %s787, 128
        %s789 = scalar_lea.vmem [#allocation7], %s788
        %p790 = pneg %p155
        %p791 = pneg %p152
        %s792 = sand.u32 %s44, 1
        %s793 = scalar_lea.sflag [#allocation9], %s792
        %s794 = sand.u32 %s168, 1
        %s795 = scalar_lea.vmem [#allocation8], %s794
        %p796 = pneg %p181
        %p797 = pneg %p178
        %s798 = sand.u32 %s44, 1
        %s799 = scalar_lea.sflag [#allocation9], %s798
        %s800 = sand.u32 %s194, 1
        %s801 = smul.addr %s800, 256
        %s802 = scalar_lea.vmem [#allocation10], %s801
        %p803 = pneg %p207
        %p804 = pneg %p204
        %p805 = scmp.lt.s32.totalorder %s49, 1
        %s806 = scalar_select %p805, %s49, 1
        %s807 = smul.addr %s806, 2
        %s808 = scalar_lea.vmem %s6, %s807
        %p809 = pneg %p233
        %p810 = pneg %p230
        %s811 = sand.u32 %s44, 1
        %s812 = scalar_lea.sflag [#allocation12], %s811
        %s813 = sand.u32 %s246, 1
        %s814 = smul.addr %s813, 128
        %s815 = scalar_lea.vmem [#allocation11], %s814
        %p816 = pneg %p259
        %p817 = pneg %p256
        %p818 = scmp.lt.s32.totalorder %s49, 1
        %s819 = scalar_select %p818, %s49, 1
        %s820 = scalar_lea.vmem %s8, %s819
        %p821 = pneg %p285
        %p822 = pneg %p282
        %p823 = scmp.lt.s32.totalorder %s49, 1
        %s824 = scalar_select %p823, %s49, 1
        %s825 = scalar_lea.vmem %s9, %s824
        %p826 = pneg %p311
        %p827 = pneg %p308
        %p828 = scmp.lt.s32.totalorder %s49, 1
        %s829 = scalar_select %p828, %s49, 1
        %s830 = scalar_lea.vmem %s10, %s829
        %p831 = pneg %p337
        %p832 = pneg %p334
        %s833 = sand.u32 %s44, 1
        %s834 = scalar_lea.sflag [#allocation12], %s833
        %s835 = sand.u32 %s350, 1
        %s836 = smul.addr %s835, 512
        %s837 = scalar_lea.vmem [#allocation13], %s836
        %p838 = pneg %p363
        %p839 = pneg %p360
        %p840 = scmp.lt.s32.totalorder %s49, 1
        %s841 = scalar_select %p840, %s49, 1
        %s842 = smul.addr %s841, 4
        %s843 = scalar_lea.vmem %s12, %s842
        %p844 = pneg %p389
        %p845 = pneg %p386
        %s846 = sand.u32 %s402, 1
        %s847 = scalar_lea.sflag [#allocation15], %s846
        %s848 = sand.u32 %s402, 1
        %s849 = smul.addr %s848, 512
        %s850 = scalar_lea.vmem [#allocation14], %s849
        %p851 = pneg %p415
        %p852 = pneg %p412
        %p853 = scmp.lt.s32.totalorder %s49, 1
        %s854 = scalar_select %p853, %s49, 1
        %s855 = scalar_lea.vmem %s14, %s854
        %p856 = pneg %p441
        %p857 = pneg %p438
        %p858 = pneg %p467
        %p859 = pneg %p464
        %s860 = sand.u32 %s454, 1
        %s861 = scalar_lea.sflag [#allocation4], %s860
        %s862 = sand.u32 %s454, 1
        %s863 = smul.addr %s862, 128
        %s864 = scalar_lea.vmem [#allocation16], %s863
        %p865 = scmp.lt.s32.totalorder %s49, 1
        %s866 = scalar_select %p865, %s49, 1
        %s867 = scalar_lea.vmem %s1, %s866
        %p868 = scmp.lt.s32.totalorder %s49, 1
        %s869 = scalar_select %p868, %s49, 1
        %s870 = smul.addr %s869, 2
        %s871 = scalar_lea.vmem %s6, %s870
        %p872 = scmp.lt.s32.totalorder %s49, 1
        %s873 = scalar_select %p872, %s49, 1
        %s874 = scalar_lea.vmem %s8, %s873
        %p875 = scmp.lt.s32.totalorder %s49, 1
        %s876 = scalar_select %p875, %s49, 1
        %s877 = scalar_lea.vmem %s9, %s876
        %p878 = scmp.lt.s32.totalorder %s49, 1
        %s879 = scalar_select %p878, %s49, 1
        %s880 = scalar_lea.vmem %s10, %s879
        %p881 = scmp.lt.s32.totalorder %s49, 1
        %s882 = scalar_select %p881, %s49, 1
        %s883 = smul.addr %s882, 4
        %s884 = scalar_lea.vmem %s12, %s883
        %p885 = scmp.lt.s32.totalorder %s49, 1
        %s886 = scalar_select %p885, %s49, 1
        %s887 = scalar_lea.vmem %s14, %s886
        %p888 = scmp.eq.s32.totalorder %s49, 0
        // Predicated region
        $region113: #{tpu_custom_call.1} parent=79 // pred_check
          %p889 = pneg %p888
        $region114: #{tpu_custom_call.1} parent=79 // pred_check_branch
          %891 = sbr.rel (%p889) target = $region116
        $region115: #{tpu_custom_call.1} parent=79 // pred_region
          %v892 = vld [vmem:[%s701] sm:$0xff]
          %v893 = vld [vmem:[%s701 + $0x8] sm:$0xff]
          %v894 = vld [vmem:[%s701 + $0x10] sm:$0xff]
          %v895 = vld [vmem:[%s701 + $0x18] sm:$0xff]
          %v896 = vld [vmem:[%s701 + $0x20] sm:$0xff]
          %v897 = vld [vmem:[%s701 + $0x28] sm:$0xff]
          %v898 = vld [vmem:[%s701 + $0x30] sm:$0xff]
          %v899 = vld [vmem:[%s701 + $0x38] sm:$0xff]
          %v900 = vld [vmem:[%s701 + $0x40] sm:$0xff]
          %v901 = vld [vmem:[%s701 + $0x48] sm:$0xff]
          %v902 = vld [vmem:[%s701 + $0x50] sm:$0xff]
          %v903 = vld [vmem:[%s701 + $0x58] sm:$0xff]
          %v904 = vld [vmem:[%s701 + $0x60] sm:$0xff]
          %v905 = vld [vmem:[%s701 + $0x68] sm:$0xff]
          %v906 = vld [vmem:[%s701 + $0x70] sm:$0xff]
          %v907 = vld [vmem:[%s701 + $0x78] sm:$0xff]
          %908 = vst [vmem:[%s864] sm:$0xff] %v892
          %909 = vst [vmem:[%s864 + $0x8] sm:$0xff] %v893
          %910 = vst [vmem:[%s864 + $0x10] sm:$0xff] %v894
          %911 = vst [vmem:[%s864 + $0x18] sm:$0xff] %v895
          %912 = vst [vmem:[%s864 + $0x20] sm:$0xff] %v896
          %913 = vst [vmem:[%s864 + $0x28] sm:$0xff] %v897
          %914 = vst [vmem:[%s864 + $0x30] sm:$0xff] %v898
          %915 = vst [vmem:[%s864 + $0x38] sm:$0xff] %v899
          %916 = vst [vmem:[%s864 + $0x40] sm:$0xff] %v900
          %917 = vst [vmem:[%s864 + $0x48] sm:$0xff] %v901
          %918 = vst [vmem:[%s864 + $0x50] sm:$0xff] %v902
          %919 = vst [vmem:[%s864 + $0x58] sm:$0xff] %v903
          %920 = vst [vmem:[%s864 + $0x60] sm:$0xff] %v904
          %921 = vst [vmem:[%s864 + $0x68] sm:$0xff] %v905
          %922 = vst [vmem:[%s864 + $0x70] sm:$0xff] %v906
          %923 = vst [vmem:[%s864 + $0x78] sm:$0xff] %v907
        $region116: #{tpu_custom_call.1} parent=79 // pred_fallthru
          _
        %v924 = vld [vmem:[%s864] sm:$0xff]
        %v925 = vld [vmem:[%s864 + $0x8] sm:$0xff]
        %v926 = vld [vmem:[%s864 + $0x10] sm:$0xff]
        %v927 = vld [vmem:[%s864 + $0x18] sm:$0xff]
        %v928 = vld [vmem:[%s864 + $0x20] sm:$0xff]
        %v929 = vld [vmem:[%s864 + $0x28] sm:$0xff]
        %v930 = vld [vmem:[%s864 + $0x30] sm:$0xff]
        %v931 = vld [vmem:[%s864 + $0x38] sm:$0xff]
        %v932 = vld [vmem:[%s864 + $0x40] sm:$0xff]
        %v933 = vld [vmem:[%s864 + $0x48] sm:$0xff]
        %v934 = vld [vmem:[%s864 + $0x50] sm:$0xff]
        %v935 = vld [vmem:[%s864 + $0x58] sm:$0xff]
        %v936 = vld [vmem:[%s864 + $0x60] sm:$0xff]
        %v937 = vld [vmem:[%s864 + $0x68] sm:$0xff]
        %v938 = vld [vmem:[%s864 + $0x70] sm:$0xff]
        %v939 = vld [vmem:[%s864 + $0x78] sm:$0xff]
        %v940 = vld [vmem:[%s867] sm:$0x1]
        %v941 = vld [vmem:[%s709] sm:$0x1]
        %942 = vadd.xlane.f32.xlu0 %v924
        %v943 = vpop.xlane.xlu0 %942
        %944 = vadd.xlane.f32.xlu0 %v925
        %v945 = vpop.xlane.xlu0 %944
        %946 = vadd.xlane.f32.xlu0 %v926
        %v947 = vpop.xlane.xlu0 %946
        %948 = vadd.xlane.f32.xlu0 %v927
        %v949 = vpop.xlane.xlu0 %948
        %950 = vadd.xlane.f32.xlu0 %v928
        %v951 = vpop.xlane.xlu0 %950
        %952 = vadd.xlane.f32.xlu0 %v929
        %v953 = vpop.xlane.xlu0 %952
        %954 = vadd.xlane.f32.xlu0 %v930
        %v955 = vpop.xlane.xlu0 %954
        %956 = vadd.xlane.f32.xlu0 %v931
        %v957 = vpop.xlane.xlu0 %956
        %958 = vadd.xlane.f32.xlu0 %v932
        %v959 = vpop.xlane.xlu0 %958
        %960 = vadd.xlane.f32.xlu0 %v933
        %v961 = vpop.xlane.xlu0 %960
        %962 = vadd.xlane.f32.xlu0 %v934
        %v963 = vpop.xlane.xlu0 %962
        %964 = vadd.xlane.f32.xlu0 %v935
        %v965 = vpop.xlane.xlu0 %964
        %966 = vadd.xlane.f32.xlu0 %v936
        %v967 = vpop.xlane.xlu0 %966
        %968 = vadd.xlane.f32.xlu0 %v937
        %v969 = vpop.xlane.xlu0 %968
        %970 = vadd.xlane.f32.xlu0 %v938
        %v971 = vpop.xlane.xlu0 %970
        %972 = vadd.xlane.f32.xlu0 %v939
        %v973 = vpop.xlane.xlu0 %972
        %v974 = vrcp.pop 128.0
        %v975 = vmul.f32 %v943, %v974
        %v976 = vmul.f32 %v945, %v974
        %v977 = vmul.f32 %v947, %v974
        %v978 = vmul.f32 %v949, %v974
        %v979 = vmul.f32 %v951, %v974
        %v980 = vmul.f32 %v953, %v974
        %v981 = vmul.f32 %v955, %v974
        %v982 = vmul.f32 %v957, %v974
        %v983 = vmul.f32 %v959, %v974
        %v984 = vmul.f32 %v961, %v974
        %v985 = vmul.f32 %v963, %v974
        %v986 = vmul.f32 %v965, %v974
        %v987 = vmul.f32 %v967, %v974
        %v988 = vmul.f32 %v969, %v974
        %v989 = vmul.f32 %v971, %v974
        %v990 = vmul.f32 %v973, %v974
        %v991 = vsub.f32 %v924, %v975
        %v992 = vsub.f32 %v925, %v976
        %v993 = vsub.f32 %v926, %v977
        %v994 = vsub.f32 %v927, %v978
        %v995 = vsub.f32 %v928, %v979
        %v996 = vsub.f32 %v929, %v980
        %v997 = vsub.f32 %v930, %v981
        %v998 = vsub.f32 %v931, %v982
        %v999 = vsub.f32 %v932, %v983
        %v1000 = vsub.f32 %v933, %v984
        %v1001 = vsub.f32 %v934, %v985
        %v1002 = vsub.f32 %v935, %v986
        %v1003 = vsub.f32 %v936, %v987
        %v1004 = vsub.f32 %v937, %v988
        %v1005 = vsub.f32 %v938, %v989
        %v1006 = vsub.f32 %v939, %v990
        %v1007 = vmul.f32 %v991, %v991
        %v1008 = vmul.f32 %v992, %v992
        %v1009 = vmul.f32 %v993, %v993
        %v1010 = vmul.f32 %v994, %v994
        %v1011 = vmul.f32 %v995, %v995
        %v1012 = vmul.f32 %v996, %v996
        %v1013 = vmul.f32 %v997, %v997
        %v1014 = vmul.f32 %v998, %v998
        %v1015 = vmul.f32 %v999, %v999
        %v1016 = vmul.f32 %v1000, %v1000
        %v1017 = vmul.f32 %v1001, %v1001
        %v1018 = vmul.f32 %v1002, %v1002
        %v1019 = vmul.f32 %v1003, %v1003
        %v1020 = vmul.f32 %v1004, %v1004
        %v1021 = vmul.f32 %v1005, %v1005
        %v1022 = vmul.f32 %v1006, %v1006
        %1023 = vadd.xlane.f32.xlu0 %v1007
        %v1024 = vpop.xlane.xlu0 %1023
        %1025 = vadd.xlane.f32.xlu0 %v1008
        %v1026 = vpop.xlane.xlu0 %1025
        %1027 = vadd.xlane.f32.xlu0 %v1009
        %v1028 = vpop.xlane.xlu0 %1027
        %1029 = vadd.xlane.f32.xlu0 %v1010
        %v1030 = vpop.xlane.xlu0 %1029
        %1031 = vadd.xlane.f32.xlu0 %v1011
        %v1032 = vpop.xlane.xlu0 %1031
        %1033 = vadd.xlane.f32.xlu0 %v1012
        %v1034 = vpop.xlane.xlu0 %1033
        %1035 = vadd.xlane.f32.xlu0 %v1013
        %v1036 = vpop.xlane.xlu0 %1035
        %1037 = vadd.xlane.f32.xlu0 %v1014
        %v1038 = vpop.xlane.xlu0 %1037
        %1039 = vadd.xlane.f32.xlu0 %v1015
        %v1040 = vpop.xlane.xlu0 %1039
        %1041 = vadd.xlane.f32.xlu0 %v1016
        %v1042 = vpop.xlane.xlu0 %1041
        %1043 = vadd.xlane.f32.xlu0 %v1017
        %v1044 = vpop.xlane.xlu0 %1043
        %1045 = vadd.xlane.f32.xlu0 %v1018
        %v1046 = vpop.xlane.xlu0 %1045
        %1047 = vadd.xlane.f32.xlu0 %v1019
        %v1048 = vpop.xlane.xlu0 %1047
        %1049 = vadd.xlane.f32.xlu0 %v1020
        %v1050 = vpop.xlane.xlu0 %1049
        %1051 = vadd.xlane.f32.xlu0 %v1021
        %v1052 = vpop.xlane.xlu0 %1051
        %1053 = vadd.xlane.f32.xlu0 %v1022
        %v1054 = vpop.xlane.xlu0 %1053
        %v1055 = vmul.f32 %v1024, %v974
        %v1056 = vmul.f32 %v1026, %v974
        %v1057 = vmul.f32 %v1028, %v974
        %v1058 = vmul.f32 %v1030, %v974
        %v1059 = vmul.f32 %v1032, %v974
        %v1060 = vmul.f32 %v1034, %v974
        %v1061 = vmul.f32 %v1036, %v974
        %v1062 = vmul.f32 %v1038, %v974
        %v1063 = vmul.f32 %v1040, %v974
        %v1064 = vmul.f32 %v1042, %v974
        %v1065 = vmul.f32 %v1044, %v974
        %v1066 = vmul.f32 %v1046, %v974
        %v1067 = vmul.f32 %v1048, %v974
        %v1068 = vmul.f32 %v1050, %v974
        %v1069 = vmul.f32 %v1052, %v974
        %v1070 = vmul.f32 %v1054, %v974
        %v1071 = vadd.f32 %v1055, 1e-05
        %v1072 = vadd.f32 %v1056, 1e-05
        %v1073 = vadd.f32 %v1057, 1e-05
        %v1074 = vadd.f32 %v1058, 1e-05
        %v1075 = vadd.f32 %v1059, 1e-05
        %v1076 = vadd.f32 %v1060, 1e-05
        %v1077 = vadd.f32 %v1061, 1e-05
        %v1078 = vadd.f32 %v1062, 1e-05
        %v1079 = vadd.f32 %v1063, 1e-05
        %v1080 = vadd.f32 %v1064, 1e-05
        %v1081 = vadd.f32 %v1065, 1e-05
        %v1082 = vadd.f32 %v1066, 1e-05
        %v1083 = vadd.f32 %v1067, 1e-05
        %v1084 = vadd.f32 %v1068, 1e-05
        %v1085 = vadd.f32 %v1069, 1e-05
        %v1086 = vadd.f32 %v1070, 1e-05
        %v1087 = vrsqrt.pop %v1071
        %v1088 = vrsqrt.pop %v1072
        %v1089 = vrsqrt.pop %v1073
        %v1090 = vrsqrt.pop %v1074
        %v1091 = vrsqrt.pop %v1075
        %v1092 = vrsqrt.pop %v1076
        %v1093 = vrsqrt.pop %v1077
        %v1094 = vrsqrt.pop %v1078
        %v1095 = vrsqrt.pop %v1079
        %v1096 = vrsqrt.pop %v1080
        %v1097 = vrsqrt.pop %v1081
        %v1098 = vrsqrt.pop %v1082
        %v1099 = vrsqrt.pop %v1083
        %v1100 = vrsqrt.pop %v1084
        %v1101 = vrsqrt.pop %v1085
        %v1102 = vrsqrt.pop %v1086
        %v1103 = vmul.f32 %v991, %v1087
        %v1104 = vmul.f32 %v992, %v1088
        %v1105 = vmul.f32 %v993, %v1089
        %v1106 = vmul.f32 %v994, %v1090
        %v1107 = vmul.f32 %v995, %v1091
        %v1108 = vmul.f32 %v996, %v1092
        %v1109 = vmul.f32 %v997, %v1093
        %v1110 = vmul.f32 %v998, %v1094
        %v1111 = vmul.f32 %v999, %v1095
        %v1112 = vmul.f32 %v1000, %v1096
        %v1113 = vmul.f32 %v1001, %v1097
        %v1114 = vmul.f32 %v1002, %v1098
        %v1115 = vmul.f32 %v1003, %v1099
        %v1116 = vmul.f32 %v1004, %v1100
        %v1117 = vmul.f32 %v1005, %v1101
        %v1118 = vmul.f32 %v1006, %v1102
        %v1120 = vlaneseq
        %v1121 = vshrl.u32 %v1120, 7
        %v1122 = vsub.s32 0, %v1121
        %v1123 = vrot.slane %v940, %v1122
        %v1125 = vmul.f32 %v1103, %v1123
        %v1126 = vmul.f32 %v1104, %v1123
        %v1127 = vmul.f32 %v1105, %v1123
        %v1128 = vmul.f32 %v1106, %v1123
        %v1129 = vmul.f32 %v1107, %v1123
        %v1130 = vmul.f32 %v1108, %v1123
        %v1131 = vmul.f32 %v1109, %v1123
        %v1132 = vmul.f32 %v1110, %v1123
        %v1133 = vmul.f32 %v1111, %v1123
        %v1134 = vmul.f32 %v1112, %v1123
        %v1135 = vmul.f32 %v1113, %v1123
        %v1136 = vmul.f32 %v1114, %v1123
        %v1137 = vmul.f32 %v1115, %v1123
        %v1138 = vmul.f32 %v1116, %v1123
        %v1139 = vmul.f32 %v1117, %v1123
        %v1140 = vmul.f32 %v1118, %v1123
        %v1142 = vlaneseq
        %v1143 = vshrl.u32 %v1142, 7
        %v1144 = vsub.s32 0, %v1143
        %v1145 = vrot.slane %v941, %v1144
        %v1147 = vadd.f32 %v1125, %v1145
        %v1148 = vadd.f32 %v1126, %v1145
        %v1149 = vadd.f32 %v1127, %v1145
        %v1150 = vadd.f32 %v1128, %v1145
        %v1151 = vadd.f32 %v1129, %v1145
        %v1152 = vadd.f32 %v1130, %v1145
        %v1153 = vadd.f32 %v1131, %v1145
        %v1154 = vadd.f32 %v1132, %v1145
        %v1155 = vadd.f32 %v1133, %v1145
        %v1156 = vadd.f32 %v1134, %v1145
        %v1157 = vadd.f32 %v1135, %v1145
        %v1158 = vadd.f32 %v1136, %v1145
        %v1159 = vadd.f32 %v1137, %v1145
        %v1160 = vadd.f32 %v1138, %v1145
        %v1161 = vadd.f32 %v1139, %v1145
        %v1162 = vadd.f32 %v1140, %v1145
        %v1163 = vld [vmem:[%s718] sm:$0xff]
        %v1164 = vld [vmem:[%s718 + $0x8] sm:$0xff]
        %v1165 = vld [vmem:[%s718 + $0x10] sm:$0xff]
        %v1166 = vld [vmem:[%s718 + $0x18] sm:$0xff]
        %v1167 = vld [vmem:[%s718 + $0x20] sm:$0xff]
        %v1168 = vld [vmem:[%s718 + $0x28] sm:$0xff]
        %v1169 = vld [vmem:[%s718 + $0x30] sm:$0xff]
        %v1170 = vld [vmem:[%s718 + $0x38] sm:$0xff]
        %v1171 = vld [vmem:[%s718 + $0x40] sm:$0xff]
        %v1172 = vld [vmem:[%s718 + $0x48] sm:$0xff]
        %v1173 = vld [vmem:[%s718 + $0x50] sm:$0xff]
        %v1174 = vld [vmem:[%s718 + $0x58] sm:$0xff]
        %v1175 = vld [vmem:[%s718 + $0x60] sm:$0xff]
        %v1176 = vld [vmem:[%s718 + $0x68] sm:$0xff]
        %v1177 = vld [vmem:[%s718 + $0x70] sm:$0xff]
        %v1178 = vld [vmem:[%s718 + $0x78] sm:$0xff]
        %v1179 = vld [vmem:[%s726] sm:$0x1]
        %v1181 = vlaneseq
        %v1182 = vshrl.u32 %v1181, 7
        %v1183 = vsub.s32 0, %v1182
        %v1184 = vrot.slane %v1179, %v1183
        %1186 = vmatprep.subr.mxu0 0.0
        %1187 = vmatpush1.msra.mxu0 %v1163
        %1188 = vmatprep.subr.mxu0 0.0
        %1189 = vmatpush1.msra.mxu0 %v1164
        %1190 = vmatprep.subr.mxu0 0.0
        %1191 = vmatpush1.msra.mxu0 %v1165
        %1192 = vmatprep.subr.mxu0 0.0
        %1193 = vmatpush1.msra.mxu0 %v1166
        %1194 = vmatprep.subr.mxu0 0.0
        %1195 = vmatpush1.msra.mxu0 %v1167
        %1196 = vmatprep.subr.mxu0 0.0
        %1197 = vmatpush1.msra.mxu0 %v1168
        %1198 = vmatprep.subr.mxu0 0.0
        %1199 = vmatpush1.msra.mxu0 %v1169
        %1200 = vmatprep.subr.mxu0 0.0
        %1201 = vmatpush1.msra.mxu0 %v1170
        %1202 = vmatprep.subr.mxu0 0.0
        %1203 = vmatpush1.msra.mxu0 %v1171
        %1204 = vmatprep.subr.mxu0 0.0
        %1205 = vmatpush1.msra.mxu0 %v1172
        %1206 = vmatprep.subr.mxu0 0.0
        %1207 = vmatpush1.msra.mxu0 %v1173
        %1208 = vmatprep.subr.mxu0 0.0
        %1209 = vmatpush1.msra.mxu0 %v1174
        %1210 = vmatprep.subr.mxu0 0.0
        %1211 = vmatpush1.msra.mxu0 %v1175
        %1212 = vmatprep.subr.mxu0 0.0
        %1213 = vmatpush1.msra.mxu0 %v1176
        %1214 = vmatprep.subr.mxu0 0.0
        %1215 = vmatpush1.msra.mxu0 %v1177
        %1216 = vmatprep.subr.mxu0 0.0
        %1217 = vmatpush1.msra.mxu0 %v1178
        %1218 = vmatprep.subr.mxu0 0.0
        %1219 = vmatpush1.msra.mxu0 0.0
        %1220 = vmatprep.subr.mxu0 0.0
        %1221 = vmatpush1.msra.mxu0 0.0
        %1222 = vmatprep.subr.mxu0 0.0
        %1223 = vmatpush1.msra.mxu0 0.0
        %1224 = vmatprep.subr.mxu0 0.0
        %1225 = vmatpush1.msra.mxu0 0.0
        %1226 = vmatprep.subr.mxu0 0.0
        %1227 = vmatpush1.msra.mxu0 0.0
        %1228 = vmatprep.subr.mxu0 0.0
        %1229 = vmatpush1.msra.mxu0 0.0
        %1230 = vmatprep.subr.mxu0 0.0
        %1231 = vmatpush1.msra.mxu0 0.0
        %1232 = vmatprep.subr.mxu0 0.0
        %1233 = vmatpush1.msra.mxu0 0.0
        %1234 = vmatprep.subr.mxu0 0.0
        %1235 = vmatpush1.msra.mxu0 0.0
        %1236 = vmatprep.subr.mxu0 0.0
        %1237 = vmatpush1.msra.mxu0 0.0
        %1238 = vmatprep.subr.mxu0 0.0
        %1239 = vmatpush1.msra.mxu0 0.0
        %1240 = vmatprep.subr.mxu0 0.0
        %1241 = vmatpush1.msra.mxu0 0.0
        %1242 = vmatprep.subr.mxu0 0.0
        %1243 = vmatpush1.msra.mxu0 0.0
        %1244 = vmatprep.subr.mxu0 0.0
        %1245 = vmatpush1.msra.mxu0 0.0
        %1246 = vmatprep.subr.mxu0 0.0
        %1247 = vmatpush1.msra.mxu0 0.0
        %1248 = vmatprep.subr.mxu0 0.0
        %1249 = vmatpush1.msra.mxu0 0.0
        %1250 = vmatprep.mubr.f32.mxu0 0.0
        %1251 = vmatmul.mubr.f32.gmra.mrb[0].mxu0 %v1147
        %v1252 = vpop.f32.mrb[0].mxu0
        %v1253 = vadd.f32 %v1184, %v1252
        %v1254 = vpop.f32.mrb[0].mxu0
        %1255 = vmatprep.mubr.f32.mxu0 0.0
        %1256 = vmatmul.mubr.f32.gmra.mrb[0].mxu0 %v1148
        %v1257 = vpop.f32.mrb[0].mxu0
        %v1258 = vadd.f32 %v1184, %v1257
        %v1259 = vpop.f32.mrb[0].mxu0
        %1260 = vmatprep.mubr.f32.mxu0 0.0
        %1261 = vmatmul.mubr.f32.gmra.mrb[0].mxu0 %v1149
        %v1262 = vpop.f32.mrb[0].mxu0
        %v1263 = vadd.f32 %v1184, %v1262
        %v1264 = vpop.f32.mrb[0].mxu0
        %1265 = vmatprep.mubr.f32.mxu0 0.0
        %1266 = vmatmul.mubr.f32.gmra.mrb[0].mxu0 %v1150
        %v1267 = vpop.f32.mrb[0].mxu0
        %v1268 = vadd.f32 %v1184, %v1267
        %v1269 = vpop.f32.mrb[0].mxu0
        %1270 = vmatprep.mubr.f32.mxu0 0.0
        %1271 = vmatmul.mubr.f32.gmra.mrb[0].mxu0 %v1151
        %v1272 = vpop.f32.mrb[0].mxu0
        %v1273 = vadd.f32 %v1184, %v1272
        %v1274 = vpop.f32.mrb[0].mxu0
        %1275 = vmatprep.mubr.f32.mxu0 0.0
        %1276 = vmatmul.mubr.f32.gmra.mrb[0].mxu0 %v1152
        %v1277 = vpop.f32.mrb[0].mxu0
        %v1278 = vadd.f32 %v1184, %v1277
        %v1279 = vpop.f32.mrb[0].mxu0
        %1280 = vmatprep.mubr.f32.mxu0 0.0
        %1281 = vmatmul.mubr.f32.gmra.mrb[0].mxu0 %v1153
        %v1282 = vpop.f32.mrb[0].mxu0
        %v1283 = vadd.f32 %v1184, %v1282
        %v1284 = vpop.f32.mrb[0].mxu0
        %1285 = vmatprep.mubr.f32.mxu0 0.0
        %1286 = vmatmul.mubr.f32.gmra.mrb[0].mxu0 %v1154
        %v1287 = vpop.f32.mrb[0].mxu0
        %v1288 = vadd.f32 %v1184, %v1287
        %v1289 = vpop.f32.mrb[0].mxu0
        %1290 = vmatprep.mubr.f32.mxu0 0.0
        %1291 = vmatmul.mubr.f32.gmra.mrb[0].mxu0 %v1155
        %v1292 = vpop.f32.mrb[0].mxu0
        %v1293 = vadd.f32 %v1184, %v1292
        %v1294 = vpop.f32.mrb[0].mxu0
        %1295 = vmatprep.mubr.f32.mxu0 0.0
        %1296 = vmatmul.mubr.f32.gmra.mrb[0].mxu0 %v1156
        %v1297 = vpop.f32.mrb[0].mxu0
        %v1298 = vadd.f32 %v1184, %v1297
        %v1299 = vpop.f32.mrb[0].mxu0
        %1300 = vmatprep.mubr.f32.mxu0 0.0
        %1301 = vmatmul.mubr.f32.gmra.mrb[0].mxu0 %v1157
        %v1302 = vpop.f32.mrb[0].mxu0
        %v1303 = vadd.f32 %v1184, %v1302
        %v1304 = vpop.f32.mrb[0].mxu0
        %1305 = vmatprep.mubr.f32.mxu0 0.0
        %1306 = vmatmul.mubr.f32.gmra.mrb[0].mxu0 %v1158
        %v1307 = vpop.f32.mrb[0].mxu0
        %v1308 = vadd.f32 %v1184, %v1307
        %v1309 = vpop.f32.mrb[0].mxu0
        %1310 = vmatprep.mubr.f32.mxu0 0.0
        %1311 = vmatmul.mubr.f32.gmra.mrb[0].mxu0 %v1159
        %v1312 = vpop.f32.mrb[0].mxu0
        %v1313 = vadd.f32 %v1184, %v1312
        %v1314 = vpop.f32.mrb[0].mxu0
        %1315 = vmatprep.mubr.f32.mxu0 0.0
        %1316 = vmatmul.mubr.f32.gmra.mrb[0].mxu0 %v1160
        %v1317 = vpop.f32.mrb[0].mxu0
        %v1318 = vadd.f32 %v1184, %v1317
        %v1319 = vpop.f32.mrb[0].mxu0
        %1320 = vmatprep.mubr.f32.mxu0 0.0
        %1321 = vmatmul.mubr.f32.gmra.mrb[0].mxu0 %v1161
        %v1322 = vpop.f32.mrb[0].mxu0
        %v1323 = vadd.f32 %v1184, %v1322
        %v1324 = vpop.f32.mrb[0].mxu0
        %1325 = vmatprep.mubr.f32.mxu0 0.0
        %1326 = vmatmul.mubr.f32.gmra.mrb[0].mxu0 %v1162
        %v1327 = vpop.f32.mrb[0].mxu0
        %v1328 = vadd.f32 %v1184, %v1327
        %v1329 = vpop.f32.mrb[0].mxu0
        %1330 = vdwg.mxu0
        %v1331 = vld [vmem:[%s735] sm:$0xff]
        %v1332 = vld [vmem:[%s735 + $0x8] sm:$0xff]
        %v1333 = vld [vmem:[%s735 + $0x10] sm:$0xff]
        %v1334 = vld [vmem:[%s735 + $0x18] sm:$0xff]
        %v1335 = vld [vmem:[%s735 + $0x20] sm:$0xff]
        %v1336 = vld [vmem:[%s735 + $0x28] sm:$0xff]
        %v1337 = vld [vmem:[%s735 + $0x30] sm:$0xff]
        %v1338 = vld [vmem:[%s735 + $0x38] sm:$0xff]
        %v1339 = vld [vmem:[%s735 + $0x40] sm:$0xff]
        %v1340 = vld [vmem:[%s735 + $0x48] sm:$0xff]
        %v1341 = vld [vmem:[%s735 + $0x50] sm:$0xff]
        %v1342 = vld [vmem:[%s735 + $0x58] sm:$0xff]
        %v1343 = vld [vmem:[%s735 + $0x60] sm:$0xff]
        %v1344 = vld [vmem:[%s735 + $0x68] sm:$0xff]
        %v1345 = vld [vmem:[%s735 + $0x70] sm:$0xff]
        %v1346 = vld [vmem:[%s735 + $0x78] sm:$0xff]
        %v1347 = vld [vmem:[%s735 + $0x80] sm:$0xff]
        %v1348 = vld [vmem:[%s735 + $0x88] sm:$0xff]
        %v1349 = vld [vmem:[%s735 + $0x90] sm:$0xff]
        %v1350 = vld [vmem:[%s735 + $0x98] sm:$0xff]
        %v1351 = vld [vmem:[%s735 + $0xa0] sm:$0xff]
        %v1352 = vld [vmem:[%s735 + $0xa8] sm:$0xff]
        %v1353 = vld [vmem:[%s735 + $0xb0] sm:$0xff]
        %v1354 = vld [vmem:[%s735 + $0xb8] sm:$0xff]
        %v1355 = vld [vmem:[%s735 + $0xc0] sm:$0xff]
        %v1356 = vld [vmem:[%s735 + $0xc8] sm:$0xff]
        %v1357 = vld [vmem:[%s735 + $0xd0] sm:$0xff]
        %v1358 = vld [vmem:[%s735 + $0xd8] sm:$0xff]
        %v1359 = vld [vmem:[%s735 + $0xe0] sm:$0xff]
        %v1360 = vld [vmem:[%s735 + $0xe8] sm:$0xff]
        %v1361 = vld [vmem:[%s735 + $0xf0] sm:$0xff]
        %v1362 = vld [vmem:[%s735 + $0xf8] sm:$0xff]
        %v1363 = vld [vmem:[%s871] sm:$0x3]
        %v1365 = vlaneseq
        %v1366 = vshrl.u32 %v1365, 7
        %v1367 = vsub.s32 0, %v1366
        %v1368 = vrot.slane %v1363, %v1367
        %v1369 = vlaneseq
        %v1370 = vshrl.u32 %v1369, 7
        %v1371 = vsub.s32 1, %v1370
        %v1372 = vrot.slane %v1363, %v1371
        %1375 = vmatprep.subr.mxu0 %v1332
        %1376 = vmatpush1.msra.mxu0 %v1331
        %1377 = vmatprep.subr.mxu0 %v1334
        %1378 = vmatpush1.msra.mxu0 %v1333
        %1379 = vmatprep.subr.mxu0 %v1336
        %1380 = vmatpush1.msra.mxu0 %v1335
        %1381 = vmatprep.subr.mxu0 %v1338
        %1382 = vmatpush1.msra.mxu0 %v1337
        %1383 = vmatprep.subr.mxu0 %v1340
        %1384 = vmatpush1.msra.mxu0 %v1339
        %1385 = vmatprep.subr.mxu0 %v1342
        %1386 = vmatpush1.msra.mxu0 %v1341
        %1387 = vmatprep.subr.mxu0 %v1344
        %1388 = vmatpush1.msra.mxu0 %v1343
        %1389 = vmatprep.subr.mxu0 %v1346
        %1390 = vmatpush1.msra.mxu0 %v1345
        %1391 = vmatprep.subr.mxu0 %v1348
        %1392 = vmatpush1.msra.mxu0 %v1347
        %1393 = vmatprep.subr.mxu0 %v1350
        %1394 = vmatpush1.msra.mxu0 %v1349
        %1395 = vmatprep.subr.mxu0 %v1352
        %1396 = vmatpush1.msra.mxu0 %v1351
        %1397 = vmatprep.subr.mxu0 %v1354
        %1398 = vmatpush1.msra.mxu0 %v1353
        %1399 = vmatprep.subr.mxu0 %v1356
        %1400 = vmatpush1.msra.mxu0 %v1355
        %1401 = vmatprep.subr.mxu0 %v1358
        %1402 = vmatpush1.msra.mxu0 %v1357
        %1403 = vmatprep.subr.mxu0 %v1360
        %1404 = vmatpush1.msra.mxu0 %v1359
        %1405 = vmatprep.subr.mxu0 %v1362
        %1406 = vmatpush1.msra.mxu0 %v1361
        %1407 = vmatprep.subr.mxu0 0.0
        %1408 = vmatpush1.msra.mxu0 0.0
        %1409 = vmatprep.subr.mxu0 0.0
        %1410 = vmatpush1.msra.mxu0 0.0
        %1411 = vmatprep.subr.mxu0 0.0
        %1412 = vmatpush1.msra.mxu0 0.0
        %1413 = vmatprep.subr.mxu0 0.0
        %1414 = vmatpush1.msra.mxu0 0.0
        %1415 = vmatprep.subr.mxu0 0.0
        %1416 = vmatpush1.msra.mxu0 0.0
        %1417 = vmatprep.subr.mxu0 0.0
        %1418 = vmatpush1.msra.mxu0 0.0
        %1419 = vmatprep.subr.mxu0 0.0
        %1420 = vmatpush1.msra.mxu0 0.0
        %1421 = vmatprep.subr.mxu0 0.0
        %1422 = vmatpush1.msra.mxu0 0.0
        %1423 = vmatprep.subr.mxu0 0.0
        %1424 = vmatpush1.msra.mxu0 0.0
        %1425 = vmatprep.subr.mxu0 0.0
        %1426 = vmatpush1.msra.mxu0 0.0
        %1427 = vmatprep.subr.mxu0 0.0
        %1428 = vmatpush1.msra.mxu0 0.0
        %1429 = vmatprep.subr.mxu0 0.0
        %1430 = vmatpush1.msra.mxu0 0.0
        %1431 = vmatprep.subr.mxu0 0.0
        %1432 = vmatpush1.msra.mxu0 0.0
        %1433 = vmatprep.subr.mxu0 0.0
        %1434 = vmatpush1.msra.mxu0 0.0
        %1435 = vmatprep.subr.mxu0 0.0
        %1436 = vmatpush1.msra.mxu0 0.0
        %1437 = vmatprep.subr.mxu0 0.0
        %1438 = vmatpush1.msra.mxu0 0.0
        %1439 = vmatprep.mubr.f32.mxu0 0.0
        %1440 = vmatmul.mubr.f32.gmra.mrb[0].mxu0 %v1147
        %v1441 = vpop.f32.mrb[0].mxu0
        %v1442 = vadd.f32 %v1368, %v1441
        %v1443 = vpop.f32.mrb[0].mxu0
        %v1444 = vadd.f32 %v1372, %v1443
        %1445 = vmatprep.mubr.f32.mxu0 0.0
        %1446 = vmatmul.mubr.f32.gmra.mrb[0].mxu0 %v1148
        %v1447 = vpop.f32.mrb[0].mxu0
        %v1448 = vadd.f32 %v1368, %v1447
        %v1449 = vpop.f32.mrb[0].mxu0
        %v1450 = vadd.f32 %v1372, %v1449
        %1451 = vmatprep.mubr.f32.mxu0 0.0
        %1452 = vmatmul.mubr.f32.gmra.mrb[0].mxu0 %v1149
        %v1453 = vpop.f32.mrb[0].mxu0
        %v1454 = vadd.f32 %v1368, %v1453
        %v1455 = vpop.f32.mrb[0].mxu0
        %v1456 = vadd.f32 %v1372, %v1455
        %1457 = vmatprep.mubr.f32.mxu0 0.0
        %1458 = vmatmul.mubr.f32.gmra.mrb[0].mxu0 %v1150
        %v1459 = vpop.f32.mrb[0].mxu0
        %v1460 = vadd.f32 %v1368, %v1459
        %v1461 = vpop.f32.mrb[0].mxu0
        %v1462 = vadd.f32 %v1372, %v1461
        %1463 = vmatprep.mubr.f32.mxu0 0.0
        %1464 = vmatmul.mubr.f32.gmra.mrb[0].mxu0 %v1151
        %v1465 = vpop.f32.mrb[0].mxu0
        %v1466 = vadd.f32 %v1368, %v1465
        %v1467 = vpop.f32.mrb[0].mxu0
        %v1468 = vadd.f32 %v1372, %v1467
        %1469 = vmatprep.mubr.f32.mxu0 0.0
        %1470 = vmatmul.mubr.f32.gmra.mrb[0].mxu0 %v1152
        %v1471 = vpop.f32.mrb[0].mxu0
        %v1472 = vadd.f32 %v1368, %v1471
        %v1473 = vpop.f32.mrb[0].mxu0
        %v1474 = vadd.f32 %v1372, %v1473
        %1475 = vmatprep.mubr.f32.mxu0 0.0
        %1476 = vmatmul.mubr.f32.gmra.mrb[0].mxu0 %v1153
        %v1477 = vpop.f32.mrb[0].mxu0
        %v1478 = vadd.f32 %v1368, %v1477
        %v1479 = vpop.f32.mrb[0].mxu0
        %v1480 = vadd.f32 %v1372, %v1479
        %1481 = vmatprep.mubr.f32.mxu0 0.0
        %1482 = vmatmul.mubr.f32.gmra.mrb[0].mxu0 %v1154
        %v1483 = vpop.f32.mrb[0].mxu0
        %v1484 = vadd.f32 %v1368, %v1483
        %v1485 = vpop.f32.mrb[0].mxu0
        %v1486 = vadd.f32 %v1372, %v1485
        %1487 = vmatprep.mubr.f32.mxu0 0.0
        %1488 = vmatmul.mubr.f32.gmra.mrb[0].mxu0 %v1155
        %v1489 = vpop.f32.mrb[0].mxu0
        %v1490 = vadd.f32 %v1368, %v1489
        %v1491 = vpop.f32.mrb[0].mxu0
        %v1492 = vadd.f32 %v1372, %v1491
        %1493 = vmatprep.mubr.f32.mxu0 0.0
        %1494 = vmatmul.mubr.f32.gmra.mrb[0].mxu0 %v1156
        %v1495 = vpop.f32.mrb[0].mxu0
        %v1496 = vadd.f32 %v1368, %v1495
        %v1497 = vpop.f32.mrb[0].mxu0
        %v1498 = vadd.f32 %v1372, %v1497
        %1499 = vmatprep.mubr.f32.mxu0 0.0
        %1500 = vmatmul.mubr.f32.gmra.mrb[0].mxu0 %v1157
        %v1501 = vpop.f32.mrb[0].mxu0
        %v1502 = vadd.f32 %v1368, %v1501
        %v1503 = vpop.f32.mrb[0].mxu0
        %v1504 = vadd.f32 %v1372, %v1503
        %1505 = vmatprep.mubr.f32.mxu0 0.0
        %1506 = vmatmul.mubr.f32.gmra.mrb[0].mxu0 %v1158
        %v1507 = vpop.f32.mrb[0].mxu0
        %v1508 = vadd.f32 %v1368, %v1507
        %v1509 = vpop.f32.mrb[0].mxu0
        %v1510 = vadd.f32 %v1372, %v1509
        %1511 = vmatprep.mubr.f32.mxu0 0.0
        %1512 = vmatmul.mubr.f32.gmra.mrb[0].mxu0 %v1159
        %v1513 = vpop.f32.mrb[0].mxu0
        %v1514 = vadd.f32 %v1368, %v1513
        %v1515 = vpop.f32.mrb[0].mxu0
        %v1516 = vadd.f32 %v1372, %v1515
        %1517 = vmatprep.mubr.f32.mxu0 0.0
        %1518 = vmatmul.mubr.f32.gmra.mrb[0].mxu0 %v1160
        %v1519 = vpop.f32.mrb[0].mxu0
        %v1520 = vadd.f32 %v1368, %v1519
        %v1521 = vpop.f32.mrb[0].mxu0
        %v1522 = vadd.f32 %v1372, %v1521
        %1523 = vmatprep.mubr.f32.mxu0 0.0
        %1524 = vmatmul.mubr.f32.gmra.mrb[0].mxu0 %v1161
        %v1525 = vpop.f32.mrb[0].mxu0
        %v1526 = vadd.f32 %v1368, %v1525
        %v1527 = vpop.f32.mrb[0].mxu0
        %v1528 = vadd.f32 %v1372, %v1527
        %1529 = vmatprep.mubr.f32.mxu0 0.0
        %1530 = vmatmul.mubr.f32.gmra.mrb[0].mxu0 %v1162
        %v1531 = vpop.f32.mrb[0].mxu0
        %v1532 = vadd.f32 %v1368, %v1531
        %v1533 = vpop.f32.mrb[0].mxu0
        %v1534 = vadd.f32 %v1372, %v1533
        %1535 = vdwg.mxu0
        %v1536 = vmul.f32 %v1253, 0.17677669
        %v1537 = vmul.f32 %v1258, 0.17677669
        %v1538 = vmul.f32 %v1263, 0.17677669
        %v1539 = vmul.f32 %v1268, 0.17677669
        %v1540 = vmul.f32 %v1273, 0.17677669
        %v1541 = vmul.f32 %v1278, 0.17677669
        %v1542 = vmul.f32 %v1283, 0.17677669
        %v1543 = vmul.f32 %v1288, 0.17677669
        %v1544 = vmul.f32 %v1293, 0.17677669
        %v1545 = vmul.f32 %v1298, 0.17677669
        %v1546 = vmul.f32 %v1303, 0.17677669
        %v1547 = vmul.f32 %v1308, 0.17677669
        %v1548 = vmul.f32 %v1313, 0.17677669
        %v1549 = vmul.f32 %v1318, 0.17677669
        %v1550 = vmul.f32 %v1323, 0.17677669
        %v1551 = vmul.f32 %v1328, 0.17677669
        %vm1552 = vcmask 261120
        %v1554 = vsel %vm1552, %v1536, 0
        %v1557 = vsel %vm1552, %v1537, 0
        %v1560 = vsel %vm1552, %v1538, 0
        %v1563 = vsel %vm1552, %v1539, 0
        %v1566 = vsel %vm1552, %v1540, 0
        %v1569 = vsel %vm1552, %v1541, 0
        %v1572 = vsel %vm1552, %v1542, 0
        %v1575 = vsel %vm1552, %v1543, 0
        %v1578 = vsel %vm1552, %v1544, 0
        %v1581 = vsel %vm1552, %v1545, 0
        %v1584 = vsel %vm1552, %v1546, 0
        %v1587 = vsel %vm1552, %v1547, 0
        %v1590 = vsel %vm1552, %v1548, 0
        %v1593 = vsel %vm1552, %v1549, 0
        %v1596 = vsel %vm1552, %v1550, 0
        %v1599 = vsel %vm1552, %v1551, 0
        %v1602 = vsel %vm1552, %v1442, 0
        %v1605 = vsel %vm1552, %v1448, 0
        %v1608 = vsel %vm1552, %v1454, 0
        %v1611 = vsel %vm1552, %v1460, 0
        %v1614 = vsel %vm1552, %v1466, 0
        %v1617 = vsel %vm1552, %v1472, 0
        %v1620 = vsel %vm1552, %v1478, 0
        %v1623 = vsel %vm1552, %v1484, 0
        %v1626 = vsel %vm1552, %v1490, 0
        %v1629 = vsel %vm1552, %v1496, 0
        %v1632 = vsel %vm1552, %v1502, 0
        %v1635 = vsel %vm1552, %v1508, 0
        %v1638 = vsel %vm1552, %v1514, 0
        %v1641 = vsel %vm1552, %v1520, 0
        %v1644 = vsel %vm1552, %v1526, 0
        %v1647 = vsel %vm1552, %v1532, 0
        %1649 = vmatprep.subr.mxu0 0.0
        %1650 = vmatpush1.xpose.msra.mxu0 %v1602
        %1651 = vmatprep.subr.mxu0 0.0
        %1652 = vmatpush1.xpose.msra.mxu0 %v1605
        %1653 = vmatprep.subr.mxu0 0.0
        %1654 = vmatpush1.xpose.msra.mxu0 %v1608
        %1655 = vmatprep.subr.mxu0 0.0
        %1656 = vmatpush1.xpose.msra.mxu0 %v1611
        %1657 = vmatprep.subr.mxu0 0.0
        %1658 = vmatpush1.xpose.msra.mxu0 %v1614
        %1659 = vmatprep.subr.mxu0 0.0
        %1660 = vmatpush1.xpose.msra.mxu0 %v1617
        %1661 = vmatprep.subr.mxu0 0.0
        %1662 = vmatpush1.xpose.msra.mxu0 %v1620
        %1663 = vmatprep.subr.mxu0 0.0
        %1664 = vmatpush1.xpose.msra.mxu0 %v1623
        %1665 = vmatprep.subr.mxu0 0.0
        %1666 = vmatpush1.xpose.msra.mxu0 %v1626
        %1667 = vmatprep.subr.mxu0 0.0
        %1668 = vmatpush1.xpose.msra.mxu0 %v1629
        %1669 = vmatprep.subr.mxu0 0.0
        %1670 = vmatpush1.xpose.msra.mxu0 %v1632
        %1671 = vmatprep.subr.mxu0 0.0
        %1672 = vmatpush1.xpose.msra.mxu0 %v1635
        %1673 = vmatprep.subr.mxu0 0.0
        %1674 = vmatpush1.xpose.msra.mxu0 %v1638
        %1675 = vmatprep.subr.mxu0 0.0
        %1676 = vmatpush1.xpose.msra.mxu0 %v1641
        %1677 = vmatprep.subr.mxu0 0.0
        %1678 = vmatpush1.xpose.msra.mxu0 %v1644
        %1679 = vmatprep.subr.mxu0 0.0
        %1680 = vmatpush1.xpose.msra.mxu0 %v1647
        %1681 = vmatprep.subr.mxu0 0.0
        %1682 = vmatpush1.xpose.msra.mxu0 0.0
        %1683 = vmatprep.subr.mxu0 0.0
        %1684 = vmatpush1.xpose.msra.mxu0 0.0
        %1685 = vmatprep.subr.mxu0 0.0
        %1686 = vmatpush1.xpose.msra.mxu0 0.0
        %1687 = vmatprep.subr.mxu0 0.0
        %1688 = vmatpush1.xpose.msra.mxu0 0.0
        %1689 = vmatprep.subr.mxu0 0.0
        %1690 = vmatpush1.xpose.msra.mxu0 0.0
        %1691 = vmatprep.subr.mxu0 0.0
        %1692 = vmatpush1.xpose.msra.mxu0 0.0
        %1693 = vmatprep.subr.mxu0 0.0
        %1694 = vmatpush1.xpose.msra.mxu0 0.0
        %1695 = vmatprep.subr.mxu0 0.0
        %1696 = vmatpush1.xpose.msra.mxu0 0.0
        %1697 = vmatprep.subr.mxu0 0.0
        %1698 = vmatpush1.xpose.msra.mxu0 0.0
        %1699 = vmatprep.subr.mxu0 0.0
        %1700 = vmatpush1.xpose.msra.mxu0 0.0
        %1701 = vmatprep.subr.mxu0 0.0
        %1702 = vmatpush1.xpose.msra.mxu0 0.0
        %1703 = vmatprep.subr.mxu0 0.0
        %1704 = vmatpush1.xpose.msra.mxu0 0.0
        %1705 = vmatprep.subr.mxu0 0.0
        %1706 = vmatpush1.xpose.msra.mxu0 0.0
        %1707 = vmatprep.subr.mxu0 0.0
        %1708 = vmatpush1.xpose.msra.mxu0 0.0
        %1709 = vmatprep.subr.mxu0 0.0
        %1710 = vmatpush1.xpose.msra.mxu0 0.0
        %1711 = vmatprep.subr.mxu0 0.0
        %1712 = vmatpush1.xpose.msra.mxu0 0.0
        %1713 = vmatprep.mubr.f32.mxu0 0.0
        %1714 = vmatmul.mubr.f32.gmra.mrb[0].mxu0 %v1554
        %v1715 = vpop.f32.mrb[0].mxu0
        %v1716 = vadd.f32 0.0, %v1715
        %v1717 = vpop.f32.mrb[0].mxu0
        %1718 = vmatprep.mubr.f32.mxu0 0.0
        %1719 = vmatmul.mubr.f32.gmra.mrb[0].mxu0 %v1557
        %v1720 = vpop.f32.mrb[0].mxu0
        %v1721 = vadd.f32 0.0, %v1720
        %v1722 = vpop.f32.mrb[0].mxu0
        %1723 = vmatprep.mubr.f32.mxu0 0.0
        %1724 = vmatmul.mubr.f32.gmra.mrb[0].mxu0 %v1560
        %v1725 = vpop.f32.mrb[0].mxu0
        %v1726 = vadd.f32 0.0, %v1725
        %v1727 = vpop.f32.mrb[0].mxu0
        %1728 = vmatprep.mubr.f32.mxu0 0.0
        %1729 = vmatmul.mubr.f32.gmra.mrb[0].mxu0 %v1563
        %v1730 = vpop.f32.mrb[0].mxu0
        %v1731 = vadd.f32 0.0, %v1730
        %v1732 = vpop.f32.mrb[0].mxu0
        %1733 = vmatprep.mubr.f32.mxu0 0.0
        %1734 = vmatmul.mubr.f32.gmra.mrb[0].mxu0 %v1566
        %v1735 = vpop.f32.mrb[0].mxu0
        %v1736 = vadd.f32 0.0, %v1735
        %v1737 = vpop.f32.mrb[0].mxu0
        %1738 = vmatprep.mubr.f32.mxu0 0.0
        %1739 = vmatmul.mubr.f32.gmra.mrb[0].mxu0 %v1569
        %v1740 = vpop.f32.mrb[0].mxu0
        %v1741 = vadd.f32 0.0, %v1740
        %v1742 = vpop.f32.mrb[0].mxu0
        %1743 = vmatprep.mubr.f32.mxu0 0.0
        %1744 = vmatmul.mubr.f32.gmra.mrb[0].mxu0 %v1572
        %v1745 = vpop.f32.mrb[0].mxu0
        %v1746 = vadd.f32 0.0, %v1745
        %v1747 = vpop.f32.mrb[0].mxu0
        %1748 = vmatprep.mubr.f32.mxu0 0.0
        %1749 = vmatmul.mubr.f32.gmra.mrb[0].mxu0 %v1575
        %v1750 = vpop.f32.mrb[0].mxu0
        %v1751 = vadd.f32 0.0, %v1750
        %v1752 = vpop.f32.mrb[0].mxu0
        %1753 = vmatprep.mubr.f32.mxu0 0.0
        %1754 = vmatmul.mubr.f32.gmra.mrb[0].mxu0 %v1578
        %v1755 = vpop.f32.mrb[0].mxu0
        %v1756 = vadd.f32 0.0, %v1755
        %v1757 = vpop.f32.mrb[0].mxu0
        %1758 = vmatprep.mubr.f32.mxu0 0.0
        %1759 = vmatmul.mubr.f32.gmra.mrb[0].mxu0 %v1581
        %v1760 = vpop.f32.mrb[0].mxu0
        %v1761 = vadd.f32 0.0, %v1760
        %v1762 = vpop.f32.mrb[0].mxu0
        %1763 = vmatprep.mubr.f32.mxu0 0.0
        %1764 = vmatmul.mubr.f32.gmra.mrb[0].mxu0 %v1584
        %v1765 = vpop.f32.mrb[0].mxu0
        %v1766 = vadd.f32 0.0, %v1765
        %v1767 = vpop.f32.mrb[0].mxu0
        %1768 = vmatprep.mubr.f32.mxu0 0.0
        %1769 = vmatmul.mubr.f32.gmra.mrb[0].mxu0 %v1587
        %v1770 = vpop.f32.mrb[0].mxu0
        %v1771 = vadd.f32 0.0, %v1770
        %v1772 = vpop.f32.mrb[0].mxu0
        %1773 = vmatprep.mubr.f32.mxu0 0.0
        %1774 = vmatmul.mubr.f32.gmra.mrb[0].mxu0 %v1590
        %v1775 = vpop.f32.mrb[0].mxu0
        %v1776 = vadd.f32 0.0, %v1775
        %v1777 = vpop.f32.mrb[0].mxu0
        %1778 = vmatprep.mubr.f32.mxu0 0.0
        %1779 = vmatmul.mubr.f32.gmra.mrb[0].mxu0 %v1593
        %v1780 = vpop.f32.mrb[0].mxu0
        %v1781 = vadd.f32 0.0, %v1780
        %v1782 = vpop.f32.mrb[0].mxu0
        %1783 = vmatprep.mubr.f32.mxu0 0.0
        %1784 = vmatmul.mubr.f32.gmra.mrb[0].mxu0 %v1596
        %v1785 = vpop.f32.mrb[0].mxu0
        %v1786 = vadd.f32 0.0, %v1785
        %v1787 = vpop.f32.mrb[0].mxu0
        %1788 = vmatprep.mubr.f32.mxu0 0.0
        %1789 = vmatmul.mubr.f32.gmra.mrb[0].mxu0 %v1599
        %v1790 = vpop.f32.mrb[0].mxu0
        %v1791 = vadd.f32 0.0, %v1790
        %v1792 = vpop.f32.mrb[0].mxu0
        %1793 = vdwg.mxu0
        %1794 = vmax.xlane.f32.xlu0 %v1716
        %v1795 = vpop.xlane.xlu0 %1794
        %1796 = vmax.xlane.f32.xlu0 %v1721
        %v1797 = vpop.xlane.xlu0 %1796
        %1798 = vmax.xlane.f32.xlu0 %v1726
        %v1799 = vpop.xlane.xlu0 %1798
        %1800 = vmax.xlane.f32.xlu0 %v1731
        %v1801 = vpop.xlane.xlu0 %1800
        %1802 = vmax.xlane.f32.xlu0 %v1736
        %v1803 = vpop.xlane.xlu0 %1802
        %1804 = vmax.xlane.f32.xlu0 %v1741
        %v1805 = vpop.xlane.xlu0 %1804
        %1806 = vmax.xlane.f32.xlu0 %v1746
        %v1807 = vpop.xlane.xlu0 %1806
        %1808 = vmax.xlane.f32.xlu0 %v1751
        %v1809 = vpop.xlane.xlu0 %1808
        %1810 = vmax.xlane.f32.xlu0 %v1756
        %v1811 = vpop.xlane.xlu0 %1810
        %1812 = vmax.xlane.f32.xlu0 %v1761
        %v1813 = vpop.xlane.xlu0 %1812
        %1814 = vmax.xlane.f32.xlu0 %v1766
        %v1815 = vpop.xlane.xlu0 %1814
        %1816 = vmax.xlane.f32.xlu0 %v1771
        %v1817 = vpop.xlane.xlu0 %1816
        %1818 = vmax.xlane.f32.xlu0 %v1776
        %v1819 = vpop.xlane.xlu0 %1818
        %1820 = vmax.xlane.f32.xlu0 %v1781
        %v1821 = vpop.xlane.xlu0 %1820
        %1822 = vmax.xlane.f32.xlu0 %v1786
        %v1823 = vpop.xlane.xlu0 %1822
        %1824 = vmax.xlane.f32.xlu0 %v1791
        %v1825 = vpop.xlane.xlu0 %1824
        %v1826 = vsub.f32 %v1716, %v1795
        %v1827 = vsub.f32 %v1721, %v1797
        %v1828 = vsub.f32 %v1726, %v1799
        %v1829 = vsub.f32 %v1731, %v1801
        %v1830 = vsub.f32 %v1736, %v1803
        %v1831 = vsub.f32 %v1741, %v1805
        %v1832 = vsub.f32 %v1746, %v1807
        %v1833 = vsub.f32 %v1751, %v1809
        %v1834 = vsub.f32 %v1756, %v1811
        %v1835 = vsub.f32 %v1761, %v1813
        %v1836 = vsub.f32 %v1766, %v1815
        %v1837 = vsub.f32 %v1771, %v1817
        %v1838 = vsub.f32 %v1776, %v1819
        %v1839 = vsub.f32 %v1781, %v1821
        %v1840 = vsub.f32 %v1786, %v1823
        %v1841 = vsub.f32 %v1791, %v1825
        %v1842 = vmul.f32 %v1826, 1.442695
        %v1843 = vpow.pop %v1842
        %v1844 = vmul.f32 %v1827, 1.442695
        %v1845 = vpow.pop %v1844
        %v1846 = vmul.f32 %v1828, 1.442695
        %v1847 = vpow.pop %v1846
        %v1848 = vmul.f32 %v1829, 1.442695
        %v1849 = vpow.pop %v1848
        %v1850 = vmul.f32 %v1830, 1.442695
        %v1851 = vpow.pop %v1850
        %v1852 = vmul.f32 %v1831, 1.442695
        %v1853 = vpow.pop %v1852
        %v1854 = vmul.f32 %v1832, 1.442695
        %v1855 = vpow.pop %v1854
        %v1856 = vmul.f32 %v1833, 1.442695
        %v1857 = vpow.pop %v1856
        %v1858 = vmul.f32 %v1834, 1.442695
        %v1859 = vpow.pop %v1858
        %v1860 = vmul.f32 %v1835, 1.442695
        %v1861 = vpow.pop %v1860
        %v1862 = vmul.f32 %v1836, 1.442695
        %v1863 = vpow.pop %v1862
        %v1864 = vmul.f32 %v1837, 1.442695
        %v1865 = vpow.pop %v1864
        %v1866 = vmul.f32 %v1838, 1.442695
        %v1867 = vpow.pop %v1866
        %v1868 = vmul.f32 %v1839, 1.442695
        %v1869 = vpow.pop %v1868
        %v1870 = vmul.f32 %v1840, 1.442695
        %v1871 = vpow.pop %v1870
        %v1872 = vmul.f32 %v1841, 1.442695
        %v1873 = vpow.pop %v1872
        %1874 = vadd.xlane.f32.xlu0 %v1843
        %v1875 = vpop.xlane.xlu0 %1874
        %1876 = vadd.xlane.f32.xlu0 %v1845
        %v1877 = vpop.xlane.xlu0 %1876
        %1878 = vadd.xlane.f32.xlu0 %v1847
        %v1879 = vpop.xlane.xlu0 %1878
        %1880 = vadd.xlane.f32.xlu0 %v1849
        %v1881 = vpop.xlane.xlu0 %1880
        %1882 = vadd.xlane.f32.xlu0 %v1851
        %v1883 = vpop.xlane.xlu0 %1882
        %1884 = vadd.xlane.f32.xlu0 %v1853
        %v1885 = vpop.xlane.xlu0 %1884
        %1886 = vadd.xlane.f32.xlu0 %v1855
        %v1887 = vpop.xlane.xlu0 %1886
        %1888 = vadd.xlane.f32.xlu0 %v1857
        %v1889 = vpop.xlane.xlu0 %1888
        %1890 = vadd.xlane.f32.xlu0 %v1859
        %v1891 = vpop.xlane.xlu0 %1890
        %1892 = vadd.xlane.f32.xlu0 %v1861
        %v1893 = vpop.xlane.xlu0 %1892
        %1894 = vadd.xlane.f32.xlu0 %v1863
        %v1895 = vpop.xlane.xlu0 %1894
        %1896 = vadd.xlane.f32.xlu0 %v1865
        %v1897 = vpop.xlane.xlu0 %1896
        %1898 = vadd.xlane.f32.xlu0 %v1867
        %v1899 = vpop.xlane.xlu0 %1898
        %1900 = vadd.xlane.f32.xlu0 %v1869
        %v1901 = vpop.xlane.xlu0 %1900
        %1902 = vadd.xlane.f32.xlu0 %v1871
        %v1903 = vpop.xlane.xlu0 %1902
        %1904 = vadd.xlane.f32.xlu0 %v1873
        %v1905 = vpop.xlane.xlu0 %1904
        %v1906 = vrcp.pop %v1875
        %v1907 = vmul.f32 %v1843, %v1906
        %v1908 = vrcp.pop %v1877
        %v1909 = vmul.f32 %v1845, %v1908
        %v1910 = vrcp.pop %v1879
        %v1911 = vmul.f32 %v1847, %v1910
        %v1912 = vrcp.pop %v1881
        %v1913 = vmul.f32 %v1849, %v1912
        %v1914 = vrcp.pop %v1883
        %v1915 = vmul.f32 %v1851, %v1914
        %v1916 = vrcp.pop %v1885
        %v1917 = vmul.f32 %v1853, %v1916
        %v1918 = vrcp.pop %v1887
        %v1919 = vmul.f32 %v1855, %v1918
        %v1920 = vrcp.pop %v1889
        %v1921 = vmul.f32 %v1857, %v1920
        %v1922 = vrcp.pop %v1891
        %v1923 = vmul.f32 %v1859, %v1922
        %v1924 = vrcp.pop %v1893
        %v1925 = vmul.f32 %v1861, %v1924
        %v1926 = vrcp.pop %v1895
        %v1927 = vmul.f32 %v1863, %v1926
        %v1928 = vrcp.pop %v1897
        %v1929 = vmul.f32 %v1865, %v1928
        %v1930 = vrcp.pop %v1899
        %v1931 = vmul.f32 %v1867, %v1930
        %v1932 = vrcp.pop %v1901
        %v1933 = vmul.f32 %v1869, %v1932
        %v1934 = vrcp.pop %v1903
        %v1935 = vmul.f32 %v1871, %v1934
        %v1936 = vrcp.pop %v1905
        %v1937 = vmul.f32 %v1873, %v1936
        %1938 = vmatprep.subr.mxu0 0.0
        %1939 = vmatpush1.msra.mxu0 %v1444
        %1940 = vmatprep.subr.mxu0 0.0
        %1941 = vmatpush1.msra.mxu0 %v1450
        %1942 = vmatprep.subr.mxu0 0.0
        %1943 = vmatpush1.msra.mxu0 %v1456
        %1944 = vmatprep.subr.mxu0 0.0
        %1945 = vmatpush1.msra.mxu0 %v1462
        %1946 = vmatprep.subr.mxu0 0.0
        %1947 = vmatpush1.msra.mxu0 %v1468
        %1948 = vmatprep.subr.mxu0 0.0
        %1949 = vmatpush1.msra.mxu0 %v1474
        %1950 = vmatprep.subr.mxu0 0.0
        %1951 = vmatpush1.msra.mxu0 %v1480
        %1952 = vmatprep.subr.mxu0 0.0
        %1953 = vmatpush1.msra.mxu0 %v1486
        %1954 = vmatprep.subr.mxu0 0.0
        %1955 = vmatpush1.msra.mxu0 %v1492
        %1956 = vmatprep.subr.mxu0 0.0
        %1957 = vmatpush1.msra.mxu0 %v1498
        %1958 = vmatprep.subr.mxu0 0.0
        %1959 = vmatpush1.msra.mxu0 %v1504
        %1960 = vmatprep.subr.mxu0 0.0
        %1961 = vmatpush1.msra.mxu0 %v1510
        %1962 = vmatprep.subr.mxu0 0.0
        %1963 = vmatpush1.msra.mxu0 %v1516
        %1964 = vmatprep.subr.mxu0 0.0
        %1965 = vmatpush1.msra.mxu0 %v1522
        %1966 = vmatprep.subr.mxu0 0.0
        %1967 = vmatpush1.msra.mxu0 %v1528
        %1968 = vmatprep.subr.mxu0 0.0
        %1969 = vmatpush1.msra.mxu0 %v1534
        %1970 = vmatprep.subr.mxu0 0.0
        %1971 = vmatpush1.msra.mxu0 0.0
        %1972 = vmatprep.subr.mxu0 0.0
        %1973 = vmatpush1.msra.mxu0 0.0
        %1974 = vmatprep.subr.mxu0 0.0
        %1975 = vmatpush1.msra.mxu0 0.0
        %1976 = vmatprep.subr.mxu0 0.0
        %1977 = vmatpush1.msra.mxu0 0.0
        %1978 = vmatprep.subr.mxu0 0.0
        %1979 = vmatpush1.msra.mxu0 0.0
        %1980 = vmatprep.subr.mxu0 0.0
        %1981 = vmatpush1.msra.mxu0 0.0
        %1982 = vmatprep.subr.mxu0 0.0
        %1983 = vmatpush1.msra.mxu0 0.0
        %1984 = vmatprep.subr.mxu0 0.0
        %1985 = vmatpush1.msra.mxu0 0.0
        %1986 = vmatprep.subr.mxu0 0.0
        %1987 = vmatpush1.msra.mxu0 0.0
        %1988 = vmatprep.subr.mxu0 0.0
        %1989 = vmatpush1.msra.mxu0 0.0
        %1990 = vmatprep.subr.mxu0 0.0
        %1991 = vmatpush1.msra.mxu0 0.0
        %1992 = vmatprep.subr.mxu0 0.0
        %1993 = vmatpush1.msra.mxu0 0.0
        %1994 = vmatprep.subr.mxu0 0.0
        %1995 = vmatpush1.msra.mxu0 0.0
        %1996 = vmatprep.subr.mxu0 0.0
        %1997 = vmatpush1.msra.mxu0 0.0
        %1998 = vmatprep.subr.mxu0 0.0
        %1999 = vmatpush1.msra.mxu0 0.0
        %2000 = vmatprep.subr.mxu0 0.0
        %2001 = vmatpush1.msra.mxu0 0.0
        %2002 = vmatprep.mubr.f32.mxu0 0.0
        %2003 = vmatmul.mubr.f32.gmra.mrb[0].mxu0 %v1907
        %v2004 = vpop.f32.mrb[0].mxu0
        %v2005 = vadd.f32 0.0, %v2004
        %v2006 = vpop.f32.mrb[0].mxu0
        %2007 = vmatprep.mubr.f32.mxu0 0.0
        %2008 = vmatmul.mubr.f32.gmra.mrb[0].mxu0 %v1909
        %v2009 = vpop.f32.mrb[0].mxu0
        %v2010 = vadd.f32 0.0, %v2009
        %v2011 = vpop.f32.mrb[0].mxu0
        %2012 = vmatprep.mubr.f32.mxu0 0.0
        %2013 = vmatmul.mubr.f32.gmra.mrb[0].mxu0 %v1911
        %v2014 = vpop.f32.mrb[0].mxu0
        %v2015 = vadd.f32 0.0, %v2014
        %v2016 = vpop.f32.mrb[0].mxu0
        %2017 = vmatprep.mubr.f32.mxu0 0.0
        %2018 = vmatmul.mubr.f32.gmra.mrb[0].mxu0 %v1913
        %v2019 = vpop.f32.mrb[0].mxu0
        %v2020 = vadd.f32 0.0, %v2019
        %v2021 = vpop.f32.mrb[0].mxu0
        %2022 = vmatprep.mubr.f32.mxu0 0.0
        %2023 = vmatmul.mubr.f32.gmra.mrb[0].mxu0 %v1915
        %v2024 = vpop.f32.mrb[0].mxu0
        %v2025 = vadd.f32 0.0, %v2024
        %v2026 = vpop.f32.mrb[0].mxu0
        %2027 = vmatprep.mubr.f32.mxu0 0.0
        %2028 = vmatmul.mubr.f32.gmra.mrb[0].mxu0 %v1917
        %v2029 = vpop.f32.mrb[0].mxu0
        %v2030 = vadd.f32 0.0, %v2029
        %v2031 = vpop.f32.mrb[0].mxu0
        %2032 = vmatprep.mubr.f32.mxu0 0.0
        %2033 = vmatmul.mubr.f32.gmra.mrb[0].mxu0 %v1919
        %v2034 = vpop.f32.mrb[0].mxu0
        %v2035 = vadd.f32 0.0, %v2034
        %v2036 = vpop.f32.mrb[0].mxu0
        %2037 = vmatprep.mubr.f32.mxu0 0.0
        %2038 = vmatmul.mubr.f32.gmra.mrb[0].mxu0 %v1921
        %v2039 = vpop.f32.mrb[0].mxu0
        %v2040 = vadd.f32 0.0, %v2039
        %v2041 = vpop.f32.mrb[0].mxu0
        %2042 = vmatprep.mubr.f32.mxu0 0.0
        %2043 = vmatmul.mubr.f32.gmra.mrb[0].mxu0 %v1923
        %v2044 = vpop.f32.mrb[0].mxu0
        %v2045 = vadd.f32 0.0, %v2044
        %v2046 = vpop.f32.mrb[0].mxu0
        %2047 = vmatprep.mubr.f32.mxu0 0.0
        %2048 = vmatmul.mubr.f32.gmra.mrb[0].mxu0 %v1925
        %v2049 = vpop.f32.mrb[0].mxu0
        %v2050 = vadd.f32 0.0, %v2049
        %v2051 = vpop.f32.mrb[0].mxu0
        %2052 = vmatprep.mubr.f32.mxu0 0.0
        %2053 = vmatmul.mubr.f32.gmra.mrb[0].mxu0 %v1927
        %v2054 = vpop.f32.mrb[0].mxu0
        %v2055 = vadd.f32 0.0, %v2054
        %v2056 = vpop.f32.mrb[0].mxu0
        %2057 = vmatprep.mubr.f32.mxu0 0.0
        %2058 = vmatmul.mubr.f32.gmra.mrb[0].mxu0 %v1929
        %v2059 = vpop.f32.mrb[0].mxu0
        %v2060 = vadd.f32 0.0, %v2059
        %v2061 = vpop.f32.mrb[0].mxu0
        %2062 = vmatprep.mubr.f32.mxu0 0.0
        %2063 = vmatmul.mubr.f32.gmra.mrb[0].mxu0 %v1931
        %v2064 = vpop.f32.mrb[0].mxu0
        %v2065 = vadd.f32 0.0, %v2064
        %v2066 = vpop.f32.mrb[0].mxu0
        %2067 = vmatprep.mubr.f32.mxu0 0.0
        %2068 = vmatmul.mubr.f32.gmra.mrb[0].mxu0 %v1933
        %v2069 = vpop.f32.mrb[0].mxu0
        %v2070 = vadd.f32 0.0, %v2069
        %v2071 = vpop.f32.mrb[0].mxu0
        %2072 = vmatprep.mubr.f32.mxu0 0.0
        %2073 = vmatmul.mubr.f32.gmra.mrb[0].mxu0 %v1935
        %v2074 = vpop.f32.mrb[0].mxu0
        %v2075 = vadd.f32 0.0, %v2074
        %v2076 = vpop.f32.mrb[0].mxu0
        %2077 = vmatprep.mubr.f32.mxu0 0.0
        %2078 = vmatmul.mubr.f32.gmra.mrb[0].mxu0 %v1937
        %v2079 = vpop.f32.mrb[0].mxu0
        %v2080 = vadd.f32 0.0, %v2079
        %v2081 = vpop.f32.mrb[0].mxu0
        %2082 = vdwg.mxu0
        %v2083 = vld [vmem:[%s744] sm:$0xff]
        %v2084 = vld [vmem:[%s744 + $0x8] sm:$0xff]
        %v2085 = vld [vmem:[%s744 + $0x10] sm:$0xff]
        %v2086 = vld [vmem:[%s744 + $0x18] sm:$0xff]
        %2087 = vrot.lane.b32.xlu0 %v1536, 96
        %v2088 = vpop.permute.xlu0 %2087
        %2089 = vrot.lane.b32.xlu0 %v1537, 96
        %v2090 = vpop.permute.xlu0 %2089
        %2091 = vrot.lane.b32.xlu0 %v1538, 96
        %v2092 = vpop.permute.xlu0 %2091
        %2093 = vrot.lane.b32.xlu0 %v1539, 96
        %v2094 = vpop.permute.xlu0 %2093
        %2095 = vrot.lane.b32.xlu0 %v1540, 96
        %v2096 = vpop.permute.xlu0 %2095
        %2097 = vrot.lane.b32.xlu0 %v1541, 96
        %v2098 = vpop.permute.xlu0 %2097
        %2099 = vrot.lane.b32.xlu0 %v1542, 96
        %v2100 = vpop.permute.xlu0 %2099
        %2101 = vrot.lane.b32.xlu0 %v1543, 96
        %v2102 = vpop.permute.xlu0 %2101
        %2103 = vrot.lane.b32.xlu0 %v1544, 96
        %v2104 = vpop.permute.xlu0 %2103
        %2105 = vrot.lane.b32.xlu0 %v1545, 96
        %v2106 = vpop.permute.xlu0 %2105
        %2107 = vrot.lane.b32.xlu0 %v1546, 96
        %v2108 = vpop.permute.xlu0 %2107
        %2109 = vrot.lane.b32.xlu0 %v1547, 96
        %v2110 = vpop.permute.xlu0 %2109
        %2111 = vrot.lane.b32.xlu0 %v1548, 96
        %v2112 = vpop.permute.xlu0 %2111
        %2113 = vrot.lane.b32.xlu0 %v1549, 96
        %v2114 = vpop.permute.xlu0 %2113
        %2115 = vrot.lane.b32.xlu0 %v1550, 96
        %v2116 = vpop.permute.xlu0 %2115
        %2117 = vrot.lane.b32.xlu0 %v1551, 96
        %v2118 = vpop.permute.xlu0 %2117
        %2119 = vrot.lane.b32.xlu0 %v1442, 96
        %v2120 = vpop.permute.xlu0 %2119
        %2121 = vrot.lane.b32.xlu0 %v1448, 96
        %v2122 = vpop.permute.xlu0 %2121
        %2123 = vrot.lane.b32.xlu0 %v1454, 96
        %v2124 = vpop.permute.xlu0 %2123
        %2125 = vrot.lane.b32.xlu0 %v1460, 96
        %v2126 = vpop.permute.xlu0 %2125
        %2127 = vrot.lane.b32.xlu0 %v1466, 96
        %v2128 = vpop.permute.xlu0 %2127
        %2129 = vrot.lane.b32.xlu0 %v1472, 96
        %v2130 = vpop.permute.xlu0 %2129
        %2131 = vrot.lane.b32.xlu0 %v1478, 96
        %v2132 = vpop.permute.xlu0 %2131
        %2133 = vrot.lane.b32.xlu0 %v1484, 96
        %v2134 = vpop.permute.xlu0 %2133
        %2135 = vrot.lane.b32.xlu0 %v1490, 96
        %v2136 = vpop.permute.xlu0 %2135
        %2137 = vrot.lane.b32.xlu0 %v1496, 96
        %v2138 = vpop.permute.xlu0 %2137
        %2139 = vrot.lane.b32.xlu0 %v1502, 96
        %v2140 = vpop.permute.xlu0 %2139
        %2141 = vrot.lane.b32.xlu0 %v1508, 96
        %v2142 = vpop.permute.xlu0 %2141
        %2143 = vrot.lane.b32.xlu0 %v1514, 96
        %v2144 = vpop.permute.xlu0 %2143
        %2145 = vrot.lane.b32.xlu0 %v1520, 96
        %v2146 = vpop.permute.xlu0 %2145
        %2147 = vrot.lane.b32.xlu0 %v1526, 96
        %v2148 = vpop.permute.xlu0 %2147
        %2149 = vrot.lane.b32.xlu0 %v1532, 96
        %v2150 = vpop.permute.xlu0 %2149
        %v2151 = vsel %vm1552, %v2088, 0
        %v2153 = vsel %vm1552, %v2090, 0
        %v2155 = vsel %vm1552, %v2092, 0
        %v2157 = vsel %vm1552, %v2094, 0
        %v2159 = vsel %vm1552, %v2096, 0
        %v2161 = vsel %vm1552, %v2098, 0
        %v2163 = vsel %vm1552, %v2100, 0
        %v2165 = vsel %vm1552, %v2102, 0
        %v2167 = vsel %vm1552, %v2104, 0
        %v2169 = vsel %vm1552, %v2106, 0
        %v2171 = vsel %vm1552, %v2108, 0
        %v2173 = vsel %vm1552, %v2110, 0
        %v2175 = vsel %vm1552, %v2112, 0
        %v2177 = vsel %vm1552, %v2114, 0
        %v2179 = vsel %vm1552, %v2116, 0
        %v2181 = vsel %vm1552, %v2118, 0
        %v2183 = vsel %vm1552, %v2120, 0
        %v2185 = vsel %vm1552, %v2122, 0
        %v2187 = vsel %vm1552, %v2124, 0
        %v2189 = vsel %vm1552, %v2126, 0
        %v2191 = vsel %vm1552, %v2128, 0
        %v2193 = vsel %vm1552, %v2130, 0
        %v2195 = vsel %vm1552, %v2132, 0
        %v2197 = vsel %vm1552, %v2134, 0
        %v2199 = vsel %vm1552, %v2136, 0
        %v2201 = vsel %vm1552, %v2138, 0
        %v2203 = vsel %vm1552, %v2140, 0
        %v2205 = vsel %vm1552, %v2142, 0
        %v2207 = vsel %vm1552, %v2144, 0
        %v2209 = vsel %vm1552, %v2146, 0
        %v2211 = vsel %vm1552, %v2148, 0
        %v2213 = vsel %vm1552, %v2150, 0
        %2215 = vmatprep.subr.mxu0 0.0
        %2216 = vmatpush1.xpose.msra.mxu0 %v2183
        %2217 = vmatprep.subr.mxu0 0.0
        %2218 = vmatpush1.xpose.msra.mxu0 %v2185
        %2219 = vmatprep.subr.mxu0 0.0
        %2220 = vmatpush1.xpose.msra.mxu0 %v2187
        %2221 = vmatprep.subr.mxu0 0.0
        %2222 = vmatpush1.xpose.msra.mxu0 %v2189
        %2223 = vmatprep.subr.mxu0 0.0
        %2224 = vmatpush1.xpose.msra.mxu0 %v2191
        %2225 = vmatprep.subr.mxu0 0.0
        %2226 = vmatpush1.xpose.msra.mxu0 %v2193
        %2227 = vmatprep.subr.mxu0 0.0
        %2228 = vmatpush1.xpose.msra.mxu0 %v2195
        %2229 = vmatprep.subr.mxu0 0.0
        %2230 = vmatpush1.xpose.msra.mxu0 %v2197
        %2231 = vmatprep.subr.mxu0 0.0
        %2232 = vmatpush1.xpose.msra.mxu0 %v2199
        %2233 = vmatprep.subr.mxu0 0.0
        %2234 = vmatpush1.xpose.msra.mxu0 %v2201
        %2235 = vmatprep.subr.mxu0 0.0
        %2236 = vmatpush1.xpose.msra.mxu0 %v2203
        %2237 = vmatprep.subr.mxu0 0.0
        %2238 = vmatpush1.xpose.msra.mxu0 %v2205
        %2239 = vmatprep.subr.mxu0 0.0
        %2240 = vmatpush1.xpose.msra.mxu0 %v2207
        %2241 = vmatprep.subr.mxu0 0.0
        %2242 = vmatpush1.xpose.msra.mxu0 %v2209
        %2243 = vmatprep.subr.mxu0 0.0
        %2244 = vmatpush1.xpose.msra.mxu0 %v2211
        %2245 = vmatprep.subr.mxu0 0.0
        %2246 = vmatpush1.xpose.msra.mxu0 %v2213
        %2247 = vmatprep.subr.mxu0 0.0
        %2248 = vmatpush1.xpose.msra.mxu0 0.0
        %2249 = vmatprep.subr.mxu0 0.0
        %2250 = vmatpush1.xpose.msra.mxu0 0.0
        %2251 = vmatprep.subr.mxu0 0.0
        %2252 = vmatpush1.xpose.msra.mxu0 0.0
        %2253 = vmatprep.subr.mxu0 0.0
        %2254 = vmatpush1.xpose.msra.mxu0 0.0
        %2255 = vmatprep.subr.mxu0 0.0
        %2256 = vmatpush1.xpose.msra.mxu0 0.0
        %2257 = vmatprep.subr.mxu0 0.0
        %2258 = vmatpush1.xpose.msra.mxu0 0.0
        %2259 = vmatprep.subr.mxu0 0.0
        %2260 = vmatpush1.xpose.msra.mxu0 0.0
        %2261 = vmatprep.subr.mxu0 0.0
        %2262 = vmatpush1.xpose.msra.mxu0 0.0
        %2263 = vmatprep.subr.mxu0 0.0
        %2264 = vmatpush1.xpose.msra.mxu0 0.0
        %2265 = vmatprep.subr.mxu0 0.0
        %2266 = vmatpush1.xpose.msra.mxu0 0.0
        %2267 = vmatprep.subr.mxu0 0.0
        %2268 = vmatpush1.xpose.msra.mxu0 0.0
        %2269 = vmatprep.subr.mxu0 0.0
        %2270 = vmatpush1.xpose.msra.mxu0 0.0
        %2271 = vmatprep.subr.mxu0 0.0
        %2272 = vmatpush1.xpose.msra.mxu0 0.0
        %2273 = vmatprep.subr.mxu0 0.0
        %2274 = vmatpush1.xpose.msra.mxu0 0.0
        %2275 = vmatprep.subr.mxu0 0.0
        %2276 = vmatpush1.xpose.msra.mxu0 0.0
        %2277 = vmatprep.subr.mxu0 0.0
        %2278 = vmatpush1.xpose.msra.mxu0 0.0
        %2279 = vmatprep.mubr.f32.mxu0 0.0
        %2280 = vmatmul.mubr.f32.gmra.mrb[0].mxu0 %v2151
        %v2281 = vpop.f32.mrb[0].mxu0
        %v2282 = vadd.f32 0.0, %v2281
        %v2283 = vpop.f32.mrb[0].mxu0
        %2284 = vmatprep.mubr.f32.mxu0 0.0
        %2285 = vmatmul.mubr.f32.gmra.mrb[0].mxu0 %v2153
        %v2286 = vpop.f32.mrb[0].mxu0
        %v2287 = vadd.f32 0.0, %v2286
        %v2288 = vpop.f32.mrb[0].mxu0
        %2289 = vmatprep.mubr.f32.mxu0 0.0
        %2290 = vmatmul.mubr.f32.gmra.mrb[0].mxu0 %v2155
        %v2291 = vpop.f32.mrb[0].mxu0
        %v2292 = vadd.f32 0.0, %v2291
        %v2293 = vpop.f32.mrb[0].mxu0
        %2294 = vmatprep.mubr.f32.mxu0 0.0
        %2295 = vmatmul.mubr.f32.gmra.mrb[0].mxu0 %v2157
        %v2296 = vpop.f32.mrb[0].mxu0
        %v2297 = vadd.f32 0.0, %v2296
        %v2298 = vpop.f32.mrb[0].mxu0
        %2299 = vmatprep.mubr.f32.mxu0 0.0
        %2300 = vmatmul.mubr.f32.gmra.mrb[0].mxu0 %v2159
        %v2301 = vpop.f32.mrb[0].mxu0
        %v2302 = vadd.f32 0.0, %v2301
        %v2303 = vpop.f32.mrb[0].mxu0
        %2304 = vmatprep.mubr.f32.mxu0 0.0
        %2305 = vmatmul.mubr.f32.gmra.mrb[0].mxu0 %v2161
        %v2306 = vpop.f32.mrb[0].mxu0
        %v2307 = vadd.f32 0.0, %v2306
        %v2308 = vpop.f32.mrb[0].mxu0
        %2309 = vmatprep.mubr.f32.mxu0 0.0
        %2310 = vmatmul.mubr.f32.gmra.mrb[0].mxu0 %v2163
        %v2311 = vpop.f32.mrb[0].mxu0
        %v2312 = vadd.f32 0.0, %v2311
        %v2313 = vpop.f32.mrb[0].mxu0
        %2314 = vmatprep.mubr.f32.mxu0 0.0
        %2315 = vmatmul.mubr.f32.gmra.mrb[0].mxu0 %v2165
        %v2316 = vpop.f32.mrb[0].mxu0
        %v2317 = vadd.f32 0.0, %v2316
        %v2318 = vpop.f32.mrb[0].mxu0
        %2319 = vmatprep.mubr.f32.mxu0 0.0
        %2320 = vmatmul.mubr.f32.gmra.mrb[0].mxu0 %v2167
        %v2321 = vpop.f32.mrb[0].mxu0
        %v2322 = vadd.f32 0.0, %v2321
        %v2323 = vpop.f32.mrb[0].mxu0
        %2324 = vmatprep.mubr.f32.mxu0 0.0
        %2325 = vmatmul.mubr.f32.gmra.mrb[0].mxu0 %v2169
        %v2326 = vpop.f32.mrb[0].mxu0
        %v2327 = vadd.f32 0.0, %v2326
        %v2328 = vpop.f32.mrb[0].mxu0
        %2329 = vmatprep.mubr.f32.mxu0 0.0
        %2330 = vmatmul.mubr.f32.gmra.mrb[0].mxu0 %v2171
        %v2331 = vpop.f32.mrb[0].mxu0
        %v2332 = vadd.f32 0.0, %v2331
        %v2333 = vpop.f32.mrb[0].mxu0
        %2334 = vmatprep.mubr.f32.mxu0 0.0
        %2335 = vmatmul.mubr.f32.gmra.mrb[0].mxu0 %v2173
        %v2336 = vpop.f32.mrb[0].mxu0
        %v2337 = vadd.f32 0.0, %v2336
        %v2338 = vpop.f32.mrb[0].mxu0
        %2339 = vmatprep.mubr.f32.mxu0 0.0
        %2340 = vmatmul.mubr.f32.gmra.mrb[0].mxu0 %v2175
        %v2341 = vpop.f32.mrb[0].mxu0
        %v2342 = vadd.f32 0.0, %v2341
        %v2343 = vpop.f32.mrb[0].mxu0
        %2344 = vmatprep.mubr.f32.mxu0 0.0
        %2345 = vmatmul.mubr.f32.gmra.mrb[0].mxu0 %v2177
        %v2346 = vpop.f32.mrb[0].mxu0
        %v2347 = vadd.f32 0.0, %v2346
        %v2348 = vpop.f32.mrb[0].mxu0
        %2349 = vmatprep.mubr.f32.mxu0 0.0
        %2350 = vmatmul.mubr.f32.gmra.mrb[0].mxu0 %v2179
        %v2351 = vpop.f32.mrb[0].mxu0
        %v2352 = vadd.f32 0.0, %v2351
        %v2353 = vpop.f32.mrb[0].mxu0
        %2354 = vmatprep.mubr.f32.mxu0 0.0
        %2355 = vmatmul.mubr.f32.gmra.mrb[0].mxu0 %v2181
        %v2356 = vpop.f32.mrb[0].mxu0
        %v2357 = vadd.f32 0.0, %v2356
        %v2358 = vpop.f32.mrb[0].mxu0
        %2359 = vdwg.mxu0
        %2360 = vmax.xlane.f32.xlu0 %v2282
        %v2361 = vpop.xlane.xlu0 %2360
        %2362 = vmax.xlane.f32.xlu0 %v2287
        %v2363 = vpop.xlane.xlu0 %2362
        %2364 = vmax.xlane.f32.xlu0 %v2292
        %v2365 = vpop.xlane.xlu0 %2364
        %2366 = vmax.xlane.f32.xlu0 %v2297
        %v2367 = vpop.xlane.xlu0 %2366
        %2368 = vmax.xlane.f32.xlu0 %v2302
        %v2369 = vpop.xlane.xlu0 %2368
        %2370 = vmax.xlane.f32.xlu0 %v2307
        %v2371 = vpop.xlane.xlu0 %2370
        %2372 = vmax.xlane.f32.xlu0 %v2312
        %v2373 = vpop.xlane.xlu0 %2372
        %2374 = vmax.xlane.f32.xlu0 %v2317
        %v2375 = vpop.xlane.xlu0 %2374
        %2376 = vmax.xlane.f32.xlu0 %v2322
        %v2377 = vpop.xlane.xlu0 %2376
        %2378 = vmax.xlane.f32.xlu0 %v2327
        %v2379 = vpop.xlane.xlu0 %2378
        %2380 = vmax.xlane.f32.xlu0 %v2332
        %v2381 = vpop.xlane.xlu0 %2380
        %2382 = vmax.xlane.f32.xlu0 %v2337
        %v2383 = vpop.xlane.xlu0 %2382
        %2384 = vmax.xlane.f32.xlu0 %v2342
        %v2385 = vpop.xlane.xlu0 %2384
        %2386 = vmax.xlane.f32.xlu0 %v2347
        %v2387 = vpop.xlane.xlu0 %2386
        %2388 = vmax.xlane.f32.xlu0 %v2352
        %v2389 = vpop.xlane.xlu0 %2388
        %2390 = vmax.xlane.f32.xlu0 %v2357
        %v2391 = vpop.xlane.xlu0 %2390
        %v2392 = vsub.f32 %v2282, %v2361
        %v2393 = vsub.f32 %v2287, %v2363
        %v2394 = vsub.f32 %v2292, %v2365
        %v2395 = vsub.f32 %v2297, %v2367
        %v2396 = vsub.f32 %v2302, %v2369
        %v2397 = vsub.f32 %v2307, %v2371
        %v2398 = vsub.f32 %v2312, %v2373
        %v2399 = vsub.f32 %v2317, %v2375
        %v2400 = vsub.f32 %v2322, %v2377
        %v2401 = vsub.f32 %v2327, %v2379
        %v2402 = vsub.f32 %v2332, %v2381
        %v2403 = vsub.f32 %v2337, %v2383
        %v2404 = vsub.f32 %v2342, %v2385
        %v2405 = vsub.f32 %v2347, %v2387
        %v2406 = vsub.f32 %v2352, %v2389
        %v2407 = vsub.f32 %v2357, %v2391
        %v2408 = vmul.f32 %v2392, 1.442695
        %v2409 = vpow.pop %v2408
        %v2410 = vmul.f32 %v2393, 1.442695
        %v2411 = vpow.pop %v2410
        %v2412 = vmul.f32 %v2394, 1.442695
        %v2413 = vpow.pop %v2412
        %v2414 = vmul.f32 %v2395, 1.442695
        %v2415 = vpow.pop %v2414
        %v2416 = vmul.f32 %v2396, 1.442695
        %v2417 = vpow.pop %v2416
        %v2418 = vmul.f32 %v2397, 1.442695
        %v2419 = vpow.pop %v2418
        %v2420 = vmul.f32 %v2398, 1.442695
        %v2421 = vpow.pop %v2420
        %v2422 = vmul.f32 %v2399, 1.442695
        %v2423 = vpow.pop %v2422
        %v2424 = vmul.f32 %v2400, 1.442695
        %v2425 = vpow.pop %v2424
        %v2426 = vmul.f32 %v2401, 1.442695
        %v2427 = vpow.pop %v2426
        %v2428 = vmul.f32 %v2402, 1.442695
        %v2429 = vpow.pop %v2428
        %v2430 = vmul.f32 %v2403, 1.442695
        %v2431 = vpow.pop %v2430
        %v2432 = vmul.f32 %v2404, 1.442695
        %v2433 = vpow.pop %v2432
        %v2434 = vmul.f32 %v2405, 1.442695
        %v2435 = vpow.pop %v2434
        %v2436 = vmul.f32 %v2406, 1.442695
        %v2437 = vpow.pop %v2436
        %v2438 = vmul.f32 %v2407, 1.442695
        %v2439 = vpow.pop %v2438
        %2440 = vadd.xlane.f32.xlu0 %v2409
        %v2441 = vpop.xlane.xlu0 %2440
        %2442 = vadd.xlane.f32.xlu0 %v2411
        %v2443 = vpop.xlane.xlu0 %2442
        %2444 = vadd.xlane.f32.xlu0 %v2413
        %v2445 = vpop.xlane.xlu0 %2444
        %2446 = vadd.xlane.f32.xlu0 %v2415
        %v2447 = vpop.xlane.xlu0 %2446
        %2448 = vadd.xlane.f32.xlu0 %v2417
        %v2449 = vpop.xlane.xlu0 %2448
        %2450 = vadd.xlane.f32.xlu0 %v2419
        %v2451 = vpop.xlane.xlu0 %2450
        %2452 = vadd.xlane.f32.xlu0 %v2421
        %v2453 = vpop.xlane.xlu0 %2452
        %2454 = vadd.xlane.f32.xlu0 %v2423
        %v2455 = vpop.xlane.xlu0 %2454
        %2456 = vadd.xlane.f32.xlu0 %v2425
        %v2457 = vpop.xlane.xlu0 %2456
        %2458 = vadd.xlane.f32.xlu0 %v2427
        %v2459 = vpop.xlane.xlu0 %2458
        %2460 = vadd.xlane.f32.xlu0 %v2429
        %v2461 = vpop.xlane.xlu0 %2460
        %2462 = vadd.xlane.f32.xlu0 %v2431
        %v2463 = vpop.xlane.xlu0 %2462
        %2464 = vadd.xlane.f32.xlu0 %v2433
        %v2465 = vpop.xlane.xlu0 %2464
        %2466 = vadd.xlane.f32.xlu0 %v2435
        %v2467 = vpop.xlane.xlu0 %2466
        %2468 = vadd.xlane.f32.xlu0 %v2437
        %v2469 = vpop.xlane.xlu0 %2468
        %2470 = vadd.xlane.f32.xlu0 %v2439
        %v2471 = vpop.xlane.xlu0 %2470
        %v2472 = vrcp.pop %v2441
        %v2473 = vmul.f32 %v2409, %v2472
        %v2474 = vrcp.pop %v2443
        %v2475 = vmul.f32 %v2411, %v2474
        %v2476 = vrcp.pop %v2445
        %v2477 = vmul.f32 %v2413, %v2476
        %v2478 = vrcp.pop %v2447
        %v2479 = vmul.f32 %v2415, %v2478
        %v2480 = vrcp.pop %v2449
        %v2481 = vmul.f32 %v2417, %v2480
        %v2482 = vrcp.pop %v2451
        %v2483 = vmul.f32 %v2419, %v2482
        %v2484 = vrcp.pop %v2453
        %v2485 = vmul.f32 %v2421, %v2484
        %v2486 = vrcp.pop %v2455
        %v2487 = vmul.f32 %v2423, %v2486
        %v2488 = vrcp.pop %v2457
        %v2489 = vmul.f32 %v2425, %v2488
        %v2490 = vrcp.pop %v2459
        %v2491 = vmul.f32 %v2427, %v2490
        %v2492 = vrcp.pop %v2461
        %v2493 = vmul.f32 %v2429, %v2492
        %v2494 = vrcp.pop %v2463
        %v2495 = vmul.f32 %v2431, %v2494
        %v2496 = vrcp.pop %v2465
        %v2497 = vmul.f32 %v2433, %v2496
        %v2498 = vrcp.pop %v2467
        %v2499 = vmul.f32 %v2435, %v2498
        %v2500 = vrcp.pop %v2469
        %v2501 = vmul.f32 %v2437, %v2500
        %v2502 = vrcp.pop %v2471
        %v2503 = vmul.f32 %v2439, %v2502
        %2520 = vrot.lane.b32.xlu0 %v1444, 96
        %v2521 = vpop.permute.xlu0 %2520
        %2522 = vrot.lane.b32.xlu0 %v1450, 96
        %v2523 = vpop.permute.xlu0 %2522
        %2524 = vrot.lane.b32.xlu0 %v1456, 96
        %v2525 = vpop.permute.xlu0 %2524
        %2526 = vrot.lane.b32.xlu0 %v1462, 96
        %v2527 = vpop.permute.xlu0 %2526
        %2528 = vrot.lane.b32.xlu0 %v1468, 96
        %v2529 = vpop.permute.xlu0 %2528
        %2530 = vrot.lane.b32.xlu0 %v1474, 96
        %v2531 = vpop.permute.xlu0 %2530
        %2532 = vrot.lane.b32.xlu0 %v1480, 96
        %v2533 = vpop.permute.xlu0 %2532
        %2534 = vrot.lane.b32.xlu0 %v1486, 96
        %v2535 = vpop.permute.xlu0 %2534
        %2536 = vrot.lane.b32.xlu0 %v1492, 96
        %v2537 = vpop.permute.xlu0 %2536
        %2538 = vrot.lane.b32.xlu0 %v1498, 96
        %v2539 = vpop.permute.xlu0 %2538
        %2540 = vrot.lane.b32.xlu0 %v1504, 96
        %v2541 = vpop.permute.xlu0 %2540
        %2542 = vrot.lane.b32.xlu0 %v1510, 96
        %v2543 = vpop.permute.xlu0 %2542
        %2544 = vrot.lane.b32.xlu0 %v1516, 96
        %v2545 = vpop.permute.xlu0 %2544
        %2546 = vrot.lane.b32.xlu0 %v1522, 96
        %v2547 = vpop.permute.xlu0 %2546
        %2548 = vrot.lane.b32.xlu0 %v1528, 96
        %v2549 = vpop.permute.xlu0 %2548
        %2550 = vrot.lane.b32.xlu0 %v1534, 96
        %v2551 = vpop.permute.xlu0 %2550
        %2568 = vmatprep.subr.mxu0 0.0
        %2569 = vmatpush1.msra.mxu0 %v2521
        %2570 = vmatprep.subr.mxu0 0.0
        %2571 = vmatpush1.msra.mxu0 %v2523
        %2572 = vmatprep.subr.mxu0 0.0
        %2573 = vmatpush1.msra.mxu0 %v2525
        %2574 = vmatprep.subr.mxu0 0.0
        %2575 = vmatpush1.msra.mxu0 %v2527
        %2576 = vmatprep.subr.mxu0 0.0
        %2577 = vmatpush1.msra.mxu0 %v2529
        %2578 = vmatprep.subr.mxu0 0.0
        %2579 = vmatpush1.msra.mxu0 %v2531
        %2580 = vmatprep.subr.mxu0 0.0
        %2581 = vmatpush1.msra.mxu0 %v2533
        %2582 = vmatprep.subr.mxu0 0.0
        %2583 = vmatpush1.msra.mxu0 %v2535
        %2584 = vmatprep.subr.mxu0 0.0
        %2585 = vmatpush1.msra.mxu0 %v2537
        %2586 = vmatprep.subr.mxu0 0.0
        %2587 = vmatpush1.msra.mxu0 %v2539
        %2588 = vmatprep.subr.mxu0 0.0
        %2589 = vmatpush1.msra.mxu0 %v2541
        %2590 = vmatprep.subr.mxu0 0.0
        %2591 = vmatpush1.msra.mxu0 %v2543
        %2592 = vmatprep.subr.mxu0 0.0
        %2593 = vmatpush1.msra.mxu0 %v2545
        %2594 = vmatprep.subr.mxu0 0.0
        %2595 = vmatpush1.msra.mxu0 %v2547
        %2596 = vmatprep.subr.mxu0 0.0
        %2597 = vmatpush1.msra.mxu0 %v2549
        %2598 = vmatprep.subr.mxu0 0.0
        %2599 = vmatpush1.msra.mxu0 %v2551
        %2600 = vmatprep.subr.mxu0 0.0
        %2601 = vmatpush1.msra.mxu0 0.0
        %2602 = vmatprep.subr.mxu0 0.0
        %2603 = vmatpush1.msra.mxu0 0.0
        %2604 = vmatprep.subr.mxu0 0.0
        %2605 = vmatpush1.msra.mxu0 0.0
        %2606 = vmatprep.subr.mxu0 0.0
        %2607 = vmatpush1.msra.mxu0 0.0
        %2608 = vmatprep.subr.mxu0 0.0
        %2609 = vmatpush1.msra.mxu0 0.0
        %2610 = vmatprep.subr.mxu0 0.0
        %2611 = vmatpush1.msra.mxu0 0.0
        %2612 = vmatprep.subr.mxu0 0.0
        %2613 = vmatpush1.msra.mxu0 0.0
        %2614 = vmatprep.subr.mxu0 0.0
        %2615 = vmatpush1.msra.mxu0 0.0
        %2616 = vmatprep.subr.mxu0 0.0
        %2617 = vmatpush1.msra.mxu0 0.0
        %2618 = vmatprep.subr.mxu0 0.0
        %2619 = vmatpush1.msra.mxu0 0.0
        %2620 = vmatprep.subr.mxu0 0.0
        %2621 = vmatpush1.msra.mxu0 0.0
        %2622 = vmatprep.subr.mxu0 0.0
        %2623 = vmatpush1.msra.mxu0 0.0
        %2624 = vmatprep.subr.mxu0 0.0
        %2625 = vmatpush1.msra.mxu0 0.0
        %2626 = vmatprep.subr.mxu0 0.0
        %2627 = vmatpush1.msra.mxu0 0.0
        %2628 = vmatprep.subr.mxu0 0.0
        %2629 = vmatpush1.msra.mxu0 0.0
        %2630 = vmatprep.subr.mxu0 0.0
        %2631 = vmatpush1.msra.mxu0 0.0
        %2632 = vmatprep.mubr.f32.mxu0 0.0
        %2633 = vmatmul.mubr.f32.gmra.mrb[0].mxu0 %v2473
        %v2634 = vpop.f32.mrb[0].mxu0
        %v2635 = vadd.f32 0.0, %v2634
        %v2636 = vpop.f32.mrb[0].mxu0
        %2637 = vmatprep.mubr.f32.mxu0 0.0
        %2638 = vmatmul.mubr.f32.gmra.mrb[0].mxu0 %v2475
        %v2639 = vpop.f32.mrb[0].mxu0
        %v2640 = vadd.f32 0.0, %v2639
        %v2641 = vpop.f32.mrb[0].mxu0
        %2642 = vmatprep.mubr.f32.mxu0 0.0
        %2643 = vmatmul.mubr.f32.gmra.mrb[0].mxu0 %v2477
        %v2644 = vpop.f32.mrb[0].mxu0
        %v2645 = vadd.f32 0.0, %v2644
        %v2646 = vpop.f32.mrb[0].mxu0
        %2647 = vmatprep.mubr.f32.mxu0 0.0
        %2648 = vmatmul.mubr.f32.gmra.mrb[0].mxu0 %v2479
        %v2649 = vpop.f32.mrb[0].mxu0
        %v2650 = vadd.f32 0.0, %v2649
        %v2651 = vpop.f32.mrb[0].mxu0
        %2652 = vmatprep.mubr.f32.mxu0 0.0
        %2653 = vmatmul.mubr.f32.gmra.mrb[0].mxu0 %v2481
        %v2654 = vpop.f32.mrb[0].mxu0
        %v2655 = vadd.f32 0.0, %v2654
        %v2656 = vpop.f32.mrb[0].mxu0
        %2657 = vmatprep.mubr.f32.mxu0 0.0
        %2658 = vmatmul.mubr.f32.gmra.mrb[0].mxu0 %v2483
        %v2659 = vpop.f32.mrb[0].mxu0
        %v2660 = vadd.f32 0.0, %v2659
        %v2661 = vpop.f32.mrb[0].mxu0
        %2662 = vmatprep.mubr.f32.mxu0 0.0
        %2663 = vmatmul.mubr.f32.gmra.mrb[0].mxu0 %v2485
        %v2664 = vpop.f32.mrb[0].mxu0
        %v2665 = vadd.f32 0.0, %v2664
        %v2666 = vpop.f32.mrb[0].mxu0
        %2667 = vmatprep.mubr.f32.mxu0 0.0
        %2668 = vmatmul.mubr.f32.gmra.mrb[0].mxu0 %v2487
        %v2669 = vpop.f32.mrb[0].mxu0
        %v2670 = vadd.f32 0.0, %v2669
        %v2671 = vpop.f32.mrb[0].mxu0
        %2672 = vmatprep.mubr.f32.mxu0 0.0
        %2673 = vmatmul.mubr.f32.gmra.mrb[0].mxu0 %v2489
        %v2674 = vpop.f32.mrb[0].mxu0
        %v2675 = vadd.f32 0.0, %v2674
        %v2676 = vpop.f32.mrb[0].mxu0
        %2677 = vmatprep.mubr.f32.mxu0 0.0
        %2678 = vmatmul.mubr.f32.gmra.mrb[0].mxu0 %v2491
        %v2679 = vpop.f32.mrb[0].mxu0
        %v2680 = vadd.f32 0.0, %v2679
        %v2681 = vpop.f32.mrb[0].mxu0
        %2682 = vmatprep.mubr.f32.mxu0 0.0
        %2683 = vmatmul.mubr.f32.gmra.mrb[0].mxu0 %v2493
        %v2684 = vpop.f32.mrb[0].mxu0
        %v2685 = vadd.f32 0.0, %v2684
        %v2686 = vpop.f32.mrb[0].mxu0
        %2687 = vmatprep.mubr.f32.mxu0 0.0
        %2688 = vmatmul.mubr.f32.gmra.mrb[0].mxu0 %v2495
        %v2689 = vpop.f32.mrb[0].mxu0
        %v2690 = vadd.f32 0.0, %v2689
        %v2691 = vpop.f32.mrb[0].mxu0
        %2692 = vmatprep.mubr.f32.mxu0 0.0
        %2693 = vmatmul.mubr.f32.gmra.mrb[0].mxu0 %v2497
        %v2694 = vpop.f32.mrb[0].mxu0
        %v2695 = vadd.f32 0.0, %v2694
        %v2696 = vpop.f32.mrb[0].mxu0
        %2697 = vmatprep.mubr.f32.mxu0 0.0
        %2698 = vmatmul.mubr.f32.gmra.mrb[0].mxu0 %v2499
        %v2699 = vpop.f32.mrb[0].mxu0
        %v2700 = vadd.f32 0.0, %v2699
        %v2701 = vpop.f32.mrb[0].mxu0
        %2702 = vmatprep.mubr.f32.mxu0 0.0
        %2703 = vmatmul.mubr.f32.gmra.mrb[0].mxu0 %v2501
        %v2704 = vpop.f32.mrb[0].mxu0
        %v2705 = vadd.f32 0.0, %v2704
        %v2706 = vpop.f32.mrb[0].mxu0
        %2707 = vmatprep.mubr.f32.mxu0 0.0
        %2708 = vmatmul.mubr.f32.gmra.mrb[0].mxu0 %v2503
        %v2709 = vpop.f32.mrb[0].mxu0
        %v2710 = vadd.f32 0.0, %v2709
        %v2711 = vpop.f32.mrb[0].mxu0
        %2712 = vdwg.mxu0
        %v2713 = vld [vmem:[%s744 + $0x20] sm:$0xff]
        %v2714 = vld [vmem:[%s744 + $0x28] sm:$0xff]
        %v2715 = vld [vmem:[%s744 + $0x30] sm:$0xff]
        %v2716 = vld [vmem:[%s744 + $0x38] sm:$0xff]
        %v2718 = vsel %vm1552, %v2635, 0
        %v2721 = vsel %vm1552, %v2640, 0
        %v2724 = vsel %vm1552, %v2645, 0
        %v2727 = vsel %vm1552, %v2650, 0
        %v2730 = vsel %vm1552, %v2655, 0
        %v2733 = vsel %vm1552, %v2660, 0
        %v2736 = vsel %vm1552, %v2665, 0
        %v2739 = vsel %vm1552, %v2670, 0
        %v2742 = vsel %vm1552, %v2675, 0
        %v2745 = vsel %vm1552, %v2680, 0
        %v2748 = vsel %vm1552, %v2685, 0
        %v2751 = vsel %vm1552, %v2690, 0
        %v2754 = vsel %vm1552, %v2695, 0
        %v2757 = vsel %vm1552, %v2700, 0
        %v2760 = vsel %vm1552, %v2705, 0
        %v2763 = vsel %vm1552, %v2710, 0
        %2765 = vmatprep.subr.mxu0 0.0
        %2766 = vmatpush1.msra.mxu0 %v2713
        %2767 = vmatprep.subr.mxu0 0.0
        %2768 = vmatpush1.msra.mxu0 %v2714
        %2769 = vmatprep.subr.mxu0 0.0
        %2770 = vmatpush1.msra.mxu0 %v2715
        %2771 = vmatprep.subr.mxu0 0.0
        %2772 = vmatpush1.msra.mxu0 %v2716
        %2773 = vmatprep.subr.mxu0 0.0
        %2774 = vmatpush1.msra.mxu0 0.0
        %2775 = vmatprep.subr.mxu0 0.0
        %2776 = vmatpush1.msra.mxu0 0.0
        %2777 = vmatprep.subr.mxu0 0.0
        %2778 = vmatpush1.msra.mxu0 0.0
        %2779 = vmatprep.subr.mxu0 0.0
        %2780 = vmatpush1.msra.mxu0 0.0
        %2781 = vmatprep.subr.mxu0 0.0
        %2782 = vmatpush1.msra.mxu0 0.0
        %2783 = vmatprep.subr.mxu0 0.0
        %2784 = vmatpush1.msra.mxu0 0.0
        %2785 = vmatprep.subr.mxu0 0.0
        %2786 = vmatpush1.msra.mxu0 0.0
        %2787 = vmatprep.subr.mxu0 0.0
        %2788 = vmatpush1.msra.mxu0 0.0
        %2789 = vmatprep.subr.mxu0 0.0
        %2790 = vmatpush1.msra.mxu0 0.0
        %2791 = vmatprep.subr.mxu0 0.0
        %2792 = vmatpush1.msra.mxu0 0.0
        %2793 = vmatprep.subr.mxu0 0.0
        %2794 = vmatpush1.msra.mxu0 0.0
        %2795 = vmatprep.subr.mxu0 0.0
        %2796 = vmatpush1.msra.mxu0 0.0
        %2797 = vmatprep.subr.mxu0 0.0
        %2798 = vmatpush1.msra.mxu0 0.0
        %2799 = vmatprep.subr.mxu0 0.0
        %2800 = vmatpush1.msra.mxu0 0.0
        %2801 = vmatprep.subr.mxu0 0.0
        %2802 = vmatpush1.msra.mxu0 0.0
        %2803 = vmatprep.subr.mxu0 0.0
        %2804 = vmatpush1.msra.mxu0 0.0
        %2805 = vmatprep.subr.mxu0 0.0
        %2806 = vmatpush1.msra.mxu0 0.0
        %2807 = vmatprep.subr.mxu0 0.0
        %2808 = vmatpush1.msra.mxu0 0.0
        %2809 = vmatprep.subr.mxu0 0.0
        %2810 = vmatpush1.msra.mxu0 0.0
        %2811 = vmatprep.subr.mxu0 0.0
        %2812 = vmatpush1.msra.mxu0 0.0
        %2813 = vmatprep.subr.mxu0 0.0
        %2814 = vmatpush1.msra.mxu0 0.0
        %2815 = vmatprep.subr.mxu0 0.0
        %2816 = vmatpush1.msra.mxu0 0.0
        %2817 = vmatprep.subr.mxu0 0.0
        %2818 = vmatpush1.msra.mxu0 0.0
        %2819 = vmatprep.subr.mxu0 0.0
        %2820 = vmatpush1.msra.mxu0 0.0
        %2821 = vmatprep.subr.mxu0 0.0
        %2822 = vmatpush1.msra.mxu0 0.0
        %2823 = vmatprep.subr.mxu0 0.0
        %2824 = vmatpush1.msra.mxu0 0.0
        %2825 = vmatprep.subr.mxu0 0.0
        %2826 = vmatpush1.msra.mxu0 0.0
        %2827 = vmatprep.subr.mxu0 0.0
        %2828 = vmatpush1.msra.mxu0 0.0
        %2829 = vmatprep.mubr.f32.mxu0 0.0
        %2830 = vmatmul.mubr.f32.gmra.mrb[0].mxu0 %v2718
        %v2831 = vpop.f32.mrb[0].mxu0
        %v2832 = vadd.f32 0.0, %v2831
        %v2833 = vpop.f32.mrb[0].mxu0
        %2834 = vmatprep.mubr.f32.mxu0 0.0
        %2835 = vmatmul.mubr.f32.gmra.mrb[0].mxu0 %v2721
        %v2836 = vpop.f32.mrb[0].mxu0
        %v2837 = vadd.f32 0.0, %v2836
        %v2838 = vpop.f32.mrb[0].mxu0
        %2839 = vmatprep.mubr.f32.mxu0 0.0
        %2840 = vmatmul.mubr.f32.gmra.mrb[0].mxu0 %v2724
        %v2841 = vpop.f32.mrb[0].mxu0
        %v2842 = vadd.f32 0.0, %v2841
        %v2843 = vpop.f32.mrb[0].mxu0
        %2844 = vmatprep.mubr.f32.mxu0 0.0
        %2845 = vmatmul.mubr.f32.gmra.mrb[0].mxu0 %v2727
        %v2846 = vpop.f32.mrb[0].mxu0
        %v2847 = vadd.f32 0.0, %v2846
        %v2848 = vpop.f32.mrb[0].mxu0
        %2849 = vmatprep.mubr.f32.mxu0 0.0
        %2850 = vmatmul.mubr.f32.gmra.mrb[0].mxu0 %v2730
        %v2851 = vpop.f32.mrb[0].mxu0
        %v2852 = vadd.f32 0.0, %v2851
        %v2853 = vpop.f32.mrb[0].mxu0
        %2854 = vmatprep.mubr.f32.mxu0 0.0
        %2855 = vmatmul.mubr.f32.gmra.mrb[0].mxu0 %v2733
        %v2856 = vpop.f32.mrb[0].mxu0
        %v2857 = vadd.f32 0.0, %v2856
        %v2858 = vpop.f32.mrb[0].mxu0
        %2859 = vmatprep.mubr.f32.mxu0 0.0
        %2860 = vmatmul.mubr.f32.gmra.mrb[0].mxu0 %v2736
        %v2861 = vpop.f32.mrb[0].mxu0
        %v2862 = vadd.f32 0.0, %v2861
        %v2863 = vpop.f32.mrb[0].mxu0
        %2864 = vmatprep.mubr.f32.mxu0 0.0
        %2865 = vmatmul.mubr.f32.gmra.mrb[0].mxu0 %v2739
        %v2866 = vpop.f32.mrb[0].mxu0
        %v2867 = vadd.f32 0.0, %v2866
        %v2868 = vpop.f32.mrb[0].mxu0
        %2869 = vmatprep.mubr.f32.mxu0 0.0
        %2870 = vmatmul.mubr.f32.gmra.mrb[0].mxu0 %v2742
        %v2871 = vpop.f32.mrb[0].mxu0
        %v2872 = vadd.f32 0.0, %v2871
        %v2873 = vpop.f32.mrb[0].mxu0
        %2874 = vmatprep.mubr.f32.mxu0 0.0
        %2875 = vmatmul.mubr.f32.gmra.mrb[0].mxu0 %v2745
        %v2876 = vpop.f32.mrb[0].mxu0
        %v2877 = vadd.f32 0.0, %v2876
        %v2878 = vpop.f32.mrb[0].mxu0
        %2879 = vmatprep.mubr.f32.mxu0 0.0
        %2880 = vmatmul.mubr.f32.gmra.mrb[0].mxu0 %v2748
        %v2881 = vpop.f32.mrb[0].mxu0
        %v2882 = vadd.f32 0.0, %v2881
        %v2883 = vpop.f32.mrb[0].mxu0
        %2884 = vmatprep.mubr.f32.mxu0 0.0
        %2885 = vmatmul.mubr.f32.gmra.mrb[0].mxu0 %v2751
        %v2886 = vpop.f32.mrb[0].mxu0
        %v2887 = vadd.f32 0.0, %v2886
        %v2888 = vpop.f32.mrb[0].mxu0
        %2889 = vmatprep.mubr.f32.mxu0 0.0
        %2890 = vmatmul.mubr.f32.gmra.mrb[0].mxu0 %v2754
        %v2891 = vpop.f32.mrb[0].mxu0
        %v2892 = vadd.f32 0.0, %v2891
        %v2893 = vpop.f32.mrb[0].mxu0
        %2894 = vmatprep.mubr.f32.mxu0 0.0
        %2895 = vmatmul.mubr.f32.gmra.mrb[0].mxu0 %v2757
        %v2896 = vpop.f32.mrb[0].mxu0
        %v2897 = vadd.f32 0.0, %v2896
        %v2898 = vpop.f32.mrb[0].mxu0
        %2899 = vmatprep.mubr.f32.mxu0 0.0
        %2900 = vmatmul.mubr.f32.gmra.mrb[0].mxu0 %v2760
        %v2901 = vpop.f32.mrb[0].mxu0
        %v2902 = vadd.f32 0.0, %v2901
        %v2903 = vpop.f32.mrb[0].mxu0
        %2904 = vmatprep.mubr.f32.mxu0 0.0
        %2905 = vmatmul.mubr.f32.gmra.mrb[0].mxu0 %v2763
        %v2906 = vpop.f32.mrb[0].mxu0
        %v2907 = vadd.f32 0.0, %v2906
        %v2908 = vpop.f32.mrb[0].mxu0
        %2909 = vdwg.mxu0
        %v2911 = vsel %vm1552, %v2005, 0
        %v2914 = vsel %vm1552, %v2010, 0
        %v2917 = vsel %vm1552, %v2015, 0
        %v2920 = vsel %vm1552, %v2020, 0
        %v2923 = vsel %vm1552, %v2025, 0
        %v2926 = vsel %vm1552, %v2030, 0
        %v2929 = vsel %vm1552, %v2035, 0
        %v2932 = vsel %vm1552, %v2040, 0
        %v2935 = vsel %vm1552, %v2045, 0
        %v2938 = vsel %vm1552, %v2050, 0
        %v2941 = vsel %vm1552, %v2055, 0
        %v2944 = vsel %vm1552, %v2060, 0
        %v2947 = vsel %vm1552, %v2065, 0
        %v2950 = vsel %vm1552, %v2070, 0
        %v2953 = vsel %vm1552, %v2075, 0
        %v2956 = vsel %vm1552, %v2080, 0
        %2958 = vmatprep.subr.mxu0 0.0
        %2959 = vmatpush1.msra.mxu0 %v2083
        %2960 = vmatprep.subr.mxu0 0.0
        %2961 = vmatpush1.msra.mxu0 %v2084
        %2962 = vmatprep.subr.mxu0 0.0
        %2963 = vmatpush1.msra.mxu0 %v2085
        %2964 = vmatprep.subr.mxu0 0.0
        %2965 = vmatpush1.msra.mxu0 %v2086
        %2966 = vmatprep.subr.mxu0 0.0
        %2967 = vmatpush1.msra.mxu0 0.0
        %2968 = vmatprep.subr.mxu0 0.0
        %2969 = vmatpush1.msra.mxu0 0.0
        %2970 = vmatprep.subr.mxu0 0.0
        %2971 = vmatpush1.msra.mxu0 0.0
        %2972 = vmatprep.subr.mxu0 0.0
        %2973 = vmatpush1.msra.mxu0 0.0
        %2974 = vmatprep.subr.mxu0 0.0
        %2975 = vmatpush1.msra.mxu0 0.0
        %2976 = vmatprep.subr.mxu0 0.0
        %2977 = vmatpush1.msra.mxu0 0.0
        %2978 = vmatprep.subr.mxu0 0.0
        %2979 = vmatpush1.msra.mxu0 0.0
        %2980 = vmatprep.subr.mxu0 0.0
        %2981 = vmatpush1.msra.mxu0 0.0
        %2982 = vmatprep.subr.mxu0 0.0
        %2983 = vmatpush1.msra.mxu0 0.0
        %2984 = vmatprep.subr.mxu0 0.0
        %2985 = vmatpush1.msra.mxu0 0.0
        %2986 = vmatprep.subr.mxu0 0.0
        %2987 = vmatpush1.msra.mxu0 0.0
        %2988 = vmatprep.subr.mxu0 0.0
        %2989 = vmatpush1.msra.mxu0 0.0
        %2990 = vmatprep.subr.mxu0 0.0
        %2991 = vmatpush1.msra.mxu0 0.0
        %2992 = vmatprep.subr.mxu0 0.0
        %2993 = vmatpush1.msra.mxu0 0.0
        %2994 = vmatprep.subr.mxu0 0.0
        %2995 = vmatpush1.msra.mxu0 0.0
        %2996 = vmatprep.subr.mxu0 0.0
        %2997 = vmatpush1.msra.mxu0 0.0
        %2998 = vmatprep.subr.mxu0 0.0
        %2999 = vmatpush1.msra.mxu0 0.0
        %3000 = vmatprep.subr.mxu0 0.0
        %3001 = vmatpush1.msra.mxu0 0.0
        %3002 = vmatprep.subr.mxu0 0.0
        %3003 = vmatpush1.msra.mxu0 0.0
        %3004 = vmatprep.subr.mxu0 0.0
        %3005 = vmatpush1.msra.mxu0 0.0
        %3006 = vmatprep.subr.mxu0 0.0
        %3007 = vmatpush1.msra.mxu0 0.0
        %3008 = vmatprep.subr.mxu0 0.0
        %3009 = vmatpush1.msra.mxu0 0.0
        %3010 = vmatprep.subr.mxu0 0.0
        %3011 = vmatpush1.msra.mxu0 0.0
        %3012 = vmatprep.subr.mxu0 0.0
        %3013 = vmatpush1.msra.mxu0 0.0
        %3014 = vmatprep.subr.mxu0 0.0
        %3015 = vmatpush1.msra.mxu0 0.0
        %3016 = vmatprep.subr.mxu0 0.0
        %3017 = vmatpush1.msra.mxu0 0.0
        %3018 = vmatprep.subr.mxu0 0.0
        %3019 = vmatpush1.msra.mxu0 0.0
        %3020 = vmatprep.subr.mxu0 0.0
        %3021 = vmatpush1.msra.mxu0 0.0
        %3022 = vmatprep.mubr.f32.mxu0 0.0
        %3023 = vmatmul.mubr.f32.gmra.mrb[0].mxu0 %v2911
        %v3024 = vpop.f32.mrb[0].mxu0
        %v3025 = vadd.f32 %v2832, %v3024
        %v3026 = vpop.f32.mrb[0].mxu0
        %3027 = vmatprep.mubr.f32.mxu0 0.0
        %3028 = vmatmul.mubr.f32.gmra.mrb[0].mxu0 %v2914
        %v3029 = vpop.f32.mrb[0].mxu0
        %v3030 = vadd.f32 %v2837, %v3029
        %v3031 = vpop.f32.mrb[0].mxu0
        %3032 = vmatprep.mubr.f32.mxu0 0.0
        %3033 = vmatmul.mubr.f32.gmra.mrb[0].mxu0 %v2917
        %v3034 = vpop.f32.mrb[0].mxu0
        %v3035 = vadd.f32 %v2842, %v3034
        %v3036 = vpop.f32.mrb[0].mxu0
        %3037 = vmatprep.mubr.f32.mxu0 0.0
        %3038 = vmatmul.mubr.f32.gmra.mrb[0].mxu0 %v2920
        %v3039 = vpop.f32.mrb[0].mxu0
        %v3040 = vadd.f32 %v2847, %v3039
        %v3041 = vpop.f32.mrb[0].mxu0
        %3042 = vmatprep.mubr.f32.mxu0 0.0
        %3043 = vmatmul.mubr.f32.gmra.mrb[0].mxu0 %v2923
        %v3044 = vpop.f32.mrb[0].mxu0
        %v3045 = vadd.f32 %v2852, %v3044
        %v3046 = vpop.f32.mrb[0].mxu0
        %3047 = vmatprep.mubr.f32.mxu0 0.0
        %3048 = vmatmul.mubr.f32.gmra.mrb[0].mxu0 %v2926
        %v3049 = vpop.f32.mrb[0].mxu0
        %v3050 = vadd.f32 %v2857, %v3049
        %v3051 = vpop.f32.mrb[0].mxu0
        %3052 = vmatprep.mubr.f32.mxu0 0.0
        %3053 = vmatmul.mubr.f32.gmra.mrb[0].mxu0 %v2929
        %v3054 = vpop.f32.mrb[0].mxu0
        %v3055 = vadd.f32 %v2862, %v3054
        %v3056 = vpop.f32.mrb[0].mxu0
        %3057 = vmatprep.mubr.f32.mxu0 0.0
        %3058 = vmatmul.mubr.f32.gmra.mrb[0].mxu0 %v2932
        %v3059 = vpop.f32.mrb[0].mxu0
        %v3060 = vadd.f32 %v2867, %v3059
        %v3061 = vpop.f32.mrb[0].mxu0
        %3062 = vmatprep.mubr.f32.mxu0 0.0
        %3063 = vmatmul.mubr.f32.gmra.mrb[0].mxu0 %v2935
        %v3064 = vpop.f32.mrb[0].mxu0
        %v3065 = vadd.f32 %v2872, %v3064
        %v3066 = vpop.f32.mrb[0].mxu0
        %3067 = vmatprep.mubr.f32.mxu0 0.0
        %3068 = vmatmul.mubr.f32.gmra.mrb[0].mxu0 %v2938
        %v3069 = vpop.f32.mrb[0].mxu0
        %v3070 = vadd.f32 %v2877, %v3069
        %v3071 = vpop.f32.mrb[0].mxu0
        %3072 = vmatprep.mubr.f32.mxu0 0.0
        %3073 = vmatmul.mubr.f32.gmra.mrb[0].mxu0 %v2941
        %v3074 = vpop.f32.mrb[0].mxu0
        %v3075 = vadd.f32 %v2882, %v3074
        %v3076 = vpop.f32.mrb[0].mxu0
        %3077 = vmatprep.mubr.f32.mxu0 0.0
        %3078 = vmatmul.mubr.f32.gmra.mrb[0].mxu0 %v2944
        %v3079 = vpop.f32.mrb[0].mxu0
        %v3080 = vadd.f32 %v2887, %v3079
        %v3081 = vpop.f32.mrb[0].mxu0
        %3082 = vmatprep.mubr.f32.mxu0 0.0
        %3083 = vmatmul.mubr.f32.gmra.mrb[0].mxu0 %v2947
        %v3084 = vpop.f32.mrb[0].mxu0
        %v3085 = vadd.f32 %v2892, %v3084
        %v3086 = vpop.f32.mrb[0].mxu0
        %3087 = vmatprep.mubr.f32.mxu0 0.0
        %3088 = vmatmul.mubr.f32.gmra.mrb[0].mxu0 %v2950
        %v3089 = vpop.f32.mrb[0].mxu0
        %v3090 = vadd.f32 %v2897, %v3089
        %v3091 = vpop.f32.mrb[0].mxu0
        %3092 = vmatprep.mubr.f32.mxu0 0.0
        %3093 = vmatmul.mubr.f32.gmra.mrb[0].mxu0 %v2953
        %v3094 = vpop.f32.mrb[0].mxu0
        %v3095 = vadd.f32 %v2902, %v3094
        %v3096 = vpop.f32.mrb[0].mxu0
        %3097 = vmatprep.mubr.f32.mxu0 0.0
        %3098 = vmatmul.mubr.f32.gmra.mrb[0].mxu0 %v2956
        %v3099 = vpop.f32.mrb[0].mxu0
        %v3100 = vadd.f32 %v2907, %v3099
        %v3101 = vpop.f32.mrb[0].mxu0
        %3102 = vdwg.mxu0
        %3103 = vrot.lane.b32.xlu0 %v1536, 64
        %v3104 = vpop.permute.xlu0 %3103
        %3105 = vrot.lane.b32.xlu0 %v1537, 64
        %v3106 = vpop.permute.xlu0 %3105
        %3107 = vrot.lane.b32.xlu0 %v1538, 64
        %v3108 = vpop.permute.xlu0 %3107
        %3109 = vrot.lane.b32.xlu0 %v1539, 64
        %v3110 = vpop.permute.xlu0 %3109
        %3111 = vrot.lane.b32.xlu0 %v1540, 64
        %v3112 = vpop.permute.xlu0 %3111
        %3113 = vrot.lane.b32.xlu0 %v1541, 64
        %v3114 = vpop.permute.xlu0 %3113
        %3115 = vrot.lane.b32.xlu0 %v1542, 64
        %v3116 = vpop.permute.xlu0 %3115
        %3117 = vrot.lane.b32.xlu0 %v1543, 64
        %v3118 = vpop.permute.xlu0 %3117
        %3119 = vrot.lane.b32.xlu0 %v1544, 64
        %v3120 = vpop.permute.xlu0 %3119
        %3121 = vrot.lane.b32.xlu0 %v1545, 64
        %v3122 = vpop.permute.xlu0 %3121
        %3123 = vrot.lane.b32.xlu0 %v1546, 64
        %v3124 = vpop.permute.xlu0 %3123
        %3125 = vrot.lane.b32.xlu0 %v1547, 64
        %v3126 = vpop.permute.xlu0 %3125
        %3127 = vrot.lane.b32.xlu0 %v1548, 64
        %v3128 = vpop.permute.xlu0 %3127
        %3129 = vrot.lane.b32.xlu0 %v1549, 64
        %v3130 = vpop.permute.xlu0 %3129
        %3131 = vrot.lane.b32.xlu0 %v1550, 64
        %v3132 = vpop.permute.xlu0 %3131
        %3133 = vrot.lane.b32.xlu0 %v1551, 64
        %v3134 = vpop.permute.xlu0 %3133
        %3135 = vrot.lane.b32.xlu0 %v1442, 64
        %v3136 = vpop.permute.xlu0 %3135
        %3137 = vrot.lane.b32.xlu0 %v1448, 64
        %v3138 = vpop.permute.xlu0 %3137
        %3139 = vrot.lane.b32.xlu0 %v1454, 64
        %v3140 = vpop.permute.xlu0 %3139
        %3141 = vrot.lane.b32.xlu0 %v1460, 64
        %v3142 = vpop.permute.xlu0 %3141
        %3143 = vrot.lane.b32.xlu0 %v1466, 64
        %v3144 = vpop.permute.xlu0 %3143
        %3145 = vrot.lane.b32.xlu0 %v1472, 64
        %v3146 = vpop.permute.xlu0 %3145
        %3147 = vrot.lane.b32.xlu0 %v1478, 64
        %v3148 = vpop.permute.xlu0 %3147
        %3149 = vrot.lane.b32.xlu0 %v1484, 64
        %v3150 = vpop.permute.xlu0 %3149
        %3151 = vrot.lane.b32.xlu0 %v1490, 64
        %v3152 = vpop.permute.xlu0 %3151
        %3153 = vrot.lane.b32.xlu0 %v1496, 64
        %v3154 = vpop.permute.xlu0 %3153
        %3155 = vrot.lane.b32.xlu0 %v1502, 64
        %v3156 = vpop.permute.xlu0 %3155
        %3157 = vrot.lane.b32.xlu0 %v1508, 64
        %v3158 = vpop.permute.xlu0 %3157
        %3159 = vrot.lane.b32.xlu0 %v1514, 64
        %v3160 = vpop.permute.xlu0 %3159
        %3161 = vrot.lane.b32.xlu0 %v1520, 64
        %v3162 = vpop.permute.xlu0 %3161
        %3163 = vrot.lane.b32.xlu0 %v1526, 64
        %v3164 = vpop.permute.xlu0 %3163
        %3165 = vrot.lane.b32.xlu0 %v1532, 64
        %v3166 = vpop.permute.xlu0 %3165
        %v3167 = vsel %vm1552, %v3104, 0
        %v3169 = vsel %vm1552, %v3106, 0
        %v3171 = vsel %vm1552, %v3108, 0
        %v3173 = vsel %vm1552, %v3110, 0
        %v3175 = vsel %vm1552, %v3112, 0
        %v3177 = vsel %vm1552, %v3114, 0
        %v3179 = vsel %vm1552, %v3116, 0
        %v3181 = vsel %vm1552, %v3118, 0
        %v3183 = vsel %vm1552, %v3120, 0
        %v3185 = vsel %vm1552, %v3122, 0
        %v3187 = vsel %vm1552, %v3124, 0
        %v3189 = vsel %vm1552, %v3126, 0
        %v3191 = vsel %vm1552, %v3128, 0
        %v3193 = vsel %vm1552, %v3130, 0
        %v3195 = vsel %vm1552, %v3132, 0
        %v3197 = vsel %vm1552, %v3134, 0
        %v3199 = vsel %vm1552, %v3136, 0
        %v3201 = vsel %vm1552, %v3138, 0
        %v3203 = vsel %vm1552, %v3140, 0
        %v3205 = vsel %vm1552, %v3142, 0
        %v3207 = vsel %vm1552, %v3144, 0
        %v3209 = vsel %vm1552, %v3146, 0
        %v3211 = vsel %vm1552, %v3148, 0
        %v3213 = vsel %vm1552, %v3150, 0
        %v3215 = vsel %vm1552, %v3152, 0
        %v3217 = vsel %vm1552, %v3154, 0
        %v3219 = vsel %vm1552, %v3156, 0
        %v3221 = vsel %vm1552, %v3158, 0
        %v3223 = vsel %vm1552, %v3160, 0
        %v3225 = vsel %vm1552, %v3162, 0
        %v3227 = vsel %vm1552, %v3164, 0
        %v3229 = vsel %vm1552, %v3166, 0
        %3231 = vmatprep.subr.mxu0 0.0
        %3232 = vmatpush1.xpose.msra.mxu0 %v3199
        %3233 = vmatprep.subr.mxu0 0.0
        %3234 = vmatpush1.xpose.msra.mxu0 %v3201
        %3235 = vmatprep.subr.mxu0 0.0
        %3236 = vmatpush1.xpose.msra.mxu0 %v3203
        %3237 = vmatprep.subr.mxu0 0.0
        %3238 = vmatpush1.xpose.msra.mxu0 %v3205
        %3239 = vmatprep.subr.mxu0 0.0
        %3240 = vmatpush1.xpose.msra.mxu0 %v3207
        %3241 = vmatprep.subr.mxu0 0.0
        %3242 = vmatpush1.xpose.msra.mxu0 %v3209
        %3243 = vmatprep.subr.mxu0 0.0
        %3244 = vmatpush1.xpose.msra.mxu0 %v3211
        %3245 = vmatprep.subr.mxu0 0.0
        %3246 = vmatpush1.xpose.msra.mxu0 %v3213
        %3247 = vmatprep.subr.mxu0 0.0
        %3248 = vmatpush1.xpose.msra.mxu0 %v3215
        %3249 = vmatprep.subr.mxu0 0.0
        %3250 = vmatpush1.xpose.msra.mxu0 %v3217
        %3251 = vmatprep.subr.mxu0 0.0
        %3252 = vmatpush1.xpose.msra.mxu0 %v3219
        %3253 = vmatprep.subr.mxu0 0.0
        %3254 = vmatpush1.xpose.msra.mxu0 %v3221
        %3255 = vmatprep.subr.mxu0 0.0
        %3256 = vmatpush1.xpose.msra.mxu0 %v3223
        %3257 = vmatprep.subr.mxu0 0.0
        %3258 = vmatpush1.xpose.msra.mxu0 %v3225
        %3259 = vmatprep.subr.mxu0 0.0
        %3260 = vmatpush1.xpose.msra.mxu0 %v3227
        %3261 = vmatprep.subr.mxu0 0.0
        %3262 = vmatpush1.xpose.msra.mxu0 %v3229
        %3263 = vmatprep.subr.mxu0 0.0
        %3264 = vmatpush1.xpose.msra.mxu0 0.0
        %3265 = vmatprep.subr.mxu0 0.0
        %3266 = vmatpush1.xpose.msra.mxu0 0.0
        %3267 = vmatprep.subr.mxu0 0.0
        %3268 = vmatpush1.xpose.msra.mxu0 0.0
        %3269 = vmatprep.subr.mxu0 0.0
        %3270 = vmatpush1.xpose.msra.mxu0 0.0
        %3271 = vmatprep.subr.mxu0 0.0
        %3272 = vmatpush1.xpose.msra.mxu0 0.0
        %3273 = vmatprep.subr.mxu0 0.0
        %3274 = vmatpush1.xpose.msra.mxu0 0.0
        %3275 = vmatprep.subr.mxu0 0.0
        %3276 = vmatpush1.xpose.msra.mxu0 0.0
        %3277 = vmatprep.subr.mxu0 0.0
        %3278 = vmatpush1.xpose.msra.mxu0 0.0
        %3279 = vmatprep.subr.mxu0 0.0
        %3280 = vmatpush1.xpose.msra.mxu0 0.0
        %3281 = vmatprep.subr.mxu0 0.0
        %3282 = vmatpush1.xpose.msra.mxu0 0.0
        %3283 = vmatprep.subr.mxu0 0.0
        %3284 = vmatpush1.xpose.msra.mxu0 0.0
        %3285 = vmatprep.subr.mxu0 0.0
        %3286 = vmatpush1.xpose.msra.mxu0 0.0
        %3287 = vmatprep.subr.mxu0 0.0
        %3288 = vmatpush1.xpose.msra.mxu0 0.0
        %3289 = vmatprep.subr.mxu0 0.0
        %3290 = vmatpush1.xpose.msra.mxu0 0.0
        %3291 = vmatprep.subr.mxu0 0.0
        %3292 = vmatpush1.xpose.msra.mxu0 0.0
        %3293 = vmatprep.subr.mxu0 0.0
        %3294 = vmatpush1.xpose.msra.mxu0 0.0
        %3295 = vmatprep.mubr.f32.mxu0 0.0
        %3296 = vmatmul.mubr.f32.gmra.mrb[0].mxu0 %v3167
        %v3297 = vpop.f32.mrb[0].mxu0
        %v3298 = vadd.f32 0.0, %v3297
        %v3299 = vpop.f32.mrb[0].mxu0
        %3300 = vmatprep.mubr.f32.mxu0 0.0
        %3301 = vmatmul.mubr.f32.gmra.mrb[0].mxu0 %v3169
        %v3302 = vpop.f32.mrb[0].mxu0
        %v3303 = vadd.f32 0.0, %v3302
        %v3304 = vpop.f32.mrb[0].mxu0
        %3305 = vmatprep.mubr.f32.mxu0 0.0
        %3306 = vmatmul.mubr.f32.gmra.mrb[0].mxu0 %v3171
        %v3307 = vpop.f32.mrb[0].mxu0
        %v3308 = vadd.f32 0.0, %v3307
        %v3309 = vpop.f32.mrb[0].mxu0
        %3310 = vmatprep.mubr.f32.mxu0 0.0
        %3311 = vmatmul.mubr.f32.gmra.mrb[0].mxu0 %v3173
        %v3312 = vpop.f32.mrb[0].mxu0
        %v3313 = vadd.f32 0.0, %v3312
        %v3314 = vpop.f32.mrb[0].mxu0
        %3315 = vmatprep.mubr.f32.mxu0 0.0
        %3316 = vmatmul.mubr.f32.gmra.mrb[0].mxu0 %v3175
        %v3317 = vpop.f32.mrb[0].mxu0
        %v3318 = vadd.f32 0.0, %v3317
        %v3319 = vpop.f32.mrb[0].mxu0
        %3320 = vmatprep.mubr.f32.mxu0 0.0
        %3321 = vmatmul.mubr.f32.gmra.mrb[0].mxu0 %v3177
        %v3322 = vpop.f32.mrb[0].mxu0
        %v3323 = vadd.f32 0.0, %v3322
        %v3324 = vpop.f32.mrb[0].mxu0
        %3325 = vmatprep.mubr.f32.mxu0 0.0
        %3326 = vmatmul.mubr.f32.gmra.mrb[0].mxu0 %v3179
        %v3327 = vpop.f32.mrb[0].mxu0
        %v3328 = vadd.f32 0.0, %v3327
        %v3329 = vpop.f32.mrb[0].mxu0
        %3330 = vmatprep.mubr.f32.mxu0 0.0
        %3331 = vmatmul.mubr.f32.gmra.mrb[0].mxu0 %v3181
        %v3332 = vpop.f32.mrb[0].mxu0
        %v3333 = vadd.f32 0.0, %v3332
        %v3334 = vpop.f32.mrb[0].mxu0
        %3335 = vmatprep.mubr.f32.mxu0 0.0
        %3336 = vmatmul.mubr.f32.gmra.mrb[0].mxu0 %v3183
        %v3337 = vpop.f32.mrb[0].mxu0
        %v3338 = vadd.f32 0.0, %v3337
        %v3339 = vpop.f32.mrb[0].mxu0
        %3340 = vmatprep.mubr.f32.mxu0 0.0
        %3341 = vmatmul.mubr.f32.gmra.mrb[0].mxu0 %v3185
        %v3342 = vpop.f32.mrb[0].mxu0
        %v3343 = vadd.f32 0.0, %v3342
        %v3344 = vpop.f32.mrb[0].mxu0
        %3345 = vmatprep.mubr.f32.mxu0 0.0
        %3346 = vmatmul.mubr.f32.gmra.mrb[0].mxu0 %v3187
        %v3347 = vpop.f32.mrb[0].mxu0
        %v3348 = vadd.f32 0.0, %v3347
        %v3349 = vpop.f32.mrb[0].mxu0
        %3350 = vmatprep.mubr.f32.mxu0 0.0
        %3351 = vmatmul.mubr.f32.gmra.mrb[0].mxu0 %v3189
        %v3352 = vpop.f32.mrb[0].mxu0
        %v3353 = vadd.f32 0.0, %v3352
        %v3354 = vpop.f32.mrb[0].mxu0
        %3355 = vmatprep.mubr.f32.mxu0 0.0
        %3356 = vmatmul.mubr.f32.gmra.mrb[0].mxu0 %v3191
        %v3357 = vpop.f32.mrb[0].mxu0
        %v3358 = vadd.f32 0.0, %v3357
        %v3359 = vpop.f32.mrb[0].mxu0
        %3360 = vmatprep.mubr.f32.mxu0 0.0
        %3361 = vmatmul.mubr.f32.gmra.mrb[0].mxu0 %v3193
        %v3362 = vpop.f32.mrb[0].mxu0
        %v3363 = vadd.f32 0.0, %v3362
        %v3364 = vpop.f32.mrb[0].mxu0
        %3365 = vmatprep.mubr.f32.mxu0 0.0
        %3366 = vmatmul.mubr.f32.gmra.mrb[0].mxu0 %v3195
        %v3367 = vpop.f32.mrb[0].mxu0
        %v3368 = vadd.f32 0.0, %v3367
        %v3369 = vpop.f32.mrb[0].mxu0
        %3370 = vmatprep.mubr.f32.mxu0 0.0
        %3371 = vmatmul.mubr.f32.gmra.mrb[0].mxu0 %v3197
        %v3372 = vpop.f32.mrb[0].mxu0
        %v3373 = vadd.f32 0.0, %v3372
        %v3374 = vpop.f32.mrb[0].mxu0
        %3375 = vdwg.mxu0
        %3376 = vmax.xlane.f32.xlu0 %v3298
        %v3377 = vpop.xlane.xlu0 %3376
        %3378 = vmax.xlane.f32.xlu0 %v3303
        %v3379 = vpop.xlane.xlu0 %3378
        %3380 = vmax.xlane.f32.xlu0 %v3308
        %v3381 = vpop.xlane.xlu0 %3380
        %3382 = vmax.xlane.f32.xlu0 %v3313
        %v3383 = vpop.xlane.xlu0 %3382
        %3384 = vmax.xlane.f32.xlu0 %v3318
        %v3385 = vpop.xlane.xlu0 %3384
        %3386 = vmax.xlane.f32.xlu0 %v3323
        %v3387 = vpop.xlane.xlu0 %3386
        %3388 = vmax.xlane.f32.xlu0 %v3328
        %v3389 = vpop.xlane.xlu0 %3388
        %3390 = vmax.xlane.f32.xlu0 %v3333
        %v3391 = vpop.xlane.xlu0 %3390
        %3392 = vmax.xlane.f32.xlu0 %v3338
        %v3393 = vpop.xlane.xlu0 %3392
        %3394 = vmax.xlane.f32.xlu0 %v3343
        %v3395 = vpop.xlane.xlu0 %3394
        %3396 = vmax.xlane.f32.xlu0 %v3348
        %v3397 = vpop.xlane.xlu0 %3396
        %3398 = vmax.xlane.f32.xlu0 %v3353
        %v3399 = vpop.xlane.xlu0 %3398
        %3400 = vmax.xlane.f32.xlu0 %v3358
        %v3401 = vpop.xlane.xlu0 %3400
        %3402 = vmax.xlane.f32.xlu0 %v3363
        %v3403 = vpop.xlane.xlu0 %3402
        %3404 = vmax.xlane.f32.xlu0 %v3368
        %v3405 = vpop.xlane.xlu0 %3404
        %3406 = vmax.xlane.f32.xlu0 %v3373
        %v3407 = vpop.xlane.xlu0 %3406
        %v3408 = vsub.f32 %v3298, %v3377
        %v3409 = vsub.f32 %v3303, %v3379
        %v3410 = vsub.f32 %v3308, %v3381
        %v3411 = vsub.f32 %v3313, %v3383
        %v3412 = vsub.f32 %v3318, %v3385
        %v3413 = vsub.f32 %v3323, %v3387
        %v3414 = vsub.f32 %v3328, %v3389
        %v3415 = vsub.f32 %v3333, %v3391
        %v3416 = vsub.f32 %v3338, %v3393
        %v3417 = vsub.f32 %v3343, %v3395
        %v3418 = vsub.f32 %v3348, %v3397
        %v3419 = vsub.f32 %v3353, %v3399
        %v3420 = vsub.f32 %v3358, %v3401
        %v3421 = vsub.f32 %v3363, %v3403
        %v3422 = vsub.f32 %v3368, %v3405
        %v3423 = vsub.f32 %v3373, %v3407
        %v3424 = vmul.f32 %v3408, 1.442695
        %v3425 = vpow.pop %v3424
        %v3426 = vmul.f32 %v3409, 1.442695
        %v3427 = vpow.pop %v3426
        %v3428 = vmul.f32 %v3410, 1.442695
        %v3429 = vpow.pop %v3428
        %v3430 = vmul.f32 %v3411, 1.442695
        %v3431 = vpow.pop %v3430
        %v3432 = vmul.f32 %v3412, 1.442695
        %v3433 = vpow.pop %v3432
        %v3434 = vmul.f32 %v3413, 1.442695
        %v3435 = vpow.pop %v3434
        %v3436 = vmul.f32 %v3414, 1.442695
        %v3437 = vpow.pop %v3436
        %v3438 = vmul.f32 %v3415, 1.442695
        %v3439 = vpow.pop %v3438
        %v3440 = vmul.f32 %v3416, 1.442695
        %v3441 = vpow.pop %v3440
        %v3442 = vmul.f32 %v3417, 1.442695
        %v3443 = vpow.pop %v3442
        %v3444 = vmul.f32 %v3418, 1.442695
        %v3445 = vpow.pop %v3444
        %v3446 = vmul.f32 %v3419, 1.442695
        %v3447 = vpow.pop %v3446
        %v3448 = vmul.f32 %v3420, 1.442695
        %v3449 = vpow.pop %v3448
        %v3450 = vmul.f32 %v3421, 1.442695
        %v3451 = vpow.pop %v3450
        %v3452 = vmul.f32 %v3422, 1.442695
        %v3453 = vpow.pop %v3452
        %v3454 = vmul.f32 %v3423, 1.442695
        %v3455 = vpow.pop %v3454
        %3456 = vadd.xlane.f32.xlu0 %v3425
        %v3457 = vpop.xlane.xlu0 %3456
        %3458 = vadd.xlane.f32.xlu0 %v3427
        %v3459 = vpop.xlane.xlu0 %3458
        %3460 = vadd.xlane.f32.xlu0 %v3429
        %v3461 = vpop.xlane.xlu0 %3460
        %3462 = vadd.xlane.f32.xlu0 %v3431
        %v3463 = vpop.xlane.xlu0 %3462
        %3464 = vadd.xlane.f32.xlu0 %v3433
        %v3465 = vpop.xlane.xlu0 %3464
        %3466 = vadd.xlane.f32.xlu0 %v3435
        %v3467 = vpop.xlane.xlu0 %3466
        %3468 = vadd.xlane.f32.xlu0 %v3437
        %v3469 = vpop.xlane.xlu0 %3468
        %3470 = vadd.xlane.f32.xlu0 %v3439
        %v3471 = vpop.xlane.xlu0 %3470
        %3472 = vadd.xlane.f32.xlu0 %v3441
        %v3473 = vpop.xlane.xlu0 %3472
        %3474 = vadd.xlane.f32.xlu0 %v3443
        %v3475 = vpop.xlane.xlu0 %3474
        %3476 = vadd.xlane.f32.xlu0 %v3445
        %v3477 = vpop.xlane.xlu0 %3476
        %3478 = vadd.xlane.f32.xlu0 %v3447
        %v3479 = vpop.xlane.xlu0 %3478
        %3480 = vadd.xlane.f32.xlu0 %v3449
        %v3481 = vpop.xlane.xlu0 %3480
        %3482 = vadd.xlane.f32.xlu0 %v3451
        %v3483 = vpop.xlane.xlu0 %3482
        %3484 = vadd.xlane.f32.xlu0 %v3453
        %v3485 = vpop.xlane.xlu0 %3484
        %3486 = vadd.xlane.f32.xlu0 %v3455
        %v3487 = vpop.xlane.xlu0 %3486
        %v3488 = vrcp.pop %v3457
        %v3489 = vmul.f32 %v3425, %v3488
        %v3490 = vrcp.pop %v3459
        %v3491 = vmul.f32 %v3427, %v3490
        %v3492 = vrcp.pop %v3461
        %v3493 = vmul.f32 %v3429, %v3492
        %v3494 = vrcp.pop %v3463
        %v3495 = vmul.f32 %v3431, %v3494
        %v3496 = vrcp.pop %v3465
        %v3497 = vmul.f32 %v3433, %v3496
        %v3498 = vrcp.pop %v3467
        %v3499 = vmul.f32 %v3435, %v3498
        %v3500 = vrcp.pop %v3469
        %v3501 = vmul.f32 %v3437, %v3500
        %v3502 = vrcp.pop %v3471
        %v3503 = vmul.f32 %v3439, %v3502
        %v3504 = vrcp.pop %v3473
        %v3505 = vmul.f32 %v3441, %v3504
        %v3506 = vrcp.pop %v3475
        %v3507 = vmul.f32 %v3443, %v3506
        %v3508 = vrcp.pop %v3477
        %v3509 = vmul.f32 %v3445, %v3508
        %v3510 = vrcp.pop %v3479
        %v3511 = vmul.f32 %v3447, %v3510
        %v3512 = vrcp.pop %v3481
        %v3513 = vmul.f32 %v3449, %v3512
        %v3514 = vrcp.pop %v3483
        %v3515 = vmul.f32 %v3451, %v3514
        %v3516 = vrcp.pop %v3485
        %v3517 = vmul.f32 %v3453, %v3516
        %v3518 = vrcp.pop %v3487
        %v3519 = vmul.f32 %v3455, %v3518
        %3520 = vrot.lane.b32.xlu0 %v1444, 64
        %v3521 = vpop.permute.xlu0 %3520
        %3522 = vrot.lane.b32.xlu0 %v1450, 64
        %v3523 = vpop.permute.xlu0 %3522
        %3524 = vrot.lane.b32.xlu0 %v1456, 64
        %v3525 = vpop.permute.xlu0 %3524
        %3526 = vrot.lane.b32.xlu0 %v1462, 64
        %v3527 = vpop.permute.xlu0 %3526
        %3528 = vrot.lane.b32.xlu0 %v1468, 64
        %v3529 = vpop.permute.xlu0 %3528
        %3530 = vrot.lane.b32.xlu0 %v1474, 64
        %v3531 = vpop.permute.xlu0 %3530
        %3532 = vrot.lane.b32.xlu0 %v1480, 64
        %v3533 = vpop.permute.xlu0 %3532
        %3534 = vrot.lane.b32.xlu0 %v1486, 64
        %v3535 = vpop.permute.xlu0 %3534
        %3536 = vrot.lane.b32.xlu0 %v1492, 64
        %v3537 = vpop.permute.xlu0 %3536
        %3538 = vrot.lane.b32.xlu0 %v1498, 64
        %v3539 = vpop.permute.xlu0 %3538
        %3540 = vrot.lane.b32.xlu0 %v1504, 64
        %v3541 = vpop.permute.xlu0 %3540
        %3542 = vrot.lane.b32.xlu0 %v1510, 64
        %v3543 = vpop.permute.xlu0 %3542
        %3544 = vrot.lane.b32.xlu0 %v1516, 64
        %v3545 = vpop.permute.xlu0 %3544
        %3546 = vrot.lane.b32.xlu0 %v1522, 64
        %v3547 = vpop.permute.xlu0 %3546
        %3548 = vrot.lane.b32.xlu0 %v1528, 64
        %v3549 = vpop.permute.xlu0 %3548
        %3550 = vrot.lane.b32.xlu0 %v1534, 64
        %v3551 = vpop.permute.xlu0 %3550
        %3568 = vmatprep.subr.mxu0 0.0
        %3569 = vmatpush1.msra.mxu0 %v3521
        %3570 = vmatprep.subr.mxu0 0.0
        %3571 = vmatpush1.msra.mxu0 %v3523
        %3572 = vmatprep.subr.mxu0 0.0
        %3573 = vmatpush1.msra.mxu0 %v3525
        %3574 = vmatprep.subr.mxu0 0.0
        %3575 = vmatpush1.msra.mxu0 %v3527
        %3576 = vmatprep.subr.mxu0 0.0
        %3577 = vmatpush1.msra.mxu0 %v3529
        %3578 = vmatprep.subr.mxu0 0.0
        %3579 = vmatpush1.msra.mxu0 %v3531
        %3580 = vmatprep.subr.mxu0 0.0
        %3581 = vmatpush1.msra.mxu0 %v3533
        %3582 = vmatprep.subr.mxu0 0.0
        %3583 = vmatpush1.msra.mxu0 %v3535
        %3584 = vmatprep.subr.mxu0 0.0
        %3585 = vmatpush1.msra.mxu0 %v3537
        %3586 = vmatprep.subr.mxu0 0.0
        %3587 = vmatpush1.msra.mxu0 %v3539
        %3588 = vmatprep.subr.mxu0 0.0
        %3589 = vmatpush1.msra.mxu0 %v3541
        %3590 = vmatprep.subr.mxu0 0.0
        %3591 = vmatpush1.msra.mxu0 %v3543
        %3592 = vmatprep.subr.mxu0 0.0
        %3593 = vmatpush1.msra.mxu0 %v3545
        %3594 = vmatprep.subr.mxu0 0.0
        %3595 = vmatpush1.msra.mxu0 %v3547
        %3596 = vmatprep.subr.mxu0 0.0
        %3597 = vmatpush1.msra.mxu0 %v3549
        %3598 = vmatprep.subr.mxu0 0.0
        %3599 = vmatpush1.msra.mxu0 %v3551
        %3600 = vmatprep.subr.mxu0 0.0
        %3601 = vmatpush1.msra.mxu0 0.0
        %3602 = vmatprep.subr.mxu0 0.0
        %3603 = vmatpush1.msra.mxu0 0.0
        %3604 = vmatprep.subr.mxu0 0.0
        %3605 = vmatpush1.msra.mxu0 0.0
        %3606 = vmatprep.subr.mxu0 0.0
        %3607 = vmatpush1.msra.mxu0 0.0
        %3608 = vmatprep.subr.mxu0 0.0
        %3609 = vmatpush1.msra.mxu0 0.0
        %3610 = vmatprep.subr.mxu0 0.0
        %3611 = vmatpush1.msra.mxu0 0.0
        %3612 = vmatprep.subr.mxu0 0.0
        %3613 = vmatpush1.msra.mxu0 0.0
        %3614 = vmatprep.subr.mxu0 0.0
        %3615 = vmatpush1.msra.mxu0 0.0
        %3616 = vmatprep.subr.mxu0 0.0
        %3617 = vmatpush1.msra.mxu0 0.0
        %3618 = vmatprep.subr.mxu0 0.0
        %3619 = vmatpush1.msra.mxu0 0.0
        %3620 = vmatprep.subr.mxu0 0.0
        %3621 = vmatpush1.msra.mxu0 0.0
        %3622 = vmatprep.subr.mxu0 0.0
        %3623 = vmatpush1.msra.mxu0 0.0
        %3624 = vmatprep.subr.mxu0 0.0
        %3625 = vmatpush1.msra.mxu0 0.0
        %3626 = vmatprep.subr.mxu0 0.0
        %3627 = vmatpush1.msra.mxu0 0.0
        %3628 = vmatprep.subr.mxu0 0.0
        %3629 = vmatpush1.msra.mxu0 0.0
        %3630 = vmatprep.subr.mxu0 0.0
        %3631 = vmatpush1.msra.mxu0 0.0
        %3632 = vmatprep.mubr.f32.mxu0 0.0
        %3633 = vmatmul.mubr.f32.gmra.mrb[0].mxu0 %v3489
        %v3634 = vpop.f32.mrb[0].mxu0
        %v3635 = vadd.f32 0.0, %v3634
        %v3636 = vpop.f32.mrb[0].mxu0
        %3637 = vmatprep.mubr.f32.mxu0 0.0
        %3638 = vmatmul.mubr.f32.gmra.mrb[0].mxu0 %v3491
        %v3639 = vpop.f32.mrb[0].mxu0
        %v3640 = vadd.f32 0.0, %v3639
        %v3641 = vpop.f32.mrb[0].mxu0
        %3642 = vmatprep.mubr.f32.mxu0 0.0
        %3643 = vmatmul.mubr.f32.gmra.mrb[0].mxu0 %v3493
        %v3644 = vpop.f32.mrb[0].mxu0
        %v3645 = vadd.f32 0.0, %v3644
        %v3646 = vpop.f32.mrb[0].mxu0
        %3647 = vmatprep.mubr.f32.mxu0 0.0
        %3648 = vmatmul.mubr.f32.gmra.mrb[0].mxu0 %v3495
        %v3649 = vpop.f32.mrb[0].mxu0
        %v3650 = vadd.f32 0.0, %v3649
        %v3651 = vpop.f32.mrb[0].mxu0
        %3652 = vmatprep.mubr.f32.mxu0 0.0
        %3653 = vmatmul.mubr.f32.gmra.mrb[0].mxu0 %v3497
        %v3654 = vpop.f32.mrb[0].mxu0
        %v3655 = vadd.f32 0.0, %v3654
        %v3656 = vpop.f32.mrb[0].mxu0
        %3657 = vmatprep.mubr.f32.mxu0 0.0
        %3658 = vmatmul.mubr.f32.gmra.mrb[0].mxu0 %v3499
        %v3659 = vpop.f32.mrb[0].mxu0
        %v3660 = vadd.f32 0.0, %v3659
        %v3661 = vpop.f32.mrb[0].mxu0
        %3662 = vmatprep.mubr.f32.mxu0 0.0
        %3663 = vmatmul.mubr.f32.gmra.mrb[0].mxu0 %v3501
        %v3664 = vpop.f32.mrb[0].mxu0
        %v3665 = vadd.f32 0.0, %v3664
        %v3666 = vpop.f32.mrb[0].mxu0
        %3667 = vmatprep.mubr.f32.mxu0 0.0
        %3668 = vmatmul.mubr.f32.gmra.mrb[0].mxu0 %v3503
        %v3669 = vpop.f32.mrb[0].mxu0
        %v3670 = vadd.f32 0.0, %v3669
        %v3671 = vpop.f32.mrb[0].mxu0
        %3672 = vmatprep.mubr.f32.mxu0 0.0
        %3673 = vmatmul.mubr.f32.gmra.mrb[0].mxu0 %v3505
        %v3674 = vpop.f32.mrb[0].mxu0
        %v3675 = vadd.f32 0.0, %v3674
        %v3676 = vpop.f32.mrb[0].mxu0
        %3677 = vmatprep.mubr.f32.mxu0 0.0
        %3678 = vmatmul.mubr.f32.gmra.mrb[0].mxu0 %v3507
        %v3679 = vpop.f32.mrb[0].mxu0
        %v3680 = vadd.f32 0.0, %v3679
        %v3681 = vpop.f32.mrb[0].mxu0
        %3682 = vmatprep.mubr.f32.mxu0 0.0
        %3683 = vmatmul.mubr.f32.gmra.mrb[0].mxu0 %v3509
        %v3684 = vpop.f32.mrb[0].mxu0
        %v3685 = vadd.f32 0.0, %v3684
        %v3686 = vpop.f32.mrb[0].mxu0
        %3687 = vmatprep.mubr.f32.mxu0 0.0
        %3688 = vmatmul.mubr.f32.gmra.mrb[0].mxu0 %v3511
        %v3689 = vpop.f32.mrb[0].mxu0
        %v3690 = vadd.f32 0.0, %v3689
        %v3691 = vpop.f32.mrb[0].mxu0
        %3692 = vmatprep.mubr.f32.mxu0 0.0
        %3693 = vmatmul.mubr.f32.gmra.mrb[0].mxu0 %v3513
        %v3694 = vpop.f32.mrb[0].mxu0
        %v3695 = vadd.f32 0.0, %v3694
        %v3696 = vpop.f32.mrb[0].mxu0
        %3697 = vmatprep.mubr.f32.mxu0 0.0
        %3698 = vmatmul.mubr.f32.gmra.mrb[0].mxu0 %v3515
        %v3699 = vpop.f32.mrb[0].mxu0
        %v3700 = vadd.f32 0.0, %v3699
        %v3701 = vpop.f32.mrb[0].mxu0
        %3702 = vmatprep.mubr.f32.mxu0 0.0
        %3703 = vmatmul.mubr.f32.gmra.mrb[0].mxu0 %v3517
        %v3704 = vpop.f32.mrb[0].mxu0
        %v3705 = vadd.f32 0.0, %v3704
        %v3706 = vpop.f32.mrb[0].mxu0
        %3707 = vmatprep.mubr.f32.mxu0 0.0
        %3708 = vmatmul.mubr.f32.gmra.mrb[0].mxu0 %v3519
        %v3709 = vpop.f32.mrb[0].mxu0
        %v3710 = vadd.f32 0.0, %v3709
        %v3711 = vpop.f32.mrb[0].mxu0
        %3712 = vdwg.mxu0
        %v3713 = vld [vmem:[%s744 + $0x40] sm:$0xff]
        %v3714 = vld [vmem:[%s744 + $0x48] sm:$0xff]
        %v3715 = vld [vmem:[%s744 + $0x50] sm:$0xff]
        %v3716 = vld [vmem:[%s744 + $0x58] sm:$0xff]
        %v3718 = vsel %vm1552, %v3635, 0
        %v3721 = vsel %vm1552, %v3640, 0
        %v3724 = vsel %vm1552, %v3645, 0
        %v3727 = vsel %vm1552, %v3650, 0
        %v3730 = vsel %vm1552, %v3655, 0
        %v3733 = vsel %vm1552, %v3660, 0
        %v3736 = vsel %vm1552, %v3665, 0
        %v3739 = vsel %vm1552, %v3670, 0
        %v3742 = vsel %vm1552, %v3675, 0
        %v3745 = vsel %vm1552, %v3680, 0
        %v3748 = vsel %vm1552, %v3685, 0
        %v3751 = vsel %vm1552, %v3690, 0
        %v3754 = vsel %vm1552, %v3695, 0
        %v3757 = vsel %vm1552, %v3700, 0
        %v3760 = vsel %vm1552, %v3705, 0
        %v3763 = vsel %vm1552, %v3710, 0
        %3765 = vmatprep.subr.mxu0 0.0
        %3766 = vmatpush1.msra.mxu0 %v3713
        %3767 = vmatprep.subr.mxu0 0.0
        %3768 = vmatpush1.msra.mxu0 %v3714
        %3769 = vmatprep.subr.mxu0 0.0
        %3770 = vmatpush1.msra.mxu0 %v3715
        %3771 = vmatprep.subr.mxu0 0.0
        %3772 = vmatpush1.msra.mxu0 %v3716
        %3773 = vmatprep.subr.mxu0 0.0
        %3774 = vmatpush1.msra.mxu0 0.0
        %3775 = vmatprep.subr.mxu0 0.0
        %3776 = vmatpush1.msra.mxu0 0.0
        %3777 = vmatprep.subr.mxu0 0.0
        %3778 = vmatpush1.msra.mxu0 0.0
        %3779 = vmatprep.subr.mxu0 0.0
        %3780 = vmatpush1.msra.mxu0 0.0
        %3781 = vmatprep.subr.mxu0 0.0
        %3782 = vmatpush1.msra.mxu0 0.0
        %3783 = vmatprep.subr.mxu0 0.0
        %3784 = vmatpush1.msra.mxu0 0.0
        %3785 = vmatprep.subr.mxu0 0.0
        %3786 = vmatpush1.msra.mxu0 0.0
        %3787 = vmatprep.subr.mxu0 0.0
        %3788 = vmatpush1.msra.mxu0 0.0
        %3789 = vmatprep.subr.mxu0 0.0
        %3790 = vmatpush1.msra.mxu0 0.0
        %3791 = vmatprep.subr.mxu0 0.0
        %3792 = vmatpush1.msra.mxu0 0.0
        %3793 = vmatprep.subr.mxu0 0.0
        %3794 = vmatpush1.msra.mxu0 0.0
        %3795 = vmatprep.subr.mxu0 0.0
        %3796 = vmatpush1.msra.mxu0 0.0
        %3797 = vmatprep.subr.mxu0 0.0
        %3798 = vmatpush1.msra.mxu0 0.0
        %3799 = vmatprep.subr.mxu0 0.0
        %3800 = vmatpush1.msra.mxu0 0.0
        %3801 = vmatprep.subr.mxu0 0.0
        %3802 = vmatpush1.msra.mxu0 0.0
        %3803 = vmatprep.subr.mxu0 0.0
        %3804 = vmatpush1.msra.mxu0 0.0
        %3805 = vmatprep.subr.mxu0 0.0
        %3806 = vmatpush1.msra.mxu0 0.0
        %3807 = vmatprep.subr.mxu0 0.0
        %3808 = vmatpush1.msra.mxu0 0.0
        %3809 = vmatprep.subr.mxu0 0.0
        %3810 = vmatpush1.msra.mxu0 0.0
        %3811 = vmatprep.subr.mxu0 0.0
        %3812 = vmatpush1.msra.mxu0 0.0
        %3813 = vmatprep.subr.mxu0 0.0
        %3814 = vmatpush1.msra.mxu0 0.0
        %3815 = vmatprep.subr.mxu0 0.0
        %3816 = vmatpush1.msra.mxu0 0.0
        %3817 = vmatprep.subr.mxu0 0.0
        %3818 = vmatpush1.msra.mxu0 0.0
        %3819 = vmatprep.subr.mxu0 0.0
        %3820 = vmatpush1.msra.mxu0 0.0
        %3821 = vmatprep.subr.mxu0 0.0
        %3822 = vmatpush1.msra.mxu0 0.0
        %3823 = vmatprep.subr.mxu0 0.0
        %3824 = vmatpush1.msra.mxu0 0.0
        %3825 = vmatprep.subr.mxu0 0.0
        %3826 = vmatpush1.msra.mxu0 0.0
        %3827 = vmatprep.subr.mxu0 0.0
        %3828 = vmatpush1.msra.mxu0 0.0
        %3829 = vmatprep.mubr.f32.mxu0 0.0
        %3830 = vmatmul.mubr.f32.gmra.mrb[0].mxu0 %v3718
        %v3831 = vpop.f32.mrb[0].mxu0
        %v3832 = vadd.f32 0.0, %v3831
        %v3833 = vpop.f32.mrb[0].mxu0
        %3834 = vmatprep.mubr.f32.mxu0 0.0
        %3835 = vmatmul.mubr.f32.gmra.mrb[0].mxu0 %v3721
        %v3836 = vpop.f32.mrb[0].mxu0
        %v3837 = vadd.f32 0.0, %v3836
        %v3838 = vpop.f32.mrb[0].mxu0
        %3839 = vmatprep.mubr.f32.mxu0 0.0
        %3840 = vmatmul.mubr.f32.gmra.mrb[0].mxu0 %v3724
        %v3841 = vpop.f32.mrb[0].mxu0
        %v3842 = vadd.f32 0.0, %v3841
        %v3843 = vpop.f32.mrb[0].mxu0
        %3844 = vmatprep.mubr.f32.mxu0 0.0
        %3845 = vmatmul.mubr.f32.gmra.mrb[0].mxu0 %v3727
        %v3846 = vpop.f32.mrb[0].mxu0
        %v3847 = vadd.f32 0.0, %v3846
        %v3848 = vpop.f32.mrb[0].mxu0
        %3849 = vmatprep.mubr.f32.mxu0 0.0
        %3850 = vmatmul.mubr.f32.gmra.mrb[0].mxu0 %v3730
        %v3851 = vpop.f32.mrb[0].mxu0
        %v3852 = vadd.f32 0.0, %v3851
        %v3853 = vpop.f32.mrb[0].mxu0
        %3854 = vmatprep.mubr.f32.mxu0 0.0
        %3855 = vmatmul.mubr.f32.gmra.mrb[0].mxu0 %v3733
        %v3856 = vpop.f32.mrb[0].mxu0
        %v3857 = vadd.f32 0.0, %v3856
        %v3858 = vpop.f32.mrb[0].mxu0
        %3859 = vmatprep.mubr.f32.mxu0 0.0
        %3860 = vmatmul.mubr.f32.gmra.mrb[0].mxu0 %v3736
        %v3861 = vpop.f32.mrb[0].mxu0
        %v3862 = vadd.f32 0.0, %v3861
        %v3863 = vpop.f32.mrb[0].mxu0
        %3864 = vmatprep.mubr.f32.mxu0 0.0
        %3865 = vmatmul.mubr.f32.gmra.mrb[0].mxu0 %v3739
        %v3866 = vpop.f32.mrb[0].mxu0
        %v3867 = vadd.f32 0.0, %v3866
        %v3868 = vpop.f32.mrb[0].mxu0
        %3869 = vmatprep.mubr.f32.mxu0 0.0
        %3870 = vmatmul.mubr.f32.gmra.mrb[0].mxu0 %v3742
        %v3871 = vpop.f32.mrb[0].mxu0
        %v3872 = vadd.f32 0.0, %v3871
        %v3873 = vpop.f32.mrb[0].mxu0
        %3874 = vmatprep.mubr.f32.mxu0 0.0
        %3875 = vmatmul.mubr.f32.gmra.mrb[0].mxu0 %v3745
        %v3876 = vpop.f32.mrb[0].mxu0
        %v3877 = vadd.f32 0.0, %v3876
        %v3878 = vpop.f32.mrb[0].mxu0
        %3879 = vmatprep.mubr.f32.mxu0 0.0
        %3880 = vmatmul.mubr.f32.gmra.mrb[0].mxu0 %v3748
        %v3881 = vpop.f32.mrb[0].mxu0
        %v3882 = vadd.f32 0.0, %v3881
        %v3883 = vpop.f32.mrb[0].mxu0
        %3884 = vmatprep.mubr.f32.mxu0 0.0
        %3885 = vmatmul.mubr.f32.gmra.mrb[0].mxu0 %v3751
        %v3886 = vpop.f32.mrb[0].mxu0
        %v3887 = vadd.f32 0.0, %v3886
        %v3888 = vpop.f32.mrb[0].mxu0
        %3889 = vmatprep.mubr.f32.mxu0 0.0
        %3890 = vmatmul.mubr.f32.gmra.mrb[0].mxu0 %v3754
        %v3891 = vpop.f32.mrb[0].mxu0
        %v3892 = vadd.f32 0.0, %v3891
        %v3893 = vpop.f32.mrb[0].mxu0
        %3894 = vmatprep.mubr.f32.mxu0 0.0
        %3895 = vmatmul.mubr.f32.gmra.mrb[0].mxu0 %v3757
        %v3896 = vpop.f32.mrb[0].mxu0
        %v3897 = vadd.f32 0.0, %v3896
        %v3898 = vpop.f32.mrb[0].mxu0
        %3899 = vmatprep.mubr.f32.mxu0 0.0
        %3900 = vmatmul.mubr.f32.gmra.mrb[0].mxu0 %v3760
        %v3901 = vpop.f32.mrb[0].mxu0
        %v3902 = vadd.f32 0.0, %v3901
        %v3903 = vpop.f32.mrb[0].mxu0
        %3904 = vmatprep.mubr.f32.mxu0 0.0
        %3905 = vmatmul.mubr.f32.gmra.mrb[0].mxu0 %v3763
        %v3906 = vpop.f32.mrb[0].mxu0
        %v3907 = vadd.f32 0.0, %v3906
        %v3908 = vpop.f32.mrb[0].mxu0
        %3909 = vdwg.mxu0
        %v3910 = vadd.f32 %v3025, %v3832
        %v3911 = vadd.f32 %v3030, %v3837
        %v3912 = vadd.f32 %v3035, %v3842
        %v3913 = vadd.f32 %v3040, %v3847
        %v3914 = vadd.f32 %v3045, %v3852
        %v3915 = vadd.f32 %v3050, %v3857
        %v3916 = vadd.f32 %v3055, %v3862
        %v3917 = vadd.f32 %v3060, %v3867
        %v3918 = vadd.f32 %v3065, %v3872
        %v3919 = vadd.f32 %v3070, %v3877
        %v3920 = vadd.f32 %v3075, %v3882
        %v3921 = vadd.f32 %v3080, %v3887
        %v3922 = vadd.f32 %v3085, %v3892
        %v3923 = vadd.f32 %v3090, %v3897
        %v3924 = vadd.f32 %v3095, %v3902
        %v3925 = vadd.f32 %v3100, %v3907
        %3926 = vrot.lane.b32.xlu0 %v1536, 32
        %v3927 = vpop.permute.xlu0 %3926
        %3928 = vrot.lane.b32.xlu0 %v1537, 32
        %v3929 = vpop.permute.xlu0 %3928
        %3930 = vrot.lane.b32.xlu0 %v1538, 32
        %v3931 = vpop.permute.xlu0 %3930
        %3932 = vrot.lane.b32.xlu0 %v1539, 32
        %v3933 = vpop.permute.xlu0 %3932
        %3934 = vrot.lane.b32.xlu0 %v1540, 32
        %v3935 = vpop.permute.xlu0 %3934
        %3936 = vrot.lane.b32.xlu0 %v1541, 32
        %v3937 = vpop.permute.xlu0 %3936
        %3938 = vrot.lane.b32.xlu0 %v1542, 32
        %v3939 = vpop.permute.xlu0 %3938
        %3940 = vrot.lane.b32.xlu0 %v1543, 32
        %v3941 = vpop.permute.xlu0 %3940
        %3942 = vrot.lane.b32.xlu0 %v1544, 32
        %v3943 = vpop.permute.xlu0 %3942
        %3944 = vrot.lane.b32.xlu0 %v1545, 32
        %v3945 = vpop.permute.xlu0 %3944
        %3946 = vrot.lane.b32.xlu0 %v1546, 32
        %v3947 = vpop.permute.xlu0 %3946
        %3948 = vrot.lane.b32.xlu0 %v1547, 32
        %v3949 = vpop.permute.xlu0 %3948
        %3950 = vrot.lane.b32.xlu0 %v1548, 32
        %v3951 = vpop.permute.xlu0 %3950
        %3952 = vrot.lane.b32.xlu0 %v1549, 32
        %v3953 = vpop.permute.xlu0 %3952
        %3954 = vrot.lane.b32.xlu0 %v1550, 32
        %v3955 = vpop.permute.xlu0 %3954
        %3956 = vrot.lane.b32.xlu0 %v1551, 32
        %v3957 = vpop.permute.xlu0 %3956
        %3958 = vrot.lane.b32.xlu0 %v1442, 32
        %v3959 = vpop.permute.xlu0 %3958
        %3960 = vrot.lane.b32.xlu0 %v1448, 32
        %v3961 = vpop.permute.xlu0 %3960
        %3962 = vrot.lane.b32.xlu0 %v1454, 32
        %v3963 = vpop.permute.xlu0 %3962
        %3964 = vrot.lane.b32.xlu0 %v1460, 32
        %v3965 = vpop.permute.xlu0 %3964
        %3966 = vrot.lane.b32.xlu0 %v1466, 32
        %v3967 = vpop.permute.xlu0 %3966
        %3968 = vrot.lane.b32.xlu0 %v1472, 32
        %v3969 = vpop.permute.xlu0 %3968
        %3970 = vrot.lane.b32.xlu0 %v1478, 32
        %v3971 = vpop.permute.xlu0 %3970
        %3972 = vrot.lane.b32.xlu0 %v1484, 32
        %v3973 = vpop.permute.xlu0 %3972
        %3974 = vrot.lane.b32.xlu0 %v1490, 32
        %v3975 = vpop.permute.xlu0 %3974
        %3976 = vrot.lane.b32.xlu0 %v1496, 32
        %v3977 = vpop.permute.xlu0 %3976
        %3978 = vrot.lane.b32.xlu0 %v1502, 32
        %v3979 = vpop.permute.xlu0 %3978
        %3980 = vrot.lane.b32.xlu0 %v1508, 32
        %v3981 = vpop.permute.xlu0 %3980
        %3982 = vrot.lane.b32.xlu0 %v1514, 32
        %v3983 = vpop.permute.xlu0 %3982
        %3984 = vrot.lane.b32.xlu0 %v1520, 32
        %v3985 = vpop.permute.xlu0 %3984
        %3986 = vrot.lane.b32.xlu0 %v1526, 32
        %v3987 = vpop.permute.xlu0 %3986
        %3988 = vrot.lane.b32.xlu0 %v1532, 32
        %v3989 = vpop.permute.xlu0 %3988
        %v3990 = vsel %vm1552, %v3927, 0
        %v3992 = vsel %vm1552, %v3929, 0
        %v3994 = vsel %vm1552, %v3931, 0
        %v3996 = vsel %vm1552, %v3933, 0
        %v3998 = vsel %vm1552, %v3935, 0
        %v4000 = vsel %vm1552, %v3937, 0
        %v4002 = vsel %vm1552, %v3939, 0
        %v4004 = vsel %vm1552, %v3941, 0
        %v4006 = vsel %vm1552, %v3943, 0
        %v4008 = vsel %vm1552, %v3945, 0
        %v4010 = vsel %vm1552, %v3947, 0
        %v4012 = vsel %vm1552, %v3949, 0
        %v4014 = vsel %vm1552, %v3951, 0
        %v4016 = vsel %vm1552, %v3953, 0
        %v4018 = vsel %vm1552, %v3955, 0
        %v4020 = vsel %vm1552, %v3957, 0
        %v4022 = vsel %vm1552, %v3959, 0
        %v4024 = vsel %vm1552, %v3961, 0
        %v4026 = vsel %vm1552, %v3963, 0
        %v4028 = vsel %vm1552, %v3965, 0
        %v4030 = vsel %vm1552, %v3967, 0
        %v4032 = vsel %vm1552, %v3969, 0
        %v4034 = vsel %vm1552, %v3971, 0
        %v4036 = vsel %vm1552, %v3973, 0
        %v4038 = vsel %vm1552, %v3975, 0
        %v4040 = vsel %vm1552, %v3977, 0
        %v4042 = vsel %vm1552, %v3979, 0
        %v4044 = vsel %vm1552, %v3981, 0
        %v4046 = vsel %vm1552, %v3983, 0
        %v4048 = vsel %vm1552, %v3985, 0
        %v4050 = vsel %vm1552, %v3987, 0
        %v4052 = vsel %vm1552, %v3989, 0
        %4054 = vmatprep.subr.mxu0 0.0
        %4055 = vmatpush1.xpose.msra.mxu0 %v4022
        %4056 = vmatprep.subr.mxu0 0.0
        %4057 = vmatpush1.xpose.msra.mxu0 %v4024
        %4058 = vmatprep.subr.mxu0 0.0
        %4059 = vmatpush1.xpose.msra.mxu0 %v4026
        %4060 = vmatprep.subr.mxu0 0.0
        %4061 = vmatpush1.xpose.msra.mxu0 %v4028
        %4062 = vmatprep.subr.mxu0 0.0
        %4063 = vmatpush1.xpose.msra.mxu0 %v4030
        %4064 = vmatprep.subr.mxu0 0.0
        %4065 = vmatpush1.xpose.msra.mxu0 %v4032
        %4066 = vmatprep.subr.mxu0 0.0
        %4067 = vmatpush1.xpose.msra.mxu0 %v4034
        %4068 = vmatprep.subr.mxu0 0.0
        %4069 = vmatpush1.xpose.msra.mxu0 %v4036
        %4070 = vmatprep.subr.mxu0 0.0
        %4071 = vmatpush1.xpose.msra.mxu0 %v4038
        %4072 = vmatprep.subr.mxu0 0.0
        %4073 = vmatpush1.xpose.msra.mxu0 %v4040
        %4074 = vmatprep.subr.mxu0 0.0
        %4075 = vmatpush1.xpose.msra.mxu0 %v4042
        %4076 = vmatprep.subr.mxu0 0.0
        %4077 = vmatpush1.xpose.msra.mxu0 %v4044
        %4078 = vmatprep.subr.mxu0 0.0
        %4079 = vmatpush1.xpose.msra.mxu0 %v4046
        %4080 = vmatprep.subr.mxu0 0.0
        %4081 = vmatpush1.xpose.msra.mxu0 %v4048
        %4082 = vmatprep.subr.mxu0 0.0
        %4083 = vmatpush1.xpose.msra.mxu0 %v4050
        %4084 = vmatprep.subr.mxu0 0.0
        %4085 = vmatpush1.xpose.msra.mxu0 %v4052
        %4086 = vmatprep.subr.mxu0 0.0
        %4087 = vmatpush1.xpose.msra.mxu0 0.0
        %4088 = vmatprep.subr.mxu0 0.0
        %4089 = vmatpush1.xpose.msra.mxu0 0.0
        %4090 = vmatprep.subr.mxu0 0.0
        %4091 = vmatpush1.xpose.msra.mxu0 0.0
        %4092 = vmatprep.subr.mxu0 0.0
        %4093 = vmatpush1.xpose.msra.mxu0 0.0
        %4094 = vmatprep.subr.mxu0 0.0
        %4095 = vmatpush1.xpose.msra.mxu0 0.0
        %4096 = vmatprep.subr.mxu0 0.0
        %4097 = vmatpush1.xpose.msra.mxu0 0.0
        %4098 = vmatprep.subr.mxu0 0.0
        %4099 = vmatpush1.xpose.msra.mxu0 0.0
        %4100 = vmatprep.subr.mxu0 0.0
        %4101 = vmatpush1.xpose.msra.mxu0 0.0
        %4102 = vmatprep.subr.mxu0 0.0
        %4103 = vmatpush1.xpose.msra.mxu0 0.0
        %4104 = vmatprep.subr.mxu0 0.0
        %4105 = vmatpush1.xpose.msra.mxu0 0.0
        %4106 = vmatprep.subr.mxu0 0.0
        %4107 = vmatpush1.xpose.msra.mxu0 0.0
        %4108 = vmatprep.subr.mxu0 0.0
        %4109 = vmatpush1.xpose.msra.mxu0 0.0
        %4110 = vmatprep.subr.mxu0 0.0
        %4111 = vmatpush1.xpose.msra.mxu0 0.0
        %4112 = vmatprep.subr.mxu0 0.0
        %4113 = vmatpush1.xpose.msra.mxu0 0.0
        %4114 = vmatprep.subr.mxu0 0.0
        %4115 = vmatpush1.xpose.msra.mxu0 0.0
        %4116 = vmatprep.subr.mxu0 0.0
        %4117 = vmatpush1.xpose.msra.mxu0 0.0
        %4118 = vmatprep.mubr.f32.mxu0 0.0
        %4119 = vmatmul.mubr.f32.gmra.mrb[0].mxu0 %v3990
        %v4120 = vpop.f32.mrb[0].mxu0
        %v4121 = vadd.f32 0.0, %v4120
        %v4122 = vpop.f32.mrb[0].mxu0
        %4123 = vmatprep.mubr.f32.mxu0 0.0
        %4124 = vmatmul.mubr.f32.gmra.mrb[0].mxu0 %v3992
        %v4125 = vpop.f32.mrb[0].mxu0
        %v4126 = vadd.f32 0.0, %v4125
        %v4127 = vpop.f32.mrb[0].mxu0
        %4128 = vmatprep.mubr.f32.mxu0 0.0
        %4129 = vmatmul.mubr.f32.gmra.mrb[0].mxu0 %v3994
        %v4130 = vpop.f32.mrb[0].mxu0
        %v4131 = vadd.f32 0.0, %v4130
        %v4132 = vpop.f32.mrb[0].mxu0
        %4133 = vmatprep.mubr.f32.mxu0 0.0
        %4134 = vmatmul.mubr.f32.gmra.mrb[0].mxu0 %v3996
        %v4135 = vpop.f32.mrb[0].mxu0
        %v4136 = vadd.f32 0.0, %v4135
        %v4137 = vpop.f32.mrb[0].mxu0
        %4138 = vmatprep.mubr.f32.mxu0 0.0
        %4139 = vmatmul.mubr.f32.gmra.mrb[0].mxu0 %v3998
        %v4140 = vpop.f32.mrb[0].mxu0
        %v4141 = vadd.f32 0.0, %v4140
        %v4142 = vpop.f32.mrb[0].mxu0
        %4143 = vmatprep.mubr.f32.mxu0 0.0
        %4144 = vmatmul.mubr.f32.gmra.mrb[0].mxu0 %v4000
        %v4145 = vpop.f32.mrb[0].mxu0
        %v4146 = vadd.f32 0.0, %v4145
        %v4147 = vpop.f32.mrb[0].mxu0
        %4148 = vmatprep.mubr.f32.mxu0 0.0
        %4149 = vmatmul.mubr.f32.gmra.mrb[0].mxu0 %v4002
        %v4150 = vpop.f32.mrb[0].mxu0
        %v4151 = vadd.f32 0.0, %v4150
        %v4152 = vpop.f32.mrb[0].mxu0
        %4153 = vmatprep.mubr.f32.mxu0 0.0
        %4154 = vmatmul.mubr.f32.gmra.mrb[0].mxu0 %v4004
        %v4155 = vpop.f32.mrb[0].mxu0
        %v4156 = vadd.f32 0.0, %v4155
        %v4157 = vpop.f32.mrb[0].mxu0
        %4158 = vmatprep.mubr.f32.mxu0 0.0
        %4159 = vmatmul.mubr.f32.gmra.mrb[0].mxu0 %v4006
        %v4160 = vpop.f32.mrb[0].mxu0
        %v4161 = vadd.f32 0.0, %v4160
        %v4162 = vpop.f32.mrb[0].mxu0
        %4163 = vmatprep.mubr.f32.mxu0 0.0
        %4164 = vmatmul.mubr.f32.gmra.mrb[0].mxu0 %v4008
        %v4165 = vpop.f32.mrb[0].mxu0
        %v4166 = vadd.f32 0.0, %v4165
        %v4167 = vpop.f32.mrb[0].mxu0
        %4168 = vmatprep.mubr.f32.mxu0 0.0
        %4169 = vmatmul.mubr.f32.gmra.mrb[0].mxu0 %v4010
        %v4170 = vpop.f32.mrb[0].mxu0
        %v4171 = vadd.f32 0.0, %v4170
        %v4172 = vpop.f32.mrb[0].mxu0
        %4173 = vmatprep.mubr.f32.mxu0 0.0
        %4174 = vmatmul.mubr.f32.gmra.mrb[0].mxu0 %v4012
        %v4175 = vpop.f32.mrb[0].mxu0
        %v4176 = vadd.f32 0.0, %v4175
        %v4177 = vpop.f32.mrb[0].mxu0
        %4178 = vmatprep.mubr.f32.mxu0 0.0
        %4179 = vmatmul.mubr.f32.gmra.mrb[0].mxu0 %v4014
        %v4180 = vpop.f32.mrb[0].mxu0
        %v4181 = vadd.f32 0.0, %v4180
        %v4182 = vpop.f32.mrb[0].mxu0
        %4183 = vmatprep.mubr.f32.mxu0 0.0
        %4184 = vmatmul.mubr.f32.gmra.mrb[0].mxu0 %v4016
        %v4185 = vpop.f32.mrb[0].mxu0
        %v4186 = vadd.f32 0.0, %v4185
        %v4187 = vpop.f32.mrb[0].mxu0
        %4188 = vmatprep.mubr.f32.mxu0 0.0
        %4189 = vmatmul.mubr.f32.gmra.mrb[0].mxu0 %v4018
        %v4190 = vpop.f32.mrb[0].mxu0
        %v4191 = vadd.f32 0.0, %v4190
        %v4192 = vpop.f32.mrb[0].mxu0
        %4193 = vmatprep.mubr.f32.mxu0 0.0
        %4194 = vmatmul.mubr.f32.gmra.mrb[0].mxu0 %v4020
        %v4195 = vpop.f32.mrb[0].mxu0
        %v4196 = vadd.f32 0.0, %v4195
        %v4197 = vpop.f32.mrb[0].mxu0
        %4198 = vdwg.mxu0
        %4199 = vmax.xlane.f32.xlu0 %v4121
        %v4200 = vpop.xlane.xlu0 %4199
        %4201 = vmax.xlane.f32.xlu0 %v4126
        %v4202 = vpop.xlane.xlu0 %4201
        %4203 = vmax.xlane.f32.xlu0 %v4131
        %v4204 = vpop.xlane.xlu0 %4203
        %4205 = vmax.xlane.f32.xlu0 %v4136
        %v4206 = vpop.xlane.xlu0 %4205
        %4207 = vmax.xlane.f32.xlu0 %v4141
        %v4208 = vpop.xlane.xlu0 %4207
        %4209 = vmax.xlane.f32.xlu0 %v4146
        %v4210 = vpop.xlane.xlu0 %4209
        %4211 = vmax.xlane.f32.xlu0 %v4151
        %v4212 = vpop.xlane.xlu0 %4211
        %4213 = vmax.xlane.f32.xlu0 %v4156
        %v4214 = vpop.xlane.xlu0 %4213
        %4215 = vmax.xlane.f32.xlu0 %v4161
        %v4216 = vpop.xlane.xlu0 %4215
        %4217 = vmax.xlane.f32.xlu0 %v4166
        %v4218 = vpop.xlane.xlu0 %4217
        %4219 = vmax.xlane.f32.xlu0 %v4171
        %v4220 = vpop.xlane.xlu0 %4219
        %4221 = vmax.xlane.f32.xlu0 %v4176
        %v4222 = vpop.xlane.xlu0 %4221
        %4223 = vmax.xlane.f32.xlu0 %v4181
        %v4224 = vpop.xlane.xlu0 %4223
        %4225 = vmax.xlane.f32.xlu0 %v4186
        %v4226 = vpop.xlane.xlu0 %4225
        %4227 = vmax.xlane.f32.xlu0 %v4191
        %v4228 = vpop.xlane.xlu0 %4227
        %4229 = vmax.xlane.f32.xlu0 %v4196
        %v4230 = vpop.xlane.xlu0 %4229
        %v4231 = vsub.f32 %v4121, %v4200
        %v4232 = vsub.f32 %v4126, %v4202
        %v4233 = vsub.f32 %v4131, %v4204
        %v4234 = vsub.f32 %v4136, %v4206
        %v4235 = vsub.f32 %v4141, %v4208
        %v4236 = vsub.f32 %v4146, %v4210
        %v4237 = vsub.f32 %v4151, %v4212
        %v4238 = vsub.f32 %v4156, %v4214
        %v4239 = vsub.f32 %v4161, %v4216
        %v4240 = vsub.f32 %v4166, %v4218
        %v4241 = vsub.f32 %v4171, %v4220
        %v4242 = vsub.f32 %v4176, %v4222
        %v4243 = vsub.f32 %v4181, %v4224
        %v4244 = vsub.f32 %v4186, %v4226
        %v4245 = vsub.f32 %v4191, %v4228
        %v4246 = vsub.f32 %v4196, %v4230
        %v4247 = vmul.f32 %v4231, 1.442695
        %v4248 = vpow.pop %v4247
        %v4249 = vmul.f32 %v4232, 1.442695
        %v4250 = vpow.pop %v4249
        %v4251 = vmul.f32 %v4233, 1.442695
        %v4252 = vpow.pop %v4251
        %v4253 = vmul.f32 %v4234, 1.442695
        %v4254 = vpow.pop %v4253
        %v4255 = vmul.f32 %v4235, 1.442695
        %v4256 = vpow.pop %v4255
        %v4257 = vmul.f32 %v4236, 1.442695
        %v4258 = vpow.pop %v4257
        %v4259 = vmul.f32 %v4237, 1.442695
        %v4260 = vpow.pop %v4259
        %v4261 = vmul.f32 %v4238, 1.442695
        %v4262 = vpow.pop %v4261
        %v4263 = vmul.f32 %v4239, 1.442695
        %v4264 = vpow.pop %v4263
        %v4265 = vmul.f32 %v4240, 1.442695
        %v4266 = vpow.pop %v4265
        %v4267 = vmul.f32 %v4241, 1.442695
        %v4268 = vpow.pop %v4267
        %v4269 = vmul.f32 %v4242, 1.442695
        %v4270 = vpow.pop %v4269
        %v4271 = vmul.f32 %v4243, 1.442695
        %v4272 = vpow.pop %v4271
        %v4273 = vmul.f32 %v4244, 1.442695
        %v4274 = vpow.pop %v4273
        %v4275 = vmul.f32 %v4245, 1.442695
        %v4276 = vpow.pop %v4275
        %v4277 = vmul.f32 %v4246, 1.442695
        %v4278 = vpow.pop %v4277
        %4279 = vadd.xlane.f32.xlu0 %v4248
        %v4280 = vpop.xlane.xlu0 %4279
        %4281 = vadd.xlane.f32.xlu0 %v4250
        %v4282 = vpop.xlane.xlu0 %4281
        %4283 = vadd.xlane.f32.xlu0 %v4252
        %v4284 = vpop.xlane.xlu0 %4283
        %4285 = vadd.xlane.f32.xlu0 %v4254
        %v4286 = vpop.xlane.xlu0 %4285
        %4287 = vadd.xlane.f32.xlu0 %v4256
        %v4288 = vpop.xlane.xlu0 %4287
        %4289 = vadd.xlane.f32.xlu0 %v4258
        %v4290 = vpop.xlane.xlu0 %4289
        %4291 = vadd.xlane.f32.xlu0 %v4260
        %v4292 = vpop.xlane.xlu0 %4291
        %4293 = vadd.xlane.f32.xlu0 %v4262
        %v4294 = vpop.xlane.xlu0 %4293
        %4295 = vadd.xlane.f32.xlu0 %v4264
        %v4296 = vpop.xlane.xlu0 %4295
        %4297 = vadd.xlane.f32.xlu0 %v4266
        %v4298 = vpop.xlane.xlu0 %4297
        %4299 = vadd.xlane.f32.xlu0 %v4268
        %v4300 = vpop.xlane.xlu0 %4299
        %4301 = vadd.xlane.f32.xlu0 %v4270
        %v4302 = vpop.xlane.xlu0 %4301
        %4303 = vadd.xlane.f32.xlu0 %v4272
        %v4304 = vpop.xlane.xlu0 %4303
        %4305 = vadd.xlane.f32.xlu0 %v4274
        %v4306 = vpop.xlane.xlu0 %4305
        %4307 = vadd.xlane.f32.xlu0 %v4276
        %v4308 = vpop.xlane.xlu0 %4307
        %4309 = vadd.xlane.f32.xlu0 %v4278
        %v4310 = vpop.xlane.xlu0 %4309
        %v4311 = vrcp.pop %v4280
        %v4312 = vmul.f32 %v4248, %v4311
        %v4313 = vrcp.pop %v4282
        %v4314 = vmul.f32 %v4250, %v4313
        %v4315 = vrcp.pop %v4284
        %v4316 = vmul.f32 %v4252, %v4315
        %v4317 = vrcp.pop %v4286
        %v4318 = vmul.f32 %v4254, %v4317
        %v4319 = vrcp.pop %v4288
        %v4320 = vmul.f32 %v4256, %v4319
        %v4321 = vrcp.pop %v4290
        %v4322 = vmul.f32 %v4258, %v4321
        %v4323 = vrcp.pop %v4292
        %v4324 = vmul.f32 %v4260, %v4323
        %v4325 = vrcp.pop %v4294
        %v4326 = vmul.f32 %v4262, %v4325
        %v4327 = vrcp.pop %v4296
        %v4328 = vmul.f32 %v4264, %v4327
        %v4329 = vrcp.pop %v4298
        %v4330 = vmul.f32 %v4266, %v4329
        %v4331 = vrcp.pop %v4300
        %v4332 = vmul.f32 %v4268, %v4331
        %v4333 = vrcp.pop %v4302
        %v4334 = vmul.f32 %v4270, %v4333
        %v4335 = vrcp.pop %v4304
        %v4336 = vmul.f32 %v4272, %v4335
        %v4337 = vrcp.pop %v4306
        %v4338 = vmul.f32 %v4274, %v4337
        %v4339 = vrcp.pop %v4308
        %v4340 = vmul.f32 %v4276, %v4339
        %v4341 = vrcp.pop %v4310
        %v4342 = vmul.f32 %v4278, %v4341
        %4343 = vrot.lane.b32.xlu0 %v1444, 32
        %v4344 = vpop.permute.xlu0 %4343
        %4345 = vrot.lane.b32.xlu0 %v1450, 32
        %v4346 = vpop.permute.xlu0 %4345
        %4347 = vrot.lane.b32.xlu0 %v1456, 32
        %v4348 = vpop.permute.xlu0 %4347
        %4349 = vrot.lane.b32.xlu0 %v1462, 32
        %v4350 = vpop.permute.xlu0 %4349
        %4351 = vrot.lane.b32.xlu0 %v1468, 32
        %v4352 = vpop.permute.xlu0 %4351
        %4353 = vrot.lane.b32.xlu0 %v1474, 32
        %v4354 = vpop.permute.xlu0 %4353
        %4355 = vrot.lane.b32.xlu0 %v1480, 32
        %v4356 = vpop.permute.xlu0 %4355
        %4357 = vrot.lane.b32.xlu0 %v1486, 32
        %v4358 = vpop.permute.xlu0 %4357
        %4359 = vrot.lane.b32.xlu0 %v1492, 32
        %v4360 = vpop.permute.xlu0 %4359
        %4361 = vrot.lane.b32.xlu0 %v1498, 32
        %v4362 = vpop.permute.xlu0 %4361
        %4363 = vrot.lane.b32.xlu0 %v1504, 32
        %v4364 = vpop.permute.xlu0 %4363
        %4365 = vrot.lane.b32.xlu0 %v1510, 32
        %v4366 = vpop.permute.xlu0 %4365
        %4367 = vrot.lane.b32.xlu0 %v1516, 32
        %v4368 = vpop.permute.xlu0 %4367
        %4369 = vrot.lane.b32.xlu0 %v1522, 32
        %v4370 = vpop.permute.xlu0 %4369
        %4371 = vrot.lane.b32.xlu0 %v1528, 32
        %v4372 = vpop.permute.xlu0 %4371
        %4373 = vrot.lane.b32.xlu0 %v1534, 32
        %v4374 = vpop.permute.xlu0 %4373
        %4391 = vmatprep.subr.mxu0 0.0
        %4392 = vmatpush1.msra.mxu0 %v4344
        %4393 = vmatprep.subr.mxu0 0.0
        %4394 = vmatpush1.msra.mxu0 %v4346
        %4395 = vmatprep.subr.mxu0 0.0
        %4396 = vmatpush1.msra.mxu0 %v4348
        %4397 = vmatprep.subr.mxu0 0.0
        %4398 = vmatpush1.msra.mxu0 %v4350
        %4399 = vmatprep.subr.mxu0 0.0
        %4400 = vmatpush1.msra.mxu0 %v4352
        %4401 = vmatprep.subr.mxu0 0.0
        %4402 = vmatpush1.msra.mxu0 %v4354
        %4403 = vmatprep.subr.mxu0 0.0
        %4404 = vmatpush1.msra.mxu0 %v4356
        %4405 = vmatprep.subr.mxu0 0.0
        %4406 = vmatpush1.msra.mxu0 %v4358
        %4407 = vmatprep.subr.mxu0 0.0
        %4408 = vmatpush1.msra.mxu0 %v4360
        %4409 = vmatprep.subr.mxu0 0.0
        %4410 = vmatpush1.msra.mxu0 %v4362
        %4411 = vmatprep.subr.mxu0 0.0
        %4412 = vmatpush1.msra.mxu0 %v4364
        %4413 = vmatprep.subr.mxu0 0.0
        %4414 = vmatpush1.msra.mxu0 %v4366
        %4415 = vmatprep.subr.mxu0 0.0
        %4416 = vmatpush1.msra.mxu0 %v4368
        %4417 = vmatprep.subr.mxu0 0.0
        %4418 = vmatpush1.msra.mxu0 %v4370
        %4419 = vmatprep.subr.mxu0 0.0
        %4420 = vmatpush1.msra.mxu0 %v4372
        %4421 = vmatprep.subr.mxu0 0.0
        %4422 = vmatpush1.msra.mxu0 %v4374
        %4423 = vmatprep.subr.mxu0 0.0
        %4424 = vmatpush1.msra.mxu0 0.0
        %4425 = vmatprep.subr.mxu0 0.0
        %4426 = vmatpush1.msra.mxu0 0.0
        %4427 = vmatprep.subr.mxu0 0.0
        %4428 = vmatpush1.msra.mxu0 0.0
        %4429 = vmatprep.subr.mxu0 0.0
        %4430 = vmatpush1.msra.mxu0 0.0
        %4431 = vmatprep.subr.mxu0 0.0
        %4432 = vmatpush1.msra.mxu0 0.0
        %4433 = vmatprep.subr.mxu0 0.0
        %4434 = vmatpush1.msra.mxu0 0.0
        %4435 = vmatprep.subr.mxu0 0.0
        %4436 = vmatpush1.msra.mxu0 0.0
        %4437 = vmatprep.subr.mxu0 0.0
        %4438 = vmatpush1.msra.mxu0 0.0
        %4439 = vmatprep.subr.mxu0 0.0
        %4440 = vmatpush1.msra.mxu0 0.0
        %4441 = vmatprep.subr.mxu0 0.0
        %4442 = vmatpush1.msra.mxu0 0.0
        %4443 = vmatprep.subr.mxu0 0.0
        %4444 = vmatpush1.msra.mxu0 0.0
        %4445 = vmatprep.subr.mxu0 0.0
        %4446 = vmatpush1.msra.mxu0 0.0
        %4447 = vmatprep.subr.mxu0 0.0
        %4448 = vmatpush1.msra.mxu0 0.0
        %4449 = vmatprep.subr.mxu0 0.0
        %4450 = vmatpush1.msra.mxu0 0.0
        %4451 = vmatprep.subr.mxu0 0.0
        %4452 = vmatpush1.msra.mxu0 0.0
        %4453 = vmatprep.subr.mxu0 0.0
        %4454 = vmatpush1.msra.mxu0 0.0
        %4455 = vmatprep.mubr.f32.mxu0 0.0
        %4456 = vmatmul.mubr.f32.gmra.mrb[0].mxu0 %v4312
        %v4457 = vpop.f32.mrb[0].mxu0
        %v4458 = vadd.f32 0.0, %v4457
        %v4459 = vpop.f32.mrb[0].mxu0
        %4460 = vmatprep.mubr.f32.mxu0 0.0
        %4461 = vmatmul.mubr.f32.gmra.mrb[0].mxu0 %v4314
        %v4462 = vpop.f32.mrb[0].mxu0
        %v4463 = vadd.f32 0.0, %v4462
        %v4464 = vpop.f32.mrb[0].mxu0
        %4465 = vmatprep.mubr.f32.mxu0 0.0
        %4466 = vmatmul.mubr.f32.gmra.mrb[0].mxu0 %v4316
        %v4467 = vpop.f32.mrb[0].mxu0
        %v4468 = vadd.f32 0.0, %v4467
        %v4469 = vpop.f32.mrb[0].mxu0
        %4470 = vmatprep.mubr.f32.mxu0 0.0
        %4471 = vmatmul.mubr.f32.gmra.mrb[0].mxu0 %v4318
        %v4472 = vpop.f32.mrb[0].mxu0
        %v4473 = vadd.f32 0.0, %v4472
        %v4474 = vpop.f32.mrb[0].mxu0
        %4475 = vmatprep.mubr.f32.mxu0 0.0
        %4476 = vmatmul.mubr.f32.gmra.mrb[0].mxu0 %v4320
        %v4477 = vpop.f32.mrb[0].mxu0
        %v4478 = vadd.f32 0.0, %v4477
        %v4479 = vpop.f32.mrb[0].mxu0
        %4480 = vmatprep.mubr.f32.mxu0 0.0
        %4481 = vmatmul.mubr.f32.gmra.mrb[0].mxu0 %v4322
        %v4482 = vpop.f32.mrb[0].mxu0
        %v4483 = vadd.f32 0.0, %v4482
        %v4484 = vpop.f32.mrb[0].mxu0
        %4485 = vmatprep.mubr.f32.mxu0 0.0
        %4486 = vmatmul.mubr.f32.gmra.mrb[0].mxu0 %v4324
        %v4487 = vpop.f32.mrb[0].mxu0
        %v4488 = vadd.f32 0.0, %v4487
        %v4489 = vpop.f32.mrb[0].mxu0
        %4490 = vmatprep.mubr.f32.mxu0 0.0
        %4491 = vmatmul.mubr.f32.gmra.mrb[0].mxu0 %v4326
        %v4492 = vpop.f32.mrb[0].mxu0
        %v4493 = vadd.f32 0.0, %v4492
        %v4494 = vpop.f32.mrb[0].mxu0
        %4495 = vmatprep.mubr.f32.mxu0 0.0
        %4496 = vmatmul.mubr.f32.gmra.mrb[0].mxu0 %v4328
        %v4497 = vpop.f32.mrb[0].mxu0
        %v4498 = vadd.f32 0.0, %v4497
        %v4499 = vpop.f32.mrb[0].mxu0
        %4500 = vmatprep.mubr.f32.mxu0 0.0
        %4501 = vmatmul.mubr.f32.gmra.mrb[0].mxu0 %v4330
        %v4502 = vpop.f32.mrb[0].mxu0
        %v4503 = vadd.f32 0.0, %v4502
        %v4504 = vpop.f32.mrb[0].mxu0
        %4505 = vmatprep.mubr.f32.mxu0 0.0
        %4506 = vmatmul.mubr.f32.gmra.mrb[0].mxu0 %v4332
        %v4507 = vpop.f32.mrb[0].mxu0
        %v4508 = vadd.f32 0.0, %v4507
        %v4509 = vpop.f32.mrb[0].mxu0
        %4510 = vmatprep.mubr.f32.mxu0 0.0
        %4511 = vmatmul.mubr.f32.gmra.mrb[0].mxu0 %v4334
        %v4512 = vpop.f32.mrb[0].mxu0
        %v4513 = vadd.f32 0.0, %v4512
        %v4514 = vpop.f32.mrb[0].mxu0
        %4515 = vmatprep.mubr.f32.mxu0 0.0
        %4516 = vmatmul.mubr.f32.gmra.mrb[0].mxu0 %v4336
        %v4517 = vpop.f32.mrb[0].mxu0
        %v4518 = vadd.f32 0.0, %v4517
        %v4519 = vpop.f32.mrb[0].mxu0
        %4520 = vmatprep.mubr.f32.mxu0 0.0
        %4521 = vmatmul.mubr.f32.gmra.mrb[0].mxu0 %v4338
        %v4522 = vpop.f32.mrb[0].mxu0
        %v4523 = vadd.f32 0.0, %v4522
        %v4524 = vpop.f32.mrb[0].mxu0
        %4525 = vmatprep.mubr.f32.mxu0 0.0
        %4526 = vmatmul.mubr.f32.gmra.mrb[0].mxu0 %v4340
        %v4527 = vpop.f32.mrb[0].mxu0
        %v4528 = vadd.f32 0.0, %v4527
        %v4529 = vpop.f32.mrb[0].mxu0
        %4530 = vmatprep.mubr.f32.mxu0 0.0
        %4531 = vmatmul.mubr.f32.gmra.mrb[0].mxu0 %v4342
        %v4532 = vpop.f32.mrb[0].mxu0
        %v4533 = vadd.f32 0.0, %v4532
        %v4534 = vpop.f32.mrb[0].mxu0
        %4535 = vdwg.mxu0
        %v4536 = vld [vmem:[%s744 + $0x60] sm:$0xff]
        %v4537 = vld [vmem:[%s744 + $0x68] sm:$0xff]
        %v4538 = vld [vmem:[%s744 + $0x70] sm:$0xff]
        %v4539 = vld [vmem:[%s744 + $0x78] sm:$0xff]
        %v4541 = vsel %vm1552, %v4458, 0
        %v4544 = vsel %vm1552, %v4463, 0
        %v4547 = vsel %vm1552, %v4468, 0
        %v4550 = vsel %vm1552, %v4473, 0
        %v4553 = vsel %vm1552, %v4478, 0
        %v4556 = vsel %vm1552, %v4483, 0
        %v4559 = vsel %vm1552, %v4488, 0
        %v4562 = vsel %vm1552, %v4493, 0
        %v4565 = vsel %vm1552, %v4498, 0
        %v4568 = vsel %vm1552, %v4503, 0
        %v4571 = vsel %vm1552, %v4508, 0
        %v4574 = vsel %vm1552, %v4513, 0
        %v4577 = vsel %vm1552, %v4518, 0
        %v4580 = vsel %vm1552, %v4523, 0
        %v4583 = vsel %vm1552, %v4528, 0
        %v4586 = vsel %vm1552, %v4533, 0
        %4588 = vmatprep.subr.mxu0 0.0
        %4589 = vmatpush1.msra.mxu0 %v4536
        %4590 = vmatprep.subr.mxu0 0.0
        %4591 = vmatpush1.msra.mxu0 %v4537
        %4592 = vmatprep.subr.mxu0 0.0
        %4593 = vmatpush1.msra.mxu0 %v4538
        %4594 = vmatprep.subr.mxu0 0.0
        %4595 = vmatpush1.msra.mxu0 %v4539
        %4596 = vmatprep.subr.mxu0 0.0
        %4597 = vmatpush1.msra.mxu0 0.0
        %4598 = vmatprep.subr.mxu0 0.0
        %4599 = vmatpush1.msra.mxu0 0.0
        %4600 = vmatprep.subr.mxu0 0.0
        %4601 = vmatpush1.msra.mxu0 0.0
        %4602 = vmatprep.subr.mxu0 0.0
        %4603 = vmatpush1.msra.mxu0 0.0
        %4604 = vmatprep.subr.mxu0 0.0
        %4605 = vmatpush1.msra.mxu0 0.0
        %4606 = vmatprep.subr.mxu0 0.0
        %4607 = vmatpush1.msra.mxu0 0.0
        %4608 = vmatprep.subr.mxu0 0.0
        %4609 = vmatpush1.msra.mxu0 0.0
        %4610 = vmatprep.subr.mxu0 0.0
        %4611 = vmatpush1.msra.mxu0 0.0
        %4612 = vmatprep.subr.mxu0 0.0
        %4613 = vmatpush1.msra.mxu0 0.0
        %4614 = vmatprep.subr.mxu0 0.0
        %4615 = vmatpush1.msra.mxu0 0.0
        %4616 = vmatprep.subr.mxu0 0.0
        %4617 = vmatpush1.msra.mxu0 0.0
        %4618 = vmatprep.subr.mxu0 0.0
        %4619 = vmatpush1.msra.mxu0 0.0
        %4620 = vmatprep.subr.mxu0 0.0
        %4621 = vmatpush1.msra.mxu0 0.0
        %4622 = vmatprep.subr.mxu0 0.0
        %4623 = vmatpush1.msra.mxu0 0.0
        %4624 = vmatprep.subr.mxu0 0.0
        %4625 = vmatpush1.msra.mxu0 0.0
        %4626 = vmatprep.subr.mxu0 0.0
        %4627 = vmatpush1.msra.mxu0 0.0
        %4628 = vmatprep.subr.mxu0 0.0
        %4629 = vmatpush1.msra.mxu0 0.0
        %4630 = vmatprep.subr.mxu0 0.0
        %4631 = vmatpush1.msra.mxu0 0.0
        %4632 = vmatprep.subr.mxu0 0.0
        %4633 = vmatpush1.msra.mxu0 0.0
        %4634 = vmatprep.subr.mxu0 0.0
        %4635 = vmatpush1.msra.mxu0 0.0
        %4636 = vmatprep.subr.mxu0 0.0
        %4637 = vmatpush1.msra.mxu0 0.0
        %4638 = vmatprep.subr.mxu0 0.0
        %4639 = vmatpush1.msra.mxu0 0.0
        %4640 = vmatprep.subr.mxu0 0.0
        %4641 = vmatpush1.msra.mxu0 0.0
        %4642 = vmatprep.subr.mxu0 0.0
        %4643 = vmatpush1.msra.mxu0 0.0
        %4644 = vmatprep.subr.mxu0 0.0
        %4645 = vmatpush1.msra.mxu0 0.0
        %4646 = vmatprep.subr.mxu0 0.0
        %4647 = vmatpush1.msra.mxu0 0.0
        %4648 = vmatprep.subr.mxu0 0.0
        %4649 = vmatpush1.msra.mxu0 0.0
        %4650 = vmatprep.subr.mxu0 0.0
        %4651 = vmatpush1.msra.mxu0 0.0
        %4652 = vmatprep.mubr.f32.mxu0 0.0
        %4653 = vmatmul.mubr.f32.gmra.mrb[0].mxu0 %v4541
        %v4654 = vpop.f32.mrb[0].mxu0
        %v4655 = vadd.f32 0.0, %v4654
        %v4656 = vpop.f32.mrb[0].mxu0
        %4657 = vmatprep.mubr.f32.mxu0 0.0
        %4658 = vmatmul.mubr.f32.gmra.mrb[0].mxu0 %v4544
        %v4659 = vpop.f32.mrb[0].mxu0
        %v4660 = vadd.f32 0.0, %v4659
        %v4661 = vpop.f32.mrb[0].mxu0
        %4662 = vmatprep.mubr.f32.mxu0 0.0
        %4663 = vmatmul.mubr.f32.gmra.mrb[0].mxu0 %v4547
        %v4664 = vpop.f32.mrb[0].mxu0
        %v4665 = vadd.f32 0.0, %v4664
        %v4666 = vpop.f32.mrb[0].mxu0
        %4667 = vmatprep.mubr.f32.mxu0 0.0
        %4668 = vmatmul.mubr.f32.gmra.mrb[0].mxu0 %v4550
        %v4669 = vpop.f32.mrb[0].mxu0
        %v4670 = vadd.f32 0.0, %v4669
        %v4671 = vpop.f32.mrb[0].mxu0
        %4672 = vmatprep.mubr.f32.mxu0 0.0
        %4673 = vmatmul.mubr.f32.gmra.mrb[0].mxu0 %v4553
        %v4674 = vpop.f32.mrb[0].mxu0
        %v4675 = vadd.f32 0.0, %v4674
        %v4676 = vpop.f32.mrb[0].mxu0
        %4677 = vmatprep.mubr.f32.mxu0 0.0
        %4678 = vmatmul.mubr.f32.gmra.mrb[0].mxu0 %v4556
        %v4679 = vpop.f32.mrb[0].mxu0
        %v4680 = vadd.f32 0.0, %v4679
        %v4681 = vpop.f32.mrb[0].mxu0
        %4682 = vmatprep.mubr.f32.mxu0 0.0
        %4683 = vmatmul.mubr.f32.gmra.mrb[0].mxu0 %v4559
        %v4684 = vpop.f32.mrb[0].mxu0
        %v4685 = vadd.f32 0.0, %v4684
        %v4686 = vpop.f32.mrb[0].mxu0
        %4687 = vmatprep.mubr.f32.mxu0 0.0
        %4688 = vmatmul.mubr.f32.gmra.mrb[0].mxu0 %v4562
        %v4689 = vpop.f32.mrb[0].mxu0
        %v4690 = vadd.f32 0.0, %v4689
        %v4691 = vpop.f32.mrb[0].mxu0
        %4692 = vmatprep.mubr.f32.mxu0 0.0
        %4693 = vmatmul.mubr.f32.gmra.mrb[0].mxu0 %v4565
        %v4694 = vpop.f32.mrb[0].mxu0
        %v4695 = vadd.f32 0.0, %v4694
        %v4696 = vpop.f32.mrb[0].mxu0
        %4697 = vmatprep.mubr.f32.mxu0 0.0
        %4698 = vmatmul.mubr.f32.gmra.mrb[0].mxu0 %v4568
        %v4699 = vpop.f32.mrb[0].mxu0
        %v4700 = vadd.f32 0.0, %v4699
        %v4701 = vpop.f32.mrb[0].mxu0
        %4702 = vmatprep.mubr.f32.mxu0 0.0
        %4703 = vmatmul.mubr.f32.gmra.mrb[0].mxu0 %v4571
        %v4704 = vpop.f32.mrb[0].mxu0
        %v4705 = vadd.f32 0.0, %v4704
        %v4706 = vpop.f32.mrb[0].mxu0
        %4707 = vmatprep.mubr.f32.mxu0 0.0
        %4708 = vmatmul.mubr.f32.gmra.mrb[0].mxu0 %v4574
        %v4709 = vpop.f32.mrb[0].mxu0
        %v4710 = vadd.f32 0.0, %v4709
        %v4711 = vpop.f32.mrb[0].mxu0
        %4712 = vmatprep.mubr.f32.mxu0 0.0
        %4713 = vmatmul.mubr.f32.gmra.mrb[0].mxu0 %v4577
        %v4714 = vpop.f32.mrb[0].mxu0
        %v4715 = vadd.f32 0.0, %v4714
        %v4716 = vpop.f32.mrb[0].mxu0
        %4717 = vmatprep.mubr.f32.mxu0 0.0
        %4718 = vmatmul.mubr.f32.gmra.mrb[0].mxu0 %v4580
        %v4719 = vpop.f32.mrb[0].mxu0
        %v4720 = vadd.f32 0.0, %v4719
        %v4721 = vpop.f32.mrb[0].mxu0
        %4722 = vmatprep.mubr.f32.mxu0 0.0
        %4723 = vmatmul.mubr.f32.gmra.mrb[0].mxu0 %v4583
        %v4724 = vpop.f32.mrb[0].mxu0
        %v4725 = vadd.f32 0.0, %v4724
        %v4726 = vpop.f32.mrb[0].mxu0
        %4727 = vmatprep.mubr.f32.mxu0 0.0
        %4728 = vmatmul.mubr.f32.gmra.mrb[0].mxu0 %v4586
        %v4729 = vpop.f32.mrb[0].mxu0
        %v4730 = vadd.f32 0.0, %v4729
        %v4731 = vpop.f32.mrb[0].mxu0
        %4732 = vdwg.mxu0
        %v4733 = vadd.f32 %v3910, %v4655
        %v4734 = vadd.f32 %v3911, %v4660
        %v4735 = vadd.f32 %v3912, %v4665
        %v4736 = vadd.f32 %v3913, %v4670
        %v4737 = vadd.f32 %v3914, %v4675
        %v4738 = vadd.f32 %v3915, %v4680
        %v4739 = vadd.f32 %v3916, %v4685
        %v4740 = vadd.f32 %v3917, %v4690
        %v4741 = vadd.f32 %v3918, %v4695
        %v4742 = vadd.f32 %v3919, %v4700
        %v4743 = vadd.f32 %v3920, %v4705
        %v4744 = vadd.f32 %v3921, %v4710
        %v4745 = vadd.f32 %v3922, %v4715
        %v4746 = vadd.f32 %v3923, %v4720
        %v4747 = vadd.f32 %v3924, %v4725
        %v4748 = vadd.f32 %v3925, %v4730
        %v4749 = vadd.f32 %v924, %v4733
        %v4750 = vadd.f32 %v925, %v4734
        %v4751 = vadd.f32 %v926, %v4735
        %v4752 = vadd.f32 %v927, %v4736
        %v4753 = vadd.f32 %v928, %v4737
        %v4754 = vadd.f32 %v929, %v4738
        %v4755 = vadd.f32 %v930, %v4739
        %v4756 = vadd.f32 %v931, %v4740
        %v4757 = vadd.f32 %v932, %v4741
        %v4758 = vadd.f32 %v933, %v4742
        %v4759 = vadd.f32 %v934, %v4743
        %v4760 = vadd.f32 %v935, %v4744
        %v4761 = vadd.f32 %v936, %v4745
        %v4762 = vadd.f32 %v937, %v4746
        %v4763 = vadd.f32 %v938, %v4747
        %v4764 = vadd.f32 %v939, %v4748
        %v4765 = vld [vmem:[%s874] sm:$0x1]
        %v4767 = vlaneseq
        %v4768 = vshrl.u32 %v4767, 7
        %v4769 = vsub.s32 0, %v4768
        %v4770 = vrot.slane %v4765, %v4769
        %v4772 = vadd.f32 %v4749, %v4770
        %v4773 = vadd.f32 %v4750, %v4770
        %v4774 = vadd.f32 %v4751, %v4770
        %v4775 = vadd.f32 %v4752, %v4770
        %v4776 = vadd.f32 %v4753, %v4770
        %v4777 = vadd.f32 %v4754, %v4770
        %v4778 = vadd.f32 %v4755, %v4770
        %v4779 = vadd.f32 %v4756, %v4770
        %v4780 = vadd.f32 %v4757, %v4770
        %v4781 = vadd.f32 %v4758, %v4770
        %v4782 = vadd.f32 %v4759, %v4770
        %v4783 = vadd.f32 %v4760, %v4770
        %v4784 = vadd.f32 %v4761, %v4770
        %v4785 = vadd.f32 %v4762, %v4770
        %v4786 = vadd.f32 %v4763, %v4770
        %v4787 = vadd.f32 %v4764, %v4770
        %v4788 = vld [vmem:[%s877] sm:$0x1]
        %v4789 = vld [vmem:[%s880] sm:$0x1]
        %4790 = vadd.xlane.f32.xlu0 %v4772
        %v4791 = vpop.xlane.xlu0 %4790
        %4792 = vadd.xlane.f32.xlu0 %v4773
        %v4793 = vpop.xlane.xlu0 %4792
        %4794 = vadd.xlane.f32.xlu0 %v4774
        %v4795 = vpop.xlane.xlu0 %4794
        %4796 = vadd.xlane.f32.xlu0 %v4775
        %v4797 = vpop.xlane.xlu0 %4796
        %4798 = vadd.xlane.f32.xlu0 %v4776
        %v4799 = vpop.xlane.xlu0 %4798
        %4800 = vadd.xlane.f32.xlu0 %v4777
        %v4801 = vpop.xlane.xlu0 %4800
        %4802 = vadd.xlane.f32.xlu0 %v4778
        %v4803 = vpop.xlane.xlu0 %4802
        %4804 = vadd.xlane.f32.xlu0 %v4779
        %v4805 = vpop.xlane.xlu0 %4804
        %4806 = vadd.xlane.f32.xlu0 %v4780
        %v4807 = vpop.xlane.xlu0 %4806
        %4808 = vadd.xlane.f32.xlu0 %v4781
        %v4809 = vpop.xlane.xlu0 %4808
        %4810 = vadd.xlane.f32.xlu0 %v4782
        %v4811 = vpop.xlane.xlu0 %4810
        %4812 = vadd.xlane.f32.xlu0 %v4783
        %v4813 = vpop.xlane.xlu0 %4812
        %4814 = vadd.xlane.f32.xlu0 %v4784
        %v4815 = vpop.xlane.xlu0 %4814
        %4816 = vadd.xlane.f32.xlu0 %v4785
        %v4817 = vpop.xlane.xlu0 %4816
        %4818 = vadd.xlane.f32.xlu0 %v4786
        %v4819 = vpop.xlane.xlu0 %4818
        %4820 = vadd.xlane.f32.xlu0 %v4787
        %v4821 = vpop.xlane.xlu0 %4820
        %v4822 = vmul.f32 %v4791, %v974
        %v4823 = vmul.f32 %v4793, %v974
        %v4824 = vmul.f32 %v4795, %v974
        %v4825 = vmul.f32 %v4797, %v974
        %v4826 = vmul.f32 %v4799, %v974
        %v4827 = vmul.f32 %v4801, %v974
        %v4828 = vmul.f32 %v4803, %v974
        %v4829 = vmul.f32 %v4805, %v974
        %v4830 = vmul.f32 %v4807, %v974
        %v4831 = vmul.f32 %v4809, %v974
        %v4832 = vmul.f32 %v4811, %v974
        %v4833 = vmul.f32 %v4813, %v974
        %v4834 = vmul.f32 %v4815, %v974
        %v4835 = vmul.f32 %v4817, %v974
        %v4836 = vmul.f32 %v4819, %v974
        %v4837 = vmul.f32 %v4821, %v974
        %v4838 = vsub.f32 %v4772, %v4822
        %v4839 = vsub.f32 %v4773, %v4823
        %v4840 = vsub.f32 %v4774, %v4824
        %v4841 = vsub.f32 %v4775, %v4825
        %v4842 = vsub.f32 %v4776, %v4826
        %v4843 = vsub.f32 %v4777, %v4827
        %v4844 = vsub.f32 %v4778, %v4828
        %v4845 = vsub.f32 %v4779, %v4829
        %v4846 = vsub.f32 %v4780, %v4830
        %v4847 = vsub.f32 %v4781, %v4831
        %v4848 = vsub.f32 %v4782, %v4832
        %v4849 = vsub.f32 %v4783, %v4833
        %v4850 = vsub.f32 %v4784, %v4834
        %v4851 = vsub.f32 %v4785, %v4835
        %v4852 = vsub.f32 %v4786, %v4836
        %v4853 = vsub.f32 %v4787, %v4837
        %v4854 = vmul.f32 %v4838, %v4838
        %v4855 = vmul.f32 %v4839, %v4839
        %v4856 = vmul.f32 %v4840, %v4840
        %v4857 = vmul.f32 %v4841, %v4841
        %v4858 = vmul.f32 %v4842, %v4842
        %v4859 = vmul.f32 %v4843, %v4843
        %v4860 = vmul.f32 %v4844, %v4844
        %v4861 = vmul.f32 %v4845, %v4845
        %v4862 = vmul.f32 %v4846, %v4846
        %v4863 = vmul.f32 %v4847, %v4847
        %v4864 = vmul.f32 %v4848, %v4848
        %v4865 = vmul.f32 %v4849, %v4849
        %v4866 = vmul.f32 %v4850, %v4850
        %v4867 = vmul.f32 %v4851, %v4851
        %v4868 = vmul.f32 %v4852, %v4852
        %v4869 = vmul.f32 %v4853, %v4853
        %4870 = vadd.xlane.f32.xlu0 %v4854
        %v4871 = vpop.xlane.xlu0 %4870
        %4872 = vadd.xlane.f32.xlu0 %v4855
        %v4873 = vpop.xlane.xlu0 %4872
        %4874 = vadd.xlane.f32.xlu0 %v4856
        %v4875 = vpop.xlane.xlu0 %4874
        %4876 = vadd.xlane.f32.xlu0 %v4857
        %v4877 = vpop.xlane.xlu0 %4876
        %4878 = vadd.xlane.f32.xlu0 %v4858
        %v4879 = vpop.xlane.xlu0 %4878
        %4880 = vadd.xlane.f32.xlu0 %v4859
        %v4881 = vpop.xlane.xlu0 %4880
        %4882 = vadd.xlane.f32.xlu0 %v4860
        %v4883 = vpop.xlane.xlu0 %4882
        %4884 = vadd.xlane.f32.xlu0 %v4861
        %v4885 = vpop.xlane.xlu0 %4884
        %4886 = vadd.xlane.f32.xlu0 %v4862
        %v4887 = vpop.xlane.xlu0 %4886
        %4888 = vadd.xlane.f32.xlu0 %v4863
        %v4889 = vpop.xlane.xlu0 %4888
        %4890 = vadd.xlane.f32.xlu0 %v4864
        %v4891 = vpop.xlane.xlu0 %4890
        %4892 = vadd.xlane.f32.xlu0 %v4865
        %v4893 = vpop.xlane.xlu0 %4892
        %4894 = vadd.xlane.f32.xlu0 %v4866
        %v4895 = vpop.xlane.xlu0 %4894
        %4896 = vadd.xlane.f32.xlu0 %v4867
        %v4897 = vpop.xlane.xlu0 %4896
        %4898 = vadd.xlane.f32.xlu0 %v4868
        %v4899 = vpop.xlane.xlu0 %4898
        %4900 = vadd.xlane.f32.xlu0 %v4869
        %v4901 = vpop.xlane.xlu0 %4900
        %v4902 = vmul.f32 %v4871, %v974
        %v4903 = vmul.f32 %v4873, %v974
        %v4904 = vmul.f32 %v4875, %v974
        %v4905 = vmul.f32 %v4877, %v974
        %v4906 = vmul.f32 %v4879, %v974
        %v4907 = vmul.f32 %v4881, %v974
        %v4908 = vmul.f32 %v4883, %v974
        %v4909 = vmul.f32 %v4885, %v974
        %v4910 = vmul.f32 %v4887, %v974
        %v4911 = vmul.f32 %v4889, %v974
        %v4912 = vmul.f32 %v4891, %v974
        %v4913 = vmul.f32 %v4893, %v974
        %v4914 = vmul.f32 %v4895, %v974
        %v4915 = vmul.f32 %v4897, %v974
        %v4916 = vmul.f32 %v4899, %v974
        %v4917 = vmul.f32 %v4901, %v974
        %v4918 = vadd.f32 %v4902, 1e-05
        %v4919 = vadd.f32 %v4903, 1e-05
        %v4920 = vadd.f32 %v4904, 1e-05
        %v4921 = vadd.f32 %v4905, 1e-05
        %v4922 = vadd.f32 %v4906, 1e-05
        %v4923 = vadd.f32 %v4907, 1e-05
        %v4924 = vadd.f32 %v4908, 1e-05
        %v4925 = vadd.f32 %v4909, 1e-05
        %v4926 = vadd.f32 %v4910, 1e-05
        %v4927 = vadd.f32 %v4911, 1e-05
        %v4928 = vadd.f32 %v4912, 1e-05
        %v4929 = vadd.f32 %v4913, 1e-05
        %v4930 = vadd.f32 %v4914, 1e-05
        %v4931 = vadd.f32 %v4915, 1e-05
        %v4932 = vadd.f32 %v4916, 1e-05
        %v4933 = vadd.f32 %v4917, 1e-05
        %v4934 = vrsqrt.pop %v4918
        %v4935 = vrsqrt.pop %v4919
        %v4936 = vrsqrt.pop %v4920
        %v4937 = vrsqrt.pop %v4921
        %v4938 = vrsqrt.pop %v4922
        %v4939 = vrsqrt.pop %v4923
        %v4940 = vrsqrt.pop %v4924
        %v4941 = vrsqrt.pop %v4925
        %v4942 = vrsqrt.pop %v4926
        %v4943 = vrsqrt.pop %v4927
        %v4944 = vrsqrt.pop %v4928
        %v4945 = vrsqrt.pop %v4929
        %v4946 = vrsqrt.pop %v4930
        %v4947 = vrsqrt.pop %v4931
        %v4948 = vrsqrt.pop %v4932
        %v4949 = vrsqrt.pop %v4933
        %v4950 = vmul.f32 %v4838, %v4934
        %v4951 = vmul.f32 %v4839, %v4935
        %v4952 = vmul.f32 %v4840, %v4936
        %v4953 = vmul.f32 %v4841, %v4937
        %v4954 = vmul.f32 %v4842, %v4938
        %v4955 = vmul.f32 %v4843, %v4939
        %v4956 = vmul.f32 %v4844, %v4940
        %v4957 = vmul.f32 %v4845, %v4941
        %v4958 = vmul.f32 %v4846, %v4942
        %v4959 = vmul.f32 %v4847, %v4943
        %v4960 = vmul.f32 %v4848, %v4944
        %v4961 = vmul.f32 %v4849, %v4945
        %v4962 = vmul.f32 %v4850, %v4946
        %v4963 = vmul.f32 %v4851, %v4947
        %v4964 = vmul.f32 %v4852, %v4948
        %v4965 = vmul.f32 %v4853, %v4949
        %v4967 = vlaneseq
        %v4968 = vshrl.u32 %v4967, 7
        %v4969 = vsub.s32 0, %v4968
        %v4970 = vrot.slane %v4788, %v4969
        %v4972 = vmul.f32 %v4950, %v4970
        %v4973 = vmul.f32 %v4951, %v4970
        %v4974 = vmul.f32 %v4952, %v4970
        %v4975 = vmul.f32 %v4953, %v4970
        %v4976 = vmul.f32 %v4954, %v4970
        %v4977 = vmul.f32 %v4955, %v4970
        %v4978 = vmul.f32 %v4956, %v4970
        %v4979 = vmul.f32 %v4957, %v4970
        %v4980 = vmul.f32 %v4958, %v4970
        %v4981 = vmul.f32 %v4959, %v4970
        %v4982 = vmul.f32 %v4960, %v4970
        %v4983 = vmul.f32 %v4961, %v4970
        %v4984 = vmul.f32 %v4962, %v4970
        %v4985 = vmul.f32 %v4963, %v4970
        %v4986 = vmul.f32 %v4964, %v4970
        %v4987 = vmul.f32 %v4965, %v4970
        %v4989 = vlaneseq
        %v4990 = vshrl.u32 %v4989, 7
        %v4991 = vsub.s32 0, %v4990
        %v4992 = vrot.slane %v4789, %v4991
        %v4994 = vadd.f32 %v4972, %v4992
        %v4995 = vadd.f32 %v4973, %v4992
        %v4996 = vadd.f32 %v4974, %v4992
        %v4997 = vadd.f32 %v4975, %v4992
        %v4998 = vadd.f32 %v4976, %v4992
        %v4999 = vadd.f32 %v4977, %v4992
        %v5000 = vadd.f32 %v4978, %v4992
        %v5001 = vadd.f32 %v4979, %v4992
        %v5002 = vadd.f32 %v4980, %v4992
        %v5003 = vadd.f32 %v4981, %v4992
        %v5004 = vadd.f32 %v4982, %v4992
        %v5005 = vadd.f32 %v4983, %v4992
        %v5006 = vadd.f32 %v4984, %v4992
        %v5007 = vadd.f32 %v4985, %v4992
        %v5008 = vadd.f32 %v4986, %v4992
        %v5009 = vadd.f32 %v4987, %v4992
        %v5010 = vld [vmem:[%s753] sm:$0xff]
        %v5011 = vld [vmem:[%s753 + $0x8] sm:$0xff]
        %v5012 = vld [vmem:[%s753 + $0x10] sm:$0xff]
        %v5013 = vld [vmem:[%s753 + $0x18] sm:$0xff]
        %v5014 = vld [vmem:[%s753 + $0x20] sm:$0xff]
        %v5015 = vld [vmem:[%s753 + $0x28] sm:$0xff]
        %v5016 = vld [vmem:[%s753 + $0x30] sm:$0xff]
        %v5017 = vld [vmem:[%s753 + $0x38] sm:$0xff]
        %v5018 = vld [vmem:[%s753 + $0x40] sm:$0xff]
        %v5019 = vld [vmem:[%s753 + $0x48] sm:$0xff]
        %v5020 = vld [vmem:[%s753 + $0x50] sm:$0xff]
        %v5021 = vld [vmem:[%s753 + $0x58] sm:$0xff]
        %v5022 = vld [vmem:[%s753 + $0x60] sm:$0xff]
        %v5023 = vld [vmem:[%s753 + $0x68] sm:$0xff]
        %v5024 = vld [vmem:[%s753 + $0x70] sm:$0xff]
        %v5025 = vld [vmem:[%s753 + $0x78] sm:$0xff]
        %v5026 = vld [vmem:[%s753 + $0x80] sm:$0xff]
        %v5027 = vld [vmem:[%s753 + $0x88] sm:$0xff]
        %v5028 = vld [vmem:[%s753 + $0x90] sm:$0xff]
        %v5029 = vld [vmem:[%s753 + $0x98] sm:$0xff]
        %v5030 = vld [vmem:[%s753 + $0xa0] sm:$0xff]
        %v5031 = vld [vmem:[%s753 + $0xa8] sm:$0xff]
        %v5032 = vld [vmem:[%s753 + $0xb0] sm:$0xff]
        %v5033 = vld [vmem:[%s753 + $0xb8] sm:$0xff]
        %v5034 = vld [vmem:[%s753 + $0xc0] sm:$0xff]
        %v5035 = vld [vmem:[%s753 + $0xc8] sm:$0xff]
        %v5036 = vld [vmem:[%s753 + $0xd0] sm:$0xff]
        %v5037 = vld [vmem:[%s753 + $0xd8] sm:$0xff]
        %v5038 = vld [vmem:[%s753 + $0xe0] sm:$0xff]
        %v5039 = vld [vmem:[%s753 + $0xe8] sm:$0xff]
        %v5040 = vld [vmem:[%s753 + $0xf0] sm:$0xff]
        %v5041 = vld [vmem:[%s753 + $0xf8] sm:$0xff]
        %v5042 = vld [vmem:[%s753 + $0x100] sm:$0xff]
        %v5043 = vld [vmem:[%s753 + $0x108] sm:$0xff]
        %v5044 = vld [vmem:[%s753 + $0x110] sm:$0xff]
        %v5045 = vld [vmem:[%s753 + $0x118] sm:$0xff]
        %v5046 = vld [vmem:[%s753 + $0x120] sm:$0xff]
        %v5047 = vld [vmem:[%s753 + $0x128] sm:$0xff]
        %v5048 = vld [vmem:[%s753 + $0x130] sm:$0xff]
        %v5049 = vld [vmem:[%s753 + $0x138] sm:$0xff]
        %v5050 = vld [vmem:[%s753 + $0x140] sm:$0xff]
        %v5051 = vld [vmem:[%s753 + $0x148] sm:$0xff]
        %v5052 = vld [vmem:[%s753 + $0x150] sm:$0xff]
        %v5053 = vld [vmem:[%s753 + $0x158] sm:$0xff]
        %v5054 = vld [vmem:[%s753 + $0x160] sm:$0xff]
        %v5055 = vld [vmem:[%s753 + $0x168] sm:$0xff]
        %v5056 = vld [vmem:[%s753 + $0x170] sm:$0xff]
        %v5057 = vld [vmem:[%s753 + $0x178] sm:$0xff]
        %v5058 = vld [vmem:[%s753 + $0x180] sm:$0xff]
        %v5059 = vld [vmem:[%s753 + $0x188] sm:$0xff]
        %v5060 = vld [vmem:[%s753 + $0x190] sm:$0xff]
        %v5061 = vld [vmem:[%s753 + $0x198] sm:$0xff]
        %v5062 = vld [vmem:[%s753 + $0x1a0] sm:$0xff]
        %v5063 = vld [vmem:[%s753 + $0x1a8] sm:$0xff]
        %v5064 = vld [vmem:[%s753 + $0x1b0] sm:$0xff]
        %v5065 = vld [vmem:[%s753 + $0x1b8] sm:$0xff]
        %v5066 = vld [vmem:[%s753 + $0x1c0] sm:$0xff]
        %v5067 = vld [vmem:[%s753 + $0x1c8] sm:$0xff]
        %v5068 = vld [vmem:[%s753 + $0x1d0] sm:$0xff]
        %v5069 = vld [vmem:[%s753 + $0x1d8] sm:$0xff]
        %v5070 = vld [vmem:[%s753 + $0x1e0] sm:$0xff]
        %v5071 = vld [vmem:[%s753 + $0x1e8] sm:$0xff]
        %v5072 = vld [vmem:[%s753 + $0x1f0] sm:$0xff]
        %v5073 = vld [vmem:[%s753 + $0x1f8] sm:$0xff]
        %v5074 = vld [vmem:[%s884] sm:$0xf]
        %v5076 = vlaneseq
        %v5077 = vshrl.u32 %v5076, 7
        %v5078 = vsub.s32 0, %v5077
        %v5079 = vrot.slane %v5074, %v5078
        %v5080 = vlaneseq
        %v5081 = vshrl.u32 %v5080, 7
        %v5082 = vsub.s32 1, %v5081
        %v5083 = vrot.slane %v5074, %v5082
        %v5084 = vlaneseq
        %v5085 = vshrl.u32 %v5084, 7
        %v5086 = vsub.s32 2, %v5085
        %v5087 = vrot.slane %v5074, %v5086
        %v5088 = vlaneseq
        %v5089 = vshrl.u32 %v5088, 7
        %v5090 = vsub.s32 3, %v5089
        %v5091 = vrot.slane %v5074, %v5090
        %5096 = vmatprep.subr.mxu0 %v5011
        %5097 = vmatpush1.msra.mxu0 %v5010
        %5098 = vmatprep.subr.mxu0 %v5015
        %5099 = vmatpush1.msra.mxu0 %v5014
        %5100 = vmatprep.subr.mxu0 %v5019
        %5101 = vmatpush1.msra.mxu0 %v5018
        %5102 = vmatprep.subr.mxu0 %v5023
        %5103 = vmatpush1.msra.mxu0 %v5022
        %5104 = vmatprep.subr.mxu0 %v5027
        %5105 = vmatpush1.msra.mxu0 %v5026
        %5106 = vmatprep.subr.mxu0 %v5031
        %5107 = vmatpush1.msra.mxu0 %v5030
        %5108 = vmatprep.subr.mxu0 %v5035
        %5109 = vmatpush1.msra.mxu0 %v5034
        %5110 = vmatprep.subr.mxu0 %v5039
        %5111 = vmatpush1.msra.mxu0 %v5038
        %5112 = vmatprep.subr.mxu0 %v5043
        %5113 = vmatpush1.msra.mxu0 %v5042
        %5114 = vmatprep.subr.mxu0 %v5047
        %5115 = vmatpush1.msra.mxu0 %v5046
        %5116 = vmatprep.subr.mxu0 %v5051
        %5117 = vmatpush1.msra.mxu0 %v5050
        %5118 = vmatprep.subr.mxu0 %v5055
        %5119 = vmatpush1.msra.mxu0 %v5054
        %5120 = vmatprep.subr.mxu0 %v5059
        %5121 = vmatpush1.msra.mxu0 %v5058
        %5122 = vmatprep.subr.mxu0 %v5063
        %5123 = vmatpush1.msra.mxu0 %v5062
        %5124 = vmatprep.subr.mxu0 %v5067
        %5125 = vmatpush1.msra.mxu0 %v5066
        %5126 = vmatprep.subr.mxu0 %v5071
        %5127 = vmatpush1.msra.mxu0 %v5070
        %5128 = vmatprep.subr.mxu0 0.0
        %5129 = vmatpush1.msra.mxu0 0.0
        %5130 = vmatprep.subr.mxu0 0.0
        %5131 = vmatpush1.msra.mxu0 0.0
        %5132 = vmatprep.subr.mxu0 0.0
        %5133 = vmatpush1.msra.mxu0 0.0
        %5134 = vmatprep.subr.mxu0 0.0
        %5135 = vmatpush1.msra.mxu0 0.0
        %5136 = vmatprep.subr.mxu0 0.0
        %5137 = vmatpush1.msra.mxu0 0.0
        %5138 = vmatprep.subr.mxu0 0.0
        %5139 = vmatpush1.msra.mxu0 0.0
        %5140 = vmatprep.subr.mxu0 0.0
        %5141 = vmatpush1.msra.mxu0 0.0
        %5142 = vmatprep.subr.mxu0 0.0
        %5143 = vmatpush1.msra.mxu0 0.0
        %5144 = vmatprep.subr.mxu0 0.0
        %5145 = vmatpush1.msra.mxu0 0.0
        %5146 = vmatprep.subr.mxu0 0.0
        %5147 = vmatpush1.msra.mxu0 0.0
        %5148 = vmatprep.subr.mxu0 0.0
        %5149 = vmatpush1.msra.mxu0 0.0
        %5150 = vmatprep.subr.mxu0 0.0
        %5151 = vmatpush1.msra.mxu0 0.0
        %5152 = vmatprep.subr.mxu0 0.0
        %5153 = vmatpush1.msra.mxu0 0.0
        %5154 = vmatprep.subr.mxu0 0.0
        %5155 = vmatpush1.msra.mxu0 0.0
        %5156 = vmatprep.subr.mxu0 0.0
        %5157 = vmatpush1.msra.mxu0 0.0
        %5158 = vmatprep.subr.mxu0 0.0
        %5159 = vmatpush1.msra.mxu0 0.0
        %5160 = vmatprep.mubr.f32.mxu0 0.0
        %5161 = vmatmul.mubr.f32.gmra.mrb[0].mxu0 %v4994
        %v5162 = vpop.f32.mrb[0].mxu0
        %v5163 = vadd.f32 %v5079, %v5162
        %v5164 = vpop.f32.mrb[0].mxu0
        %v5165 = vadd.f32 %v5083, %v5164
        %5166 = vmatprep.mubr.f32.mxu0 0.0
        %5167 = vmatmul.mubr.f32.gmra.mrb[0].mxu0 %v4995
        %v5168 = vpop.f32.mrb[0].mxu0
        %v5169 = vadd.f32 %v5079, %v5168
        %v5170 = vpop.f32.mrb[0].mxu0
        %v5171 = vadd.f32 %v5083, %v5170
        %5172 = vmatprep.mubr.f32.mxu0 0.0
        %5173 = vmatmul.mubr.f32.gmra.mrb[0].mxu0 %v4996
        %v5174 = vpop.f32.mrb[0].mxu0
        %v5175 = vadd.f32 %v5079, %v5174
        %v5176 = vpop.f32.mrb[0].mxu0
        %v5177 = vadd.f32 %v5083, %v5176
        %5178 = vmatprep.mubr.f32.mxu0 0.0
        %5179 = vmatmul.mubr.f32.gmra.mrb[0].mxu0 %v4997
        %v5180 = vpop.f32.mrb[0].mxu0
        %v5181 = vadd.f32 %v5079, %v5180
        %v5182 = vpop.f32.mrb[0].mxu0
        %v5183 = vadd.f32 %v5083, %v5182
        %5184 = vmatprep.mubr.f32.mxu0 0.0
        %5185 = vmatmul.mubr.f32.gmra.mrb[0].mxu0 %v4998
        %v5186 = vpop.f32.mrb[0].mxu0
        %v5187 = vadd.f32 %v5079, %v5186
        %v5188 = vpop.f32.mrb[0].mxu0
        %v5189 = vadd.f32 %v5083, %v5188
        %5190 = vmatprep.mubr.f32.mxu0 0.0
        %5191 = vmatmul.mubr.f32.gmra.mrb[0].mxu0 %v4999
        %v5192 = vpop.f32.mrb[0].mxu0
        %v5193 = vadd.f32 %v5079, %v5192
        %v5194 = vpop.f32.mrb[0].mxu0
        %v5195 = vadd.f32 %v5083, %v5194
        %5196 = vmatprep.mubr.f32.mxu0 0.0
        %5197 = vmatmul.mubr.f32.gmra.mrb[0].mxu0 %v5000
        %v5198 = vpop.f32.mrb[0].mxu0
        %v5199 = vadd.f32 %v5079, %v5198
        %v5200 = vpop.f32.mrb[0].mxu0
        %v5201 = vadd.f32 %v5083, %v5200
        %5202 = vmatprep.mubr.f32.mxu0 0.0
        %5203 = vmatmul.mubr.f32.gmra.mrb[0].mxu0 %v5001
        %v5204 = vpop.f32.mrb[0].mxu0
        %v5205 = vadd.f32 %v5079, %v5204
        %v5206 = vpop.f32.mrb[0].mxu0
        %v5207 = vadd.f32 %v5083, %v5206
        %5208 = vmatprep.mubr.f32.mxu0 0.0
        %5209 = vmatmul.mubr.f32.gmra.mrb[0].mxu0 %v5002
        %v5210 = vpop.f32.mrb[0].mxu0
        %v5211 = vadd.f32 %v5079, %v5210
        %v5212 = vpop.f32.mrb[0].mxu0
        %v5213 = vadd.f32 %v5083, %v5212
        %5214 = vmatprep.mubr.f32.mxu0 0.0
        %5215 = vmatmul.mubr.f32.gmra.mrb[0].mxu0 %v5003
        %v5216 = vpop.f32.mrb[0].mxu0
        %v5217 = vadd.f32 %v5079, %v5216
        %v5218 = vpop.f32.mrb[0].mxu0
        %v5219 = vadd.f32 %v5083, %v5218
        %5220 = vmatprep.mubr.f32.mxu0 0.0
        %5221 = vmatmul.mubr.f32.gmra.mrb[0].mxu0 %v5004
        %v5222 = vpop.f32.mrb[0].mxu0
        %v5223 = vadd.f32 %v5079, %v5222
        %v5224 = vpop.f32.mrb[0].mxu0
        %v5225 = vadd.f32 %v5083, %v5224
        %5226 = vmatprep.mubr.f32.mxu0 0.0
        %5227 = vmatmul.mubr.f32.gmra.mrb[0].mxu0 %v5005
        %v5228 = vpop.f32.mrb[0].mxu0
        %v5229 = vadd.f32 %v5079, %v5228
        %v5230 = vpop.f32.mrb[0].mxu0
        %v5231 = vadd.f32 %v5083, %v5230
        %5232 = vmatprep.mubr.f32.mxu0 0.0
        %5233 = vmatmul.mubr.f32.gmra.mrb[0].mxu0 %v5006
        %v5234 = vpop.f32.mrb[0].mxu0
        %v5235 = vadd.f32 %v5079, %v5234
        %v5236 = vpop.f32.mrb[0].mxu0
        %v5237 = vadd.f32 %v5083, %v5236
        %5238 = vmatprep.mubr.f32.mxu0 0.0
        %5239 = vmatmul.mubr.f32.gmra.mrb[0].mxu0 %v5007
        %v5240 = vpop.f32.mrb[0].mxu0
        %v5241 = vadd.f32 %v5079, %v5240
        %v5242 = vpop.f32.mrb[0].mxu0
        %v5243 = vadd.f32 %v5083, %v5242
        %5244 = vmatprep.mubr.f32.mxu0 0.0
        %5245 = vmatmul.mubr.f32.gmra.mrb[0].mxu0 %v5008
        %v5246 = vpop.f32.mrb[0].mxu0
        %v5247 = vadd.f32 %v5079, %v5246
        %v5248 = vpop.f32.mrb[0].mxu0
        %v5249 = vadd.f32 %v5083, %v5248
        %5250 = vmatprep.mubr.f32.mxu0 0.0
        %5251 = vmatmul.mubr.f32.gmra.mrb[0].mxu0 %v5009
        %v5252 = vpop.f32.mrb[0].mxu0
        %v5253 = vadd.f32 %v5079, %v5252
        %v5254 = vpop.f32.mrb[0].mxu0
        %v5255 = vadd.f32 %v5083, %v5254
        %5256 = vdwg.mxu0
        %5257 = vmatprep.subr.mxu0 %v5013
        %5258 = vmatpush1.msra.mxu0 %v5012
        %5259 = vmatprep.subr.mxu0 %v5017
        %5260 = vmatpush1.msra.mxu0 %v5016
        %5261 = vmatprep.subr.mxu0 %v5021
        %5262 = vmatpush1.msra.mxu0 %v5020
        %5263 = vmatprep.subr.mxu0 %v5025
        %5264 = vmatpush1.msra.mxu0 %v5024
        %5265 = vmatprep.subr.mxu0 %v5029
        %5266 = vmatpush1.msra.mxu0 %v5028
        %5267 = vmatprep.subr.mxu0 %v5033
        %5268 = vmatpush1.msra.mxu0 %v5032
        %5269 = vmatprep.subr.mxu0 %v5037
        %5270 = vmatpush1.msra.mxu0 %v5036
        %5271 = vmatprep.subr.mxu0 %v5041
        %5272 = vmatpush1.msra.mxu0 %v5040
        %5273 = vmatprep.subr.mxu0 %v5045
        %5274 = vmatpush1.msra.mxu0 %v5044
        %5275 = vmatprep.subr.mxu0 %v5049
        %5276 = vmatpush1.msra.mxu0 %v5048
        %5277 = vmatprep.subr.mxu0 %v5053
        %5278 = vmatpush1.msra.mxu0 %v5052
        %5279 = vmatprep.subr.mxu0 %v5057
        %5280 = vmatpush1.msra.mxu0 %v5056
        %5281 = vmatprep.subr.mxu0 %v5061
        %5282 = vmatpush1.msra.mxu0 %v5060
        %5283 = vmatprep.subr.mxu0 %v5065
        %5284 = vmatpush1.msra.mxu0 %v5064
        %5285 = vmatprep.subr.mxu0 %v5069
        %5286 = vmatpush1.msra.mxu0 %v5068
        %5287 = vmatprep.subr.mxu0 %v5073
        %5288 = vmatpush1.msra.mxu0 %v5072
        %5289 = vmatprep.subr.mxu0 0.0
        %5290 = vmatpush1.msra.mxu0 0.0
        %5291 = vmatprep.subr.mxu0 0.0
        %5292 = vmatpush1.msra.mxu0 0.0
        %5293 = vmatprep.subr.mxu0 0.0
        %5294 = vmatpush1.msra.mxu0 0.0
        %5295 = vmatprep.subr.mxu0 0.0
        %5296 = vmatpush1.msra.mxu0 0.0
        %5297 = vmatprep.subr.mxu0 0.0
        %5298 = vmatpush1.msra.mxu0 0.0
        %5299 = vmatprep.subr.mxu0 0.0
        %5300 = vmatpush1.msra.mxu0 0.0
        %5301 = vmatprep.subr.mxu0 0.0
        %5302 = vmatpush1.msra.mxu0 0.0
        %5303 = vmatprep.subr.mxu0 0.0
        %5304 = vmatpush1.msra.mxu0 0.0
        %5305 = vmatprep.subr.mxu0 0.0
        %5306 = vmatpush1.msra.mxu0 0.0
        %5307 = vmatprep.subr.mxu0 0.0
        %5308 = vmatpush1.msra.mxu0 0.0
        %5309 = vmatprep.subr.mxu0 0.0
        %5310 = vmatpush1.msra.mxu0 0.0
        %5311 = vmatprep.subr.mxu0 0.0
        %5312 = vmatpush1.msra.mxu0 0.0
        %5313 = vmatprep.subr.mxu0 0.0
        %5314 = vmatpush1.msra.mxu0 0.0
        %5315 = vmatprep.subr.mxu0 0.0
        %5316 = vmatpush1.msra.mxu0 0.0
        %5317 = vmatprep.subr.mxu0 0.0
        %5318 = vmatpush1.msra.mxu0 0.0
        %5319 = vmatprep.subr.mxu0 0.0
        %5320 = vmatpush1.msra.mxu0 0.0
        %5321 = vmatprep.mubr.f32.mxu0 0.0
        %5322 = vmatmul.mubr.f32.gmra.mrb[0].mxu0 %v4994
        %v5323 = vpop.f32.mrb[0].mxu0
        %v5324 = vadd.f32 %v5087, %v5323
        %v5325 = vpop.f32.mrb[0].mxu0
        %v5326 = vadd.f32 %v5091, %v5325
        %5327 = vmatprep.mubr.f32.mxu0 0.0
        %5328 = vmatmul.mubr.f32.gmra.mrb[0].mxu0 %v4995
        %v5329 = vpop.f32.mrb[0].mxu0
        %v5330 = vadd.f32 %v5087, %v5329
        %v5331 = vpop.f32.mrb[0].mxu0
        %v5332 = vadd.f32 %v5091, %v5331
        %5333 = vmatprep.mubr.f32.mxu0 0.0
        %5334 = vmatmul.mubr.f32.gmra.mrb[0].mxu0 %v4996
        %v5335 = vpop.f32.mrb[0].mxu0
        %v5336 = vadd.f32 %v5087, %v5335
        %v5337 = vpop.f32.mrb[0].mxu0
        %v5338 = vadd.f32 %v5091, %v5337
        %5339 = vmatprep.mubr.f32.mxu0 0.0
        %5340 = vmatmul.mubr.f32.gmra.mrb[0].mxu0 %v4997
        %v5341 = vpop.f32.mrb[0].mxu0
        %v5342 = vadd.f32 %v5087, %v5341
        %v5343 = vpop.f32.mrb[0].mxu0
        %v5344 = vadd.f32 %v5091, %v5343
        %5345 = vmatprep.mubr.f32.mxu0 0.0
        %5346 = vmatmul.mubr.f32.gmra.mrb[0].mxu0 %v4998
        %v5347 = vpop.f32.mrb[0].mxu0
        %v5348 = vadd.f32 %v5087, %v5347
        %v5349 = vpop.f32.mrb[0].mxu0
        %v5350 = vadd.f32 %v5091, %v5349
        %5351 = vmatprep.mubr.f32.mxu0 0.0
        %5352 = vmatmul.mubr.f32.gmra.mrb[0].mxu0 %v4999
        %v5353 = vpop.f32.mrb[0].mxu0
        %v5354 = vadd.f32 %v5087, %v5353
        %v5355 = vpop.f32.mrb[0].mxu0
        %v5356 = vadd.f32 %v5091, %v5355
        %5357 = vmatprep.mubr.f32.mxu0 0.0
        %5358 = vmatmul.mubr.f32.gmra.mrb[0].mxu0 %v5000
        %v5359 = vpop.f32.mrb[0].mxu0
        %v5360 = vadd.f32 %v5087, %v5359
        %v5361 = vpop.f32.mrb[0].mxu0
        %v5362 = vadd.f32 %v5091, %v5361
        %5363 = vmatprep.mubr.f32.mxu0 0.0
        %5364 = vmatmul.mubr.f32.gmra.mrb[0].mxu0 %v5001
        %v5365 = vpop.f32.mrb[0].mxu0
        %v5366 = vadd.f32 %v5087, %v5365
        %v5367 = vpop.f32.mrb[0].mxu0
        %v5368 = vadd.f32 %v5091, %v5367
        %5369 = vmatprep.mubr.f32.mxu0 0.0
        %5370 = vmatmul.mubr.f32.gmra.mrb[0].mxu0 %v5002
        %v5371 = vpop.f32.mrb[0].mxu0
        %v5372 = vadd.f32 %v5087, %v5371
        %v5373 = vpop.f32.mrb[0].mxu0
        %v5374 = vadd.f32 %v5091, %v5373
        %5375 = vmatprep.mubr.f32.mxu0 0.0
        %5376 = vmatmul.mubr.f32.gmra.mrb[0].mxu0 %v5003
        %v5377 = vpop.f32.mrb[0].mxu0
        %v5378 = vadd.f32 %v5087, %v5377
        %v5379 = vpop.f32.mrb[0].mxu0
        %v5380 = vadd.f32 %v5091, %v5379
        %5381 = vmatprep.mubr.f32.mxu0 0.0
        %5382 = vmatmul.mubr.f32.gmra.mrb[0].mxu0 %v5004
        %v5383 = vpop.f32.mrb[0].mxu0
        %v5384 = vadd.f32 %v5087, %v5383
        %v5385 = vpop.f32.mrb[0].mxu0
        %v5386 = vadd.f32 %v5091, %v5385
        %5387 = vmatprep.mubr.f32.mxu0 0.0
        %5388 = vmatmul.mubr.f32.gmra.mrb[0].mxu0 %v5005
        %v5389 = vpop.f32.mrb[0].mxu0
        %v5390 = vadd.f32 %v5087, %v5389
        %v5391 = vpop.f32.mrb[0].mxu0
        %v5392 = vadd.f32 %v5091, %v5391
        %5393 = vmatprep.mubr.f32.mxu0 0.0
        %5394 = vmatmul.mubr.f32.gmra.mrb[0].mxu0 %v5006
        %v5395 = vpop.f32.mrb[0].mxu0
        %v5396 = vadd.f32 %v5087, %v5395
        %v5397 = vpop.f32.mrb[0].mxu0
        %v5398 = vadd.f32 %v5091, %v5397
        %5399 = vmatprep.mubr.f32.mxu0 0.0
        %5400 = vmatmul.mubr.f32.gmra.mrb[0].mxu0 %v5007
        %v5401 = vpop.f32.mrb[0].mxu0
        %v5402 = vadd.f32 %v5087, %v5401
        %v5403 = vpop.f32.mrb[0].mxu0
        %v5404 = vadd.f32 %v5091, %v5403
        %5405 = vmatprep.mubr.f32.mxu0 0.0
        %5406 = vmatmul.mubr.f32.gmra.mrb[0].mxu0 %v5008
        %v5407 = vpop.f32.mrb[0].mxu0
        %v5408 = vadd.f32 %v5087, %v5407
        %v5409 = vpop.f32.mrb[0].mxu0
        %v5410 = vadd.f32 %v5091, %v5409
        %5411 = vmatprep.mubr.f32.mxu0 0.0
        %5412 = vmatmul.mubr.f32.gmra.mrb[0].mxu0 %v5009
        %v5413 = vpop.f32.mrb[0].mxu0
        %v5414 = vadd.f32 %v5087, %v5413
        %v5415 = vpop.f32.mrb[0].mxu0
        %v5416 = vadd.f32 %v5091, %v5415
        %5417 = vdwg.mxu0
        %v5418 = vmul.f32 %v5163, 0.70710677
        %v5419 = vmul.f32 %v5165, 0.70710677
        %v5420 = vmul.f32 %v5324, 0.70710677
        %v5421 = vmul.f32 %v5326, 0.70710677
        %v5422 = vmul.f32 %v5169, 0.70710677
        %v5423 = vmul.f32 %v5171, 0.70710677
        %v5424 = vmul.f32 %v5330, 0.70710677
        %v5425 = vmul.f32 %v5332, 0.70710677
        %v5426 = vmul.f32 %v5175, 0.70710677
        %v5427 = vmul.f32 %v5177, 0.70710677
        %v5428 = vmul.f32 %v5336, 0.70710677
        %v5429 = vmul.f32 %v5338, 0.70710677
        %v5430 = vmul.f32 %v5181, 0.70710677
        %v5431 = vmul.f32 %v5183, 0.70710677
        %v5432 = vmul.f32 %v5342, 0.70710677
        %v5433 = vmul.f32 %v5344, 0.70710677
        %v5434 = vmul.f32 %v5187, 0.70710677
        %v5435 = vmul.f32 %v5189, 0.70710677
        %v5436 = vmul.f32 %v5348, 0.70710677
        %v5437 = vmul.f32 %v5350, 0.70710677
        %v5438 = vmul.f32 %v5193, 0.70710677
        %v5439 = vmul.f32 %v5195, 0.70710677
        %v5440 = vmul.f32 %v5354, 0.70710677
        %v5441 = vmul.f32 %v5356, 0.70710677
        %v5442 = vmul.f32 %v5199, 0.70710677
        %v5443 = vmul.f32 %v5201, 0.70710677
        %v5444 = vmul.f32 %v5360, 0.70710677
        %v5445 = vmul.f32 %v5362, 0.70710677
        %v5446 = vmul.f32 %v5205, 0.70710677
        %v5447 = vmul.f32 %v5207, 0.70710677
        %v5448 = vmul.f32 %v5366, 0.70710677
        %v5449 = vmul.f32 %v5368, 0.70710677
        %v5450 = vmul.f32 %v5211, 0.70710677
        %v5451 = vmul.f32 %v5213, 0.70710677
        %v5452 = vmul.f32 %v5372, 0.70710677
        %v5453 = vmul.f32 %v5374, 0.70710677
        %v5454 = vmul.f32 %v5217, 0.70710677
        %v5455 = vmul.f32 %v5219, 0.70710677
        %v5456 = vmul.f32 %v5378, 0.70710677
        %v5457 = vmul.f32 %v5380, 0.70710677
        %v5458 = vmul.f32 %v5223, 0.70710677
        %v5459 = vmul.f32 %v5225, 0.70710677
        %v5460 = vmul.f32 %v5384, 0.70710677
        %v5461 = vmul.f32 %v5386, 0.70710677
        %v5462 = vmul.f32 %v5229, 0.70710677
        %v5463 = vmul.f32 %v5231, 0.70710677
        %v5464 = vmul.f32 %v5390, 0.70710677
        %v5465 = vmul.f32 %v5392, 0.70710677
        %v5466 = vmul.f32 %v5235, 0.70710677
        %v5467 = vmul.f32 %v5237, 0.70710677
        %v5468 = vmul.f32 %v5396, 0.70710677
        %v5469 = vmul.f32 %v5398, 0.70710677
        %v5470 = vmul.f32 %v5241, 0.70710677
        %v5471 = vmul.f32 %v5243, 0.70710677
        %v5472 = vmul.f32 %v5402, 0.70710677
        %v5473 = vmul.f32 %v5404, 0.70710677
        %v5474 = vmul.f32 %v5247, 0.70710677
        %v5475 = vmul.f32 %v5249, 0.70710677
        %v5476 = vmul.f32 %v5408, 0.70710677
        %v5477 = vmul.f32 %v5410, 0.70710677
        %v5478 = vmul.f32 %v5253, 0.70710677
        %v5479 = vmul.f32 %v5255, 0.70710677
        %v5480 = vmul.f32 %v5414, 0.70710677
        %v5481 = vmul.f32 %v5416, 0.70710677
        %v5482 = vand.u32 2147483647, %v5418
        %v5483 = vand.u32 2147483647, %v5419
        %v5484 = vand.u32 2147483647, %v5420
        %v5485 = vand.u32 2147483647, %v5421
        %v5486 = vand.u32 2147483647, %v5422
        %v5487 = vand.u32 2147483647, %v5423
        %v5488 = vand.u32 2147483647, %v5424
        %v5489 = vand.u32 2147483647, %v5425
        %v5490 = vand.u32 2147483647, %v5426
        %v5491 = vand.u32 2147483647, %v5427
        %v5492 = vand.u32 2147483647, %v5428
        %v5493 = vand.u32 2147483647, %v5429
        %v5494 = vand.u32 2147483647, %v5430
        %v5495 = vand.u32 2147483647, %v5431
        %v5496 = vand.u32 2147483647, %v5432
        %v5497 = vand.u32 2147483647, %v5433
        %v5498 = vand.u32 2147483647, %v5434
        %v5499 = vand.u32 2147483647, %v5435
        %v5500 = vand.u32 2147483647, %v5436
        %v5501 = vand.u32 2147483647, %v5437
        %v5502 = vand.u32 2147483647, %v5438
        %v5503 = vand.u32 2147483647, %v5439
        %v5504 = vand.u32 2147483647, %v5440
        %v5505 = vand.u32 2147483647, %v5441
        %v5506 = vand.u32 2147483647, %v5442
        %v5507 = vand.u32 2147483647, %v5443
        %v5508 = vand.u32 2147483647, %v5444
        %v5509 = vand.u32 2147483647, %v5445
        %v5510 = vand.u32 2147483647, %v5446
        %v5511 = vand.u32 2147483647, %v5447
        %v5512 = vand.u32 2147483647, %v5448
        %v5513 = vand.u32 2147483647, %v5449
        %v5514 = vand.u32 2147483647, %v5450
        %v5515 = vand.u32 2147483647, %v5451
        %v5516 = vand.u32 2147483647, %v5452
        %v5517 = vand.u32 2147483647, %v5453
        %v5518 = vand.u32 2147483647, %v5454
        %v5519 = vand.u32 2147483647, %v5455
        %v5520 = vand.u32 2147483647, %v5456
        %v5521 = vand.u32 2147483647, %v5457
        %v5522 = vand.u32 2147483647, %v5458
        %v5523 = vand.u32 2147483647, %v5459
        %v5524 = vand.u32 2147483647, %v5460
        %v5525 = vand.u32 2147483647, %v5461
        %v5526 = vand.u32 2147483647, %v5462
        %v5527 = vand.u32 2147483647, %v5463
        %v5528 = vand.u32 2147483647, %v5464
        %v5529 = vand.u32 2147483647, %v5465
        %v5530 = vand.u32 2147483647, %v5466
        %v5531 = vand.u32 2147483647, %v5467
        %v5532 = vand.u32 2147483647, %v5468
        %v5533 = vand.u32 2147483647, %v5469
        %v5534 = vand.u32 2147483647, %v5470
        %v5535 = vand.u32 2147483647, %v5471
        %v5536 = vand.u32 2147483647, %v5472
        %v5537 = vand.u32 2147483647, %v5473
        %v5538 = vand.u32 2147483647, %v5474
        %v5539 = vand.u32 2147483647, %v5475
        %v5540 = vand.u32 2147483647, %v5476
        %v5541 = vand.u32 2147483647, %v5477
        %v5542 = vand.u32 2147483647, %v5478
        %v5543 = vand.u32 2147483647, %v5479
        %v5544 = vand.u32 2147483647, %v5480
        %v5545 = vand.u32 2147483647, %v5481
        %v5546 = vmul.f32 %v5482, 0.3275911
        %v5547 = vmul.f32 %v5483, 0.3275911
        %v5548 = vmul.f32 %v5484, 0.3275911
        %v5549 = vmul.f32 %v5485, 0.3275911
        %v5550 = vmul.f32 %v5486, 0.3275911
        %v5551 = vmul.f32 %v5487, 0.3275911
        %v5552 = vmul.f32 %v5488, 0.3275911
        %v5553 = vmul.f32 %v5489, 0.3275911
        %v5554 = vmul.f32 %v5490, 0.3275911
        %v5555 = vmul.f32 %v5491, 0.3275911
        %v5556 = vmul.f32 %v5492, 0.3275911
        %v5557 = vmul.f32 %v5493, 0.3275911
        %v5558 = vmul.f32 %v5494, 0.3275911
        %v5559 = vmul.f32 %v5495, 0.3275911
        %v5560 = vmul.f32 %v5496, 0.3275911
        %v5561 = vmul.f32 %v5497, 0.3275911
        %v5562 = vmul.f32 %v5498, 0.3275911
        %v5563 = vmul.f32 %v5499, 0.3275911
        %v5564 = vmul.f32 %v5500, 0.3275911
        %v5565 = vmul.f32 %v5501, 0.3275911
        %v5566 = vmul.f32 %v5502, 0.3275911
        %v5567 = vmul.f32 %v5503, 0.3275911
        %v5568 = vmul.f32 %v5504, 0.3275911
        %v5569 = vmul.f32 %v5505, 0.3275911
        %v5570 = vmul.f32 %v5506, 0.3275911
        %v5571 = vmul.f32 %v5507, 0.3275911
        %v5572 = vmul.f32 %v5508, 0.3275911
        %v5573 = vmul.f32 %v5509, 0.3275911
        %v5574 = vmul.f32 %v5510, 0.3275911
        %v5575 = vmul.f32 %v5511, 0.3275911
        %v5576 = vmul.f32 %v5512, 0.3275911
        %v5577 = vmul.f32 %v5513, 0.3275911
        %v5578 = vmul.f32 %v5514, 0.3275911
        %v5579 = vmul.f32 %v5515, 0.3275911
        %v5580 = vmul.f32 %v5516, 0.3275911
        %v5581 = vmul.f32 %v5517, 0.3275911
        %v5582 = vmul.f32 %v5518, 0.3275911
        %v5583 = vmul.f32 %v5519, 0.3275911
        %v5584 = vmul.f32 %v5520, 0.3275911
        %v5585 = vmul.f32 %v5521, 0.3275911
        %v5586 = vmul.f32 %v5522, 0.3275911
        %v5587 = vmul.f32 %v5523, 0.3275911
        %v5588 = vmul.f32 %v5524, 0.3275911
        %v5589 = vmul.f32 %v5525, 0.3275911
        %v5590 = vmul.f32 %v5526, 0.3275911
        %v5591 = vmul.f32 %v5527, 0.3275911
        %v5592 = vmul.f32 %v5528, 0.3275911
        %v5593 = vmul.f32 %v5529, 0.3275911
        %v5594 = vmul.f32 %v5530, 0.3275911
        %v5595 = vmul.f32 %v5531, 0.3275911
        %v5596 = vmul.f32 %v5532, 0.3275911
        %v5597 = vmul.f32 %v5533, 0.3275911
        %v5598 = vmul.f32 %v5534, 0.3275911
        %v5599 = vmul.f32 %v5535, 0.3275911
        %v5600 = vmul.f32 %v5536, 0.3275911
        %v5601 = vmul.f32 %v5537, 0.3275911
        %v5602 = vmul.f32 %v5538, 0.3275911
        %v5603 = vmul.f32 %v5539, 0.3275911
        %v5604 = vmul.f32 %v5540, 0.3275911
        %v5605 = vmul.f32 %v5541, 0.3275911
        %v5606 = vmul.f32 %v5542, 0.3275911
        %v5607 = vmul.f32 %v5543, 0.3275911
        %v5608 = vmul.f32 %v5544, 0.3275911
        %v5609 = vmul.f32 %v5545, 0.3275911
        %v5610 = vadd.f32 %v5546, 1.0
        %v5611 = vadd.f32 %v5547, 1.0
        %v5612 = vadd.f32 %v5548, 1.0
        %v5613 = vadd.f32 %v5549, 1.0
        %v5614 = vadd.f32 %v5550, 1.0
        %v5615 = vadd.f32 %v5551, 1.0
        %v5616 = vadd.f32 %v5552, 1.0
        %v5617 = vadd.f32 %v5553, 1.0
        %v5618 = vadd.f32 %v5554, 1.0
        %v5619 = vadd.f32 %v5555, 1.0
        %v5620 = vadd.f32 %v5556, 1.0
        %v5621 = vadd.f32 %v5557, 1.0
        %v5622 = vadd.f32 %v5558, 1.0
        %v5623 = vadd.f32 %v5559, 1.0
        %v5624 = vadd.f32 %v5560, 1.0
        %v5625 = vadd.f32 %v5561, 1.0
        %v5626 = vadd.f32 %v5562, 1.0
        %v5627 = vadd.f32 %v5563, 1.0
        %v5628 = vadd.f32 %v5564, 1.0
        %v5629 = vadd.f32 %v5565, 1.0
        %v5630 = vadd.f32 %v5566, 1.0
        %v5631 = vadd.f32 %v5567, 1.0
        %v5632 = vadd.f32 %v5568, 1.0
        %v5633 = vadd.f32 %v5569, 1.0
        %v5634 = vadd.f32 %v5570, 1.0
        %v5635 = vadd.f32 %v5571, 1.0
        %v5636 = vadd.f32 %v5572, 1.0
        %v5637 = vadd.f32 %v5573, 1.0
        %v5638 = vadd.f32 %v5574, 1.0
        %v5639 = vadd.f32 %v5575, 1.0
        %v5640 = vadd.f32 %v5576, 1.0
        %v5641 = vadd.f32 %v5577, 1.0
        %v5642 = vadd.f32 %v5578, 1.0
        %v5643 = vadd.f32 %v5579, 1.0
        %v5644 = vadd.f32 %v5580, 1.0
        %v5645 = vadd.f32 %v5581, 1.0
        %v5646 = vadd.f32 %v5582, 1.0
        %v5647 = vadd.f32 %v5583, 1.0
        %v5648 = vadd.f32 %v5584, 1.0
        %v5649 = vadd.f32 %v5585, 1.0
        %v5650 = vadd.f32 %v5586, 1.0
        %v5651 = vadd.f32 %v5587, 1.0
        %v5652 = vadd.f32 %v5588, 1.0
        %v5653 = vadd.f32 %v5589, 1.0
        %v5654 = vadd.f32 %v5590, 1.0
        %v5655 = vadd.f32 %v5591, 1.0
        %v5656 = vadd.f32 %v5592, 1.0
        %v5657 = vadd.f32 %v5593, 1.0
        %v5658 = vadd.f32 %v5594, 1.0
        %v5659 = vadd.f32 %v5595, 1.0
        %v5660 = vadd.f32 %v5596, 1.0
        %v5661 = vadd.f32 %v5597, 1.0
        %v5662 = vadd.f32 %v5598, 1.0
        %v5663 = vadd.f32 %v5599, 1.0
        %v5664 = vadd.f32 %v5600, 1.0
        %v5665 = vadd.f32 %v5601, 1.0
        %v5666 = vadd.f32 %v5602, 1.0
        %v5667 = vadd.f32 %v5603, 1.0
        %v5668 = vadd.f32 %v5604, 1.0
        %v5669 = vadd.f32 %v5605, 1.0
        %v5670 = vadd.f32 %v5606, 1.0
        %v5671 = vadd.f32 %v5607, 1.0
        %v5672 = vadd.f32 %v5608, 1.0
        %v5673 = vadd.f32 %v5609, 1.0
        %v5674 = vrcp.pop %v5610
        %v5675 = vmul.f32 1.0, %v5674
        %v5676 = vrcp.pop %v5611
        %v5677 = vmul.f32 1.0, %v5676
        %v5678 = vrcp.pop %v5612
        %v5679 = vmul.f32 1.0, %v5678
        %v5680 = vrcp.pop %v5613
        %v5681 = vmul.f32 1.0, %v5680
        %v5682 = vrcp.pop %v5614
        %v5683 = vmul.f32 1.0, %v5682
        %v5684 = vrcp.pop %v5615
        %v5685 = vmul.f32 1.0, %v5684
        %v5686 = vrcp.pop %v5616
        %v5687 = vmul.f32 1.0, %v5686
        %v5688 = vrcp.pop %v5617
        %v5689 = vmul.f32 1.0, %v5688
        %v5690 = vrcp.pop %v5618
        %v5691 = vmul.f32 1.0, %v5690
        %v5692 = vrcp.pop %v5619
        %v5693 = vmul.f32 1.0, %v5692
        %v5694 = vrcp.pop %v5620
        %v5695 = vmul.f32 1.0, %v5694
        %v5696 = vrcp.pop %v5621
        %v5697 = vmul.f32 1.0, %v5696
        %v5698 = vrcp.pop %v5622
        %v5699 = vmul.f32 1.0, %v5698
        %v5700 = vrcp.pop %v5623
        %v5701 = vmul.f32 1.0, %v5700
        %v5702 = vrcp.pop %v5624
        %v5703 = vmul.f32 1.0, %v5702
        %v5704 = vrcp.pop %v5625
        %v5705 = vmul.f32 1.0, %v5704
        %v5706 = vrcp.pop %v5626
        %v5707 = vmul.f32 1.0, %v5706
        %v5708 = vrcp.pop %v5627
        %v5709 = vmul.f32 1.0, %v5708
        %v5710 = vrcp.pop %v5628
        %v5711 = vmul.f32 1.0, %v5710
        %v5712 = vrcp.pop %v5629
        %v5713 = vmul.f32 1.0, %v5712
        %v5714 = vrcp.pop %v5630
        %v5715 = vmul.f32 1.0, %v5714
        %v5716 = vrcp.pop %v5631
        %v5717 = vmul.f32 1.0, %v5716
        %v5718 = vrcp.pop %v5632
        %v5719 = vmul.f32 1.0, %v5718
        %v5720 = vrcp.pop %v5633
        %v5721 = vmul.f32 1.0, %v5720
        %v5722 = vrcp.pop %v5634
        %v5723 = vmul.f32 1.0, %v5722
        %v5724 = vrcp.pop %v5635
        %v5725 = vmul.f32 1.0, %v5724
        %v5726 = vrcp.pop %v5636
        %v5727 = vmul.f32 1.0, %v5726
        %v5728 = vrcp.pop %v5637
        %v5729 = vmul.f32 1.0, %v5728
        %v5730 = vrcp.pop %v5638
        %v5731 = vmul.f32 1.0, %v5730
        %v5732 = vrcp.pop %v5639
        %v5733 = vmul.f32 1.0, %v5732
        %v5734 = vrcp.pop %v5640
        %v5735 = vmul.f32 1.0, %v5734
        %v5736 = vrcp.pop %v5641
        %v5737 = vmul.f32 1.0, %v5736
        %v5738 = vrcp.pop %v5642
        %v5739 = vmul.f32 1.0, %v5738
        %v5740 = vrcp.pop %v5643
        %v5741 = vmul.f32 1.0, %v5740
        %v5742 = vrcp.pop %v5644
        %v5743 = vmul.f32 1.0, %v5742
        %v5744 = vrcp.pop %v5645
        %v5745 = vmul.f32 1.0, %v5744
        %v5746 = vrcp.pop %v5646
        %v5747 = vmul.f32 1.0, %v5746
        %v5748 = vrcp.pop %v5647
        %v5749 = vmul.f32 1.0, %v5748
        %v5750 = vrcp.pop %v5648
        %v5751 = vmul.f32 1.0, %v5750
        %v5752 = vrcp.pop %v5649
        %v5753 = vmul.f32 1.0, %v5752
        %v5754 = vrcp.pop %v5650
        %v5755 = vmul.f32 1.0, %v5754
        %v5756 = vrcp.pop %v5651
        %v5757 = vmul.f32 1.0, %v5756
        %v5758 = vrcp.pop %v5652
        %v5759 = vmul.f32 1.0, %v5758
        %v5760 = vrcp.pop %v5653
        %v5761 = vmul.f32 1.0, %v5760
        %v5762 = vrcp.pop %v5654
        %v5763 = vmul.f32 1.0, %v5762
        %v5764 = vrcp.pop %v5655
        %v5765 = vmul.f32 1.0, %v5764
        %v5766 = vrcp.pop %v5656
        %v5767 = vmul.f32 1.0, %v5766
        %v5768 = vrcp.pop %v5657
        %v5769 = vmul.f32 1.0, %v5768
        %v5770 = vrcp.pop %v5658
        %v5771 = vmul.f32 1.0, %v5770
        %v5772 = vrcp.pop %v5659
        %v5773 = vmul.f32 1.0, %v5772
        %v5774 = vrcp.pop %v5660
        %v5775 = vmul.f32 1.0, %v5774
        %v5776 = vrcp.pop %v5661
        %v5777 = vmul.f32 1.0, %v5776
        %v5778 = vrcp.pop %v5662
        %v5779 = vmul.f32 1.0, %v5778
        %v5780 = vrcp.pop %v5663
        %v5781 = vmul.f32 1.0, %v5780
        %v5782 = vrcp.pop %v5664
        %v5783 = vmul.f32 1.0, %v5782
        %v5784 = vrcp.pop %v5665
        %v5785 = vmul.f32 1.0, %v5784
        %v5786 = vrcp.pop %v5666
        %v5787 = vmul.f32 1.0, %v5786
        %v5788 = vrcp.pop %v5667
        %v5789 = vmul.f32 1.0, %v5788
        %v5790 = vrcp.pop %v5668
        %v5791 = vmul.f32 1.0, %v5790
        %v5792 = vrcp.pop %v5669
        %v5793 = vmul.f32 1.0, %v5792
        %v5794 = vrcp.pop %v5670
        %v5795 = vmul.f32 1.0, %v5794
        %v5796 = vrcp.pop %v5671
        %v5797 = vmul.f32 1.0, %v5796
        %v5798 = vrcp.pop %v5672
        %v5799 = vmul.f32 1.0, %v5798
        %v5800 = vrcp.pop %v5673
        %v5801 = vmul.f32 1.0, %v5800
        %v5802 = vmul.f32 %v5675, 1.0614054
        %v5803 = vmul.f32 %v5677, 1.0614054
        %v5804 = vmul.f32 %v5679, 1.0614054
        %v5805 = vmul.f32 %v5681, 1.0614054
        %v5806 = vmul.f32 %v5683, 1.0614054
        %v5807 = vmul.f32 %v5685, 1.0614054
        %v5808 = vmul.f32 %v5687, 1.0614054
        %v5809 = vmul.f32 %v5689, 1.0614054
        %v5810 = vmul.f32 %v5691, 1.0614054
        %v5811 = vmul.f32 %v5693, 1.0614054
        %v5812 = vmul.f32 %v5695, 1.0614054
        %v5813 = vmul.f32 %v5697, 1.0614054
        %v5814 = vmul.f32 %v5699, 1.0614054
        %v5815 = vmul.f32 %v5701, 1.0614054
        %v5816 = vmul.f32 %v5703, 1.0614054
        %v5817 = vmul.f32 %v5705, 1.0614054
        %v5818 = vmul.f32 %v5707, 1.0614054
        %v5819 = vmul.f32 %v5709, 1.0614054
        %v5820 = vmul.f32 %v5711, 1.0614054
        %v5821 = vmul.f32 %v5713, 1.0614054
        %v5822 = vmul.f32 %v5715, 1.0614054
        %v5823 = vmul.f32 %v5717, 1.0614054
        %v5824 = vmul.f32 %v5719, 1.0614054
        %v5825 = vmul.f32 %v5721, 1.0614054
        %v5826 = vmul.f32 %v5723, 1.0614054
        %v5827 = vmul.f32 %v5725, 1.0614054
        %v5828 = vmul.f32 %v5727, 1.0614054
        %v5829 = vmul.f32 %v5729, 1.0614054
        %v5830 = vmul.f32 %v5731, 1.0614054
        %v5831 = vmul.f32 %v5733, 1.0614054
        %v5832 = vmul.f32 %v5735, 1.0614054
        %v5833 = vmul.f32 %v5737, 1.0614054
        %v5834 = vmul.f32 %v5739, 1.0614054
        %v5835 = vmul.f32 %v5741, 1.0614054
        %v5836 = vmul.f32 %v5743, 1.0614054
        %v5837 = vmul.f32 %v5745, 1.0614054
        %v5838 = vmul.f32 %v5747, 1.0614054
        %v5839 = vmul.f32 %v5749, 1.0614054
        %v5840 = vmul.f32 %v5751, 1.0614054
        %v5841 = vmul.f32 %v5753, 1.0614054
        %v5842 = vmul.f32 %v5755, 1.0614054
        %v5843 = vmul.f32 %v5757, 1.0614054
        %v5844 = vmul.f32 %v5759, 1.0614054
        %v5845 = vmul.f32 %v5761, 1.0614054
        %v5846 = vmul.f32 %v5763, 1.0614054
        %v5847 = vmul.f32 %v5765, 1.0614054
        %v5848 = vmul.f32 %v5767, 1.0614054
        %v5849 = vmul.f32 %v5769, 1.0614054
        %v5850 = vmul.f32 %v5771, 1.0614054
        %v5851 = vmul.f32 %v5773, 1.0614054
        %v5852 = vmul.f32 %v5775, 1.0614054
        %v5853 = vmul.f32 %v5777, 1.0614054
        %v5854 = vmul.f32 %v5779, 1.0614054
        %v5855 = vmul.f32 %v5781, 1.0614054
        %v5856 = vmul.f32 %v5783, 1.0614054
        %v5857 = vmul.f32 %v5785, 1.0614054
        %v5858 = vmul.f32 %v5787, 1.0614054
        %v5859 = vmul.f32 %v5789, 1.0614054
        %v5860 = vmul.f32 %v5791, 1.0614054
        %v5861 = vmul.f32 %v5793, 1.0614054
        %v5862 = vmul.f32 %v5795, 1.0614054
        %v5863 = vmul.f32 %v5797, 1.0614054
        %v5864 = vmul.f32 %v5799, 1.0614054
        %v5865 = vmul.f32 %v5801, 1.0614054
        %v5866 = vadd.f32 %v5802, -1.4531521
        %v5867 = vadd.f32 %v5803, -1.4531521
        %v5868 = vadd.f32 %v5804, -1.4531521
        %v5869 = vadd.f32 %v5805, -1.4531521
        %v5870 = vadd.f32 %v5806, -1.4531521
        %v5871 = vadd.f32 %v5807, -1.4531521
        %v5872 = vadd.f32 %v5808, -1.4531521
        %v5873 = vadd.f32 %v5809, -1.4531521
        %v5874 = vadd.f32 %v5810, -1.4531521
        %v5875 = vadd.f32 %v5811, -1.4531521
        %v5876 = vadd.f32 %v5812, -1.4531521
        %v5877 = vadd.f32 %v5813, -1.4531521
        %v5878 = vadd.f32 %v5814, -1.4531521
        %v5879 = vadd.f32 %v5815, -1.4531521
        %v5880 = vadd.f32 %v5816, -1.4531521
        %v5881 = vadd.f32 %v5817, -1.4531521
        %v5882 = vadd.f32 %v5818, -1.4531521
        %v5883 = vadd.f32 %v5819, -1.4531521
        %v5884 = vadd.f32 %v5820, -1.4531521
        %v5885 = vadd.f32 %v5821, -1.4531521
        %v5886 = vadd.f32 %v5822, -1.4531521
        %v5887 = vadd.f32 %v5823, -1.4531521
        %v5888 = vadd.f32 %v5824, -1.4531521
        %v5889 = vadd.f32 %v5825, -1.4531521
        %v5890 = vadd.f32 %v5826, -1.4531521
        %v5891 = vadd.f32 %v5827, -1.4531521
        %v5892 = vadd.f32 %v5828, -1.4531521
        %v5893 = vadd.f32 %v5829, -1.4531521
        %v5894 = vadd.f32 %v5830, -1.4531521
        %v5895 = vadd.f32 %v5831, -1.4531521
        %v5896 = vadd.f32 %v5832, -1.4531521
        %v5897 = vadd.f32 %v5833, -1.4531521
        %v5898 = vadd.f32 %v5834, -1.4531521
        %v5899 = vadd.f32 %v5835, -1.4531521
        %v5900 = vadd.f32 %v5836, -1.4531521
        %v5901 = vadd.f32 %v5837, -1.4531521
        %v5902 = vadd.f32 %v5838, -1.4531521
        %v5903 = vadd.f32 %v5839, -1.4531521
        %v5904 = vadd.f32 %v5840, -1.4531521
        %v5905 = vadd.f32 %v5841, -1.4531521
        %v5906 = vadd.f32 %v5842, -1.4531521
        %v5907 = vadd.f32 %v5843, -1.4531521
        %v5908 = vadd.f32 %v5844, -1.4531521
        %v5909 = vadd.f32 %v5845, -1.4531521
        %v5910 = vadd.f32 %v5846, -1.4531521
        %v5911 = vadd.f32 %v5847, -1.4531521
        %v5912 = vadd.f32 %v5848, -1.4531521
        %v5913 = vadd.f32 %v5849, -1.4531521
        %v5914 = vadd.f32 %v5850, -1.4531521
        %v5915 = vadd.f32 %v5851, -1.4531521
        %v5916 = vadd.f32 %v5852, -1.4531521
        %v5917 = vadd.f32 %v5853, -1.4531521
        %v5918 = vadd.f32 %v5854, -1.4531521
        %v5919 = vadd.f32 %v5855, -1.4531521
        %v5920 = vadd.f32 %v5856, -1.4531521
        %v5921 = vadd.f32 %v5857, -1.4531521
        %v5922 = vadd.f32 %v5858, -1.4531521
        %v5923 = vadd.f32 %v5859, -1.4531521
        %v5924 = vadd.f32 %v5860, -1.4531521
        %v5925 = vadd.f32 %v5861, -1.4531521
        %v5926 = vadd.f32 %v5862, -1.4531521
        %v5927 = vadd.f32 %v5863, -1.4531521
        %v5928 = vadd.f32 %v5864, -1.4531521
        %v5929 = vadd.f32 %v5865, -1.4531521
        %v5930 = vmul.f32 %v5866, %v5675
        %v5931 = vmul.f32 %v5867, %v5677
        %v5932 = vmul.f32 %v5868, %v5679
        %v5933 = vmul.f32 %v5869, %v5681
        %v5934 = vmul.f32 %v5870, %v5683
        %v5935 = vmul.f32 %v5871, %v5685
        %v5936 = vmul.f32 %v5872, %v5687
        %v5937 = vmul.f32 %v5873, %v5689
        %v5938 = vmul.f32 %v5874, %v5691
        %v5939 = vmul.f32 %v5875, %v5693
        %v5940 = vmul.f32 %v5876, %v5695
        %v5941 = vmul.f32 %v5877, %v5697
        %v5942 = vmul.f32 %v5878, %v5699
        %v5943 = vmul.f32 %v5879, %v5701
        %v5944 = vmul.f32 %v5880, %v5703
        %v5945 = vmul.f32 %v5881, %v5705
        %v5946 = vmul.f32 %v5882, %v5707
        %v5947 = vmul.f32 %v5883, %v5709
        %v5948 = vmul.f32 %v5884, %v5711
        %v5949 = vmul.f32 %v5885, %v5713
        %v5950 = vmul.f32 %v5886, %v5715
        %v5951 = vmul.f32 %v5887, %v5717
        %v5952 = vmul.f32 %v5888, %v5719
        %v5953 = vmul.f32 %v5889, %v5721
        %v5954 = vmul.f32 %v5890, %v5723
        %v5955 = vmul.f32 %v5891, %v5725
        %v5956 = vmul.f32 %v5892, %v5727
        %v5957 = vmul.f32 %v5893, %v5729
        %v5958 = vmul.f32 %v5894, %v5731
        %v5959 = vmul.f32 %v5895, %v5733
        %v5960 = vmul.f32 %v5896, %v5735
        %v5961 = vmul.f32 %v5897, %v5737
        %v5962 = vmul.f32 %v5898, %v5739
        %v5963 = vmul.f32 %v5899, %v5741
        %v5964 = vmul.f32 %v5900, %v5743
        %v5965 = vmul.f32 %v5901, %v5745
        %v5966 = vmul.f32 %v5902, %v5747
        %v5967 = vmul.f32 %v5903, %v5749
        %v5968 = vmul.f32 %v5904, %v5751
        %v5969 = vmul.f32 %v5905, %v5753
        %v5970 = vmul.f32 %v5906, %v5755
        %v5971 = vmul.f32 %v5907, %v5757
        %v5972 = vmul.f32 %v5908, %v5759
        %v5973 = vmul.f32 %v5909, %v5761
        %v5974 = vmul.f32 %v5910, %v5763
        %v5975 = vmul.f32 %v5911, %v5765
        %v5976 = vmul.f32 %v5912, %v5767
        %v5977 = vmul.f32 %v5913, %v5769
        %v5978 = vmul.f32 %v5914, %v5771
        %v5979 = vmul.f32 %v5915, %v5773
        %v5980 = vmul.f32 %v5916, %v5775
        %v5981 = vmul.f32 %v5917, %v5777
        %v5982 = vmul.f32 %v5918, %v5779
        %v5983 = vmul.f32 %v5919, %v5781
        %v5984 = vmul.f32 %v5920, %v5783
        %v5985 = vmul.f32 %v5921, %v5785
        %v5986 = vmul.f32 %v5922, %v5787
        %v5987 = vmul.f32 %v5923, %v5789
        %v5988 = vmul.f32 %v5924, %v5791
        %v5989 = vmul.f32 %v5925, %v5793
        %v5990 = vmul.f32 %v5926, %v5795
        %v5991 = vmul.f32 %v5927, %v5797
        %v5992 = vmul.f32 %v5928, %v5799
        %v5993 = vmul.f32 %v5929, %v5801
        %v5994 = vadd.f32 %v5930, 1.4214138
        %v5995 = vadd.f32 %v5931, 1.4214138
        %v5996 = vadd.f32 %v5932, 1.4214138
        %v5997 = vadd.f32 %v5933, 1.4214138
        %v5998 = vadd.f32 %v5934, 1.4214138
        %v5999 = vadd.f32 %v5935, 1.4214138
        %v6000 = vadd.f32 %v5936, 1.4214138
        %v6001 = vadd.f32 %v5937, 1.4214138
        %v6002 = vadd.f32 %v5938, 1.4214138
        %v6003 = vadd.f32 %v5939, 1.4214138
        %v6004 = vadd.f32 %v5940, 1.4214138
        %v6005 = vadd.f32 %v5941, 1.4214138
        %v6006 = vadd.f32 %v5942, 1.4214138
        %v6007 = vadd.f32 %v5943, 1.4214138
        %v6008 = vadd.f32 %v5944, 1.4214138
        %v6009 = vadd.f32 %v5945, 1.4214138
        %v6010 = vadd.f32 %v5946, 1.4214138
        %v6011 = vadd.f32 %v5947, 1.4214138
        %v6012 = vadd.f32 %v5948, 1.4214138
        %v6013 = vadd.f32 %v5949, 1.4214138
        %v6014 = vadd.f32 %v5950, 1.4214138
        %v6015 = vadd.f32 %v5951, 1.4214138
        %v6016 = vadd.f32 %v5952, 1.4214138
        %v6017 = vadd.f32 %v5953, 1.4214138
        %v6018 = vadd.f32 %v5954, 1.4214138
        %v6019 = vadd.f32 %v5955, 1.4214138
        %v6020 = vadd.f32 %v5956, 1.4214138
        %v6021 = vadd.f32 %v5957, 1.4214138
        %v6022 = vadd.f32 %v5958, 1.4214138
        %v6023 = vadd.f32 %v5959, 1.4214138
        %v6024 = vadd.f32 %v5960, 1.4214138
        %v6025 = vadd.f32 %v5961, 1.4214138
        %v6026 = vadd.f32 %v5962, 1.4214138
        %v6027 = vadd.f32 %v5963, 1.4214138
        %v6028 = vadd.f32 %v5964, 1.4214138
        %v6029 = vadd.f32 %v5965, 1.4214138
        %v6030 = vadd.f32 %v5966, 1.4214138
        %v6031 = vadd.f32 %v5967, 1.4214138
        %v6032 = vadd.f32 %v5968, 1.4214138
        %v6033 = vadd.f32 %v5969, 1.4214138
        %v6034 = vadd.f32 %v5970, 1.4214138
        %v6035 = vadd.f32 %v5971, 1.4214138
        %v6036 = vadd.f32 %v5972, 1.4214138
        %v6037 = vadd.f32 %v5973, 1.4214138
        %v6038 = vadd.f32 %v5974, 1.4214138
        %v6039 = vadd.f32 %v5975, 1.4214138
        %v6040 = vadd.f32 %v5976, 1.4214138
        %v6041 = vadd.f32 %v5977, 1.4214138
        %v6042 = vadd.f32 %v5978, 1.4214138
        %v6043 = vadd.f32 %v5979, 1.4214138
        %v6044 = vadd.f32 %v5980, 1.4214138
        %v6045 = vadd.f32 %v5981, 1.4214138
        %v6046 = vadd.f32 %v5982, 1.4214138
        %v6047 = vadd.f32 %v5983, 1.4214138
        %v6048 = vadd.f32 %v5984, 1.4214138
        %v6049 = vadd.f32 %v5985, 1.4214138
        %v6050 = vadd.f32 %v5986, 1.4214138
        %v6051 = vadd.f32 %v5987, 1.4214138
        %v6052 = vadd.f32 %v5988, 1.4214138
        %v6053 = vadd.f32 %v5989, 1.4214138
        %v6054 = vadd.f32 %v5990, 1.4214138
        %v6055 = vadd.f32 %v5991, 1.4214138
        %v6056 = vadd.f32 %v5992, 1.4214138
        %v6057 = vadd.f32 %v5993, 1.4214138
        %v6058 = vmul.f32 %v5994, %v5675
        %v6059 = vmul.f32 %v5995, %v5677
        %v6060 = vmul.f32 %v5996, %v5679
        %v6061 = vmul.f32 %v5997, %v5681
        %v6062 = vmul.f32 %v5998, %v5683
        %v6063 = vmul.f32 %v5999, %v5685
        %v6064 = vmul.f32 %v6000, %v5687
        %v6065 = vmul.f32 %v6001, %v5689
        %v6066 = vmul.f32 %v6002, %v5691
        %v6067 = vmul.f32 %v6003, %v5693
        %v6068 = vmul.f32 %v6004, %v5695
        %v6069 = vmul.f32 %v6005, %v5697
        %v6070 = vmul.f32 %v6006, %v5699
        %v6071 = vmul.f32 %v6007, %v5701
        %v6072 = vmul.f32 %v6008, %v5703
        %v6073 = vmul.f32 %v6009, %v5705
        %v6074 = vmul.f32 %v6010, %v5707
        %v6075 = vmul.f32 %v6011, %v5709
        %v6076 = vmul.f32 %v6012, %v5711
        %v6077 = vmul.f32 %v6013, %v5713
        %v6078 = vmul.f32 %v6014, %v5715
        %v6079 = vmul.f32 %v6015, %v5717
        %v6080 = vmul.f32 %v6016, %v5719
        %v6081 = vmul.f32 %v6017, %v5721
        %v6082 = vmul.f32 %v6018, %v5723
        %v6083 = vmul.f32 %v6019, %v5725
        %v6084 = vmul.f32 %v6020, %v5727
        %v6085 = vmul.f32 %v6021, %v5729
        %v6086 = vmul.f32 %v6022, %v5731
        %v6087 = vmul.f32 %v6023, %v5733
        %v6088 = vmul.f32 %v6024, %v5735
        %v6089 = vmul.f32 %v6025, %v5737
        %v6090 = vmul.f32 %v6026, %v5739
        %v6091 = vmul.f32 %v6027, %v5741
        %v6092 = vmul.f32 %v6028, %v5743
        %v6093 = vmul.f32 %v6029, %v5745
        %v6094 = vmul.f32 %v6030, %v5747
        %v6095 = vmul.f32 %v6031, %v5749
        %v6096 = vmul.f32 %v6032, %v5751
        %v6097 = vmul.f32 %v6033, %v5753
        %v6098 = vmul.f32 %v6034, %v5755
        %v6099 = vmul.f32 %v6035, %v5757
        %v6100 = vmul.f32 %v6036, %v5759
        %v6101 = vmul.f32 %v6037, %v5761
        %v6102 = vmul.f32 %v6038, %v5763
        %v6103 = vmul.f32 %v6039, %v5765
        %v6104 = vmul.f32 %v6040, %v5767
        %v6105 = vmul.f32 %v6041, %v5769
        %v6106 = vmul.f32 %v6042, %v5771
        %v6107 = vmul.f32 %v6043, %v5773
        %v6108 = vmul.f32 %v6044, %v5775
        %v6109 = vmul.f32 %v6045, %v5777
        %v6110 = vmul.f32 %v6046, %v5779
        %v6111 = vmul.f32 %v6047, %v5781
        %v6112 = vmul.f32 %v6048, %v5783
        %v6113 = vmul.f32 %v6049, %v5785
        %v6114 = vmul.f32 %v6050, %v5787
        %v6115 = vmul.f32 %v6051, %v5789
        %v6116 = vmul.f32 %v6052, %v5791
        %v6117 = vmul.f32 %v6053, %v5793
        %v6118 = vmul.f32 %v6054, %v5795
        %v6119 = vmul.f32 %v6055, %v5797
        %v6120 = vmul.f32 %v6056, %v5799
        %v6121 = vmul.f32 %v6057, %v5801
        %v6122 = vadd.f32 %v6058, -0.28449672
        %v6123 = vadd.f32 %v6059, -0.28449672
        %v6124 = vadd.f32 %v6060, -0.28449672
        %v6125 = vadd.f32 %v6061, -0.28449672
        %v6126 = vadd.f32 %v6062, -0.28449672
        %v6127 = vadd.f32 %v6063, -0.28449672
        %v6128 = vadd.f32 %v6064, -0.28449672
        %v6129 = vadd.f32 %v6065, -0.28449672
        %v6130 = vadd.f32 %v6066, -0.28449672
        %v6131 = vadd.f32 %v6067, -0.28449672
        %v6132 = vadd.f32 %v6068, -0.28449672
        %v6133 = vadd.f32 %v6069, -0.28449672
        %v6134 = vadd.f32 %v6070, -0.28449672
        %v6135 = vadd.f32 %v6071, -0.28449672
        %v6136 = vadd.f32 %v6072, -0.28449672
        %v6137 = vadd.f32 %v6073, -0.28449672
        %v6138 = vadd.f32 %v6074, -0.28449672
        %v6139 = vadd.f32 %v6075, -0.28449672
        %v6140 = vadd.f32 %v6076, -0.28449672
        %v6141 = vadd.f32 %v6077, -0.28449672
        %v6142 = vadd.f32 %v6078, -0.28449672
        %v6143 = vadd.f32 %v6079, -0.28449672
        %v6144 = vadd.f32 %v6080, -0.28449672
        %v6145 = vadd.f32 %v6081, -0.28449672
        %v6146 = vadd.f32 %v6082, -0.28449672
        %v6147 = vadd.f32 %v6083, -0.28449672
        %v6148 = vadd.f32 %v6084, -0.28449672
        %v6149 = vadd.f32 %v6085, -0.28449672
        %v6150 = vadd.f32 %v6086, -0.28449672
        %v6151 = vadd.f32 %v6087, -0.28449672
        %v6152 = vadd.f32 %v6088, -0.28449672
        %v6153 = vadd.f32 %v6089, -0.28449672
        %v6154 = vadd.f32 %v6090, -0.28449672
        %v6155 = vadd.f32 %v6091, -0.28449672
        %v6156 = vadd.f32 %v6092, -0.28449672
        %v6157 = vadd.f32 %v6093, -0.28449672
        %v6158 = vadd.f32 %v6094, -0.28449672
        %v6159 = vadd.f32 %v6095, -0.28449672
        %v6160 = vadd.f32 %v6096, -0.28449672
        %v6161 = vadd.f32 %v6097, -0.28449672
        %v6162 = vadd.f32 %v6098, -0.28449672
        %v6163 = vadd.f32 %v6099, -0.28449672
        %v6164 = vadd.f32 %v6100, -0.28449672
        %v6165 = vadd.f32 %v6101, -0.28449672
        %v6166 = vadd.f32 %v6102, -0.28449672
        %v6167 = vadd.f32 %v6103, -0.28449672
        %v6168 = vadd.f32 %v6104, -0.28449672
        %v6169 = vadd.f32 %v6105, -0.28449672
        %v6170 = vadd.f32 %v6106, -0.28449672
        %v6171 = vadd.f32 %v6107, -0.28449672
        %v6172 = vadd.f32 %v6108, -0.28449672
        %v6173 = vadd.f32 %v6109, -0.28449672
        %v6174 = vadd.f32 %v6110, -0.28449672
        %v6175 = vadd.f32 %v6111, -0.28449672
        %v6176 = vadd.f32 %v6112, -0.28449672
        %v6177 = vadd.f32 %v6113, -0.28449672
        %v6178 = vadd.f32 %v6114, -0.28449672
        %v6179 = vadd.f32 %v6115, -0.28449672
        %v6180 = vadd.f32 %v6116, -0.28449672
        %v6181 = vadd.f32 %v6117, -0.28449672
        %v6182 = vadd.f32 %v6118, -0.28449672
        %v6183 = vadd.f32 %v6119, -0.28449672
        %v6184 = vadd.f32 %v6120, -0.28449672
        %v6185 = vadd.f32 %v6121, -0.28449672
        %v6186 = vmul.f32 %v6122, %v5675
        %v6187 = vmul.f32 %v6123, %v5677
        %v6188 = vmul.f32 %v6124, %v5679
        %v6189 = vmul.f32 %v6125, %v5681
        %v6190 = vmul.f32 %v6126, %v5683
        %v6191 = vmul.f32 %v6127, %v5685
        %v6192 = vmul.f32 %v6128, %v5687
        %v6193 = vmul.f32 %v6129, %v5689
        %v6194 = vmul.f32 %v6130, %v5691
        %v6195 = vmul.f32 %v6131, %v5693
        %v6196 = vmul.f32 %v6132, %v5695
        %v6197 = vmul.f32 %v6133, %v5697
        %v6198 = vmul.f32 %v6134, %v5699
        %v6199 = vmul.f32 %v6135, %v5701
        %v6200 = vmul.f32 %v6136, %v5703
        %v6201 = vmul.f32 %v6137, %v5705
        %v6202 = vmul.f32 %v6138, %v5707
        %v6203 = vmul.f32 %v6139, %v5709
        %v6204 = vmul.f32 %v6140, %v5711
        %v6205 = vmul.f32 %v6141, %v5713
        %v6206 = vmul.f32 %v6142, %v5715
        %v6207 = vmul.f32 %v6143, %v5717
        %v6208 = vmul.f32 %v6144, %v5719
        %v6209 = vmul.f32 %v6145, %v5721
        %v6210 = vmul.f32 %v6146, %v5723
        %v6211 = vmul.f32 %v6147, %v5725
        %v6212 = vmul.f32 %v6148, %v5727
        %v6213 = vmul.f32 %v6149, %v5729
        %v6214 = vmul.f32 %v6150, %v5731
        %v6215 = vmul.f32 %v6151, %v5733
        %v6216 = vmul.f32 %v6152, %v5735
        %v6217 = vmul.f32 %v6153, %v5737
        %v6218 = vmul.f32 %v6154, %v5739
        %v6219 = vmul.f32 %v6155, %v5741
        %v6220 = vmul.f32 %v6156, %v5743
        %v6221 = vmul.f32 %v6157, %v5745
        %v6222 = vmul.f32 %v6158, %v5747
        %v6223 = vmul.f32 %v6159, %v5749
        %v6224 = vmul.f32 %v6160, %v5751
        %v6225 = vmul.f32 %v6161, %v5753
        %v6226 = vmul.f32 %v6162, %v5755
        %v6227 = vmul.f32 %v6163, %v5757
        %v6228 = vmul.f32 %v6164, %v5759
        %v6229 = vmul.f32 %v6165, %v5761
        %v6230 = vmul.f32 %v6166, %v5763
        %v6231 = vmul.f32 %v6167, %v5765
        %v6232 = vmul.f32 %v6168, %v5767
        %v6233 = vmul.f32 %v6169, %v5769
        %v6234 = vmul.f32 %v6170, %v5771
        %v6235 = vmul.f32 %v6171, %v5773
        %v6236 = vmul.f32 %v6172, %v5775
        %v6237 = vmul.f32 %v6173, %v5777
        %v6238 = vmul.f32 %v6174, %v5779
        %v6239 = vmul.f32 %v6175, %v5781
        %v6240 = vmul.f32 %v6176, %v5783
        %v6241 = vmul.f32 %v6177, %v5785
        %v6242 = vmul.f32 %v6178, %v5787
        %v6243 = vmul.f32 %v6179, %v5789
        %v6244 = vmul.f32 %v6180, %v5791
        %v6245 = vmul.f32 %v6181, %v5793
        %v6246 = vmul.f32 %v6182, %v5795
        %v6247 = vmul.f32 %v6183, %v5797
        %v6248 = vmul.f32 %v6184, %v5799
        %v6249 = vmul.f32 %v6185, %v5801
        %v6250 = vadd.f32 %v6186, 0.2548296
        %v6251 = vadd.f32 %v6187, 0.2548296
        %v6252 = vadd.f32 %v6188, 0.2548296
        %v6253 = vadd.f32 %v6189, 0.2548296
        %v6254 = vadd.f32 %v6190, 0.2548296
        %v6255 = vadd.f32 %v6191, 0.2548296
        %v6256 = vadd.f32 %v6192, 0.2548296
        %v6257 = vadd.f32 %v6193, 0.2548296
        %v6258 = vadd.f32 %v6194, 0.2548296
        %v6259 = vadd.f32 %v6195, 0.2548296
        %v6260 = vadd.f32 %v6196, 0.2548296
        %v6261 = vadd.f32 %v6197, 0.2548296
        %v6262 = vadd.f32 %v6198, 0.2548296
        %v6263 = vadd.f32 %v6199, 0.2548296
        %v6264 = vadd.f32 %v6200, 0.2548296
        %v6265 = vadd.f32 %v6201, 0.2548296
        %v6266 = vadd.f32 %v6202, 0.2548296
        %v6267 = vadd.f32 %v6203, 0.2548296
        %v6268 = vadd.f32 %v6204, 0.2548296
        %v6269 = vadd.f32 %v6205, 0.2548296
        %v6270 = vadd.f32 %v6206, 0.2548296
        %v6271 = vadd.f32 %v6207, 0.2548296
        %v6272 = vadd.f32 %v6208, 0.2548296
        %v6273 = vadd.f32 %v6209, 0.2548296
        %v6274 = vadd.f32 %v6210, 0.2548296
        %v6275 = vadd.f32 %v6211, 0.2548296
        %v6276 = vadd.f32 %v6212, 0.2548296
        %v6277 = vadd.f32 %v6213, 0.2548296
        %v6278 = vadd.f32 %v6214, 0.2548296
        %v6279 = vadd.f32 %v6215, 0.2548296
        %v6280 = vadd.f32 %v6216, 0.2548296
        %v6281 = vadd.f32 %v6217, 0.2548296
        %v6282 = vadd.f32 %v6218, 0.2548296
        %v6283 = vadd.f32 %v6219, 0.2548296
        %v6284 = vadd.f32 %v6220, 0.2548296
        %v6285 = vadd.f32 %v6221, 0.2548296
        %v6286 = vadd.f32 %v6222, 0.2548296
        %v6287 = vadd.f32 %v6223, 0.2548296
        %v6288 = vadd.f32 %v6224, 0.2548296
        %v6289 = vadd.f32 %v6225, 0.2548296
        %v6290 = vadd.f32 %v6226, 0.2548296
        %v6291 = vadd.f32 %v6227, 0.2548296
        %v6292 = vadd.f32 %v6228, 0.2548296
        %v6293 = vadd.f32 %v6229, 0.2548296
        %v6294 = vadd.f32 %v6230, 0.2548296
        %v6295 = vadd.f32 %v6231, 0.2548296
        %v6296 = vadd.f32 %v6232, 0.2548296
        %v6297 = vadd.f32 %v6233, 0.2548296
        %v6298 = vadd.f32 %v6234, 0.2548296
        %v6299 = vadd.f32 %v6235, 0.2548296
        %v6300 = vadd.f32 %v6236, 0.2548296
        %v6301 = vadd.f32 %v6237, 0.2548296
        %v6302 = vadd.f32 %v6238, 0.2548296
        %v6303 = vadd.f32 %v6239, 0.2548296
        %v6304 = vadd.f32 %v6240, 0.2548296
        %v6305 = vadd.f32 %v6241, 0.2548296
        %v6306 = vadd.f32 %v6242, 0.2548296
        %v6307 = vadd.f32 %v6243, 0.2548296
        %v6308 = vadd.f32 %v6244, 0.2548296
        %v6309 = vadd.f32 %v6245, 0.2548296
        %v6310 = vadd.f32 %v6246, 0.2548296
        %v6311 = vadd.f32 %v6247, 0.2548296
        %v6312 = vadd.f32 %v6248, 0.2548296
        %v6313 = vadd.f32 %v6249, 0.2548296
        %v6314 = vmul.f32 %v6250, %v5675
        %v6315 = vmul.f32 %v6251, %v5677
        %v6316 = vmul.f32 %v6252, %v5679
        %v6317 = vmul.f32 %v6253, %v5681
        %v6318 = vmul.f32 %v6254, %v5683
        %v6319 = vmul.f32 %v6255, %v5685
        %v6320 = vmul.f32 %v6256, %v5687
        %v6321 = vmul.f32 %v6257, %v5689
        %v6322 = vmul.f32 %v6258, %v5691
        %v6323 = vmul.f32 %v6259, %v5693
        %v6324 = vmul.f32 %v6260, %v5695
        %v6325 = vmul.f32 %v6261, %v5697
        %v6326 = vmul.f32 %v6262, %v5699
        %v6327 = vmul.f32 %v6263, %v5701
        %v6328 = vmul.f32 %v6264, %v5703
        %v6329 = vmul.f32 %v6265, %v5705
        %v6330 = vmul.f32 %v6266, %v5707
        %v6331 = vmul.f32 %v6267, %v5709
        %v6332 = vmul.f32 %v6268, %v5711
        %v6333 = vmul.f32 %v6269, %v5713
        %v6334 = vmul.f32 %v6270, %v5715
        %v6335 = vmul.f32 %v6271, %v5717
        %v6336 = vmul.f32 %v6272, %v5719
        %v6337 = vmul.f32 %v6273, %v5721
        %v6338 = vmul.f32 %v6274, %v5723
        %v6339 = vmul.f32 %v6275, %v5725
        %v6340 = vmul.f32 %v6276, %v5727
        %v6341 = vmul.f32 %v6277, %v5729
        %v6342 = vmul.f32 %v6278, %v5731
        %v6343 = vmul.f32 %v6279, %v5733
        %v6344 = vmul.f32 %v6280, %v5735
        %v6345 = vmul.f32 %v6281, %v5737
        %v6346 = vmul.f32 %v6282, %v5739
        %v6347 = vmul.f32 %v6283, %v5741
        %v6348 = vmul.f32 %v6284, %v5743
        %v6349 = vmul.f32 %v6285, %v5745
        %v6350 = vmul.f32 %v6286, %v5747
        %v6351 = vmul.f32 %v6287, %v5749
        %v6352 = vmul.f32 %v6288, %v5751
        %v6353 = vmul.f32 %v6289, %v5753
        %v6354 = vmul.f32 %v6290, %v5755
        %v6355 = vmul.f32 %v6291, %v5757
        %v6356 = vmul.f32 %v6292, %v5759
        %v6357 = vmul.f32 %v6293, %v5761
        %v6358 = vmul.f32 %v6294, %v5763
        %v6359 = vmul.f32 %v6295, %v5765
        %v6360 = vmul.f32 %v6296, %v5767
        %v6361 = vmul.f32 %v6297, %v5769
        %v6362 = vmul.f32 %v6298, %v5771
        %v6363 = vmul.f32 %v6299, %v5773
        %v6364 = vmul.f32 %v6300, %v5775
        %v6365 = vmul.f32 %v6301, %v5777
        %v6366 = vmul.f32 %v6302, %v5779
        %v6367 = vmul.f32 %v6303, %v5781
        %v6368 = vmul.f32 %v6304, %v5783
        %v6369 = vmul.f32 %v6305, %v5785
        %v6370 = vmul.f32 %v6306, %v5787
        %v6371 = vmul.f32 %v6307, %v5789
        %v6372 = vmul.f32 %v6308, %v5791
        %v6373 = vmul.f32 %v6309, %v5793
        %v6374 = vmul.f32 %v6310, %v5795
        %v6375 = vmul.f32 %v6311, %v5797
        %v6376 = vmul.f32 %v6312, %v5799
        %v6377 = vmul.f32 %v6313, %v5801
        %v6378 = vsub.f32 0.0, %v5482
        %v6379 = vsub.f32 0.0, %v5483
        %v6380 = vsub.f32 0.0, %v5484
        %v6381 = vsub.f32 0.0, %v5485
        %v6382 = vsub.f32 0.0, %v5486
        %v6383 = vsub.f32 0.0, %v5487
        %v6384 = vsub.f32 0.0, %v5488
        %v6385 = vsub.f32 0.0, %v5489
        %v6386 = vsub.f32 0.0, %v5490
        %v6387 = vsub.f32 0.0, %v5491
        %v6388 = vsub.f32 0.0, %v5492
        %v6389 = vsub.f32 0.0, %v5493
        %v6390 = vsub.f32 0.0, %v5494
        %v6391 = vsub.f32 0.0, %v5495
        %v6392 = vsub.f32 0.0, %v5496
        %v6393 = vsub.f32 0.0, %v5497
        %v6394 = vsub.f32 0.0, %v5498
        %v6395 = vsub.f32 0.0, %v5499
        %v6396 = vsub.f32 0.0, %v5500
        %v6397 = vsub.f32 0.0, %v5501
        %v6398 = vsub.f32 0.0, %v5502
        %v6399 = vsub.f32 0.0, %v5503
        %v6400 = vsub.f32 0.0, %v5504
        %v6401 = vsub.f32 0.0, %v5505
        %v6402 = vsub.f32 0.0, %v5506
        %v6403 = vsub.f32 0.0, %v5507
        %v6404 = vsub.f32 0.0, %v5508
        %v6405 = vsub.f32 0.0, %v5509
        %v6406 = vsub.f32 0.0, %v5510
        %v6407 = vsub.f32 0.0, %v5511
        %v6408 = vsub.f32 0.0, %v5512
        %v6409 = vsub.f32 0.0, %v5513
        %v6410 = vsub.f32 0.0, %v5514
        %v6411 = vsub.f32 0.0, %v5515
        %v6412 = vsub.f32 0.0, %v5516
        %v6413 = vsub.f32 0.0, %v5517
        %v6414 = vsub.f32 0.0, %v5518
        %v6415 = vsub.f32 0.0, %v5519
        %v6416 = vsub.f32 0.0, %v5520
        %v6417 = vsub.f32 0.0, %v5521
        %v6418 = vsub.f32 0.0, %v5522
        %v6419 = vsub.f32 0.0, %v5523
        %v6420 = vsub.f32 0.0, %v5524
        %v6421 = vsub.f32 0.0, %v5525
        %v6422 = vsub.f32 0.0, %v5526
        %v6423 = vsub.f32 0.0, %v5527
        %v6424 = vsub.f32 0.0, %v5528
        %v6425 = vsub.f32 0.0, %v5529
        %v6426 = vsub.f32 0.0, %v5530
        %v6427 = vsub.f32 0.0, %v5531
        %v6428 = vsub.f32 0.0, %v5532
        %v6429 = vsub.f32 0.0, %v5533
        %v6430 = vsub.f32 0.0, %v5534
        %v6431 = vsub.f32 0.0, %v5535
        %v6432 = vsub.f32 0.0, %v5536
        %v6433 = vsub.f32 0.0, %v5537
        %v6434 = vsub.f32 0.0, %v5538
        %v6435 = vsub.f32 0.0, %v5539
        %v6436 = vsub.f32 0.0, %v5540
        %v6437 = vsub.f32 0.0, %v5541
        %v6438 = vsub.f32 0.0, %v5542
        %v6439 = vsub.f32 0.0, %v5543
        %v6440 = vsub.f32 0.0, %v5544
        %v6441 = vsub.f32 0.0, %v5545
        %v6442 = vmul.f32 %v6378, %v5482
        %v6443 = vmul.f32 %v6379, %v5483
        %v6444 = vmul.f32 %v6380, %v5484
        %v6445 = vmul.f32 %v6381, %v5485
        %v6446 = vmul.f32 %v6382, %v5486
        %v6447 = vmul.f32 %v6383, %v5487
        %v6448 = vmul.f32 %v6384, %v5488
        %v6449 = vmul.f32 %v6385, %v5489
        %v6450 = vmul.f32 %v6386, %v5490
        %v6451 = vmul.f32 %v6387, %v5491
        %v6452 = vmul.f32 %v6388, %v5492
        %v6453 = vmul.f32 %v6389, %v5493
        %v6454 = vmul.f32 %v6390, %v5494
        %v6455 = vmul.f32 %v6391, %v5495
        %v6456 = vmul.f32 %v6392, %v5496
        %v6457 = vmul.f32 %v6393, %v5497
        %v6458 = vmul.f32 %v6394, %v5498
        %v6459 = vmul.f32 %v6395, %v5499
        %v6460 = vmul.f32 %v6396, %v5500
        %v6461 = vmul.f32 %v6397, %v5501
        %v6462 = vmul.f32 %v6398, %v5502
        %v6463 = vmul.f32 %v6399, %v5503
        %v6464 = vmul.f32 %v6400, %v5504
        %v6465 = vmul.f32 %v6401, %v5505
        %v6466 = vmul.f32 %v6402, %v5506
        %v6467 = vmul.f32 %v6403, %v5507
        %v6468 = vmul.f32 %v6404, %v5508
        %v6469 = vmul.f32 %v6405, %v5509
        %v6470 = vmul.f32 %v6406, %v5510
        %v6471 = vmul.f32 %v6407, %v5511
        %v6472 = vmul.f32 %v6408, %v5512
        %v6473 = vmul.f32 %v6409, %v5513
        %v6474 = vmul.f32 %v6410, %v5514
        %v6475 = vmul.f32 %v6411, %v5515
        %v6476 = vmul.f32 %v6412, %v5516
        %v6477 = vmul.f32 %v6413, %v5517
        %v6478 = vmul.f32 %v6414, %v5518
        %v6479 = vmul.f32 %v6415, %v5519
        %v6480 = vmul.f32 %v6416, %v5520
        %v6481 = vmul.f32 %v6417, %v5521
        %v6482 = vmul.f32 %v6418, %v5522
        %v6483 = vmul.f32 %v6419, %v5523
        %v6484 = vmul.f32 %v6420, %v5524
        %v6485 = vmul.f32 %v6421, %v5525
        %v6486 = vmul.f32 %v6422, %v5526
        %v6487 = vmul.f32 %v6423, %v5527
        %v6488 = vmul.f32 %v6424, %v5528
        %v6489 = vmul.f32 %v6425, %v5529
        %v6490 = vmul.f32 %v6426, %v5530
        %v6491 = vmul.f32 %v6427, %v5531
        %v6492 = vmul.f32 %v6428, %v5532
        %v6493 = vmul.f32 %v6429, %v5533
        %v6494 = vmul.f32 %v6430, %v5534
        %v6495 = vmul.f32 %v6431, %v5535
        %v6496 = vmul.f32 %v6432, %v5536
        %v6497 = vmul.f32 %v6433, %v5537
        %v6498 = vmul.f32 %v6434, %v5538
        %v6499 = vmul.f32 %v6435, %v5539
        %v6500 = vmul.f32 %v6436, %v5540
        %v6501 = vmul.f32 %v6437, %v5541
        %v6502 = vmul.f32 %v6438, %v5542
        %v6503 = vmul.f32 %v6439, %v5543
        %v6504 = vmul.f32 %v6440, %v5544
        %v6505 = vmul.f32 %v6441, %v5545
        %v6506 = vmul.f32 %v6442, 1.442695
        %v6507 = vpow.pop %v6506
        %v6508 = vmul.f32 %v6443, 1.442695
        %v6509 = vpow.pop %v6508
        %v6510 = vmul.f32 %v6444, 1.442695
        %v6511 = vpow.pop %v6510
        %v6512 = vmul.f32 %v6445, 1.442695
        %v6513 = vpow.pop %v6512
        %v6514 = vmul.f32 %v6446, 1.442695
        %v6515 = vpow.pop %v6514
        %v6516 = vmul.f32 %v6447, 1.442695
        %v6517 = vpow.pop %v6516
        %v6518 = vmul.f32 %v6448, 1.442695
        %v6519 = vpow.pop %v6518
        %v6520 = vmul.f32 %v6449, 1.442695
        %v6521 = vpow.pop %v6520
        %v6522 = vmul.f32 %v6450, 1.442695
        %v6523 = vpow.pop %v6522
        %v6524 = vmul.f32 %v6451, 1.442695
        %v6525 = vpow.pop %v6524
        %v6526 = vmul.f32 %v6452, 1.442695
        %v6527 = vpow.pop %v6526
        %v6528 = vmul.f32 %v6453, 1.442695
        %v6529 = vpow.pop %v6528
        %v6530 = vmul.f32 %v6454, 1.442695
        %v6531 = vpow.pop %v6530
        %v6532 = vmul.f32 %v6455, 1.442695
        %v6533 = vpow.pop %v6532
        %v6534 = vmul.f32 %v6456, 1.442695
        %v6535 = vpow.pop %v6534
        %v6536 = vmul.f32 %v6457, 1.442695
        %v6537 = vpow.pop %v6536
        %v6538 = vmul.f32 %v6458, 1.442695
        %v6539 = vpow.pop %v6538
        %v6540 = vmul.f32 %v6459, 1.442695
        %v6541 = vpow.pop %v6540
        %v6542 = vmul.f32 %v6460, 1.442695
        %v6543 = vpow.pop %v6542
        %v6544 = vmul.f32 %v6461, 1.442695
        %v6545 = vpow.pop %v6544
        %v6546 = vmul.f32 %v6462, 1.442695
        %v6547 = vpow.pop %v6546
        %v6548 = vmul.f32 %v6463, 1.442695
        %v6549 = vpow.pop %v6548
        %v6550 = vmul.f32 %v6464, 1.442695
        %v6551 = vpow.pop %v6550
        %v6552 = vmul.f32 %v6465, 1.442695
        %v6553 = vpow.pop %v6552
        %v6554 = vmul.f32 %v6466, 1.442695
        %v6555 = vpow.pop %v6554
        %v6556 = vmul.f32 %v6467, 1.442695
        %v6557 = vpow.pop %v6556
        %v6558 = vmul.f32 %v6468, 1.442695
        %v6559 = vpow.pop %v6558
        %v6560 = vmul.f32 %v6469, 1.442695
        %v6561 = vpow.pop %v6560
        %v6562 = vmul.f32 %v6470, 1.442695
        %v6563 = vpow.pop %v6562
        %v6564 = vmul.f32 %v6471, 1.442695
        %v6565 = vpow.pop %v6564
        %v6566 = vmul.f32 %v6472, 1.442695
        %v6567 = vpow.pop %v6566
        %v6568 = vmul.f32 %v6473, 1.442695
        %v6569 = vpow.pop %v6568
        %v6570 = vmul.f32 %v6474, 1.442695
        %v6571 = vpow.pop %v6570
        %v6572 = vmul.f32 %v6475, 1.442695
        %v6573 = vpow.pop %v6572
        %v6574 = vmul.f32 %v6476, 1.442695
        %v6575 = vpow.pop %v6574
        %v6576 = vmul.f32 %v6477, 1.442695
        %v6577 = vpow.pop %v6576
        %v6578 = vmul.f32 %v6478, 1.442695
        %v6579 = vpow.pop %v6578
        %v6580 = vmul.f32 %v6479, 1.442695
        %v6581 = vpow.pop %v6580
        %v6582 = vmul.f32 %v6480, 1.442695
        %v6583 = vpow.pop %v6582
        %v6584 = vmul.f32 %v6481, 1.442695
        %v6585 = vpow.pop %v6584
        %v6586 = vmul.f32 %v6482, 1.442695
        %v6587 = vpow.pop %v6586
        %v6588 = vmul.f32 %v6483, 1.442695
        %v6589 = vpow.pop %v6588
        %v6590 = vmul.f32 %v6484, 1.442695
        %v6591 = vpow.pop %v6590
        %v6592 = vmul.f32 %v6485, 1.442695
        %v6593 = vpow.pop %v6592
        %v6594 = vmul.f32 %v6486, 1.442695
        %v6595 = vpow.pop %v6594
        %v6596 = vmul.f32 %v6487, 1.442695
        %v6597 = vpow.pop %v6596
        %v6598 = vmul.f32 %v6488, 1.442695
        %v6599 = vpow.pop %v6598
        %v6600 = vmul.f32 %v6489, 1.442695
        %v6601 = vpow.pop %v6600
        %v6602 = vmul.f32 %v6490, 1.442695
        %v6603 = vpow.pop %v6602
        %v6604 = vmul.f32 %v6491, 1.442695
        %v6605 = vpow.pop %v6604
        %v6606 = vmul.f32 %v6492, 1.442695
        %v6607 = vpow.pop %v6606
        %v6608 = vmul.f32 %v6493, 1.442695
        %v6609 = vpow.pop %v6608
        %v6610 = vmul.f32 %v6494, 1.442695
        %v6611 = vpow.pop %v6610
        %v6612 = vmul.f32 %v6495, 1.442695
        %v6613 = vpow.pop %v6612
        %v6614 = vmul.f32 %v6496, 1.442695
        %v6615 = vpow.pop %v6614
        %v6616 = vmul.f32 %v6497, 1.442695
        %v6617 = vpow.pop %v6616
        %v6618 = vmul.f32 %v6498, 1.442695
        %v6619 = vpow.pop %v6618
        %v6620 = vmul.f32 %v6499, 1.442695
        %v6621 = vpow.pop %v6620
        %v6622 = vmul.f32 %v6500, 1.442695
        %v6623 = vpow.pop %v6622
        %v6624 = vmul.f32 %v6501, 1.442695
        %v6625 = vpow.pop %v6624
        %v6626 = vmul.f32 %v6502, 1.442695
        %v6627 = vpow.pop %v6626
        %v6628 = vmul.f32 %v6503, 1.442695
        %v6629 = vpow.pop %v6628
        %v6630 = vmul.f32 %v6504, 1.442695
        %v6631 = vpow.pop %v6630
        %v6632 = vmul.f32 %v6505, 1.442695
        %v6633 = vpow.pop %v6632
        %v6634 = vmul.f32 %v6314, %v6507
        %v6635 = vmul.f32 %v6315, %v6509
        %v6636 = vmul.f32 %v6316, %v6511
        %v6637 = vmul.f32 %v6317, %v6513
        %v6638 = vmul.f32 %v6318, %v6515
        %v6639 = vmul.f32 %v6319, %v6517
        %v6640 = vmul.f32 %v6320, %v6519
        %v6641 = vmul.f32 %v6321, %v6521
        %v6642 = vmul.f32 %v6322, %v6523
        %v6643 = vmul.f32 %v6323, %v6525
        %v6644 = vmul.f32 %v6324, %v6527
        %v6645 = vmul.f32 %v6325, %v6529
        %v6646 = vmul.f32 %v6326, %v6531
        %v6647 = vmul.f32 %v6327, %v6533
        %v6648 = vmul.f32 %v6328, %v6535
        %v6649 = vmul.f32 %v6329, %v6537
        %v6650 = vmul.f32 %v6330, %v6539
        %v6651 = vmul.f32 %v6331, %v6541
        %v6652 = vmul.f32 %v6332, %v6543
        %v6653 = vmul.f32 %v6333, %v6545
        %v6654 = vmul.f32 %v6334, %v6547
        %v6655 = vmul.f32 %v6335, %v6549
        %v6656 = vmul.f32 %v6336, %v6551
        %v6657 = vmul.f32 %v6337, %v6553
        %v6658 = vmul.f32 %v6338, %v6555
        %v6659 = vmul.f32 %v6339, %v6557
        %v6660 = vmul.f32 %v6340, %v6559
        %v6661 = vmul.f32 %v6341, %v6561
        %v6662 = vmul.f32 %v6342, %v6563
        %v6663 = vmul.f32 %v6343, %v6565
        %v6664 = vmul.f32 %v6344, %v6567
        %v6665 = vmul.f32 %v6345, %v6569
        %v6666 = vmul.f32 %v6346, %v6571
        %v6667 = vmul.f32 %v6347, %v6573
        %v6668 = vmul.f32 %v6348, %v6575
        %v6669 = vmul.f32 %v6349, %v6577
        %v6670 = vmul.f32 %v6350, %v6579
        %v6671 = vmul.f32 %v6351, %v6581
        %v6672 = vmul.f32 %v6352, %v6583
        %v6673 = vmul.f32 %v6353, %v6585
        %v6674 = vmul.f32 %v6354, %v6587
        %v6675 = vmul.f32 %v6355, %v6589
        %v6676 = vmul.f32 %v6356, %v6591
        %v6677 = vmul.f32 %v6357, %v6593
        %v6678 = vmul.f32 %v6358, %v6595
        %v6679 = vmul.f32 %v6359, %v6597
        %v6680 = vmul.f32 %v6360, %v6599
        %v6681 = vmul.f32 %v6361, %v6601
        %v6682 = vmul.f32 %v6362, %v6603
        %v6683 = vmul.f32 %v6363, %v6605
        %v6684 = vmul.f32 %v6364, %v6607
        %v6685 = vmul.f32 %v6365, %v6609
        %v6686 = vmul.f32 %v6366, %v6611
        %v6687 = vmul.f32 %v6367, %v6613
        %v6688 = vmul.f32 %v6368, %v6615
        %v6689 = vmul.f32 %v6369, %v6617
        %v6690 = vmul.f32 %v6370, %v6619
        %v6691 = vmul.f32 %v6371, %v6621
        %v6692 = vmul.f32 %v6372, %v6623
        %v6693 = vmul.f32 %v6373, %v6625
        %v6694 = vmul.f32 %v6374, %v6627
        %v6695 = vmul.f32 %v6375, %v6629
        %v6696 = vmul.f32 %v6376, %v6631
        %v6697 = vmul.f32 %v6377, %v6633
        %v6698 = vsub.f32 1.0, %v6634
        %v6699 = vsub.f32 1.0, %v6635
        %v6700 = vsub.f32 1.0, %v6636
        %v6701 = vsub.f32 1.0, %v6637
        %v6702 = vsub.f32 1.0, %v6638
        %v6703 = vsub.f32 1.0, %v6639
        %v6704 = vsub.f32 1.0, %v6640
        %v6705 = vsub.f32 1.0, %v6641
        %v6706 = vsub.f32 1.0, %v6642
        %v6707 = vsub.f32 1.0, %v6643
        %v6708 = vsub.f32 1.0, %v6644
        %v6709 = vsub.f32 1.0, %v6645
        %v6710 = vsub.f32 1.0, %v6646
        %v6711 = vsub.f32 1.0, %v6647
        %v6712 = vsub.f32 1.0, %v6648
        %v6713 = vsub.f32 1.0, %v6649
        %v6714 = vsub.f32 1.0, %v6650
        %v6715 = vsub.f32 1.0, %v6651
        %v6716 = vsub.f32 1.0, %v6652
        %v6717 = vsub.f32 1.0, %v6653
        %v6718 = vsub.f32 1.0, %v6654
        %v6719 = vsub.f32 1.0, %v6655
        %v6720 = vsub.f32 1.0, %v6656
        %v6721 = vsub.f32 1.0, %v6657
        %v6722 = vsub.f32 1.0, %v6658
        %v6723 = vsub.f32 1.0, %v6659
        %v6724 = vsub.f32 1.0, %v6660
        %v6725 = vsub.f32 1.0, %v6661
        %v6726 = vsub.f32 1.0, %v6662
        %v6727 = vsub.f32 1.0, %v6663
        %v6728 = vsub.f32 1.0, %v6664
        %v6729 = vsub.f32 1.0, %v6665
        %v6730 = vsub.f32 1.0, %v6666
        %v6731 = vsub.f32 1.0, %v6667
        %v6732 = vsub.f32 1.0, %v6668
        %v6733 = vsub.f32 1.0, %v6669
        %v6734 = vsub.f32 1.0, %v6670
        %v6735 = vsub.f32 1.0, %v6671
        %v6736 = vsub.f32 1.0, %v6672
        %v6737 = vsub.f32 1.0, %v6673
        %v6738 = vsub.f32 1.0, %v6674
        %v6739 = vsub.f32 1.0, %v6675
        %v6740 = vsub.f32 1.0, %v6676
        %v6741 = vsub.f32 1.0, %v6677
        %v6742 = vsub.f32 1.0, %v6678
        %v6743 = vsub.f32 1.0, %v6679
        %v6744 = vsub.f32 1.0, %v6680
        %v6745 = vsub.f32 1.0, %v6681
        %v6746 = vsub.f32 1.0, %v6682
        %v6747 = vsub.f32 1.0, %v6683
        %v6748 = vsub.f32 1.0, %v6684
        %v6749 = vsub.f32 1.0, %v6685
        %v6750 = vsub.f32 1.0, %v6686
        %v6751 = vsub.f32 1.0, %v6687
        %v6752 = vsub.f32 1.0, %v6688
        %v6753 = vsub.f32 1.0, %v6689
        %v6754 = vsub.f32 1.0, %v6690
        %v6755 = vsub.f32 1.0, %v6691
        %v6756 = vsub.f32 1.0, %v6692
        %v6757 = vsub.f32 1.0, %v6693
        %v6758 = vsub.f32 1.0, %v6694
        %v6759 = vsub.f32 1.0, %v6695
        %v6760 = vsub.f32 1.0, %v6696
        %v6761 = vsub.f32 1.0, %v6697
        %vm6762 = vcmp.ge.f32.partialorder %v5418, 0.0
        %vm6763 = vcmp.ge.f32.partialorder %v5419, 0.0
        %vm6764 = vcmp.ge.f32.partialorder %v5420, 0.0
        %vm6765 = vcmp.ge.f32.partialorder %v5421, 0.0
        %vm6766 = vcmp.ge.f32.partialorder %v5422, 0.0
        %vm6767 = vcmp.ge.f32.partialorder %v5423, 0.0
        %vm6768 = vcmp.ge.f32.partialorder %v5424, 0.0
        %vm6769 = vcmp.ge.f32.partialorder %v5425, 0.0
        %vm6770 = vcmp.ge.f32.partialorder %v5426, 0.0
        %vm6771 = vcmp.ge.f32.partialorder %v5427, 0.0
        %vm6772 = vcmp.ge.f32.partialorder %v5428, 0.0
        %vm6773 = vcmp.ge.f32.partialorder %v5429, 0.0
        %vm6774 = vcmp.ge.f32.partialorder %v5430, 0.0
        %vm6775 = vcmp.ge.f32.partialorder %v5431, 0.0
        %vm6776 = vcmp.ge.f32.partialorder %v5432, 0.0
        %vm6777 = vcmp.ge.f32.partialorder %v5433, 0.0
        %vm6778 = vcmp.ge.f32.partialorder %v5434, 0.0
        %vm6779 = vcmp.ge.f32.partialorder %v5435, 0.0
        %vm6780 = vcmp.ge.f32.partialorder %v5436, 0.0
        %vm6781 = vcmp.ge.f32.partialorder %v5437, 0.0
        %vm6782 = vcmp.ge.f32.partialorder %v5438, 0.0
        %vm6783 = vcmp.ge.f32.partialorder %v5439, 0.0
        %vm6784 = vcmp.ge.f32.partialorder %v5440, 0.0
        %vm6785 = vcmp.ge.f32.partialorder %v5441, 0.0
        %vm6786 = vcmp.ge.f32.partialorder %v5442, 0.0
        %vm6787 = vcmp.ge.f32.partialorder %v5443, 0.0
        %vm6788 = vcmp.ge.f32.partialorder %v5444, 0.0
        %vm6789 = vcmp.ge.f32.partialorder %v5445, 0.0
        %vm6790 = vcmp.ge.f32.partialorder %v5446, 0.0
        %vm6791 = vcmp.ge.f32.partialorder %v5447, 0.0
        %vm6792 = vcmp.ge.f32.partialorder %v5448, 0.0
        %vm6793 = vcmp.ge.f32.partialorder %v5449, 0.0
        %vm6794 = vcmp.ge.f32.partialorder %v5450, 0.0
        %vm6795 = vcmp.ge.f32.partialorder %v5451, 0.0
        %vm6796 = vcmp.ge.f32.partialorder %v5452, 0.0
        %vm6797 = vcmp.ge.f32.partialorder %v5453, 0.0
        %vm6798 = vcmp.ge.f32.partialorder %v5454, 0.0
        %vm6799 = vcmp.ge.f32.partialorder %v5455, 0.0
        %vm6800 = vcmp.ge.f32.partialorder %v5456, 0.0
        %vm6801 = vcmp.ge.f32.partialorder %v5457, 0.0
        %vm6802 = vcmp.ge.f32.partialorder %v5458, 0.0
        %vm6803 = vcmp.ge.f32.partialorder %v5459, 0.0
        %vm6804 = vcmp.ge.f32.partialorder %v5460, 0.0
        %vm6805 = vcmp.ge.f32.partialorder %v5461, 0.0
        %vm6806 = vcmp.ge.f32.partialorder %v5462, 0.0
        %vm6807 = vcmp.ge.f32.partialorder %v5463, 0.0
        %vm6808 = vcmp.ge.f32.partialorder %v5464, 0.0
        %vm6809 = vcmp.ge.f32.partialorder %v5465, 0.0
        %vm6810 = vcmp.ge.f32.partialorder %v5466, 0.0
        %vm6811 = vcmp.ge.f32.partialorder %v5467, 0.0
        %vm6812 = vcmp.ge.f32.partialorder %v5468, 0.0
        %vm6813 = vcmp.ge.f32.partialorder %v5469, 0.0
        %vm6814 = vcmp.ge.f32.partialorder %v5470, 0.0
        %vm6815 = vcmp.ge.f32.partialorder %v5471, 0.0
        %vm6816 = vcmp.ge.f32.partialorder %v5472, 0.0
        %vm6817 = vcmp.ge.f32.partialorder %v5473, 0.0
        %vm6818 = vcmp.ge.f32.partialorder %v5474, 0.0
        %vm6819 = vcmp.ge.f32.partialorder %v5475, 0.0
        %vm6820 = vcmp.ge.f32.partialorder %v5476, 0.0
        %vm6821 = vcmp.ge.f32.partialorder %v5477, 0.0
        %vm6822 = vcmp.ge.f32.partialorder %v5478, 0.0
        %vm6823 = vcmp.ge.f32.partialorder %v5479, 0.0
        %vm6824 = vcmp.ge.f32.partialorder %v5480, 0.0
        %vm6825 = vcmp.ge.f32.partialorder %v5481, 0.0
        %v6826 = vsub.f32 0.0, %v6698
        %v6827 = vsub.f32 0.0, %v6699
        %v6828 = vsub.f32 0.0, %v6700
        %v6829 = vsub.f32 0.0, %v6701
        %v6830 = vsub.f32 0.0, %v6702
        %v6831 = vsub.f32 0.0, %v6703
        %v6832 = vsub.f32 0.0, %v6704
        %v6833 = vsub.f32 0.0, %v6705
        %v6834 = vsub.f32 0.0, %v6706
        %v6835 = vsub.f32 0.0, %v6707
        %v6836 = vsub.f32 0.0, %v6708
        %v6837 = vsub.f32 0.0, %v6709
        %v6838 = vsub.f32 0.0, %v6710
        %v6839 = vsub.f32 0.0, %v6711
        %v6840 = vsub.f32 0.0, %v6712
        %v6841 = vsub.f32 0.0, %v6713
        %v6842 = vsub.f32 0.0, %v6714
        %v6843 = vsub.f32 0.0, %v6715
        %v6844 = vsub.f32 0.0, %v6716
        %v6845 = vsub.f32 0.0, %v6717
        %v6846 = vsub.f32 0.0, %v6718
        %v6847 = vsub.f32 0.0, %v6719
        %v6848 = vsub.f32 0.0, %v6720
        %v6849 = vsub.f32 0.0, %v6721
        %v6850 = vsub.f32 0.0, %v6722
        %v6851 = vsub.f32 0.0, %v6723
        %v6852 = vsub.f32 0.0, %v6724
        %v6853 = vsub.f32 0.0, %v6725
        %v6854 = vsub.f32 0.0, %v6726
        %v6855 = vsub.f32 0.0, %v6727
        %v6856 = vsub.f32 0.0, %v6728
        %v6857 = vsub.f32 0.0, %v6729
        %v6858 = vsub.f32 0.0, %v6730
        %v6859 = vsub.f32 0.0, %v6731
        %v6860 = vsub.f32 0.0, %v6732
        %v6861 = vsub.f32 0.0, %v6733
        %v6862 = vsub.f32 0.0, %v6734
        %v6863 = vsub.f32 0.0, %v6735
        %v6864 = vsub.f32 0.0, %v6736
        %v6865 = vsub.f32 0.0, %v6737
        %v6866 = vsub.f32 0.0, %v6738
        %v6867 = vsub.f32 0.0, %v6739
        %v6868 = vsub.f32 0.0, %v6740
        %v6869 = vsub.f32 0.0, %v6741
        %v6870 = vsub.f32 0.0, %v6742
        %v6871 = vsub.f32 0.0, %v6743
        %v6872 = vsub.f32 0.0, %v6744
        %v6873 = vsub.f32 0.0, %v6745
        %v6874 = vsub.f32 0.0, %v6746
        %v6875 = vsub.f32 0.0, %v6747
        %v6876 = vsub.f32 0.0, %v6748
        %v6877 = vsub.f32 0.0, %v6749
        %v6878 = vsub.f32 0.0, %v6750
        %v6879 = vsub.f32 0.0, %v6751
        %v6880 = vsub.f32 0.0, %v6752
        %v6881 = vsub.f32 0.0, %v6753
        %v6882 = vsub.f32 0.0, %v6754
        %v6883 = vsub.f32 0.0, %v6755
        %v6884 = vsub.f32 0.0, %v6756
        %v6885 = vsub.f32 0.0, %v6757
        %v6886 = vsub.f32 0.0, %v6758
        %v6887 = vsub.f32 0.0, %v6759
        %v6888 = vsub.f32 0.0, %v6760
        %v6889 = vsub.f32 0.0, %v6761
        %v6890 = vsel %vm6762, %v6698, %v6826
        %v6891 = vsel %vm6763, %v6699, %v6827
        %v6892 = vsel %vm6764, %v6700, %v6828
        %v6893 = vsel %vm6765, %v6701, %v6829
        %v6894 = vsel %vm6766, %v6702, %v6830
        %v6895 = vsel %vm6767, %v6703, %v6831
        %v6896 = vsel %vm6768, %v6704, %v6832
        %v6897 = vsel %vm6769, %v6705, %v6833
        %v6898 = vsel %vm6770, %v6706, %v6834
        %v6899 = vsel %vm6771, %v6707, %v6835
        %v6900 = vsel %vm6772, %v6708, %v6836
        %v6901 = vsel %vm6773, %v6709, %v6837
        %v6902 = vsel %vm6774, %v6710, %v6838
        %v6903 = vsel %vm6775, %v6711, %v6839
        %v6904 = vsel %vm6776, %v6712, %v6840
        %v6905 = vsel %vm6777, %v6713, %v6841
        %v6906 = vsel %vm6778, %v6714, %v6842
        %v6907 = vsel %vm6779, %v6715, %v6843
        %v6908 = vsel %vm6780, %v6716, %v6844
        %v6909 = vsel %vm6781, %v6717, %v6845
        %v6910 = vsel %vm6782, %v6718, %v6846
        %v6911 = vsel %vm6783, %v6719, %v6847
        %v6912 = vsel %vm6784, %v6720, %v6848
        %v6913 = vsel %vm6785, %v6721, %v6849
        %v6914 = vsel %vm6786, %v6722, %v6850
        %v6915 = vsel %vm6787, %v6723, %v6851
        %v6916 = vsel %vm6788, %v6724, %v6852
        %v6917 = vsel %vm6789, %v6725, %v6853
        %v6918 = vsel %vm6790, %v6726, %v6854
        %v6919 = vsel %vm6791, %v6727, %v6855
        %v6920 = vsel %vm6792, %v6728, %v6856
        %v6921 = vsel %vm6793, %v6729, %v6857
        %v6922 = vsel %vm6794, %v6730, %v6858
        %v6923 = vsel %vm6795, %v6731, %v6859
        %v6924 = vsel %vm6796, %v6732, %v6860
        %v6925 = vsel %vm6797, %v6733, %v6861
        %v6926 = vsel %vm6798, %v6734, %v6862
        %v6927 = vsel %vm6799, %v6735, %v6863
        %v6928 = vsel %vm6800, %v6736, %v6864
        %v6929 = vsel %vm6801, %v6737, %v6865
        %v6930 = vsel %vm6802, %v6738, %v6866
        %v6931 = vsel %vm6803, %v6739, %v6867
        %v6932 = vsel %vm6804, %v6740, %v6868
        %v6933 = vsel %vm6805, %v6741, %v6869
        %v6934 = vsel %vm6806, %v6742, %v6870
        %v6935 = vsel %vm6807, %v6743, %v6871
        %v6936 = vsel %vm6808, %v6744, %v6872
        %v6937 = vsel %vm6809, %v6745, %v6873
        %v6938 = vsel %vm6810, %v6746, %v6874
        %v6939 = vsel %vm6811, %v6747, %v6875
        %v6940 = vsel %vm6812, %v6748, %v6876
        %v6941 = vsel %vm6813, %v6749, %v6877
        %v6942 = vsel %vm6814, %v6750, %v6878
        %v6943 = vsel %vm6815, %v6751, %v6879
        %v6944 = vsel %vm6816, %v6752, %v6880
        %v6945 = vsel %vm6817, %v6753, %v6881
        %v6946 = vsel %vm6818, %v6754, %v6882
        %v6947 = vsel %vm6819, %v6755, %v6883
        %v6948 = vsel %vm6820, %v6756, %v6884
        %v6949 = vsel %vm6821, %v6757, %v6885
        %v6950 = vsel %vm6822, %v6758, %v6886
        %v6951 = vsel %vm6823, %v6759, %v6887
        %v6952 = vsel %vm6824, %v6760, %v6888
        %v6953 = vsel %vm6825, %v6761, %v6889
        %v6954 = vmul.f32 %v5163, 0.5
        %v6955 = vmul.f32 %v5165, 0.5
        %v6956 = vmul.f32 %v5324, 0.5
        %v6957 = vmul.f32 %v5326, 0.5
        %v6958 = vmul.f32 %v5169, 0.5
        %v6959 = vmul.f32 %v5171, 0.5
        %v6960 = vmul.f32 %v5330, 0.5
        %v6961 = vmul.f32 %v5332, 0.5
        %v6962 = vmul.f32 %v5175, 0.5
        %v6963 = vmul.f32 %v5177, 0.5
        %v6964 = vmul.f32 %v5336, 0.5
        %v6965 = vmul.f32 %v5338, 0.5
        %v6966 = vmul.f32 %v5181, 0.5
        %v6967 = vmul.f32 %v5183, 0.5
        %v6968 = vmul.f32 %v5342, 0.5
        %v6969 = vmul.f32 %v5344, 0.5
        %v6970 = vmul.f32 %v5187, 0.5
        %v6971 = vmul.f32 %v5189, 0.5
        %v6972 = vmul.f32 %v5348, 0.5
        %v6973 = vmul.f32 %v5350, 0.5
        %v6974 = vmul.f32 %v5193, 0.5
        %v6975 = vmul.f32 %v5195, 0.5
        %v6976 = vmul.f32 %v5354, 0.5
        %v6977 = vmul.f32 %v5356, 0.5
        %v6978 = vmul.f32 %v5199, 0.5
        %v6979 = vmul.f32 %v5201, 0.5
        %v6980 = vmul.f32 %v5360, 0.5
        %v6981 = vmul.f32 %v5362, 0.5
        %v6982 = vmul.f32 %v5205, 0.5
        %v6983 = vmul.f32 %v5207, 0.5
        %v6984 = vmul.f32 %v5366, 0.5
        %v6985 = vmul.f32 %v5368, 0.5
        %v6986 = vmul.f32 %v5211, 0.5
        %v6987 = vmul.f32 %v5213, 0.5
        %v6988 = vmul.f32 %v5372, 0.5
        %v6989 = vmul.f32 %v5374, 0.5
        %v6990 = vmul.f32 %v5217, 0.5
        %v6991 = vmul.f32 %v5219, 0.5
        %v6992 = vmul.f32 %v5378, 0.5
        %v6993 = vmul.f32 %v5380, 0.5
        %v6994 = vmul.f32 %v5223, 0.5
        %v6995 = vmul.f32 %v5225, 0.5
        %v6996 = vmul.f32 %v5384, 0.5
        %v6997 = vmul.f32 %v5386, 0.5
        %v6998 = vmul.f32 %v5229, 0.5
        %v6999 = vmul.f32 %v5231, 0.5
        %v7000 = vmul.f32 %v5390, 0.5
        %v7001 = vmul.f32 %v5392, 0.5
        %v7002 = vmul.f32 %v5235, 0.5
        %v7003 = vmul.f32 %v5237, 0.5
        %v7004 = vmul.f32 %v5396, 0.5
        %v7005 = vmul.f32 %v5398, 0.5
        %v7006 = vmul.f32 %v5241, 0.5
        %v7007 = vmul.f32 %v5243, 0.5
        %v7008 = vmul.f32 %v5402, 0.5
        %v7009 = vmul.f32 %v5404, 0.5
        %v7010 = vmul.f32 %v5247, 0.5
        %v7011 = vmul.f32 %v5249, 0.5
        %v7012 = vmul.f32 %v5408, 0.5
        %v7013 = vmul.f32 %v5410, 0.5
        %v7014 = vmul.f32 %v5253, 0.5
        %v7015 = vmul.f32 %v5255, 0.5
        %v7016 = vmul.f32 %v5414, 0.5
        %v7017 = vmul.f32 %v5416, 0.5
        %v7018 = vadd.f32 %v6890, 1.0
        %v7019 = vadd.f32 %v6891, 1.0
        %v7020 = vadd.f32 %v6892, 1.0
        %v7021 = vadd.f32 %v6893, 1.0
        %v7022 = vadd.f32 %v6894, 1.0
        %v7023 = vadd.f32 %v6895, 1.0
        %v7024 = vadd.f32 %v6896, 1.0
        %v7025 = vadd.f32 %v6897, 1.0
        %v7026 = vadd.f32 %v6898, 1.0
        %v7027 = vadd.f32 %v6899, 1.0
        %v7028 = vadd.f32 %v6900, 1.0
        %v7029 = vadd.f32 %v6901, 1.0
        %v7030 = vadd.f32 %v6902, 1.0
        %v7031 = vadd.f32 %v6903, 1.0
        %v7032 = vadd.f32 %v6904, 1.0
        %v7033 = vadd.f32 %v6905, 1.0
        %v7034 = vadd.f32 %v6906, 1.0
        %v7035 = vadd.f32 %v6907, 1.0
        %v7036 = vadd.f32 %v6908, 1.0
        %v7037 = vadd.f32 %v6909, 1.0
        %v7038 = vadd.f32 %v6910, 1.0
        %v7039 = vadd.f32 %v6911, 1.0
        %v7040 = vadd.f32 %v6912, 1.0
        %v7041 = vadd.f32 %v6913, 1.0
        %v7042 = vadd.f32 %v6914, 1.0
        %v7043 = vadd.f32 %v6915, 1.0
        %v7044 = vadd.f32 %v6916, 1.0
        %v7045 = vadd.f32 %v6917, 1.0
        %v7046 = vadd.f32 %v6918, 1.0
        %v7047 = vadd.f32 %v6919, 1.0
        %v7048 = vadd.f32 %v6920, 1.0
        %v7049 = vadd.f32 %v6921, 1.0
        %v7050 = vadd.f32 %v6922, 1.0
        %v7051 = vadd.f32 %v6923, 1.0
        %v7052 = vadd.f32 %v6924, 1.0
        %v7053 = vadd.f32 %v6925, 1.0
        %v7054 = vadd.f32 %v6926, 1.0
        %v7055 = vadd.f32 %v6927, 1.0
        %v7056 = vadd.f32 %v6928, 1.0
        %v7057 = vadd.f32 %v6929, 1.0
        %v7058 = vadd.f32 %v6930, 1.0
        %v7059 = vadd.f32 %v6931, 1.0
        %v7060 = vadd.f32 %v6932, 1.0
        %v7061 = vadd.f32 %v6933, 1.0
        %v7062 = vadd.f32 %v6934, 1.0
        %v7063 = vadd.f32 %v6935, 1.0
        %v7064 = vadd.f32 %v6936, 1.0
        %v7065 = vadd.f32 %v6937, 1.0
        %v7066 = vadd.f32 %v6938, 1.0
        %v7067 = vadd.f32 %v6939, 1.0
        %v7068 = vadd.f32 %v6940, 1.0
        %v7069 = vadd.f32 %v6941, 1.0
        %v7070 = vadd.f32 %v6942, 1.0
        %v7071 = vadd.f32 %v6943, 1.0
        %v7072 = vadd.f32 %v6944, 1.0
        %v7073 = vadd.f32 %v6945, 1.0
        %v7074 = vadd.f32 %v6946, 1.0
        %v7075 = vadd.f32 %v6947, 1.0
        %v7076 = vadd.f32 %v6948, 1.0
        %v7077 = vadd.f32 %v6949, 1.0
        %v7078 = vadd.f32 %v6950, 1.0
        %v7079 = vadd.f32 %v6951, 1.0
        %v7080 = vadd.f32 %v6952, 1.0
        %v7081 = vadd.f32 %v6953, 1.0
        %v7082 = vmul.f32 %v6954, %v7018
        %v7083 = vmul.f32 %v6955, %v7019
        %v7084 = vmul.f32 %v6956, %v7020
        %v7085 = vmul.f32 %v6957, %v7021
        %v7086 = vmul.f32 %v6958, %v7022
        %v7087 = vmul.f32 %v6959, %v7023
        %v7088 = vmul.f32 %v6960, %v7024
        %v7089 = vmul.f32 %v6961, %v7025
        %v7090 = vmul.f32 %v6962, %v7026
        %v7091 = vmul.f32 %v6963, %v7027
        %v7092 = vmul.f32 %v6964, %v7028
        %v7093 = vmul.f32 %v6965, %v7029
        %v7094 = vmul.f32 %v6966, %v7030
        %v7095 = vmul.f32 %v6967, %v7031
        %v7096 = vmul.f32 %v6968, %v7032
        %v7097 = vmul.f32 %v6969, %v7033
        %v7098 = vmul.f32 %v6970, %v7034
        %v7099 = vmul.f32 %v6971, %v7035
        %v7100 = vmul.f32 %v6972, %v7036
        %v7101 = vmul.f32 %v6973, %v7037
        %v7102 = vmul.f32 %v6974, %v7038
        %v7103 = vmul.f32 %v6975, %v7039
        %v7104 = vmul.f32 %v6976, %v7040
        %v7105 = vmul.f32 %v6977, %v7041
        %v7106 = vmul.f32 %v6978, %v7042
        %v7107 = vmul.f32 %v6979, %v7043
        %v7108 = vmul.f32 %v6980, %v7044
        %v7109 = vmul.f32 %v6981, %v7045
        %v7110 = vmul.f32 %v6982, %v7046
        %v7111 = vmul.f32 %v6983, %v7047
        %v7112 = vmul.f32 %v6984, %v7048
        %v7113 = vmul.f32 %v6985, %v7049
        %v7114 = vmul.f32 %v6986, %v7050
        %v7115 = vmul.f32 %v6987, %v7051
        %v7116 = vmul.f32 %v6988, %v7052
        %v7117 = vmul.f32 %v6989, %v7053
        %v7118 = vmul.f32 %v6990, %v7054
        %v7119 = vmul.f32 %v6991, %v7055
        %v7120 = vmul.f32 %v6992, %v7056
        %v7121 = vmul.f32 %v6993, %v7057
        %v7122 = vmul.f32 %v6994, %v7058
        %v7123 = vmul.f32 %v6995, %v7059
        %v7124 = vmul.f32 %v6996, %v7060
        %v7125 = vmul.f32 %v6997, %v7061
        %v7126 = vmul.f32 %v6998, %v7062
        %v7127 = vmul.f32 %v6999, %v7063
        %v7128 = vmul.f32 %v7000, %v7064
        %v7129 = vmul.f32 %v7001, %v7065
        %v7130 = vmul.f32 %v7002, %v7066
        %v7131 = vmul.f32 %v7003, %v7067
        %v7132 = vmul.f32 %v7004, %v7068
        %v7133 = vmul.f32 %v7005, %v7069
        %v7134 = vmul.f32 %v7006, %v7070
        %v7135 = vmul.f32 %v7007, %v7071
        %v7136 = vmul.f32 %v7008, %v7072
        %v7137 = vmul.f32 %v7009, %v7073
        %v7138 = vmul.f32 %v7010, %v7074
        %v7139 = vmul.f32 %v7011, %v7075
        %v7140 = vmul.f32 %v7012, %v7076
        %v7141 = vmul.f32 %v7013, %v7077
        %v7142 = vmul.f32 %v7014, %v7078
        %v7143 = vmul.f32 %v7015, %v7079
        %v7144 = vmul.f32 %v7016, %v7080
        %v7145 = vmul.f32 %v7017, %v7081
        %v7146 = vld [vmem:[%s762] sm:$0xff]
        %v7147 = vld [vmem:[%s762 + $0x8] sm:$0xff]
        %v7148 = vld [vmem:[%s762 + $0x10] sm:$0xff]
        %v7149 = vld [vmem:[%s762 + $0x18] sm:$0xff]
        %v7150 = vld [vmem:[%s762 + $0x20] sm:$0xff]
        %v7151 = vld [vmem:[%s762 + $0x28] sm:$0xff]
        %v7152 = vld [vmem:[%s762 + $0x30] sm:$0xff]
        %v7153 = vld [vmem:[%s762 + $0x38] sm:$0xff]
        %v7154 = vld [vmem:[%s762 + $0x40] sm:$0xff]
        %v7155 = vld [vmem:[%s762 + $0x48] sm:$0xff]
        %v7156 = vld [vmem:[%s762 + $0x50] sm:$0xff]
        %v7157 = vld [vmem:[%s762 + $0x58] sm:$0xff]
        %v7158 = vld [vmem:[%s762 + $0x60] sm:$0xff]
        %v7159 = vld [vmem:[%s762 + $0x68] sm:$0xff]
        %v7160 = vld [vmem:[%s762 + $0x70] sm:$0xff]
        %v7161 = vld [vmem:[%s762 + $0x78] sm:$0xff]
        %v7162 = vld [vmem:[%s762 + $0x80] sm:$0xff]
        %v7163 = vld [vmem:[%s762 + $0x88] sm:$0xff]
        %v7164 = vld [vmem:[%s762 + $0x90] sm:$0xff]
        %v7165 = vld [vmem:[%s762 + $0x98] sm:$0xff]
        %v7166 = vld [vmem:[%s762 + $0xa0] sm:$0xff]
        %v7167 = vld [vmem:[%s762 + $0xa8] sm:$0xff]
        %v7168 = vld [vmem:[%s762 + $0xb0] sm:$0xff]
        %v7169 = vld [vmem:[%s762 + $0xb8] sm:$0xff]
        %v7170 = vld [vmem:[%s762 + $0xc0] sm:$0xff]
        %v7171 = vld [vmem:[%s762 + $0xc8] sm:$0xff]
        %v7172 = vld [vmem:[%s762 + $0xd0] sm:$0xff]
        %v7173 = vld [vmem:[%s762 + $0xd8] sm:$0xff]
        %v7174 = vld [vmem:[%s762 + $0xe0] sm:$0xff]
        %v7175 = vld [vmem:[%s762 + $0xe8] sm:$0xff]
        %v7176 = vld [vmem:[%s762 + $0xf0] sm:$0xff]
        %v7177 = vld [vmem:[%s762 + $0xf8] sm:$0xff]
        %v7178 = vld [vmem:[%s762 + $0x100] sm:$0xff]
        %v7179 = vld [vmem:[%s762 + $0x108] sm:$0xff]
        %v7180 = vld [vmem:[%s762 + $0x110] sm:$0xff]
        %v7181 = vld [vmem:[%s762 + $0x118] sm:$0xff]
        %v7182 = vld [vmem:[%s762 + $0x120] sm:$0xff]
        %v7183 = vld [vmem:[%s762 + $0x128] sm:$0xff]
        %v7184 = vld [vmem:[%s762 + $0x130] sm:$0xff]
        %v7185 = vld [vmem:[%s762 + $0x138] sm:$0xff]
        %v7186 = vld [vmem:[%s762 + $0x140] sm:$0xff]
        %v7187 = vld [vmem:[%s762 + $0x148] sm:$0xff]
        %v7188 = vld [vmem:[%s762 + $0x150] sm:$0xff]
        %v7189 = vld [vmem:[%s762 + $0x158] sm:$0xff]
        %v7190 = vld [vmem:[%s762 + $0x160] sm:$0xff]
        %v7191 = vld [vmem:[%s762 + $0x168] sm:$0xff]
        %v7192 = vld [vmem:[%s762 + $0x170] sm:$0xff]
        %v7193 = vld [vmem:[%s762 + $0x178] sm:$0xff]
        %v7194 = vld [vmem:[%s762 + $0x180] sm:$0xff]
        %v7195 = vld [vmem:[%s762 + $0x188] sm:$0xff]
        %v7196 = vld [vmem:[%s762 + $0x190] sm:$0xff]
        %v7197 = vld [vmem:[%s762 + $0x198] sm:$0xff]
        %v7198 = vld [vmem:[%s762 + $0x1a0] sm:$0xff]
        %v7199 = vld [vmem:[%s762 + $0x1a8] sm:$0xff]
        %v7200 = vld [vmem:[%s762 + $0x1b0] sm:$0xff]
        %v7201 = vld [vmem:[%s762 + $0x1b8] sm:$0xff]
        %v7202 = vld [vmem:[%s762 + $0x1c0] sm:$0xff]
        %v7203 = vld [vmem:[%s762 + $0x1c8] sm:$0xff]
        %v7204 = vld [vmem:[%s762 + $0x1d0] sm:$0xff]
        %v7205 = vld [vmem:[%s762 + $0x1d8] sm:$0xff]
        %v7206 = vld [vmem:[%s762 + $0x1e0] sm:$0xff]
        %v7207 = vld [vmem:[%s762 + $0x1e8] sm:$0xff]
        %v7208 = vld [vmem:[%s762 + $0x1f0] sm:$0xff]
        %v7209 = vld [vmem:[%s762 + $0x1f8] sm:$0xff]
        %v7210 = vld [vmem:[%s887] sm:$0x1]
        %v7212 = vlaneseq
        %v7213 = vshrl.u32 %v7212, 7
        %v7214 = vsub.s32 0, %v7213
        %v7215 = vrot.slane %v7210, %v7214
        %7217 = vmatprep.subr.mxu0 0.0
        %7218 = vmatpush1.msra.mxu0 %v7146
        %7219 = vmatprep.subr.mxu0 0.0
        %7220 = vmatpush1.msra.mxu0 %v7147
        %7221 = vmatprep.subr.mxu0 0.0
        %7222 = vmatpush1.msra.mxu0 %v7148
        %7223 = vmatprep.subr.mxu0 0.0
        %7224 = vmatpush1.msra.mxu0 %v7149
        %7225 = vmatprep.subr.mxu0 0.0
        %7226 = vmatpush1.msra.mxu0 %v7150
        %7227 = vmatprep.subr.mxu0 0.0
        %7228 = vmatpush1.msra.mxu0 %v7151
        %7229 = vmatprep.subr.mxu0 0.0
        %7230 = vmatpush1.msra.mxu0 %v7152
        %7231 = vmatprep.subr.mxu0 0.0
        %7232 = vmatpush1.msra.mxu0 %v7153
        %7233 = vmatprep.subr.mxu0 0.0
        %7234 = vmatpush1.msra.mxu0 %v7154
        %7235 = vmatprep.subr.mxu0 0.0
        %7236 = vmatpush1.msra.mxu0 %v7155
        %7237 = vmatprep.subr.mxu0 0.0
        %7238 = vmatpush1.msra.mxu0 %v7156
        %7239 = vmatprep.subr.mxu0 0.0
        %7240 = vmatpush1.msra.mxu0 %v7157
        %7241 = vmatprep.subr.mxu0 0.0
        %7242 = vmatpush1.msra.mxu0 %v7158
        %7243 = vmatprep.subr.mxu0 0.0
        %7244 = vmatpush1.msra.mxu0 %v7159
        %7245 = vmatprep.subr.mxu0 0.0
        %7246 = vmatpush1.msra.mxu0 %v7160
        %7247 = vmatprep.subr.mxu0 0.0
        %7248 = vmatpush1.msra.mxu0 %v7161
        %7249 = vmatprep.subr.mxu0 0.0
        %7250 = vmatpush1.msra.mxu0 %v7162
        %7251 = vmatprep.subr.mxu0 0.0
        %7252 = vmatpush1.msra.mxu0 %v7163
        %7253 = vmatprep.subr.mxu0 0.0
        %7254 = vmatpush1.msra.mxu0 %v7164
        %7255 = vmatprep.subr.mxu0 0.0
        %7256 = vmatpush1.msra.mxu0 %v7165
        %7257 = vmatprep.subr.mxu0 0.0
        %7258 = vmatpush1.msra.mxu0 %v7166
        %7259 = vmatprep.subr.mxu0 0.0
        %7260 = vmatpush1.msra.mxu0 %v7167
        %7261 = vmatprep.subr.mxu0 0.0
        %7262 = vmatpush1.msra.mxu0 %v7168
        %7263 = vmatprep.subr.mxu0 0.0
        %7264 = vmatpush1.msra.mxu0 %v7169
        %7265 = vmatprep.subr.mxu0 0.0
        %7266 = vmatpush1.msra.mxu0 %v7170
        %7267 = vmatprep.subr.mxu0 0.0
        %7268 = vmatpush1.msra.mxu0 %v7171
        %7269 = vmatprep.subr.mxu0 0.0
        %7270 = vmatpush1.msra.mxu0 %v7172
        %7271 = vmatprep.subr.mxu0 0.0
        %7272 = vmatpush1.msra.mxu0 %v7173
        %7273 = vmatprep.subr.mxu0 0.0
        %7274 = vmatpush1.msra.mxu0 %v7174
        %7275 = vmatprep.subr.mxu0 0.0
        %7276 = vmatpush1.msra.mxu0 %v7175
        %7277 = vmatprep.subr.mxu0 0.0
        %7278 = vmatpush1.msra.mxu0 %v7176
        %7279 = vmatprep.subr.mxu0 0.0
        %7280 = vmatpush1.msra.mxu0 %v7177
        %7281 = vmatprep.mubr.f32.mxu0 %v7083
        %7282 = vmatmul.mubr.f32.gmra.mrb[0].mxu0 %v7082
        %v7283 = vpop.f32.mrb[0].mxu0
        %v7284 = vadd.f32 %v7215, %v7283
        %v7285 = vpop.f32.mrb[0].mxu0
        %7286 = vmatprep.mubr.f32.mxu0 %v7087
        %7287 = vmatmul.mubr.f32.gmra.mrb[0].mxu0 %v7086
        %v7288 = vpop.f32.mrb[0].mxu0
        %v7289 = vadd.f32 %v7215, %v7288
        %v7290 = vpop.f32.mrb[0].mxu0
        %7291 = vmatprep.mubr.f32.mxu0 %v7091
        %7292 = vmatmul.mubr.f32.gmra.mrb[0].mxu0 %v7090
        %v7293 = vpop.f32.mrb[0].mxu0
        %v7294 = vadd.f32 %v7215, %v7293
        %v7295 = vpop.f32.mrb[0].mxu0
        %7296 = vmatprep.mubr.f32.mxu0 %v7095
        %7297 = vmatmul.mubr.f32.gmra.mrb[0].mxu0 %v7094
        %v7298 = vpop.f32.mrb[0].mxu0
        %v7299 = vadd.f32 %v7215, %v7298
        %v7300 = vpop.f32.mrb[0].mxu0
        %7301 = vmatprep.mubr.f32.mxu0 %v7099
        %7302 = vmatmul.mubr.f32.gmra.mrb[0].mxu0 %v7098
        %v7303 = vpop.f32.mrb[0].mxu0
        %v7304 = vadd.f32 %v7215, %v7303
        %v7305 = vpop.f32.mrb[0].mxu0
        %7306 = vmatprep.mubr.f32.mxu0 %v7103
        %7307 = vmatmul.mubr.f32.gmra.mrb[0].mxu0 %v7102
        %v7308 = vpop.f32.mrb[0].mxu0
        %v7309 = vadd.f32 %v7215, %v7308
        %v7310 = vpop.f32.mrb[0].mxu0
        %7311 = vmatprep.mubr.f32.mxu0 %v7107
        %7312 = vmatmul.mubr.f32.gmra.mrb[0].mxu0 %v7106
        %v7313 = vpop.f32.mrb[0].mxu0
        %v7314 = vadd.f32 %v7215, %v7313
        %v7315 = vpop.f32.mrb[0].mxu0
        %7316 = vmatprep.mubr.f32.mxu0 %v7111
        %7317 = vmatmul.mubr.f32.gmra.mrb[0].mxu0 %v7110
        %v7318 = vpop.f32.mrb[0].mxu0
        %v7319 = vadd.f32 %v7215, %v7318
        %v7320 = vpop.f32.mrb[0].mxu0
        %7321 = vmatprep.mubr.f32.mxu0 %v7115
        %7322 = vmatmul.mubr.f32.gmra.mrb[0].mxu0 %v7114
        %v7323 = vpop.f32.mrb[0].mxu0
        %v7324 = vadd.f32 %v7215, %v7323
        %v7325 = vpop.f32.mrb[0].mxu0
        %7326 = vmatprep.mubr.f32.mxu0 %v7119
        %7327 = vmatmul.mubr.f32.gmra.mrb[0].mxu0 %v7118
        %v7328 = vpop.f32.mrb[0].mxu0
        %v7329 = vadd.f32 %v7215, %v7328
        %v7330 = vpop.f32.mrb[0].mxu0
        %7331 = vmatprep.mubr.f32.mxu0 %v7123
        %7332 = vmatmul.mubr.f32.gmra.mrb[0].mxu0 %v7122
        %v7333 = vpop.f32.mrb[0].mxu0
        %v7334 = vadd.f32 %v7215, %v7333
        %v7335 = vpop.f32.mrb[0].mxu0
        %7336 = vmatprep.mubr.f32.mxu0 %v7127
        %7337 = vmatmul.mubr.f32.gmra.mrb[0].mxu0 %v7126
        %v7338 = vpop.f32.mrb[0].mxu0
        %v7339 = vadd.f32 %v7215, %v7338
        %v7340 = vpop.f32.mrb[0].mxu0
        %7341 = vmatprep.mubr.f32.mxu0 %v7131
        %7342 = vmatmul.mubr.f32.gmra.mrb[0].mxu0 %v7130
        %v7343 = vpop.f32.mrb[0].mxu0
        %v7344 = vadd.f32 %v7215, %v7343
        %v7345 = vpop.f32.mrb[0].mxu0
        %7346 = vmatprep.mubr.f32.mxu0 %v7135
        %7347 = vmatmul.mubr.f32.gmra.mrb[0].mxu0 %v7134
        %v7348 = vpop.f32.mrb[0].mxu0
        %v7349 = vadd.f32 %v7215, %v7348
        %v7350 = vpop.f32.mrb[0].mxu0
        %7351 = vmatprep.mubr.f32.mxu0 %v7139
        %7352 = vmatmul.mubr.f32.gmra.mrb[0].mxu0 %v7138
        %v7353 = vpop.f32.mrb[0].mxu0
        %v7354 = vadd.f32 %v7215, %v7353
        %v7355 = vpop.f32.mrb[0].mxu0
        %7356 = vmatprep.mubr.f32.mxu0 %v7143
        %7357 = vmatmul.mubr.f32.gmra.mrb[0].mxu0 %v7142
        %v7358 = vpop.f32.mrb[0].mxu0
        %v7359 = vadd.f32 %v7215, %v7358
        %v7360 = vpop.f32.mrb[0].mxu0
        %7361 = vdwg.mxu0
        %7362 = vmatprep.subr.mxu0 0.0
        %7363 = vmatpush1.msra.mxu0 %v7178
        %7364 = vmatprep.subr.mxu0 0.0
        %7365 = vmatpush1.msra.mxu0 %v7179
        %7366 = vmatprep.subr.mxu0 0.0
        %7367 = vmatpush1.msra.mxu0 %v7180
        %7368 = vmatprep.subr.mxu0 0.0
        %7369 = vmatpush1.msra.mxu0 %v7181
        %7370 = vmatprep.subr.mxu0 0.0
        %7371 = vmatpush1.msra.mxu0 %v7182
        %7372 = vmatprep.subr.mxu0 0.0
        %7373 = vmatpush1.msra.mxu0 %v7183
        %7374 = vmatprep.subr.mxu0 0.0
        %7375 = vmatpush1.msra.mxu0 %v7184
        %7376 = vmatprep.subr.mxu0 0.0
        %7377 = vmatpush1.msra.mxu0 %v7185
        %7378 = vmatprep.subr.mxu0 0.0
        %7379 = vmatpush1.msra.mxu0 %v7186
        %7380 = vmatprep.subr.mxu0 0.0
        %7381 = vmatpush1.msra.mxu0 %v7187
        %7382 = vmatprep.subr.mxu0 0.0
        %7383 = vmatpush1.msra.mxu0 %v7188
        %7384 = vmatprep.subr.mxu0 0.0
        %7385 = vmatpush1.msra.mxu0 %v7189
        %7386 = vmatprep.subr.mxu0 0.0
        %7387 = vmatpush1.msra.mxu0 %v7190
        %7388 = vmatprep.subr.mxu0 0.0
        %7389 = vmatpush1.msra.mxu0 %v7191
        %7390 = vmatprep.subr.mxu0 0.0
        %7391 = vmatpush1.msra.mxu0 %v7192
        %7392 = vmatprep.subr.mxu0 0.0
        %7393 = vmatpush1.msra.mxu0 %v7193
        %7394 = vmatprep.subr.mxu0 0.0
        %7395 = vmatpush1.msra.mxu0 %v7194
        %7396 = vmatprep.subr.mxu0 0.0
        %7397 = vmatpush1.msra.mxu0 %v7195
        %7398 = vmatprep.subr.mxu0 0.0
        %7399 = vmatpush1.msra.mxu0 %v7196
        %7400 = vmatprep.subr.mxu0 0.0
        %7401 = vmatpush1.msra.mxu0 %v7197
        %7402 = vmatprep.subr.mxu0 0.0
        %7403 = vmatpush1.msra.mxu0 %v7198
        %7404 = vmatprep.subr.mxu0 0.0
        %7405 = vmatpush1.msra.mxu0 %v7199
        %7406 = vmatprep.subr.mxu0 0.0
        %7407 = vmatpush1.msra.mxu0 %v7200
        %7408 = vmatprep.subr.mxu0 0.0
        %7409 = vmatpush1.msra.mxu0 %v7201
        %7410 = vmatprep.subr.mxu0 0.0
        %7411 = vmatpush1.msra.mxu0 %v7202
        %7412 = vmatprep.subr.mxu0 0.0
        %7413 = vmatpush1.msra.mxu0 %v7203
        %7414 = vmatprep.subr.mxu0 0.0
        %7415 = vmatpush1.msra.mxu0 %v7204
        %7416 = vmatprep.subr.mxu0 0.0
        %7417 = vmatpush1.msra.mxu0 %v7205
        %7418 = vmatprep.subr.mxu0 0.0
        %7419 = vmatpush1.msra.mxu0 %v7206
        %7420 = vmatprep.subr.mxu0 0.0
        %7421 = vmatpush1.msra.mxu0 %v7207
        %7422 = vmatprep.subr.mxu0 0.0
        %7423 = vmatpush1.msra.mxu0 %v7208
        %7424 = vmatprep.subr.mxu0 0.0
        %7425 = vmatpush1.msra.mxu0 %v7209
        %7426 = vmatprep.mubr.f32.mxu0 %v7085
        %7427 = vmatmul.mubr.f32.gmra.mrb[0].mxu0 %v7084
        %v7428 = vpop.f32.mrb[0].mxu0
        %v7429 = vadd.f32 %v7284, %v7428
        %v7430 = vpop.f32.mrb[0].mxu0
        %7431 = vmatprep.mubr.f32.mxu0 %v7089
        %7432 = vmatmul.mubr.f32.gmra.mrb[0].mxu0 %v7088
        %v7433 = vpop.f32.mrb[0].mxu0
        %v7434 = vadd.f32 %v7289, %v7433
        %v7435 = vpop.f32.mrb[0].mxu0
        %7436 = vmatprep.mubr.f32.mxu0 %v7093
        %7437 = vmatmul.mubr.f32.gmra.mrb[0].mxu0 %v7092
        %v7438 = vpop.f32.mrb[0].mxu0
        %v7439 = vadd.f32 %v7294, %v7438
        %v7440 = vpop.f32.mrb[0].mxu0
        %7441 = vmatprep.mubr.f32.mxu0 %v7097
        %7442 = vmatmul.mubr.f32.gmra.mrb[0].mxu0 %v7096
        %v7443 = vpop.f32.mrb[0].mxu0
        %v7444 = vadd.f32 %v7299, %v7443
        %v7445 = vpop.f32.mrb[0].mxu0
        %7446 = vmatprep.mubr.f32.mxu0 %v7101
        %7447 = vmatmul.mubr.f32.gmra.mrb[0].mxu0 %v7100
        %v7448 = vpop.f32.mrb[0].mxu0
        %v7449 = vadd.f32 %v7304, %v7448
        %v7450 = vpop.f32.mrb[0].mxu0
        %7451 = vmatprep.mubr.f32.mxu0 %v7105
        %7452 = vmatmul.mubr.f32.gmra.mrb[0].mxu0 %v7104
        %v7453 = vpop.f32.mrb[0].mxu0
        %v7454 = vadd.f32 %v7309, %v7453
        %v7455 = vpop.f32.mrb[0].mxu0
        %7456 = vmatprep.mubr.f32.mxu0 %v7109
        %7457 = vmatmul.mubr.f32.gmra.mrb[0].mxu0 %v7108
        %v7458 = vpop.f32.mrb[0].mxu0
        %v7459 = vadd.f32 %v7314, %v7458
        %v7460 = vpop.f32.mrb[0].mxu0
        %7461 = vmatprep.mubr.f32.mxu0 %v7113
        %7462 = vmatmul.mubr.f32.gmra.mrb[0].mxu0 %v7112
        %v7463 = vpop.f32.mrb[0].mxu0
        %v7464 = vadd.f32 %v7319, %v7463
        %v7465 = vpop.f32.mrb[0].mxu0
        %7466 = vmatprep.mubr.f32.mxu0 %v7117
        %7467 = vmatmul.mubr.f32.gmra.mrb[0].mxu0 %v7116
        %v7468 = vpop.f32.mrb[0].mxu0
        %v7469 = vadd.f32 %v7324, %v7468
        %v7470 = vpop.f32.mrb[0].mxu0
        %7471 = vmatprep.mubr.f32.mxu0 %v7121
        %7472 = vmatmul.mubr.f32.gmra.mrb[0].mxu0 %v7120
        %v7473 = vpop.f32.mrb[0].mxu0
        %v7474 = vadd.f32 %v7329, %v7473
        %v7475 = vpop.f32.mrb[0].mxu0
        %7476 = vmatprep.mubr.f32.mxu0 %v7125
        %7477 = vmatmul.mubr.f32.gmra.mrb[0].mxu0 %v7124
        %v7478 = vpop.f32.mrb[0].mxu0
        %v7479 = vadd.f32 %v7334, %v7478
        %v7480 = vpop.f32.mrb[0].mxu0
        %7481 = vmatprep.mubr.f32.mxu0 %v7129
        %7482 = vmatmul.mubr.f32.gmra.mrb[0].mxu0 %v7128
        %v7483 = vpop.f32.mrb[0].mxu0
        %v7484 = vadd.f32 %v7339, %v7483
        %v7485 = vpop.f32.mrb[0].mxu0
        %7486 = vmatprep.mubr.f32.mxu0 %v7133
        %7487 = vmatmul.mubr.f32.gmra.mrb[0].mxu0 %v7132
        %v7488 = vpop.f32.mrb[0].mxu0
        %v7489 = vadd.f32 %v7344, %v7488
        %v7490 = vpop.f32.mrb[0].mxu0
        %7491 = vmatprep.mubr.f32.mxu0 %v7137
        %7492 = vmatmul.mubr.f32.gmra.mrb[0].mxu0 %v7136
        %v7493 = vpop.f32.mrb[0].mxu0
        %v7494 = vadd.f32 %v7349, %v7493
        %v7495 = vpop.f32.mrb[0].mxu0
        %7496 = vmatprep.mubr.f32.mxu0 %v7141
        %7497 = vmatmul.mubr.f32.gmra.mrb[0].mxu0 %v7140
        %v7498 = vpop.f32.mrb[0].mxu0
        %v7499 = vadd.f32 %v7354, %v7498
        %v7500 = vpop.f32.mrb[0].mxu0
        %7501 = vmatprep.mubr.f32.mxu0 %v7145
        %7502 = vmatmul.mubr.f32.gmra.mrb[0].mxu0 %v7144
        %v7503 = vpop.f32.mrb[0].mxu0
        %v7504 = vadd.f32 %v7359, %v7503
        %v7505 = vpop.f32.mrb[0].mxu0
        %7506 = vdwg.mxu0
        %v7507 = vadd.f32 %v4772, %v7429
        %v7508 = vadd.f32 %v4773, %v7434
        %v7509 = vadd.f32 %v4774, %v7439
        %v7510 = vadd.f32 %v4775, %v7444
        %v7511 = vadd.f32 %v4776, %v7449
        %v7512 = vadd.f32 %v4777, %v7454
        %v7513 = vadd.f32 %v4778, %v7459
        %v7514 = vadd.f32 %v4779, %v7464
        %v7515 = vadd.f32 %v4780, %v7469
        %v7516 = vadd.f32 %v4781, %v7474
        %v7517 = vadd.f32 %v4782, %v7479
        %v7518 = vadd.f32 %v4783, %v7484
        %v7519 = vadd.f32 %v4784, %v7489
        %v7520 = vadd.f32 %v4785, %v7494
        %v7521 = vadd.f32 %v4786, %v7499
        %v7522 = vadd.f32 %v4787, %v7504
        %7523 = vst [vmem:[%s864] sm:$0xff] %v7507
        %7524 = vst [vmem:[%s864 + $0x8] sm:$0xff] %v7508
        %7525 = vst [vmem:[%s864 + $0x10] sm:$0xff] %v7509
        %7526 = vst [vmem:[%s864 + $0x18] sm:$0xff] %v7510
        %7527 = vst [vmem:[%s864 + $0x20] sm:$0xff] %v7511
        %7528 = vst [vmem:[%s864 + $0x28] sm:$0xff] %v7512
        %7529 = vst [vmem:[%s864 + $0x30] sm:$0xff] %v7513
        %7530 = vst [vmem:[%s864 + $0x38] sm:$0xff] %v7514
        %7531 = vst [vmem:[%s864 + $0x40] sm:$0xff] %v7515
        %7532 = vst [vmem:[%s864 + $0x48] sm:$0xff] %v7516
        %7533 = vst [vmem:[%s864 + $0x50] sm:$0xff] %v7517
        %7534 = vst [vmem:[%s864 + $0x58] sm:$0xff] %v7518
        %7535 = vst [vmem:[%s864 + $0x60] sm:$0xff] %v7519
        %7536 = vst [vmem:[%s864 + $0x68] sm:$0xff] %v7520
        %7537 = vst [vmem:[%s864 + $0x70] sm:$0xff] %v7521
        %7538 = vst [vmem:[%s864 + $0x78] sm:$0xff] %v7522
        %s7539 = sand.u32 %s454, 1
        %s7540 = scalar_lea.sflag [#allocation4], %s7539
        %s7541 = sand.u32 %s454, 1
        %s7542 = smul.addr %s7541, 128
        %s7543 = scalar_lea.vmem [#allocation16], %s7542
        // Predicated region
        $region117: #{tpu_custom_call.1} parent=79 // pred_check
          %p7544 = pneg %p464
        $region118: #{tpu_custom_call.1} parent=79 // pred_check_branch
          %7546 = sbr.rel (%p7544) target = $region120
        $region119: #{tpu_custom_call.1} parent=79 // pred_region
          %s7548 = ssub.s32 2048, 2048
          %7549 = vsyncadd %s7540, %s7548
          %s7550 = smul.addr %s48, 16
          %s7551 = smul.addr %s7550, 128
          %s7552 = scalar_lea.hbm %s15, %s7551
          %s7553 = sshll.u32 %s7543, 4
          %s7554 = int_to_ptr.vmem [resolvable:$true] %s7553
          %7559 = dma.vmem_to_hbm [thread:$0]  %s7554, 2048, %s7552, %s7540, 128, 128, 8
        $region120: #{tpu_custom_call.1} parent=79 // pred_fallthru
          _
      $region80: #{tpu_custom_call.1} parent=5 // pred_fallthru
        _
      %p7560 = scmp.le.s32.totalorder 2, %s39
      // Predicated region
      $region121: #{tpu_custom_call.1} parent=5 // pred_check
        %p7561 = pneg %p7560
      $region122: #{tpu_custom_call.1} parent=5 // pred_check_branch
        %7563 = sbr.rel (%p7561) target = $region124
      $region123: #{tpu_custom_call.1} parent=5 // pred_region
        %s7564 = ssub.s32 %s39, 2
        // Predicated region
        $region125: #{tpu_custom_call.1} parent=123 // pred_check
          %p7565 = pneg %p470
        $region126: #{tpu_custom_call.1} parent=123 // pred_check_branch
          %7567 = sbr.rel (%p7565) target = $region128
        $region127: #{tpu_custom_call.1} parent=123 // pred_region
          %s7568 = sand.u32 %s455, 1
          %s7569 = scalar_lea.sflag [#allocation4], %s7568
          %s7570 = sand.u32 %s455, 1
          %s7571 = smul.addr %s7570, 128
          %s7572 = scalar_lea.vmem [#allocation16], %s7571
          %7573 = dma.done %s7569, 2048
        $region128: #{tpu_custom_call.1} parent=123 // pred_fallthru
          _
      $region124: #{tpu_custom_call.1} parent=5 // pred_fallthru
        _
    $region6: #{tpu_custom_call.1} parent=1 // loop_footer
      %s43 = sadd.s32 1, %s39
    $region7: #{tpu_custom_call.1} parent=1 // loop_footer_branch
      %38 = sbr.rel target = $region3
    $region8: #{tpu_custom_call.1} parent=1 // loop_exit
      _
    %7574 = vsyncpa [#allocation3], 1
    %s7575 = scalar_lea.sflag [#allocation3], 1
    %7576 = vsyncpa %s7575, 1
    %7577 = vsyncpa [#allocation6], 1
    %s7578 = scalar_lea.sflag [#allocation6], 1
    %7579 = vsyncpa %s7578, 1
    %7580 = vsyncpa [#allocation9], 1
    %s7581 = scalar_lea.sflag [#allocation9], 1
    %7582 = vsyncpa %s7581, 1
    %7583 = vsyncpa [#allocation12], 1
    %s7584 = scalar_lea.sflag [#allocation12], 1
    %7585 = vsyncpa %s7584, 1
    %7586 = vsyncpa [#allocation15], 1
    %s7587 = scalar_lea.sflag [#allocation15], 1
    %7588 = vsyncpa %s7587, 1
    %7589 = vsyncpa [#allocation4], 1
    %s7590 = scalar_lea.sflag [#allocation4], 1
    %7591 = vsyncpa %s7590, 1

</llo_original>
